<compile_context>
chip_gen: v5e
topology: v5e:2x2
jax: 0.10.0
libtpu: 0.0.40
codegen_flags: <defaults>
</compile_context>

<pallas_src>
import functools
import math

import jax
import jax.numpy as jnp
from jax.experimental import pallas as pl
from jax.experimental.pallas import tpu as pltpu

LN_EPS = 1e-5


def _round_up(x, m):
    return (x + m - 1) // m * m


# ---------------------------------------------------------------------------
# In-kernel helpers (operate on register values inside the fused layer kernels)
# ---------------------------------------------------------------------------
def _layernorm(z, g, b, eps=LN_EPS):
    mu = jnp.mean(z, axis=-1, keepdims=True)
    var = jnp.mean(jnp.square(z - mu), axis=-1, keepdims=True)
    return (z - mu) * jax.lax.rsqrt(var + eps) * g + b


def _mha_add_ln(q_in, kv_in, residual, wq, wk, wv, wo, bq, bk, bv, bo, g, bln,
                *, n_heads, d_k):
    """Multi-head attention (mask=None path) + residual add + LayerNorm.

    q_in / kv_in / residual are f32 (S, D) register values; w* are bf16 weights,
    b* / LN params are f32 (1, D). The output projection is accumulated per head
    in-register (ctx_h @ Wo[h*dk:(h+1)*dk, :]) so there is no head concat and no
    narrow-lane store.
    """
    scale = 1.0 / math.sqrt(d_k)
    qb = q_in.astype(jnp.bfloat16)
    kb = kv_in.astype(jnp.bfloat16)
    q = (jnp.dot(qb, wq, preferred_element_type=jnp.float32) + bq).astype(jnp.bfloat16)
    k = (jnp.dot(kb, wk, preferred_element_type=jnp.float32) + bk).astype(jnp.bfloat16)
    v = (jnp.dot(kb, wv, preferred_element_type=jnp.float32) + bv).astype(jnp.bfloat16)

    ctx_proj = jnp.zeros(residual.shape, jnp.float32)
    for h in range(n_heads):                       # static unroll over heads
        lo = h * d_k
        qh = q[:, lo:lo + d_k]
        kh = k[:, lo:lo + d_k]
        vh = v[:, lo:lo + d_k]
        s = jax.lax.dot_general(qh, kh, (((1,), (1,)), ((), ())),
                                preferred_element_type=jnp.float32) * scale
        m = jnp.max(s, axis=-1, keepdims=True)
        p = jnp.exp(s - m)
        attn = (p * pl.reciprocal(jnp.sum(p, axis=-1, keepdims=True), approx=True)
                ).astype(jnp.bfloat16)
        ctx_h = jnp.dot(attn, vh, preferred_element_type=jnp.float32).astype(jnp.bfloat16)
        ctx_proj = ctx_proj + jnp.dot(ctx_h, wo[lo:lo + d_k, :],
                                      preferred_element_type=jnp.float32)
    return _layernorm(residual + ctx_proj + bo, g, bln)


def _ffn_add_ln(x, w1, b1, w2, b2, g, bln):
    """LayerNorm(x + relu(x @ w1 + b1) @ w2 + b2); hidden stays in registers (bf16)."""
    h = jnp.dot(x.astype(jnp.bfloat16), w1, preferred_element_type=jnp.float32) + b1
    h = jnp.maximum(h, 0.0).astype(jnp.bfloat16)
    y = jnp.dot(h, w2, preferred_element_type=jnp.float32) + b2
    return _layernorm(x + y, g, bln)


# ---------------------------------------------------------------------------
# Kernel 1: fused encoder layer (one pallas_call, grid over batch)
# ---------------------------------------------------------------------------
def _encoder_layer_kernel(x_ref,
                          wq_ref, wk_ref, wv_ref, wo_ref,
                          bq_ref, bk_ref, bv_ref, bo_ref,
                          g1_ref, bln1_ref,
                          w1_ref, b1_ref, w2_ref, b2_ref,
                          g2_ref, bln2_ref,
                          o_ref, *, n_heads, d_k):
    x = x_ref[0]                                          # (S, D) f32
    y1 = _mha_add_ln(x, x, x,
                     wq_ref[...], wk_ref[...], wv_ref[...], wo_ref[...],
                     bq_ref[...], bk_ref[...], bv_ref[...], bo_ref[...],
                     g1_ref[...], bln1_ref[...], n_heads=n_heads, d_k=d_k)
    o_ref[0] = _ffn_add_ln(y1, w1_ref[...], b1_ref[...], w2_ref[...], b2_ref[...],
                           g2_ref[...], bln2_ref[...])


# ---------------------------------------------------------------------------
# Kernel 2: fused decoder layer (self-attn -> cross-attn -> FFN, grid over batch)
# ---------------------------------------------------------------------------
def _decoder_layer_kernel(x_ref, enc_ref,
                          s_wq_ref, s_wk_ref, s_wv_ref, s_wo_ref,
                          s_bq_ref, s_bk_ref, s_bv_ref, s_bo_ref,
                          g1_ref, bln1_ref,
                          c_wq_ref, c_wk_ref, c_wv_ref, c_wo_ref,
                          c_bq_ref, c_bk_ref, c_bv_ref, c_bo_ref,
                          g2_ref, bln2_ref,
                          w1_ref, b1_ref, w2_ref, b2_ref,
                          g3_ref, bln3_ref,
                          o_ref, *, n_heads, d_k):
    x = x_ref[0]                                          # (St, D) f32
    enc = enc_ref[0]                                      # (Ss, D) f32
    y1 = _mha_add_ln(x, x, x,
                     s_wq_ref[...], s_wk_ref[...], s_wv_ref[...], s_wo_ref[...],
                     s_bq_ref[...], s_bk_ref[...], s_bv_ref[...], s_bo_ref[...],
                     g1_ref[...], bln1_ref[...], n_heads=n_heads, d_k=d_k)
    y2 = _mha_add_ln(y1, enc, y1,
                     c_wq_ref[...], c_wk_ref[...], c_wv_ref[...], c_wo_ref[...],
                     c_bq_ref[...], c_bk_ref[...], c_bv_ref[...], c_bo_ref[...],
                     g2_ref[...], bln2_ref[...], n_heads=n_heads, d_k=d_k)
    o_ref[0] = _ffn_add_ln(y2, w1_ref[...], b1_ref[...], w2_ref[...], b2_ref[...],
                           g3_ref[...], bln3_ref[...])


# ---------------------------------------------------------------------------
# Kernel 3: final vocab projection (lane-dense padded output, >=2 parallel tiles)
# ---------------------------------------------------------------------------
def _logits_kernel(x_ref, w_ref, b_ref, o_ref):
    # K fits one block at transformer d_model sizes -> no accumulator scratch needed.
    # TODO(synk): add a K-tiled ("arbitrary") reduction axis for very large d_model.
    o_ref[...] = (jnp.dot(x_ref[...].astype(jnp.bfloat16), w_ref[...],
                          preferred_element_type=jnp.float32) + b_ref[...])


def linear_logits(x2d, w_bf16_pad, b_pad):
    M, K = x2d.shape
    N_pad = w_bf16_pad.shape[1]                       # pre-padded to 128-multiple
    M8 = _round_up(M, 8)
    grid_m = max(pl.cdiv(M8, 256), 2 if M8 >= 16 else 1)   # >=2 row tiles (megacore)
    tm = _round_up(pl.cdiv(M8, grid_m), 8)
    grid_m = pl.cdiv(M8, tm)
    M_pad = grid_m * tm
    tn = 256 if N_pad % 256 == 0 else 128
    grid_n = N_pad // tn

    xp = jnp.pad(x2d, ((0, M_pad - M), (0, 0))) if M_pad != M else x2d
    out = pl.pallas_call(
        _logits_kernel,
        out_shape=jax.ShapeDtypeStruct((M_pad, N_pad), jnp.float32),
        grid=(grid_m, grid_n),
        in_specs=[pl.BlockSpec((tm, K), lambda i, j: (i, 0)),
                  pl.BlockSpec((K, tn), lambda i, j: (0, j)),
                  pl.BlockSpec((1, tn), lambda i, j: (0, j))],
        out_specs=pl.BlockSpec((tm, tn), lambda i, j: (i, j)),
        compiler_params=pltpu.CompilerParams(
            dimension_semantics=("parallel", "parallel")),
    )(xp, w_bf16_pad, b_pad)
    return out[:M] if M_pad != M else out


# ---------------------------------------------------------------------------
# pallas_call wrappers for the fused layer kernels
# ---------------------------------------------------------------------------
def _rep2d(arr):
    # Broadcast (replicated) 2-D parameter: full-extent block, constant index map.
    return pl.BlockSpec(arr.shape, lambda b: (0, 0))


_MHA_KEYS = ("wq", "wk", "wv", "wo", "bq", "bk", "bv", "bo")


def _mha_args(p):
    return tuple(p[k] for k in _MHA_KEYS)


def encoder_layer(lp, x, n_heads):
    B, S, D = x.shape
    p_args = (_mha_args(lp["self_attn"])
              + (lp["ln1"]["g"], lp["ln1"]["b"])
              + (lp["ff"]["w1"], lp["ff"]["b1"], lp["ff"]["w2"], lp["ff"]["b2"])
              + (lp["ln2"]["g"], lp["ln2"]["b"]))
    act_spec = pl.BlockSpec((1, S, D), lambda b: (b, 0, 0))
    return pl.pallas_call(
        functools.partial(_encoder_layer_kernel, n_heads=n_heads, d_k=D // n_heads),
        out_shape=jax.ShapeDtypeStruct((B, S, D), jnp.float32),
        grid=(B,),
        in_specs=[act_spec] + [_rep2d(a) for a in p_args],
        out_specs=act_spec,
        compiler_params=pltpu.CompilerParams(dimension_semantics=("parallel",)),
    )(x, *p_args)


def decoder_layer(lp, x, enc_out, n_heads):
    B, St, D = x.shape
    Ss = enc_out.shape[1]
    p_args = (_mha_args(lp["self_attn"])
              + (lp["ln1"]["g"], lp["ln1"]["b"])
              + _mha_args(lp["cross_attn"])
              + (lp["ln2"]["g"], lp["ln2"]["b"])
              + (lp["ff"]["w1"], lp["ff"]["b1"], lp["ff"]["w2"], lp["ff"]["b2"])
              + (lp["ln3"]["g"], lp["ln3"]["b"]))
    x_spec = pl.BlockSpec((1, St, D), lambda b: (b, 0, 0))
    enc_spec = pl.BlockSpec((1, Ss, D), lambda b: (b, 0, 0))
    return pl.pallas_call(
        functools.partial(_decoder_layer_kernel, n_heads=n_heads, d_k=D // n_heads),
        out_shape=jax.ShapeDtypeStruct((B, St, D), jnp.float32),
        grid=(B,),
        in_specs=[x_spec, enc_spec] + [_rep2d(a) for a in p_args],
        out_specs=x_spec,
        compiler_params=pltpu.CompilerParams(dimension_semantics=("parallel",)),
    )(x, enc_out, *p_args)


# ---------------------------------------------------------------------------
# Forward pass (JAX glue: embedding lookup + PE stay in plain JAX)
# ---------------------------------------------------------------------------
def transformer_seq2seq(prepared, src_tokens, tgt_tokens, *, n_heads, tgt_vocab):
    pe = prepared["pe"]
    # ----- encoder -----
    x = jnp.take(prepared["enc"]["embedding"], src_tokens, axis=0)       # (B, Ss, D)
    x = x + pe[None, : src_tokens.shape[1], :]
    for lp in prepared["enc"]["layers"]:
        x = encoder_layer(lp, x, n_heads)
    enc_out = x
    # ----- decoder -----
    y = jnp.take(prepared["dec"]["embedding"], tgt_tokens, axis=0)       # (B, St, D)
    y = y + pe[None, : tgt_tokens.shape[1], :]
    for lp in prepared["dec"]["layers"]:
        y = decoder_layer(lp, y, enc_out, n_heads)
    B, St, D = y.shape
    logits = linear_logits(y.reshape(B * St, D),
                           prepared["dec"]["fc_out"]["w"], prepared["dec"]["fc_out"]["b"])
    return logits[:, :tgt_vocab].reshape(B, St, tgt_vocab)


# ---------------------------------------------------------------------------
# Parameter init (f32, reference layout) and one-time kernel-ready prep
# ---------------------------------------------------------------------------
def positional_encoding(max_len, d_model):
    position = jnp.arange(max_len, dtype=jnp.float32)[:, None]
    div_term = jnp.exp(jnp.arange(0, d_model, 2, dtype=jnp.float32)
                       * (-math.log(10000.0) / d_model))
    pe = jnp.zeros((max_len, d_model), jnp.float32)
    pe = pe.at[:, 0::2].set(jnp.sin(position * div_term))
    pe = pe.at[:, 1::2].set(jnp.cos(position * div_term))
    return pe


def _init_linear(key, d_in, d_out):
    kw, kb = jax.random.split(key)
    return {"w": jax.random.normal(kw, (d_in, d_out), jnp.float32) * 0.02,
            "b": jax.random.normal(kb, (d_out,), jnp.float32) * 0.02}


def _init_ln(d):
    return {"g": jnp.ones((d,), jnp.float32), "b": jnp.zeros((d,), jnp.float32)}


def _init_mha(key, d):
    ks = jax.random.split(key, 4)
    q = _init_linear(ks[0], d, d)
    k = _init_linear(ks[1], d, d)
    v = _init_linear(ks[2], d, d)
    o = _init_linear(ks[3], d, d)
    return {"wq": q["w"], "bq": q["b"], "wk": k["w"], "bk": k["b"],
            "wv": v["w"], "bv": v["b"], "wo": o["w"], "bo": o["b"]}


def _init_ff(key, d, f):
    k1, k2 = jax.random.split(key)
    l1 = _init_linear(k1, d, f)
    l2 = _init_linear(k2, f, d)
    return {"w1": l1["w"], "b1": l1["b"], "w2": l2["w"], "b2": l2["b"]}


def _init_enc_layer(key, d, f):
    k1, k2 = jax.random.split(key)
    return {"self_attn": _init_mha(k1, d), "ff": _init_ff(k2, d, f),
            "ln1": _init_ln(d), "ln2": _init_ln(d)}


def _init_dec_layer(key, d, f):
    k1, k2, k3 = jax.random.split(key, 3)
    return {"self_attn": _init_mha(k1, d), "cross_attn": _init_mha(k2, d),
            "ff": _init_ff(k3, d, f),
            "ln1": _init_ln(d), "ln2": _init_ln(d), "ln3": _init_ln(d)}


def init_params(key, src_vocab, tgt_vocab, d_model, d_ff, num_layers, max_len):
    keys = jax.random.split(key, 4 + 2 * num_layers)
    return {
        "pe": positional_encoding(max_len, d_model),
        "enc": {
            "embedding": jax.random.normal(keys[0], (src_vocab, d_model), jnp.float32) * 0.02,
            "layers": [_init_enc_layer(keys[4 + i], d_model, d_ff) for i in range(num_layers)],
        },
        "dec": {
            "embedding": jax.random.normal(keys[1], (tgt_vocab, d_model), jnp.float32) * 0.02,
            "layers": [_init_dec_layer(keys[4 + num_layers + i], d_model, d_ff)
                       for i in range(num_layers)],
            "fc_out": _init_linear(keys[2], d_model, tgt_vocab),
        },
    }


def prepare_params(params):
    """One-time (outside the jitted forward) conversion to kernel-ready layout:
    bf16 matmul weights, (1, N) biases / LN params, lane-padded (128) fc_out."""
    def prep_mha(p):
        return {"wq": p["wq"].astype(jnp.bfloat16), "wk": p["wk"].astype(jnp.bfloat16),
                "wv": p["wv"].astype(jnp.bfloat16), "wo": p["wo"].astype(jnp.bfloat16),
                "bq": p["bq"].reshape(1, -1), "bk": p["bk"].reshape(1, -1),
                "bv": p["bv"].reshape(1, -1), "bo": p["bo"].reshape(1, -1)}

    def prep_ln(p):
        return {"g": p["g"].reshape(1, -1), "b": p["b"].reshape(1, -1)}

    def prep_ff(p):
        return {"w1": p["w1"].astype(jnp.bfloat16), "b1": p["b1"].reshape(1, -1),
                "w2": p["w2"].astype(jnp.bfloat16), "b2": p["b2"].reshape(1, -1)}

    def prep_enc_layer(lp):
        return {"self_attn": prep_mha(lp["self_attn"]), "ff": prep_ff(lp["ff"]),
                "ln1": prep_ln(lp["ln1"]), "ln2": prep_ln(lp["ln2"])}

    def prep_dec_layer(lp):
        return {"self_attn": prep_mha(lp["self_attn"]),
                "cross_attn": prep_mha(lp["cross_attn"]), "ff": prep_ff(lp["ff"]),
                "ln1": prep_ln(lp["ln1"]), "ln2": prep_ln(lp["ln2"]),
                "ln3": prep_ln(lp["ln3"])}

    fc_w = params["dec"]["fc_out"]["w"]
    fc_b = params["dec"]["fc_out"]["b"]
    n = fc_w.shape[1]
    n_pad = _round_up(n, 128)
    fc = {"w": jnp.pad(fc_w, ((0, 0), (0, n_pad - n))).astype(jnp.bfloat16),
          "b": jnp.pad(fc_b, (0, n_pad - n)).reshape(1, -1)}

    return {"pe": params["pe"],
            "enc": {"embedding": params["enc"]["embedding"],
                    "layers": [prep_enc_layer(lp) for lp in params["enc"]["layers"]]},
            "dec": {"embedding": params["dec"]["embedding"],
                    "layers": [prep_dec_layer(lp) for lp in params["dec"]["layers"]],
                    "fc_out": fc}}


# ---------------------------------------------------------------------------
# Main
# ---------------------------------------------------------------------------
if __name__ == "__main__":
    # Small, module-consistent config.
    SRC_VOCAB, TGT_VOCAB = 50, 60
    D_MODEL, N_HEADS, D_FF, NUM_LAYERS, MAX_LEN = 32, 4, 64, 2, 64
    BATCH, SRC_LEN, TGT_LEN = 2, 8, 8

    root = jax.random.PRNGKey(0)
    k_params, k_src, k_tgt = jax.random.split(root, 3)

    params = init_params(k_params, SRC_VOCAB, TGT_VOCAB, D_MODEL, D_FF, NUM_LAYERS, MAX_LEN)
    prepared = prepare_params(params)      # bf16 / padded weights, once, outside jit

    src = jax.random.randint(k_src, (BATCH, SRC_LEN), 0, SRC_VOCAB, dtype=jnp.int32)
    tgt = jax.random.randint(k_tgt, (BATCH, TGT_LEN), 0, TGT_VOCAB, dtype=jnp.int32)

    fwd = jax.jit(functools.partial(transformer_seq2seq,
                                    n_heads=N_HEADS, tgt_vocab=TGT_VOCAB))
    logits = fwd(prepared, src, tgt)
    jax.block_until_ready(logits)

    assert logits.shape == (BATCH, TGT_LEN, TGT_VOCAB), logits.shape
    assert logits.dtype == jnp.float32
    assert bool(jnp.all(jnp.isfinite(logits)))
    print("KERNEL_OK")
</pallas_src>

<mosaic_0001>
module attributes {stable_mosaic.version = 11 : i64} {
  func.func @_encoder_layer_kernel(%arg0: i32, %arg1: memref<1x8x32xf32, #tpu.memory_space<vmem>>, %arg2: memref<32x32xbf16, #tpu.memory_space<vmem>>, %arg3: memref<32x32xbf16, #tpu.memory_space<vmem>>, %arg4: memref<32x32xbf16, #tpu.memory_space<vmem>>, %arg5: memref<32x32xbf16, #tpu.memory_space<vmem>>, %arg6: memref<1x32xf32, #tpu.memory_space<vmem>>, %arg7: memref<1x32xf32, #tpu.memory_space<vmem>>, %arg8: memref<1x32xf32, #tpu.memory_space<vmem>>, %arg9: memref<1x32xf32, #tpu.memory_space<vmem>>, %arg10: memref<1x32xf32, #tpu.memory_space<vmem>>, %arg11: memref<1x32xf32, #tpu.memory_space<vmem>>, %arg12: memref<32x64xbf16, #tpu.memory_space<vmem>>, %arg13: memref<1x64xf32, #tpu.memory_space<vmem>>, %arg14: memref<64x32xbf16, #tpu.memory_space<vmem>>, %arg15: memref<1x32xf32, #tpu.memory_space<vmem>>, %arg16: memref<1x32xf32, #tpu.memory_space<vmem>>, %arg17: memref<1x32xf32, #tpu.memory_space<vmem>>, %arg18: memref<1x8x32xf32, #tpu.memory_space<vmem>>) attributes {dimension_semantics = [#tpu.dimension_semantics<parallel>], iteration_bounds = array<i64: 2>, scalar_prefetch = 0 : i64, scratch_operands = 0 : i64, tpu.core_type = #tpu.core_type<tc>, window_params = [{transform_indices = @transform_0, window_bounds = array<i64: 1, 8, 32>}, {pipeline_mode = #tpu.pipeline_mode<synchronous>, transform_indices = @transform_1, window_bounds = array<i64: 32, 32>}, {pipeline_mode = #tpu.pipeline_mode<synchronous>, transform_indices = @transform_2, window_bounds = array<i64: 32, 32>}, {pipeline_mode = #tpu.pipeline_mode<synchronous>, transform_indices = @transform_3, window_bounds = array<i64: 32, 32>}, {pipeline_mode = #tpu.pipeline_mode<synchronous>, transform_indices = @transform_4, window_bounds = array<i64: 32, 32>}, {pipeline_mode = #tpu.pipeline_mode<synchronous>, transform_indices = @transform_5, window_bounds = array<i64: 1, 32>}, {pipeline_mode = #tpu.pipeline_mode<synchronous>, transform_indices = @transform_6, window_bounds = array<i64: 1, 32>}, {pipeline_mode = #tpu.pipeline_mode<synchronous>, transform_indices = @transform_7, window_bounds = array<i64: 1, 32>}, {pipeline_mode = #tpu.pipeline_mode<synchronous>, transform_indices = @transform_8, window_bounds = array<i64: 1, 32>}, {pipeline_mode = #tpu.pipeline_mode<synchronous>, transform_indices = @transform_9, window_bounds = array<i64: 1, 32>}, {pipeline_mode = #tpu.pipeline_mode<synchronous>, transform_indices = @transform_10, window_bounds = array<i64: 1, 32>}, {pipeline_mode = #tpu.pipeline_mode<synchronous>, transform_indices = @transform_11, window_bounds = array<i64: 32, 64>}, {pipeline_mode = #tpu.pipeline_mode<synchronous>, transform_indices = @transform_12, window_bounds = array<i64: 1, 64>}, {pipeline_mode = #tpu.pipeline_mode<synchronous>, transform_indices = @transform_13, window_bounds = array<i64: 64, 32>}, {pipeline_mode = #tpu.pipeline_mode<synchronous>, transform_indices = @transform_14, window_bounds = array<i64: 1, 32>}, {pipeline_mode = #tpu.pipeline_mode<synchronous>, transform_indices = @transform_15, window_bounds = array<i64: 1, 32>}, {pipeline_mode = #tpu.pipeline_mode<synchronous>, transform_indices = @transform_16, window_bounds = array<i64: 1, 32>}, {transform_indices = @transform_17, window_bounds = array<i64: 1, 8, 32>}]} {
    %c0 = arith.constant 0 : index
    %c0_0 = arith.constant 0 : index
    %c0_1 = arith.constant 0 : index
    %0 = vector.load %arg1[%c0, %c0_0, %c0_1] : memref<1x8x32xf32, #tpu.memory_space<vmem>>, vector<1x8x32xf32>
    %1 = vector.shape_cast %0 : vector<1x8x32xf32> to vector<8x32xf32>
    %c0_2 = arith.constant 0 : index
    %c0_3 = arith.constant 0 : index
    %2 = vector.load %arg2[%c0_2, %c0_3] : memref<32x32xbf16, #tpu.memory_space<vmem>>, vector<32x32xbf16>
    %c0_4 = arith.constant 0 : index
    %c0_5 = arith.constant 0 : index
    %3 = vector.load %arg3[%c0_4, %c0_5] : memref<32x32xbf16, #tpu.memory_space<vmem>>, vector<32x32xbf16>
    %c0_6 = arith.constant 0 : index
    %c0_7 = arith.constant 0 : index
    %4 = vector.load %arg4[%c0_6, %c0_7] : memref<32x32xbf16, #tpu.memory_space<vmem>>, vector<32x32xbf16>
    %c0_8 = arith.constant 0 : index
    %c0_9 = arith.constant 0 : index
    %5 = vector.load %arg5[%c0_8, %c0_9] : memref<32x32xbf16, #tpu.memory_space<vmem>>, vector<32x32xbf16>
    %c0_10 = arith.constant 0 : index
    %c0_11 = arith.constant 0 : index
    %6 = vector.load %arg6[%c0_10, %c0_11] : memref<1x32xf32, #tpu.memory_space<vmem>>, vector<1x32xf32>
    %c0_12 = arith.constant 0 : index
    %c0_13 = arith.constant 0 : index
    %7 = vector.load %arg7[%c0_12, %c0_13] : memref<1x32xf32, #tpu.memory_space<vmem>>, vector<1x32xf32>
    %c0_14 = arith.constant 0 : index
    %c0_15 = arith.constant 0 : index
    %8 = vector.load %arg8[%c0_14, %c0_15] : memref<1x32xf32, #tpu.memory_space<vmem>>, vector<1x32xf32>
    %c0_16 = arith.constant 0 : index
    %c0_17 = arith.constant 0 : index
    %9 = vector.load %arg9[%c0_16, %c0_17] : memref<1x32xf32, #tpu.memory_space<vmem>>, vector<1x32xf32>
    %c0_18 = arith.constant 0 : index
    %c0_19 = arith.constant 0 : index
    %10 = vector.load %arg10[%c0_18, %c0_19] : memref<1x32xf32, #tpu.memory_space<vmem>>, vector<1x32xf32>
    %c0_20 = arith.constant 0 : index
    %c0_21 = arith.constant 0 : index
    %11 = vector.load %arg11[%c0_20, %c0_21] : memref<1x32xf32, #tpu.memory_space<vmem>>, vector<1x32xf32>
    %12 = arith.truncf %1 : vector<8x32xf32> to vector<8x32xbf16>
    %13 = arith.truncf %1 : vector<8x32xf32> to vector<8x32xbf16>
    %cst = arith.constant dense<0.000000e+00> : vector<8x32xf32>
    %14 = tpu.matmul %12, %2, %cst {dimension_numbers = #tpu.dot_dimension_numbers<[1], [0], [0], [1], [0, 0, 1, 1], [], []>} : vector<8x32xbf16>, vector<32x32xbf16>, vector<8x32xf32> -> vector<8x32xf32>
    %15 = vector.broadcast %6 : vector<1x32xf32> to vector<8x32xf32>
    %16 = arith.addf %14, %15 : vector<8x32xf32>
    %17 = arith.truncf %16 : vector<8x32xf32> to vector<8x32xbf16>
    %cst_22 = arith.constant dense<0.000000e+00> : vector<8x32xf32>
    %18 = tpu.matmul %13, %3, %cst_22 {dimension_numbers = #tpu.dot_dimension_numbers<[1], [0], [0], [1], [0, 0, 1, 1], [], []>} : vector<8x32xbf16>, vector<32x32xbf16>, vector<8x32xf32> -> vector<8x32xf32>
    %19 = vector.broadcast %7 : vector<1x32xf32> to vector<8x32xf32>
    %20 = arith.addf %18, %19 : vector<8x32xf32>
    %21 = arith.truncf %20 : vector<8x32xf32> to vector<8x32xbf16>
    %cst_23 = arith.constant dense<0.000000e+00> : vector<8x32xf32>
    %22 = tpu.matmul %13, %4, %cst_23 {dimension_numbers = #tpu.dot_dimension_numbers<[1], [0], [0], [1], [0, 0, 1, 1], [], []>} : vector<8x32xbf16>, vector<32x32xbf16>, vector<8x32xf32> -> vector<8x32xf32>
    %23 = vector.broadcast %8 : vector<1x32xf32> to vector<8x32xf32>
    %24 = arith.addf %22, %23 : vector<8x32xf32>
    %25 = arith.truncf %24 : vector<8x32xf32> to vector<8x32xbf16>
    %cst_24 = arith.constant 0.000000e+00 : f32
    %26 = vector.broadcast %cst_24 : f32 to vector<8x32xf32>
    %27 = vector.extract_strided_slice %17 {offsets = [0, 0], sizes = [8, 8], strides = [1, 1]} : vector<8x32xbf16> to vector<8x8xbf16>
    %28 = vector.extract_strided_slice %21 {offsets = [0, 0], sizes = [8, 8], strides = [1, 1]} : vector<8x32xbf16> to vector<8x8xbf16>
    %29 = vector.extract_strided_slice %25 {offsets = [0, 0], sizes = [8, 8], strides = [1, 1]} : vector<8x32xbf16> to vector<8x8xbf16>
    %cst_25 = arith.constant dense<0.000000e+00> : vector<8x8xf32>
    %30 = tpu.matmul %27, %28, %cst_25 {dimension_numbers = #tpu.dot_dimension_numbers<[1], [1], [0], [0], [0, 0, 1, 0], [], []>} : vector<8x8xbf16>, vector<8x8xbf16>, vector<8x8xf32> -> vector<8x8xf32>
    %cst_26 = arith.constant 0.353553385 : f32
    %31 = vector.broadcast %cst_26 : f32 to vector<8x8xf32>
    %32 = arith.mulf %30, %31 : vector<8x8xf32>
    %cst_27 = arith.constant dense<0xFF800000> : vector<8xf32>
    %33 = vector.multi_reduction <maximumf>, %32, %cst_27 [1] : vector<8x8xf32> to vector<8xf32>
    %34 = vector.shape_cast %33 : vector<8xf32> to vector<8x1xf32>
    %35 = vector.broadcast %34 : vector<8x1xf32> to vector<8x8xf32>
    %36 = arith.subf %32, %35 : vector<8x8xf32>
    %37 = math.exp %36 : vector<8x8xf32>
    %cst_28 = arith.constant dense<0.000000e+00> : vector<8xf32>
    %38 = vector.multi_reduction <add>, %37, %cst_28 [1] : vector<8x8xf32> to vector<8xf32>
    %39 = vector.shape_cast %38 : vector<8xf32> to vector<8x1xf32>
    %40 = tpu.reciprocal %39 {approx = true} : vector<8x1xf32> -> vector<8x1xf32>
    %41 = vector.broadcast %40 : vector<8x1xf32> to vector<8x8xf32>
    %42 = arith.mulf %37, %41 : vector<8x8xf32>
    %43 = arith.truncf %42 : vector<8x8xf32> to vector<8x8xbf16>
    %cst_29 = arith.constant dense<0.000000e+00> : vector<8x8xf32>
    %44 = tpu.matmul %43, %29, %cst_29 {dimension_numbers = #tpu.dot_dimension_numbers<[1], [0], [0], [1], [0, 0, 1, 1], [], []>} : vector<8x8xbf16>, vector<8x8xbf16>, vector<8x8xf32> -> vector<8x8xf32>
    %45 = arith.truncf %44 : vector<8x8xf32> to vector<8x8xbf16>
    %46 = vector.extract_strided_slice %5 {offsets = [0, 0], sizes = [8, 32], strides = [1, 1]} : vector<32x32xbf16> to vector<8x32xbf16>
    %cst_30 = arith.constant dense<0.000000e+00> : vector<8x32xf32>
    %47 = tpu.matmul %45, %46, %cst_30 {dimension_numbers = #tpu.dot_dimension_numbers<[1], [0], [0], [1], [0, 0, 1, 1], [], []>} : vector<8x8xbf16>, vector<8x32xbf16>, vector<8x32xf32> -> vector<8x32xf32>
    %48 = arith.addf %26, %47 : vector<8x32xf32>
    %49 = vector.extract_strided_slice %17 {offsets = [0, 8], sizes = [8, 8], strides = [1, 1]} : vector<8x32xbf16> to vector<8x8xbf16>
    %50 = vector.extract_strided_slice %21 {offsets = [0, 8], sizes = [8, 8], strides = [1, 1]} : vector<8x32xbf16> to vector<8x8xbf16>
    %51 = vector.extract_strided_slice %25 {offsets = [0, 8], sizes = [8, 8], strides = [1, 1]} : vector<8x32xbf16> to vector<8x8xbf16>
    %cst_31 = arith.constant dense<0.000000e+00> : vector<8x8xf32>
    %52 = tpu.matmul %49, %50, %cst_31 {dimension_numbers = #tpu.dot_dimension_numbers<[1], [1], [0], [0], [0, 0, 1, 0], [], []>} : vector<8x8xbf16>, vector<8x8xbf16>, vector<8x8xf32> -> vector<8x8xf32>
    %cst_32 = arith.constant 0.353553385 : f32
    %53 = vector.broadcast %cst_32 : f32 to vector<8x8xf32>
    %54 = arith.mulf %52, %53 : vector<8x8xf32>
    %cst_33 = arith.constant dense<0xFF800000> : vector<8xf32>
    %55 = vector.multi_reduction <maximumf>, %54, %cst_33 [1] : vector<8x8xf32> to vector<8xf32>
    %56 = vector.shape_cast %55 : vector<8xf32> to vector<8x1xf32>
    %57 = vector.broadcast %56 : vector<8x1xf32> to vector<8x8xf32>
    %58 = arith.subf %54, %57 : vector<8x8xf32>
    %59 = math.exp %58 : vector<8x8xf32>
    %cst_34 = arith.constant dense<0.000000e+00> : vector<8xf32>
    %60 = vector.multi_reduction <add>, %59, %cst_34 [1] : vector<8x8xf32> to vector<8xf32>
    %61 = vector.shape_cast %60 : vector<8xf32> to vector<8x1xf32>
    %62 = tpu.reciprocal %61 {approx = true} : vector<8x1xf32> -> vector<8x1xf32>
    %63 = vector.broadcast %62 : vector<8x1xf32> to vector<8x8xf32>
    %64 = arith.mulf %59, %63 : vector<8x8xf32>
    %65 = arith.truncf %64 : vector<8x8xf32> to vector<8x8xbf16>
    %cst_35 = arith.constant dense<0.000000e+00> : vector<8x8xf32>
    %66 = tpu.matmul %65, %51, %cst_35 {dimension_numbers = #tpu.dot_dimension_numbers<[1], [0], [0], [1], [0, 0, 1, 1], [], []>} : vector<8x8xbf16>, vector<8x8xbf16>, vector<8x8xf32> -> vector<8x8xf32>
    %67 = arith.truncf %66 : vector<8x8xf32> to vector<8x8xbf16>
    %68 = vector.extract_strided_slice %5 {offsets = [8, 0], sizes = [8, 32], strides = [1, 1]} : vector<32x32xbf16> to vector<8x32xbf16>
    %cst_36 = arith.constant dense<0.000000e+00> : vector<8x32xf32>
    %69 = tpu.matmul %67, %68, %cst_36 {dimension_numbers = #tpu.dot_dimension_numbers<[1], [0], [0], [1], [0, 0, 1, 1], [], []>} : vector<8x8xbf16>, vector<8x32xbf16>, vector<8x32xf32> -> vector<8x32xf32>
    %70 = arith.addf %48, %69 : vector<8x32xf32>
    %71 = vector.extract_strided_slice %17 {offsets = [0, 16], sizes = [8, 8], strides = [1, 1]} : vector<8x32xbf16> to vector<8x8xbf16>
    %72 = vector.extract_strided_slice %21 {offsets = [0, 16], sizes = [8, 8], strides = [1, 1]} : vector<8x32xbf16> to vector<8x8xbf16>
    %73 = vector.extract_strided_slice %25 {offsets = [0, 16], sizes = [8, 8], strides = [1, 1]} : vector<8x32xbf16> to vector<8x8xbf16>
    %cst_37 = arith.constant dense<0.000000e+00> : vector<8x8xf32>
    %74 = tpu.matmul %71, %72, %cst_37 {dimension_numbers = #tpu.dot_dimension_numbers<[1], [1], [0], [0], [0, 0, 1, 0], [], []>} : vector<8x8xbf16>, vector<8x8xbf16>, vector<8x8xf32> -> vector<8x8xf32>
    %cst_38 = arith.constant 0.353553385 : f32
    %75 = vector.broadcast %cst_38 : f32 to vector<8x8xf32>
    %76 = arith.mulf %74, %75 : vector<8x8xf32>
    %cst_39 = arith.constant dense<0xFF800000> : vector<8xf32>
    %77 = vector.multi_reduction <maximumf>, %76, %cst_39 [1] : vector<8x8xf32> to vector<8xf32>
    %78 = vector.shape_cast %77 : vector<8xf32> to vector<8x1xf32>
    %79 = vector.broadcast %78 : vector<8x1xf32> to vector<8x8xf32>
    %80 = arith.subf %76, %79 : vector<8x8xf32>
    %81 = math.exp %80 : vector<8x8xf32>
    %cst_40 = arith.constant dense<0.000000e+00> : vector<8xf32>
    %82 = vector.multi_reduction <add>, %81, %cst_40 [1] : vector<8x8xf32> to vector<8xf32>
    %83 = vector.shape_cast %82 : vector<8xf32> to vector<8x1xf32>
    %84 = tpu.reciprocal %83 {approx = true} : vector<8x1xf32> -> vector<8x1xf32>
    %85 = vector.broadcast %84 : vector<8x1xf32> to vector<8x8xf32>
    %86 = arith.mulf %81, %85 : vector<8x8xf32>
    %87 = arith.truncf %86 : vector<8x8xf32> to vector<8x8xbf16>
    %cst_41 = arith.constant dense<0.000000e+00> : vector<8x8xf32>
    %88 = tpu.matmul %87, %73, %cst_41 {dimension_numbers = #tpu.dot_dimension_numbers<[1], [0], [0], [1], [0, 0, 1, 1], [], []>} : vector<8x8xbf16>, vector<8x8xbf16>, vector<8x8xf32> -> vector<8x8xf32>
    %89 = arith.truncf %88 : vector<8x8xf32> to vector<8x8xbf16>
    %90 = vector.extract_strided_slice %5 {offsets = [16, 0], sizes = [8, 32], strides = [1, 1]} : vector<32x32xbf16> to vector<8x32xbf16>
    %cst_42 = arith.constant dense<0.000000e+00> : vector<8x32xf32>
    %91 = tpu.matmul %89, %90, %cst_42 {dimension_numbers = #tpu.dot_dimension_numbers<[1], [0], [0], [1], [0, 0, 1, 1], [], []>} : vector<8x8xbf16>, vector<8x32xbf16>, vector<8x32xf32> -> vector<8x32xf32>
    %92 = arith.addf %70, %91 : vector<8x32xf32>
    %93 = vector.extract_strided_slice %17 {offsets = [0, 24], sizes = [8, 8], strides = [1, 1]} : vector<8x32xbf16> to vector<8x8xbf16>
    %94 = vector.extract_strided_slice %21 {offsets = [0, 24], sizes = [8, 8], strides = [1, 1]} : vector<8x32xbf16> to vector<8x8xbf16>
    %95 = vector.extract_strided_slice %25 {offsets = [0, 24], sizes = [8, 8], strides = [1, 1]} : vector<8x32xbf16> to vector<8x8xbf16>
    %cst_43 = arith.constant dense<0.000000e+00> : vector<8x8xf32>
    %96 = tpu.matmul %93, %94, %cst_43 {dimension_numbers = #tpu.dot_dimension_numbers<[1], [1], [0], [0], [0, 0, 1, 0], [], []>} : vector<8x8xbf16>, vector<8x8xbf16>, vector<8x8xf32> -> vector<8x8xf32>
    %cst_44 = arith.constant 0.353553385 : f32
    %97 = vector.broadcast %cst_44 : f32 to vector<8x8xf32>
    %98 = arith.mulf %96, %97 : vector<8x8xf32>
    %cst_45 = arith.constant dense<0xFF800000> : vector<8xf32>
    %99 = vector.multi_reduction <maximumf>, %98, %cst_45 [1] : vector<8x8xf32> to vector<8xf32>
    %100 = vector.shape_cast %99 : vector<8xf32> to vector<8x1xf32>
    %101 = vector.broadcast %100 : vector<8x1xf32> to vector<8x8xf32>
    %102 = arith.subf %98, %101 : vector<8x8xf32>
    %103 = math.exp %102 : vector<8x8xf32>
    %cst_46 = arith.constant dense<0.000000e+00> : vector<8xf32>
    %104 = vector.multi_reduction <add>, %103, %cst_46 [1] : vector<8x8xf32> to vector<8xf32>
    %105 = vector.shape_cast %104 : vector<8xf32> to vector<8x1xf32>
    %106 = tpu.reciprocal %105 {approx = true} : vector<8x1xf32> -> vector<8x1xf32>
    %107 = vector.broadcast %106 : vector<8x1xf32> to vector<8x8xf32>
    %108 = arith.mulf %103, %107 : vector<8x8xf32>
    %109 = arith.truncf %108 : vector<8x8xf32> to vector<8x8xbf16>
    %cst_47 = arith.constant dense<0.000000e+00> : vector<8x8xf32>
    %110 = tpu.matmul %109, %95, %cst_47 {dimension_numbers = #tpu.dot_dimension_numbers<[1], [0], [0], [1], [0, 0, 1, 1], [], []>} : vector<8x8xbf16>, vector<8x8xbf16>, vector<8x8xf32> -> vector<8x8xf32>
    %111 = arith.truncf %110 : vector<8x8xf32> to vector<8x8xbf16>
    %112 = vector.extract_strided_slice %5 {offsets = [24, 0], sizes = [8, 32], strides = [1, 1]} : vector<32x32xbf16> to vector<8x32xbf16>
    %cst_48 = arith.constant dense<0.000000e+00> : vector<8x32xf32>
    %113 = tpu.matmul %111, %112, %cst_48 {dimension_numbers = #tpu.dot_dimension_numbers<[1], [0], [0], [1], [0, 0, 1, 1], [], []>} : vector<8x8xbf16>, vector<8x32xbf16>, vector<8x32xf32> -> vector<8x32xf32>
    %114 = arith.addf %92, %113 : vector<8x32xf32>
    %115 = arith.addf %1, %114 : vector<8x32xf32>
    %116 = vector.broadcast %9 : vector<1x32xf32> to vector<8x32xf32>
    %117 = arith.addf %115, %116 : vector<8x32xf32>
    %cst_49 = arith.constant dense<0.000000e+00> : vector<8xf32>
    %118 = vector.multi_reduction <add>, %117, %cst_49 [1] : vector<8x32xf32> to vector<8xf32>
    %119 = vector.shape_cast %118 : vector<8xf32> to vector<8x1xf32>
    %cst_50 = arith.constant 3.200000e+01 : f32
    %120 = vector.broadcast %cst_50 : f32 to vector<8x1xf32>
    %121 = arith.divf %119, %120 : vector<8x1xf32>
    %122 = vector.broadcast %121 : vector<8x1xf32> to vector<8x32xf32>
    %123 = arith.subf %117, %122 : vector<8x32xf32>
    %124 = arith.mulf %123, %123 : vector<8x32xf32>
    %cst_51 = arith.constant dense<0.000000e+00> : vector<8xf32>
    %125 = vector.multi_reduction <add>, %124, %cst_51 [1] : vector<8x32xf32> to vector<8xf32>
    %126 = vector.shape_cast %125 : vector<8xf32> to vector<8x1xf32>
    %cst_52 = arith.constant 3.200000e+01 : f32
    %127 = vector.broadcast %cst_52 : f32 to vector<8x1xf32>
    %128 = arith.divf %126, %127 : vector<8x1xf32>
    %129 = vector.broadcast %121 : vector<8x1xf32> to vector<8x32xf32>
    %130 = arith.subf %117, %129 : vector<8x32xf32>
    %cst_53 = arith.constant 9.99999974E-6 : f32
    %131 = vector.broadcast %cst_53 : f32 to vector<8x1xf32>
    %132 = arith.addf %128, %131 : vector<8x1xf32>
    %133 = math.rsqrt %132 : vector<8x1xf32>
    %134 = vector.broadcast %133 : vector<8x1xf32> to vector<8x32xf32>
    %135 = arith.mulf %130, %134 : vector<8x32xf32>
    %136 = vector.broadcast %10 : vector<1x32xf32> to vector<8x32xf32>
    %137 = arith.mulf %135, %136 : vector<8x32xf32>
    %138 = vector.broadcast %11 : vector<1x32xf32> to vector<8x32xf32>
    %139 = arith.addf %137, %138 : vector<8x32xf32>
    %c0_54 = arith.constant 0 : index
    %c0_55 = arith.constant 0 : index
    %140 = vector.load %arg12[%c0_54, %c0_55] : memref<32x64xbf16, #tpu.memory_space<vmem>>, vector<32x64xbf16>
    %c0_56 = arith.constant 0 : index
    %c0_57 = arith.constant 0 : index
    %141 = vector.load %arg13[%c0_56, %c0_57] : memref<1x64xf32, #tpu.memory_space<vmem>>, vector<1x64xf32>
    %c0_58 = arith.constant 0 : index
    %c0_59 = arith.constant 0 : index
    %142 = vector.load %arg14[%c0_58, %c0_59] : memref<64x32xbf16, #tpu.memory_space<vmem>>, vector<64x32xbf16>
    %c0_60 = arith.constant 0 : index
    %c0_61 = arith.constant 0 : index
    %143 = vector.load %arg15[%c0_60, %c0_61] : memref<1x32xf32, #tpu.memory_space<vmem>>, vector<1x32xf32>
    %c0_62 = arith.constant 0 : index
    %c0_63 = arith.constant 0 : index
    %144 = vector.load %arg16[%c0_62, %c0_63] : memref<1x32xf32, #tpu.memory_space<vmem>>, vector<1x32xf32>
    %c0_64 = arith.constant 0 : index
    %c0_65 = arith.constant 0 : index
    %145 = vector.load %arg17[%c0_64, %c0_65] : memref<1x32xf32, #tpu.memory_space<vmem>>, vector<1x32xf32>
    %146 = arith.truncf %139 : vector<8x32xf32> to vector<8x32xbf16>
    %cst_66 = arith.constant dense<0.000000e+00> : vector<8x64xf32>
    %147 = tpu.matmul %146, %140, %cst_66 {dimension_numbers = #tpu.dot_dimension_numbers<[1], [0], [0], [1], [0, 0, 1, 1], [], []>} : vector<8x32xbf16>, vector<32x64xbf16>, vector<8x64xf32> -> vector<8x64xf32>
    %148 = vector.broadcast %141 : vector<1x64xf32> to vector<8x64xf32>
    %149 = arith.addf %147, %148 : vector<8x64xf32>
    %cst_67 = arith.constant 0.000000e+00 : f32
    %150 = vector.broadcast %cst_67 : f32 to vector<8x64xf32>
    %151 = arith.maximumf %149, %150 : vector<8x64xf32>
    %152 = arith.truncf %151 : vector<8x64xf32> to vector<8x64xbf16>
    %cst_68 = arith.constant dense<0.000000e+00> : vector<8x32xf32>
    %153 = tpu.matmul %152, %142, %cst_68 {dimension_numbers = #tpu.dot_dimension_numbers<[1], [0], [0], [1], [0, 0, 1, 1], [], []>} : vector<8x64xbf16>, vector<64x32xbf16>, vector<8x32xf32> -> vector<8x32xf32>
    %154 = vector.broadcast %143 : vector<1x32xf32> to vector<8x32xf32>
    %155 = arith.addf %153, %154 : vector<8x32xf32>
    %156 = arith.addf %139, %155 : vector<8x32xf32>
    %cst_69 = arith.constant dense<0.000000e+00> : vector<8xf32>
    %157 = vector.multi_reduction <add>, %156, %cst_69 [1] : vector<8x32xf32> to vector<8xf32>
    %158 = vector.shape_cast %157 : vector<8xf32> to vector<8x1xf32>
    %cst_70 = arith.constant 3.200000e+01 : f32
    %159 = vector.broadcast %cst_70 : f32 to vector<8x1xf32>
    %160 = arith.divf %158, %159 : vector<8x1xf32>
    %161 = vector.broadcast %160 : vector<8x1xf32> to vector<8x32xf32>
    %162 = arith.subf %156, %161 : vector<8x32xf32>
    %163 = arith.mulf %162, %162 : vector<8x32xf32>
    %cst_71 = arith.constant dense<0.000000e+00> : vector<8xf32>
    %164 = vector.multi_reduction <add>, %163, %cst_71 [1] : vector<8x32xf32> to vector<8xf32>
    %165 = vector.shape_cast %164 : vector<8xf32> to vector<8x1xf32>
    %cst_72 = arith.constant 3.200000e+01 : f32
    %166 = vector.broadcast %cst_72 : f32 to vector<8x1xf32>
    %167 = arith.divf %165, %166 : vector<8x1xf32>
    %168 = vector.broadcast %160 : vector<8x1xf32> to vector<8x32xf32>
    %169 = arith.subf %156, %168 : vector<8x32xf32>
    %cst_73 = arith.constant 9.99999974E-6 : f32
    %170 = vector.broadcast %cst_73 : f32 to vector<8x1xf32>
    %171 = arith.addf %167, %170 : vector<8x1xf32>
    %172 = math.rsqrt %171 : vector<8x1xf32>
    %173 = vector.broadcast %172 : vector<8x1xf32> to vector<8x32xf32>
    %174 = arith.mulf %169, %173 : vector<8x32xf32>
    %175 = vector.broadcast %144 : vector<1x32xf32> to vector<8x32xf32>
    %176 = arith.mulf %174, %175 : vector<8x32xf32>
    %177 = vector.broadcast %145 : vector<1x32xf32> to vector<8x32xf32>
    %178 = arith.addf %176, %177 : vector<8x32xf32>
    %c0_74 = arith.constant 0 : index
    %c0_75 = arith.constant 0 : index
    %c0_76 = arith.constant 0 : index
    %179 = vector.load %arg18[%c0_74, %c0_75, %c0_76] : memref<1x8x32xf32, #tpu.memory_space<vmem>>, vector<1x8x32xf32>
    %180 = vector.shape_cast %179 : vector<1x8x32xf32> to vector<8x32xf32>
    %181 = vector.shape_cast %178 : vector<8x32xf32> to vector<1x8x32xf32>
    tpu.vector_store %arg18[%c0_74, %c0_75, %c0_76], %181 {strides = array<i32>} : memref<1x8x32xf32, #tpu.memory_space<vmem>>, vector<1x8x32xf32>,
    return
  }
  func.func @transform_0(%arg0: i32) -> (i32, i32, i32) {
    %c0_i32 = arith.constant 0 : i32
    %c0_i32_0 = arith.constant 0 : i32
    %c0_i32_1 = arith.constant 0 : i32
    return %arg0, %c0_i32, %c0_i32_0 : i32, i32, i32
  }
  func.func @transform_1(%arg0: i32) -> (i32, i32) {
    %c0_i32 = arith.constant 0 : i32
    %c0_i32_0 = arith.constant 0 : i32
    %c0_i32_1 = arith.constant 0 : i32
    return %c0_i32, %c0_i32_0 : i32, i32
  }
  func.func @transform_2(%arg0: i32) -> (i32, i32) {
    %c0_i32 = arith.constant 0 : i32
    %c0_i32_0 = arith.constant 0 : i32
    %c0_i32_1 = arith.constant 0 : i32
    return %c0_i32, %c0_i32_0 : i32, i32
  }
  func.func @transform_3(%arg0: i32) -> (i32, i32) {
    %c0_i32 = arith.constant 0 : i32
    %c0_i32_0 = arith.constant 0 : i32
    %c0_i32_1 = arith.constant 0 : i32
    return %c0_i32, %c0_i32_0 : i32, i32
  }
  func.func @transform_4(%arg0: i32) -> (i32, i32) {
    %c0_i32 = arith.constant 0 : i32
    %c0_i32_0 = arith.constant 0 : i32
    %c0_i32_1 = arith.constant 0 : i32
    return %c0_i32, %c0_i32_0 : i32, i32
  }
  func.func @transform_5(%arg0: i32) -> (i32, i32) {
    %c0_i32 = arith.constant 0 : i32
    %c0_i32_0 = arith.constant 0 : i32
    %c0_i32_1 = arith.constant 0 : i32
    return %c0_i32, %c0_i32_0 : i32, i32
  }
  func.func @transform_6(%arg0: i32) -> (i32, i32) {
    %c0_i32 = arith.constant 0 : i32
    %c0_i32_0 = arith.constant 0 : i32
    %c0_i32_1 = arith.constant 0 : i32
    return %c0_i32, %c0_i32_0 : i32, i32
  }
  func.func @transform_7(%arg0: i32) -> (i32, i32) {
    %c0_i32 = arith.constant 0 : i32
    %c0_i32_0 = arith.constant 0 : i32
    %c0_i32_1 = arith.constant 0 : i32
    return %c0_i32, %c0_i32_0 : i32, i32
  }
  func.func @transform_8(%arg0: i32) -> (i32, i32) {
    %c0_i32 = arith.constant 0 : i32
    %c0_i32_0 = arith.constant 0 : i32
    %c0_i32_1 = arith.constant 0 : i32
    return %c0_i32, %c0_i32_0 : i32, i32
  }
  func.func @transform_9(%arg0: i32) -> (i32, i32) {
    %c0_i32 = arith.constant 0 : i32
    %c0_i32_0 = arith.constant 0 : i32
    %c0_i32_1 = arith.constant 0 : i32
    return %c0_i32, %c0_i32_0 : i32, i32
  }
  func.func @transform_10(%arg0: i32) -> (i32, i32) {
    %c0_i32 = arith.constant 0 : i32
    %c0_i32_0 = arith.constant 0 : i32
    %c0_i32_1 = arith.constant 0 : i32
    return %c0_i32, %c0_i32_0 : i32, i32
  }
  func.func @transform_11(%arg0: i32) -> (i32, i32) {
    %c0_i32 = arith.constant 0 : i32
    %c0_i32_0 = arith.constant 0 : i32
    %c0_i32_1 = arith.constant 0 : i32
    return %c0_i32, %c0_i32_0 : i32, i32
  }
  func.func @transform_12(%arg0: i32) -> (i32, i32) {
    %c0_i32 = arith.constant 0 : i32
    %c0_i32_0 = arith.constant 0 : i32
    %c0_i32_1 = arith.constant 0 : i32
    return %c0_i32, %c0_i32_0 : i32, i32
  }
  func.func @transform_13(%arg0: i32) -> (i32, i32) {
    %c0_i32 = arith.constant 0 : i32
    %c0_i32_0 = arith.constant 0 : i32
    %c0_i32_1 = arith.constant 0 : i32
    return %c0_i32, %c0_i32_0 : i32, i32
  }
  func.func @transform_14(%arg0: i32) -> (i32, i32) {
    %c0_i32 = arith.constant 0 : i32
    %c0_i32_0 = arith.constant 0 : i32
    %c0_i32_1 = arith.constant 0 : i32
    return %c0_i32, %c0_i32_0 : i32, i32
  }
  func.func @transform_15(%arg0: i32) -> (i32, i32) {
    %c0_i32 = arith.constant 0 : i32
    %c0_i32_0 = arith.constant 0 : i32
    %c0_i32_1 = arith.constant 0 : i32
    return %c0_i32, %c0_i32_0 : i32, i32
  }
  func.func @transform_16(%arg0: i32) -> (i32, i32) {
    %c0_i32 = arith.constant 0 : i32
    %c0_i32_0 = arith.constant 0 : i32
    %c0_i32_1 = arith.constant 0 : i32
    return %c0_i32, %c0_i32_0 : i32, i32
  }
  func.func @transform_17(%arg0: i32) -> (i32, i32, i32) {
    %c0_i32 = arith.constant 0 : i32
    %c0_i32_0 = arith.constant 0 : i32
    %c0_i32_1 = arith.constant 0 : i32
    return %arg0, %c0_i32, %c0_i32_0 : i32, i32, i32
  }
}

module attributes {stable_mosaic.version = 11 : i64} {
  func.func @_encoder_layer_kernel(%arg0: i32, %arg1: memref<1x8x32xf32, #tpu.memory_space<vmem>>, %arg2: memref<32x32xbf16, #tpu.memory_space<vmem>>, %arg3: memref<32x32xbf16, #tpu.memory_space<vmem>>, %arg4: memref<32x32xbf16, #tpu.memory_space<vmem>>, %arg5: memref<32x32xbf16, #tpu.memory_space<vmem>>, %arg6: memref<1x32xf32, #tpu.memory_space<vmem>>, %arg7: memref<1x32xf32, #tpu.memory_space<vmem>>, %arg8: memref<1x32xf32, #tpu.memory_space<vmem>>, %arg9: memref<1x32xf32, #tpu.memory_space<vmem>>, %arg10: memref<1x32xf32, #tpu.memory_space<vmem>>, %arg11: memref<1x32xf32, #tpu.memory_space<vmem>>, %arg12: memref<32x64xbf16, #tpu.memory_space<vmem>>, %arg13: memref<1x64xf32, #tpu.memory_space<vmem>>, %arg14: memref<64x32xbf16, #tpu.memory_space<vmem>>, %arg15: memref<1x32xf32, #tpu.memory_space<vmem>>, %arg16: memref<1x32xf32, #tpu.memory_space<vmem>>, %arg17: memref<1x32xf32, #tpu.memory_space<vmem>>, %arg18: memref<1x8x32xf32, #tpu.memory_space<vmem>>) attributes {dimension_semantics = [#tpu.dimension_semantics<parallel>], iteration_bounds = array<i64: 2>, scalar_prefetch = 0 : i64, scratch_operands = 0 : i64, tpu.core_type = #tpu.core_type<tc>, window_params = [{transform_indices = @transform_0, window_bounds = array<i64: 1, 8, 32>}, {pipeline_mode = #tpu.pipeline_mode<synchronous>, transform_indices = @transform_1, window_bounds = array<i64: 32, 32>}, {pipeline_mode = #tpu.pipeline_mode<synchronous>, transform_indices = @transform_2, window_bounds = array<i64: 32, 32>}, {pipeline_mode = #tpu.pipeline_mode<synchronous>, transform_indices = @transform_3, window_bounds = array<i64: 32, 32>}, {pipeline_mode = #tpu.pipeline_mode<synchronous>, transform_indices = @transform_4, window_bounds = array<i64: 32, 32>}, {pipeline_mode = #tpu.pipeline_mode<synchronous>, transform_indices = @transform_5, window_bounds = array<i64: 1, 32>}, {pipeline_mode = #tpu.pipeline_mode<synchronous>, transform_indices = @transform_6, window_bounds = array<i64: 1, 32>}, {pipeline_mode = #tpu.pipeline_mode<synchronous>, transform_indices = @transform_7, window_bounds = array<i64: 1, 32>}, {pipeline_mode = #tpu.pipeline_mode<synchronous>, transform_indices = @transform_8, window_bounds = array<i64: 1, 32>}, {pipeline_mode = #tpu.pipeline_mode<synchronous>, transform_indices = @transform_9, window_bounds = array<i64: 1, 32>}, {pipeline_mode = #tpu.pipeline_mode<synchronous>, transform_indices = @transform_10, window_bounds = array<i64: 1, 32>}, {pipeline_mode = #tpu.pipeline_mode<synchronous>, transform_indices = @transform_11, window_bounds = array<i64: 32, 64>}, {pipeline_mode = #tpu.pipeline_mode<synchronous>, transform_indices = @transform_12, window_bounds = array<i64: 1, 64>}, {pipeline_mode = #tpu.pipeline_mode<synchronous>, transform_indices = @transform_13, window_bounds = array<i64: 64, 32>}, {pipeline_mode = #tpu.pipeline_mode<synchronous>, transform_indices = @transform_14, window_bounds = array<i64: 1, 32>}, {pipeline_mode = #tpu.pipeline_mode<synchronous>, transform_indices = @transform_15, window_bounds = array<i64: 1, 32>}, {pipeline_mode = #tpu.pipeline_mode<synchronous>, transform_indices = @transform_16, window_bounds = array<i64: 1, 32>}, {transform_indices = @transform_17, window_bounds = array<i64: 1, 8, 32>}]} {
    %c0 = arith.constant 0 : index
    %c0_0 = arith.constant 0 : index
    %c0_1 = arith.constant 0 : index
    %0 = vector.load %arg1[%c0, %c0_0, %c0_1] : memref<1x8x32xf32, #tpu.memory_space<vmem>>, vector<1x8x32xf32>
    %1 = vector.shape_cast %0 : vector<1x8x32xf32> to vector<8x32xf32>
    %c0_2 = arith.constant 0 : index
    %c0_3 = arith.constant 0 : index
    %2 = vector.load %arg2[%c0_2, %c0_3] : memref<32x32xbf16, #tpu.memory_space<vmem>>, vector<32x32xbf16>
    %c0_4 = arith.constant 0 : index
    %c0_5 = arith.constant 0 : index
    %3 = vector.load %arg3[%c0_4, %c0_5] : memref<32x32xbf16, #tpu.memory_space<vmem>>, vector<32x32xbf16>
    %c0_6 = arith.constant 0 : index
    %c0_7 = arith.constant 0 : index
    %4 = vector.load %arg4[%c0_6, %c0_7] : memref<32x32xbf16, #tpu.memory_space<vmem>>, vector<32x32xbf16>
    %c0_8 = arith.constant 0 : index
    %c0_9 = arith.constant 0 : index
    %5 = vector.load %arg5[%c0_8, %c0_9] : memref<32x32xbf16, #tpu.memory_space<vmem>>, vector<32x32xbf16>
    %c0_10 = arith.constant 0 : index
    %c0_11 = arith.constant 0 : index
    %6 = vector.load %arg6[%c0_10, %c0_11] : memref<1x32xf32, #tpu.memory_space<vmem>>, vector<1x32xf32>
    %c0_12 = arith.constant 0 : index
    %c0_13 = arith.constant 0 : index
    %7 = vector.load %arg7[%c0_12, %c0_13] : memref<1x32xf32, #tpu.memory_space<vmem>>, vector<1x32xf32>
    %c0_14 = arith.constant 0 : index
    %c0_15 = arith.constant 0 : index
    %8 = vector.load %arg8[%c0_14, %c0_15] : memref<1x32xf32, #tpu.memory_space<vmem>>, vector<1x32xf32>
    %c0_16 = arith.constant 0 : index
    %c0_17 = arith.constant 0 : index
    %9 = vector.load %arg9[%c0_16, %c0_17] : memref<1x32xf32, #tpu.memory_space<vmem>>, vector<1x32xf32>
    %c0_18 = arith.constant 0 : index
    %c0_19 = arith.constant 0 : index
    %10 = vector.load %arg10[%c0_18, %c0_19] : memref<1x32xf32, #tpu.memory_space<vmem>>, vector<1x32xf32>
    %c0_20 = arith.constant 0 : index
    %c0_21 = arith.constant 0 : index
    %11 = vector.load %arg11[%c0_20, %c0_21] : memref<1x32xf32, #tpu.memory_space<vmem>>, vector<1x32xf32>
    %12 = arith.truncf %1 : vector<8x32xf32> to vector<8x32xbf16>
    %13 = arith.truncf %1 : vector<8x32xf32> to vector<8x32xbf16>
    %cst = arith.constant dense<0.000000e+00> : vector<8x32xf32>
    %14 = tpu.matmul %12, %2, %cst {dimension_numbers = #tpu.dot_dimension_numbers<[1], [0], [0], [1], [0, 0, 1, 1], [], []>} : vector<8x32xbf16>, vector<32x32xbf16>, vector<8x32xf32> -> vector<8x32xf32>
    %15 = vector.broadcast %6 : vector<1x32xf32> to vector<8x32xf32>
    %16 = arith.addf %14, %15 : vector<8x32xf32>
    %17 = arith.truncf %16 : vector<8x32xf32> to vector<8x32xbf16>
    %cst_22 = arith.constant dense<0.000000e+00> : vector<8x32xf32>
    %18 = tpu.matmul %13, %3, %cst_22 {dimension_numbers = #tpu.dot_dimension_numbers<[1], [0], [0], [1], [0, 0, 1, 1], [], []>} : vector<8x32xbf16>, vector<32x32xbf16>, vector<8x32xf32> -> vector<8x32xf32>
    %19 = vector.broadcast %7 : vector<1x32xf32> to vector<8x32xf32>
    %20 = arith.addf %18, %19 : vector<8x32xf32>
    %21 = arith.truncf %20 : vector<8x32xf32> to vector<8x32xbf16>
    %cst_23 = arith.constant dense<0.000000e+00> : vector<8x32xf32>
    %22 = tpu.matmul %13, %4, %cst_23 {dimension_numbers = #tpu.dot_dimension_numbers<[1], [0], [0], [1], [0, 0, 1, 1], [], []>} : vector<8x32xbf16>, vector<32x32xbf16>, vector<8x32xf32> -> vector<8x32xf32>
    %23 = vector.broadcast %8 : vector<1x32xf32> to vector<8x32xf32>
    %24 = arith.addf %22, %23 : vector<8x32xf32>
    %25 = arith.truncf %24 : vector<8x32xf32> to vector<8x32xbf16>
    %cst_24 = arith.constant 0.000000e+00 : f32
    %26 = vector.broadcast %cst_24 : f32 to vector<8x32xf32>
    %27 = vector.extract_strided_slice %17 {offsets = [0, 0], sizes = [8, 8], strides = [1, 1]} : vector<8x32xbf16> to vector<8x8xbf16>
    %28 = vector.extract_strided_slice %21 {offsets = [0, 0], sizes = [8, 8], strides = [1, 1]} : vector<8x32xbf16> to vector<8x8xbf16>
    %29 = vector.extract_strided_slice %25 {offsets = [0, 0], sizes = [8, 8], strides = [1, 1]} : vector<8x32xbf16> to vector<8x8xbf16>
    %cst_25 = arith.constant dense<0.000000e+00> : vector<8x8xf32>
    %30 = tpu.matmul %27, %28, %cst_25 {dimension_numbers = #tpu.dot_dimension_numbers<[1], [1], [0], [0], [0, 0, 1, 0], [], []>} : vector<8x8xbf16>, vector<8x8xbf16>, vector<8x8xf32> -> vector<8x8xf32>
    %cst_26 = arith.constant 0.353553385 : f32
    %31 = vector.broadcast %cst_26 : f32 to vector<8x8xf32>
    %32 = arith.mulf %30, %31 : vector<8x8xf32>
    %cst_27 = arith.constant dense<0xFF800000> : vector<8xf32>
    %33 = vector.multi_reduction <maximumf>, %32, %cst_27 [1] : vector<8x8xf32> to vector<8xf32>
    %34 = vector.shape_cast %33 : vector<8xf32> to vector<8x1xf32>
    %35 = vector.broadcast %34 : vector<8x1xf32> to vector<8x8xf32>
    %36 = arith.subf %32, %35 : vector<8x8xf32>
    %37 = math.exp %36 : vector<8x8xf32>
    %cst_28 = arith.constant dense<0.000000e+00> : vector<8xf32>
    %38 = vector.multi_reduction <add>, %37, %cst_28 [1] : vector<8x8xf32> to vector<8xf32>
    %39 = vector.shape_cast %38 : vector<8xf32> to vector<8x1xf32>
    %40 = tpu.reciprocal %39 {approx = true} : vector<8x1xf32> -> vector<8x1xf32>
    %41 = vector.broadcast %40 : vector<8x1xf32> to vector<8x8xf32>
    %42 = arith.mulf %37, %41 : vector<8x8xf32>
    %43 = arith.truncf %42 : vector<8x8xf32> to vector<8x8xbf16>
    %cst_29 = arith.constant dense<0.000000e+00> : vector<8x8xf32>
    %44 = tpu.matmul %43, %29, %cst_29 {dimension_numbers = #tpu.dot_dimension_numbers<[1], [0], [0], [1], [0, 0, 1, 1], [], []>} : vector<8x8xbf16>, vector<8x8xbf16>, vector<8x8xf32> -> vector<8x8xf32>
    %45 = arith.truncf %44 : vector<8x8xf32> to vector<8x8xbf16>
    %46 = vector.extract_strided_slice %5 {offsets = [0, 0], sizes = [8, 32], strides = [1, 1]} : vector<32x32xbf16> to vector<8x32xbf16>
    %cst_30 = arith.constant dense<0.000000e+00> : vector<8x32xf32>
    %47 = tpu.matmul %45, %46, %cst_30 {dimension_numbers = #tpu.dot_dimension_numbers<[1], [0], [0], [1], [0, 0, 1, 1], [], []>} : vector<8x8xbf16>, vector<8x32xbf16>, vector<8x32xf32> -> vector<8x32xf32>
    %48 = arith.addf %26, %47 : vector<8x32xf32>
    %49 = vector.extract_strided_slice %17 {offsets = [0, 8], sizes = [8, 8], strides = [1, 1]} : vector<8x32xbf16> to vector<8x8xbf16>
    %50 = vector.extract_strided_slice %21 {offsets = [0, 8], sizes = [8, 8], strides = [1, 1]} : vector<8x32xbf16> to vector<8x8xbf16>
    %51 = vector.extract_strided_slice %25 {offsets = [0, 8], sizes = [8, 8], strides = [1, 1]} : vector<8x32xbf16> to vector<8x8xbf16>
    %cst_31 = arith.constant dense<0.000000e+00> : vector<8x8xf32>
    %52 = tpu.matmul %49, %50, %cst_31 {dimension_numbers = #tpu.dot_dimension_numbers<[1], [1], [0], [0], [0, 0, 1, 0], [], []>} : vector<8x8xbf16>, vector<8x8xbf16>, vector<8x8xf32> -> vector<8x8xf32>
    %cst_32 = arith.constant 0.353553385 : f32
    %53 = vector.broadcast %cst_32 : f32 to vector<8x8xf32>
    %54 = arith.mulf %52, %53 : vector<8x8xf32>
    %cst_33 = arith.constant dense<0xFF800000> : vector<8xf32>
    %55 = vector.multi_reduction <maximumf>, %54, %cst_33 [1] : vector<8x8xf32> to vector<8xf32>
    %56 = vector.shape_cast %55 : vector<8xf32> to vector<8x1xf32>
    %57 = vector.broadcast %56 : vector<8x1xf32> to vector<8x8xf32>
    %58 = arith.subf %54, %57 : vector<8x8xf32>
    %59 = math.exp %58 : vector<8x8xf32>
    %cst_34 = arith.constant dense<0.000000e+00> : vector<8xf32>
    %60 = vector.multi_reduction <add>, %59, %cst_34 [1] : vector<8x8xf32> to vector<8xf32>
    %61 = vector.shape_cast %60 : vector<8xf32> to vector<8x1xf32>
    %62 = tpu.reciprocal %61 {approx = true} : vector<8x1xf32> -> vector<8x1xf32>
    %63 = vector.broadcast %62 : vector<8x1xf32> to vector<8x8xf32>
    %64 = arith.mulf %59, %63 : vector<8x8xf32>
    %65 = arith.truncf %64 : vector<8x8xf32> to vector<8x8xbf16>
    %cst_35 = arith.constant dense<0.000000e+00> : vector<8x8xf32>
    %66 = tpu.matmul %65, %51, %cst_35 {dimension_numbers = #tpu.dot_dimension_numbers<[1], [0], [0], [1], [0, 0, 1, 1], [], []>} : vector<8x8xbf16>, vector<8x8xbf16>, vector<8x8xf32> -> vector<8x8xf32>
    %67 = arith.truncf %66 : vector<8x8xf32> to vector<8x8xbf16>
    %68 = vector.extract_strided_slice %5 {offsets = [8, 0], sizes = [8, 32], strides = [1, 1]} : vector<32x32xbf16> to vector<8x32xbf16>
    %cst_36 = arith.constant dense<0.000000e+00> : vector<8x32xf32>
    %69 = tpu.matmul %67, %68, %cst_36 {dimension_numbers = #tpu.dot_dimension_numbers<[1], [0], [0], [1], [0, 0, 1, 1], [], []>} : vector<8x8xbf16>, vector<8x32xbf16>, vector<8x32xf32> -> vector<8x32xf32>
    %70 = arith.addf %48, %69 : vector<8x32xf32>
    %71 = vector.extract_strided_slice %17 {offsets = [0, 16], sizes = [8, 8], strides = [1, 1]} : vector<8x32xbf16> to vector<8x8xbf16>
    %72 = vector.extract_strided_slice %21 {offsets = [0, 16], sizes = [8, 8], strides = [1, 1]} : vector<8x32xbf16> to vector<8x8xbf16>
    %73 = vector.extract_strided_slice %25 {offsets = [0, 16], sizes = [8, 8], strides = [1, 1]} : vector<8x32xbf16> to vector<8x8xbf16>
    %cst_37 = arith.constant dense<0.000000e+00> : vector<8x8xf32>
    %74 = tpu.matmul %71, %72, %cst_37 {dimension_numbers = #tpu.dot_dimension_numbers<[1], [1], [0], [0], [0, 0, 1, 0], [], []>} : vector<8x8xbf16>, vector<8x8xbf16>, vector<8x8xf32> -> vector<8x8xf32>
    %cst_38 = arith.constant 0.353553385 : f32
    %75 = vector.broadcast %cst_38 : f32 to vector<8x8xf32>
    %76 = arith.mulf %74, %75 : vector<8x8xf32>
    %cst_39 = arith.constant dense<0xFF800000> : vector<8xf32>
    %77 = vector.multi_reduction <maximumf>, %76, %cst_39 [1] : vector<8x8xf32> to vector<8xf32>
    %78 = vector.shape_cast %77 : vector<8xf32> to vector<8x1xf32>
    %79 = vector.broadcast %78 : vector<8x1xf32> to vector<8x8xf32>
    %80 = arith.subf %76, %79 : vector<8x8xf32>
    %81 = math.exp %80 : vector<8x8xf32>
    %cst_40 = arith.constant dense<0.000000e+00> : vector<8xf32>
    %82 = vector.multi_reduction <add>, %81, %cst_40 [1] : vector<8x8xf32> to vector<8xf32>
    %83 = vector.shape_cast %82 : vector<8xf32> to vector<8x1xf32>
    %84 = tpu.reciprocal %83 {approx = true} : vector<8x1xf32> -> vector<8x1xf32>
    %85 = vector.broadcast %84 : vector<8x1xf32> to vector<8x8xf32>
    %86 = arith.mulf %81, %85 : vector<8x8xf32>
    %87 = arith.truncf %86 : vector<8x8xf32> to vector<8x8xbf16>
    %cst_41 = arith.constant dense<0.000000e+00> : vector<8x8xf32>
    %88 = tpu.matmul %87, %73, %cst_41 {dimension_numbers = #tpu.dot_dimension_numbers<[1], [0], [0], [1], [0, 0, 1, 1], [], []>} : vector<8x8xbf16>, vector<8x8xbf16>, vector<8x8xf32> -> vector<8x8xf32>
    %89 = arith.truncf %88 : vector<8x8xf32> to vector<8x8xbf16>
    %90 = vector.extract_strided_slice %5 {offsets = [16, 0], sizes = [8, 32], strides = [1, 1]} : vector<32x32xbf16> to vector<8x32xbf16>
    %cst_42 = arith.constant dense<0.000000e+00> : vector<8x32xf32>
    %91 = tpu.matmul %89, %90, %cst_42 {dimension_numbers = #tpu.dot_dimension_numbers<[1], [0], [0], [1], [0, 0, 1, 1], [], []>} : vector<8x8xbf16>, vector<8x32xbf16>, vector<8x32xf32> -> vector<8x32xf32>
    %92 = arith.addf %70, %91 : vector<8x32xf32>
    %93 = vector.extract_strided_slice %17 {offsets = [0, 24], sizes = [8, 8], strides = [1, 1]} : vector<8x32xbf16> to vector<8x8xbf16>
    %94 = vector.extract_strided_slice %21 {offsets = [0, 24], sizes = [8, 8], strides = [1, 1]} : vector<8x32xbf16> to vector<8x8xbf16>
    %95 = vector.extract_strided_slice %25 {offsets = [0, 24], sizes = [8, 8], strides = [1, 1]} : vector<8x32xbf16> to vector<8x8xbf16>
    %cst_43 = arith.constant dense<0.000000e+00> : vector<8x8xf32>
    %96 = tpu.matmul %93, %94, %cst_43 {dimension_numbers = #tpu.dot_dimension_numbers<[1], [1], [0], [0], [0, 0, 1, 0], [], []>} : vector<8x8xbf16>, vector<8x8xbf16>, vector<8x8xf32> -> vector<8x8xf32>
    %cst_44 = arith.constant 0.353553385 : f32
    %97 = vector.broadcast %cst_44 : f32 to vector<8x8xf32>
    %98 = arith.mulf %96, %97 : vector<8x8xf32>
    %cst_45 = arith.constant dense<0xFF800000> : vector<8xf32>
    %99 = vector.multi_reduction <maximumf>, %98, %cst_45 [1] : vector<8x8xf32> to vector<8xf32>
    %100 = vector.shape_cast %99 : vector<8xf32> to vector<8x1xf32>
    %101 = vector.broadcast %100 : vector<8x1xf32> to vector<8x8xf32>
    %102 = arith.subf %98, %101 : vector<8x8xf32>
    %103 = math.exp %102 : vector<8x8xf32>
    %cst_46 = arith.constant dense<0.000000e+00> : vector<8xf32>
    %104 = vector.multi_reduction <add>, %103, %cst_46 [1] : vector<8x8xf32> to vector<8xf32>
    %105 = vector.shape_cast %104 : vector<8xf32> to vector<8x1xf32>
    %106 = tpu.reciprocal %105 {approx = true} : vector<8x1xf32> -> vector<8x1xf32>
    %107 = vector.broadcast %106 : vector<8x1xf32> to vector<8x8xf32>
    %108 = arith.mulf %103, %107 : vector<8x8xf32>
    %109 = arith.truncf %108 : vector<8x8xf32> to vector<8x8xbf16>
    %cst_47 = arith.constant dense<0.000000e+00> : vector<8x8xf32>
    %110 = tpu.matmul %109, %95, %cst_47 {dimension_numbers = #tpu.dot_dimension_numbers<[1], [0], [0], [1], [0, 0, 1, 1], [], []>} : vector<8x8xbf16>, vector<8x8xbf16>, vector<8x8xf32> -> vector<8x8xf32>
    %111 = arith.truncf %110 : vector<8x8xf32> to vector<8x8xbf16>
    %112 = vector.extract_strided_slice %5 {offsets = [24, 0], sizes = [8, 32], strides = [1, 1]} : vector<32x32xbf16> to vector<8x32xbf16>
    %cst_48 = arith.constant dense<0.000000e+00> : vector<8x32xf32>
    %113 = tpu.matmul %111, %112, %cst_48 {dimension_numbers = #tpu.dot_dimension_numbers<[1], [0], [0], [1], [0, 0, 1, 1], [], []>} : vector<8x8xbf16>, vector<8x32xbf16>, vector<8x32xf32> -> vector<8x32xf32>
    %114 = arith.addf %92, %113 : vector<8x32xf32>
    %115 = arith.addf %1, %114 : vector<8x32xf32>
    %116 = vector.broadcast %9 : vector<1x32xf32> to vector<8x32xf32>
    %117 = arith.addf %115, %116 : vector<8x32xf32>
    %cst_49 = arith.constant dense<0.000000e+00> : vector<8xf32>
    %118 = vector.multi_reduction <add>, %117, %cst_49 [1] : vector<8x32xf32> to vector<8xf32>
    %119 = vector.shape_cast %118 : vector<8xf32> to vector<8x1xf32>
    %cst_50 = arith.constant 3.200000e+01 : f32
    %120 = vector.broadcast %cst_50 : f32 to vector<8x1xf32>
    %121 = arith.divf %119, %120 : vector<8x1xf32>
    %122 = vector.broadcast %121 : vector<8x1xf32> to vector<8x32xf32>
    %123 = arith.subf %117, %122 : vector<8x32xf32>
    %124 = arith.mulf %123, %123 : vector<8x32xf32>
    %cst_51 = arith.constant dense<0.000000e+00> : vector<8xf32>
    %125 = vector.multi_reduction <add>, %124, %cst_51 [1] : vector<8x32xf32> to vector<8xf32>
    %126 = vector.shape_cast %125 : vector<8xf32> to vector<8x1xf32>
    %cst_52 = arith.constant 3.200000e+01 : f32
    %127 = vector.broadcast %cst_52 : f32 to vector<8x1xf32>
    %128 = arith.divf %126, %127 : vector<8x1xf32>
    %129 = vector.broadcast %121 : vector<8x1xf32> to vector<8x32xf32>
    %130 = arith.subf %117, %129 : vector<8x32xf32>
    %cst_53 = arith.constant 9.99999974E-6 : f32
    %131 = vector.broadcast %cst_53 : f32 to vector<8x1xf32>
    %132 = arith.addf %128, %131 : vector<8x1xf32>
    %133 = math.rsqrt %132 : vector<8x1xf32>
    %134 = vector.broadcast %133 : vector<8x1xf32> to vector<8x32xf32>
    %135 = arith.mulf %130, %134 : vector<8x32xf32>
    %136 = vector.broadcast %10 : vector<1x32xf32> to vector<8x32xf32>
    %137 = arith.mulf %135, %136 : vector<8x32xf32>
    %138 = vector.broadcast %11 : vector<1x32xf32> to vector<8x32xf32>
    %139 = arith.addf %137, %138 : vector<8x32xf32>
    %c0_54 = arith.constant 0 : index
    %c0_55 = arith.constant 0 : index
    %140 = vector.load %arg12[%c0_54, %c0_55] : memref<32x64xbf16, #tpu.memory_space<vmem>>, vector<32x64xbf16>
    %c0_56 = arith.constant 0 : index
    %c0_57 = arith.constant 0 : index
    %141 = vector.load %arg13[%c0_56, %c0_57] : memref<1x64xf32, #tpu.memory_space<vmem>>, vector<1x64xf32>
    %c0_58 = arith.constant 0 : index
    %c0_59 = arith.constant 0 : index
    %142 = vector.load %arg14[%c0_58, %c0_59] : memref<64x32xbf16, #tpu.memory_space<vmem>>, vector<64x32xbf16>
    %c0_60 = arith.constant 0 : index
    %c0_61 = arith.constant 0 : index
    %143 = vector.load %arg15[%c0_60, %c0_61] : memref<1x32xf32, #tpu.memory_space<vmem>>, vector<1x32xf32>
    %c0_62 = arith.constant 0 : index
    %c0_63 = arith.constant 0 : index
    %144 = vector.load %arg16[%c0_62, %c0_63] : memref<1x32xf32, #tpu.memory_space<vmem>>, vector<1x32xf32>
    %c0_64 = arith.constant 0 : index
    %c0_65 = arith.constant 0 : index
    %145 = vector.load %arg17[%c0_64, %c0_65] : memref<1x32xf32, #tpu.memory_space<vmem>>, vector<1x32xf32>
    %146 = arith.truncf %139 : vector<8x32xf32> to vector<8x32xbf16>
    %cst_66 = arith.constant dense<0.000000e+00> : vector<8x64xf32>
    %147 = tpu.matmul %146, %140, %cst_66 {dimension_numbers = #tpu.dot_dimension_numbers<[1], [0], [0], [1], [0, 0, 1, 1], [], []>} : vector<8x32xbf16>, vector<32x64xbf16>, vector<8x64xf32> -> vector<8x64xf32>
    %148 = vector.broadcast %141 : vector<1x64xf32> to vector<8x64xf32>
    %149 = arith.addf %147, %148 : vector<8x64xf32>
    %cst_67 = arith.constant 0.000000e+00 : f32
    %150 = vector.broadcast %cst_67 : f32 to vector<8x64xf32>
    %151 = arith.maximumf %149, %150 : vector<8x64xf32>
    %152 = arith.truncf %151 : vector<8x64xf32> to vector<8x64xbf16>
    %cst_68 = arith.constant dense<0.000000e+00> : vector<8x32xf32>
    %153 = tpu.matmul %152, %142, %cst_68 {dimension_numbers = #tpu.dot_dimension_numbers<[1], [0], [0], [1], [0, 0, 1, 1], [], []>} : vector<8x64xbf16>, vector<64x32xbf16>, vector<8x32xf32> -> vector<8x32xf32>
    %154 = vector.broadcast %143 : vector<1x32xf32> to vector<8x32xf32>
    %155 = arith.addf %153, %154 : vector<8x32xf32>
    %156 = arith.addf %139, %155 : vector<8x32xf32>
    %cst_69 = arith.constant dense<0.000000e+00> : vector<8xf32>
    %157 = vector.multi_reduction <add>, %156, %cst_69 [1] : vector<8x32xf32> to vector<8xf32>
    %158 = vector.shape_cast %157 : vector<8xf32> to vector<8x1xf32>
    %cst_70 = arith.constant 3.200000e+01 : f32
    %159 = vector.broadcast %cst_70 : f32 to vector<8x1xf32>
    %160 = arith.divf %158, %159 : vector<8x1xf32>
    %161 = vector.broadcast %160 : vector<8x1xf32> to vector<8x32xf32>
    %162 = arith.subf %156, %161 : vector<8x32xf32>
    %163 = arith.mulf %162, %162 : vector<8x32xf32>
    %cst_71 = arith.constant dense<0.000000e+00> : vector<8xf32>
    %164 = vector.multi_reduction <add>, %163, %cst_71 [1] : vector<8x32xf32> to vector<8xf32>
    %165 = vector.shape_cast %164 : vector<8xf32> to vector<8x1xf32>
    %cst_72 = arith.constant 3.200000e+01 : f32
    %166 = vector.broadcast %cst_72 : f32 to vector<8x1xf32>
    %167 = arith.divf %165, %166 : vector<8x1xf32>
    %168 = vector.broadcast %160 : vector<8x1xf32> to vector<8x32xf32>
    %169 = arith.subf %156, %168 : vector<8x32xf32>
    %cst_73 = arith.constant 9.99999974E-6 : f32
    %170 = vector.broadcast %cst_73 : f32 to vector<8x1xf32>
    %171 = arith.addf %167, %170 : vector<8x1xf32>
    %172 = math.rsqrt %171 : vector<8x1xf32>
    %173 = vector.broadcast %172 : vector<8x1xf32> to vector<8x32xf32>
    %174 = arith.mulf %169, %173 : vector<8x32xf32>
    %175 = vector.broadcast %144 : vector<1x32xf32> to vector<8x32xf32>
    %176 = arith.mulf %174, %175 : vector<8x32xf32>
    %177 = vector.broadcast %145 : vector<1x32xf32> to vector<8x32xf32>
    %178 = arith.addf %176, %177 : vector<8x32xf32>
    %c0_74 = arith.constant 0 : index
    %c0_75 = arith.constant 0 : index
    %c0_76 = arith.constant 0 : index
    %179 = vector.load %arg18[%c0_74, %c0_75, %c0_76] : memref<1x8x32xf32, #tpu.memory_space<vmem>>, vector<1x8x32xf32>
    %180 = vector.shape_cast %179 : vector<1x8x32xf32> to vector<8x32xf32>
    %181 = vector.shape_cast %178 : vector<8x32xf32> to vector<1x8x32xf32>
    tpu.vector_store %arg18[%c0_74, %c0_75, %c0_76], %181 {strides = array<i32>} : memref<1x8x32xf32, #tpu.memory_space<vmem>>, vector<1x8x32xf32>,
    return
  }
  func.func @transform_0(%arg0: i32) -> (i32, i32, i32) {
    %c0_i32 = arith.constant 0 : i32
    %c0_i32_0 = arith.constant 0 : i32
    %c0_i32_1 = arith.constant 0 : i32
    return %arg0, %c0_i32, %c0_i32_0 : i32, i32, i32
  }
  func.func @transform_1(%arg0: i32) -> (i32, i32) {
    %c0_i32 = arith.constant 0 : i32
    %c0_i32_0 = arith.constant 0 : i32
    %c0_i32_1 = arith.constant 0 : i32
    return %c0_i32, %c0_i32_0 : i32, i32
  }
  func.func @transform_2(%arg0: i32) -> (i32, i32) {
    %c0_i32 = arith.constant 0 : i32
    %c0_i32_0 = arith.constant 0 : i32
    %c0_i32_1 = arith.constant 0 : i32
    return %c0_i32, %c0_i32_0 : i32, i32
  }
  func.func @transform_3(%arg0: i32) -> (i32, i32) {
    %c0_i32 = arith.constant 0 : i32
    %c0_i32_0 = arith.constant 0 : i32
    %c0_i32_1 = arith.constant 0 : i32
    return %c0_i32, %c0_i32_0 : i32, i32
  }
  func.func @transform_4(%arg0: i32) -> (i32, i32) {
    %c0_i32 = arith.constant 0 : i32
    %c0_i32_0 = arith.constant 0 : i32
    %c0_i32_1 = arith.constant 0 : i32
    return %c0_i32, %c0_i32_0 : i32, i32
  }
  func.func @transform_5(%arg0: i32) -> (i32, i32) {
    %c0_i32 = arith.constant 0 : i32
    %c0_i32_0 = arith.constant 0 : i32
    %c0_i32_1 = arith.constant 0 : i32
    return %c0_i32, %c0_i32_0 : i32, i32
  }
  func.func @transform_6(%arg0: i32) -> (i32, i32) {
    %c0_i32 = arith.constant 0 : i32
    %c0_i32_0 = arith.constant 0 : i32
    %c0_i32_1 = arith.constant 0 : i32
    return %c0_i32, %c0_i32_0 : i32, i32
  }
  func.func @transform_7(%arg0: i32) -> (i32, i32) {
    %c0_i32 = arith.constant 0 : i32
    %c0_i32_0 = arith.constant 0 : i32
    %c0_i32_1 = arith.constant 0 : i32
    return %c0_i32, %c0_i32_0 : i32, i32
  }
  func.func @transform_8(%arg0: i32) -> (i32, i32) {
    %c0_i32 = arith.constant 0 : i32
    %c0_i32_0 = arith.constant 0 : i32
    %c0_i32_1 = arith.constant 0 : i32
    return %c0_i32, %c0_i32_0 : i32, i32
  }
  func.func @transform_9(%arg0: i32) -> (i32, i32) {
    %c0_i32 = arith.constant 0 : i32
    %c0_i32_0 = arith.constant 0 : i32
    %c0_i32_1 = arith.constant 0 : i32
    return %c0_i32, %c0_i32_0 : i32, i32
  }
  func.func @transform_10(%arg0: i32) -> (i32, i32) {
    %c0_i32 = arith.constant 0 : i32
    %c0_i32_0 = arith.constant 0 : i32
    %c0_i32_1 = arith.constant 0 : i32
    return %c0_i32, %c0_i32_0 : i32, i32
  }
  func.func @transform_11(%arg0: i32) -> (i32, i32) {
    %c0_i32 = arith.constant 0 : i32
    %c0_i32_0 = arith.constant 0 : i32
    %c0_i32_1 = arith.constant 0 : i32
    return %c0_i32, %c0_i32_0 : i32, i32
  }
  func.func @transform_12(%arg0: i32) -> (i32, i32) {
    %c0_i32 = arith.constant 0 : i32
    %c0_i32_0 = arith.constant 0 : i32
    %c0_i32_1 = arith.constant 0 : i32
    return %c0_i32, %c0_i32_0 : i32, i32
  }
  func.func @transform_13(%arg0: i32) -> (i32, i32) {
    %c0_i32 = arith.constant 0 : i32
    %c0_i32_0 = arith.constant 0 : i32
    %c0_i32_1 = arith.constant 0 : i32
    return %c0_i32, %c0_i32_0 : i32, i32
  }
  func.func @transform_14(%arg0: i32) -> (i32, i32) {
    %c0_i32 = arith.constant 0 : i32
    %c0_i32_0 = arith.constant 0 : i32
    %c0_i32_1 = arith.constant 0 : i32
    return %c0_i32, %c0_i32_0 : i32, i32
  }
  func.func @transform_15(%arg0: i32) -> (i32, i32) {
    %c0_i32 = arith.constant 0 : i32
    %c0_i32_0 = arith.constant 0 : i32
    %c0_i32_1 = arith.constant 0 : i32
    return %c0_i32, %c0_i32_0 : i32, i32
  }
  func.func @transform_16(%arg0: i32) -> (i32, i32) {
    %c0_i32 = arith.constant 0 : i32
    %c0_i32_0 = arith.constant 0 : i32
    %c0_i32_1 = arith.constant 0 : i32
    return %c0_i32, %c0_i32_0 : i32, i32
  }
  func.func @transform_17(%arg0: i32) -> (i32, i32, i32) {
    %c0_i32 = arith.constant 0 : i32
    %c0_i32_0 = arith.constant 0 : i32
    %c0_i32_1 = arith.constant 0 : i32
    return %arg0, %c0_i32, %c0_i32_0 : i32, i32, i32
  }
}

module attributes {stable_mosaic.version = 11 : i64} {
  func.func @_decoder_layer_kernel(%arg0: i32, %arg1: memref<1x8x32xf32, #tpu.memory_space<vmem>>, %arg2: memref<1x8x32xf32, #tpu.memory_space<vmem>>, %arg3: memref<32x32xbf16, #tpu.memory_space<vmem>>, %arg4: memref<32x32xbf16, #tpu.memory_space<vmem>>, %arg5: memref<32x32xbf16, #tpu.memory_space<vmem>>, %arg6: memref<32x32xbf16, #tpu.memory_space<vmem>>, %arg7: memref<1x32xf32, #tpu.memory_space<vmem>>, %arg8: memref<1x32xf32, #tpu.memory_space<vmem>>, %arg9: memref<1x32xf32, #tpu.memory_space<vmem>>, %arg10: memref<1x32xf32, #tpu.memory_space<vmem>>, %arg11: memref<1x32xf32, #tpu.memory_space<vmem>>, %arg12: memref<1x32xf32, #tpu.memory_space<vmem>>, %arg13: memref<32x32xbf16, #tpu.memory_space<vmem>>, %arg14: memref<32x32xbf16, #tpu.memory_space<vmem>>, %arg15: memref<32x32xbf16, #tpu.memory_space<vmem>>, %arg16: memref<32x32xbf16, #tpu.memory_space<vmem>>, %arg17: memref<1x32xf32, #tpu.memory_space<vmem>>, %arg18: memref<1x32xf32, #tpu.memory_space<vmem>>, %arg19: memref<1x32xf32, #tpu.memory_space<vmem>>, %arg20: memref<1x32xf32, #tpu.memory_space<vmem>>, %arg21: memref<1x32xf32, #tpu.memory_space<vmem>>, %arg22: memref<1x32xf32, #tpu.memory_space<vmem>>, %arg23: memref<32x64xbf16, #tpu.memory_space<vmem>>, %arg24: memref<1x64xf32, #tpu.memory_space<vmem>>, %arg25: memref<64x32xbf16, #tpu.memory_space<vmem>>, %arg26: memref<1x32xf32, #tpu.memory_space<vmem>>, %arg27: memref<1x32xf32, #tpu.memory_space<vmem>>, %arg28: memref<1x32xf32, #tpu.memory_space<vmem>>, %arg29: memref<1x8x32xf32, #tpu.memory_space<vmem>>) attributes {dimension_semantics = [#tpu.dimension_semantics<parallel>], iteration_bounds = array<i64: 2>, scalar_prefetch = 0 : i64, scratch_operands = 0 : i64, tpu.core_type = #tpu.core_type<tc>, window_params = [{transform_indices = @transform_0, window_bounds = array<i64: 1, 8, 32>}, {transform_indices = @transform_1, window_bounds = array<i64: 1, 8, 32>}, {pipeline_mode = #tpu.pipeline_mode<synchronous>, transform_indices = @transform_2, window_bounds = array<i64: 32, 32>}, {pipeline_mode = #tpu.pipeline_mode<synchronous>, transform_indices = @transform_3, window_bounds = array<i64: 32, 32>}, {pipeline_mode = #tpu.pipeline_mode<synchronous>, transform_indices = @transform_4, window_bounds = array<i64: 32, 32>}, {pipeline_mode = #tpu.pipeline_mode<synchronous>, transform_indices = @transform_5, window_bounds = array<i64: 32, 32>}, {pipeline_mode = #tpu.pipeline_mode<synchronous>, transform_indices = @transform_6, window_bounds = array<i64: 1, 32>}, {pipeline_mode = #tpu.pipeline_mode<synchronous>, transform_indices = @transform_7, window_bounds = array<i64: 1, 32>}, {pipeline_mode = #tpu.pipeline_mode<synchronous>, transform_indices = @transform_8, window_bounds = array<i64: 1, 32>}, {pipeline_mode = #tpu.pipeline_mode<synchronous>, transform_indices = @transform_9, window_bounds = array<i64: 1, 32>}, {pipeline_mode = #tpu.pipeline_mode<synchronous>, transform_indices = @transform_10, window_bounds = array<i64: 1, 32>}, {pipeline_mode = #tpu.pipeline_mode<synchronous>, transform_indices = @transform_11, window_bounds = array<i64: 1, 32>}, {pipeline_mode = #tpu.pipeline_mode<synchronous>, transform_indices = @transform_12, window_bounds = array<i64: 32, 32>}, {pipeline_mode = #tpu.pipeline_mode<synchronous>, transform_indices = @transform_13, window_bounds = array<i64: 32, 32>}, {pipeline_mode = #tpu.pipeline_mode<synchronous>, transform_indices = @transform_14, window_bounds = array<i64: 32, 32>}, {pipeline_mode = #tpu.pipeline_mode<synchronous>, transform_indices = @transform_15, window_bounds = array<i64: 32, 32>}, {pipeline_mode = #tpu.pipeline_mode<synchronous>, transform_indices = @transform_16, window_bounds = array<i64: 1, 32>}, {pipeline_mode = #tpu.pipeline_mode<synchronous>, transform_indices = @transform_17, window_bounds = array<i64: 1, 32>}, {pipeline_mode = #tpu.pipeline_mode<synchronous>, transform_indices = @transform_18, window_bounds = array<i64: 1, 32>}, {pipeline_mode = #tpu.pipeline_mode<synchronous>, transform_indices = @transform_19, window_bounds = array<i64: 1, 32>}, {pipeline_mode = #tpu.pipeline_mode<synchronous>, transform_indices = @transform_20, window_bounds = array<i64: 1, 32>}, {pipeline_mode = #tpu.pipeline_mode<synchronous>, transform_indices = @transform_21, window_bounds = array<i64: 1, 32>}, {pipeline_mode = #tpu.pipeline_mode<synchronous>, transform_indices = @transform_22, window_bounds = array<i64: 32, 64>}, {pipeline_mode = #tpu.pipeline_mode<synchronous>, transform_indices = @transform_23, window_bounds = array<i64: 1, 64>}, {pipeline_mode = #tpu.pipeline_mode<synchronous>, transform_indices = @transform_24, window_bounds = array<i64: 64, 32>}, {pipeline_mode = #tpu.pipeline_mode<synchronous>, transform_indices = @transform_25, window_bounds = array<i64: 1, 32>}, {pipeline_mode = #tpu.pipeline_mode<synchronous>, transform_indices = @transform_26, window_bounds = array<i64: 1, 32>}, {pipeline_mode = #tpu.pipeline_mode<synchronous>, transform_indices = @transform_27, window_bounds = array<i64: 1, 32>}, {transform_indices = @transform_28, window_bounds = array<i64: 1, 8, 32>}]} {
    %c0 = arith.constant 0 : index
    %c0_0 = arith.constant 0 : index
    %c0_1 = arith.constant 0 : index
    %0 = vector.load %arg1[%c0, %c0_0, %c0_1] : memref<1x8x32xf32, #tpu.memory_space<vmem>>, vector<1x8x32xf32>
    %1 = vector.shape_cast %0 : vector<1x8x32xf32> to vector<8x32xf32>
    %c0_2 = arith.constant 0 : index
    %c0_3 = arith.constant 0 : index
    %c0_4 = arith.constant 0 : index
    %2 = vector.load %arg2[%c0_2, %c0_3, %c0_4] : memref<1x8x32xf32, #tpu.memory_space<vmem>>, vector<1x8x32xf32>
    %3 = vector.shape_cast %2 : vector<1x8x32xf32> to vector<8x32xf32>
    %c0_5 = arith.constant 0 : index
    %c0_6 = arith.constant 0 : index
    %4 = vector.load %arg3[%c0_5, %c0_6] : memref<32x32xbf16, #tpu.memory_space<vmem>>, vector<32x32xbf16>
    %c0_7 = arith.constant 0 : index
    %c0_8 = arith.constant 0 : index
    %5 = vector.load %arg4[%c0_7, %c0_8] : memref<32x32xbf16, #tpu.memory_space<vmem>>, vector<32x32xbf16>
    %c0_9 = arith.constant 0 : index
    %c0_10 = arith.constant 0 : index
    %6 = vector.load %arg5[%c0_9, %c0_10] : memref<32x32xbf16, #tpu.memory_space<vmem>>, vector<32x32xbf16>
    %c0_11 = arith.constant 0 : index
    %c0_12 = arith.constant 0 : index
    %7 = vector.load %arg6[%c0_11, %c0_12] : memref<32x32xbf16, #tpu.memory_space<vmem>>, vector<32x32xbf16>
    %c0_13 = arith.constant 0 : index
    %c0_14 = arith.constant 0 : index
    %8 = vector.load %arg7[%c0_13, %c0_14] : memref<1x32xf32, #tpu.memory_space<vmem>>, vector<1x32xf32>
    %c0_15 = arith.constant 0 : index
    %c0_16 = arith.constant 0 : index
    %9 = vector.load %arg8[%c0_15, %c0_16] : memref<1x32xf32, #tpu.memory_space<vmem>>, vector<1x32xf32>
    %c0_17 = arith.constant 0 : index
    %c0_18 = arith.constant 0 : index
    %10 = vector.load %arg9[%c0_17, %c0_18] : memref<1x32xf32, #tpu.memory_space<vmem>>, vector<1x32xf32>
    %c0_19 = arith.constant 0 : index
    %c0_20 = arith.constant 0 : index
    %11 = vector.load %arg10[%c0_19, %c0_20] : memref<1x32xf32, #tpu.memory_space<vmem>>, vector<1x32xf32>
    %c0_21 = arith.constant 0 : index
    %c0_22 = arith.constant 0 : index
    %12 = vector.load %arg11[%c0_21, %c0_22] : memref<1x32xf32, #tpu.memory_space<vmem>>, vector<1x32xf32>
    %c0_23 = arith.constant 0 : index
    %c0_24 = arith.constant 0 : index
    %13 = vector.load %arg12[%c0_23, %c0_24] : memref<1x32xf32, #tpu.memory_space<vmem>>, vector<1x32xf32>
    %14 = arith.truncf %1 : vector<8x32xf32> to vector<8x32xbf16>
    %15 = arith.truncf %1 : vector<8x32xf32> to vector<8x32xbf16>
    %cst = arith.constant dense<0.000000e+00> : vector<8x32xf32>
    %16 = tpu.matmul %14, %4, %cst {dimension_numbers = #tpu.dot_dimension_numbers<[1], [0], [0], [1], [0, 0, 1, 1], [], []>} : vector<8x32xbf16>, vector<32x32xbf16>, vector<8x32xf32> -> vector<8x32xf32>
    %17 = vector.broadcast %8 : vector<1x32xf32> to vector<8x32xf32>
    %18 = arith.addf %16, %17 : vector<8x32xf32>
    %19 = arith.truncf %18 : vector<8x32xf32> to vector<8x32xbf16>
    %cst_25 = arith.constant dense<0.000000e+00> : vector<8x32xf32>
    %20 = tpu.matmul %15, %5, %cst_25 {dimension_numbers = #tpu.dot_dimension_numbers<[1], [0], [0], [1], [0, 0, 1, 1], [], []>} : vector<8x32xbf16>, vector<32x32xbf16>, vector<8x32xf32> -> vector<8x32xf32>
    %21 = vector.broadcast %9 : vector<1x32xf32> to vector<8x32xf32>
    %22 = arith.addf %20, %21 : vector<8x32xf32>
    %23 = arith.truncf %22 : vector<8x32xf32> to vector<8x32xbf16>
    %cst_26 = arith.constant dense<0.000000e+00> : vector<8x32xf32>
    %24 = tpu.matmul %15, %6, %cst_26 {dimension_numbers = #tpu.dot_dimension_numbers<[1], [0], [0], [1], [0, 0, 1, 1], [], []>} : vector<8x32xbf16>, vector<32x32xbf16>, vector<8x32xf32> -> vector<8x32xf32>
    %25 = vector.broadcast %10 : vector<1x32xf32> to vector<8x32xf32>
    %26 = arith.addf %24, %25 : vector<8x32xf32>
    %27 = arith.truncf %26 : vector<8x32xf32> to vector<8x32xbf16>
    %cst_27 = arith.constant 0.000000e+00 : f32
    %28 = vector.broadcast %cst_27 : f32 to vector<8x32xf32>
    %29 = vector.extract_strided_slice %19 {offsets = [0, 0], sizes = [8, 8], strides = [1, 1]} : vector<8x32xbf16> to vector<8x8xbf16>
    %30 = vector.extract_strided_slice %23 {offsets = [0, 0], sizes = [8, 8], strides = [1, 1]} : vector<8x32xbf16> to vector<8x8xbf16>
    %31 = vector.extract_strided_slice %27 {offsets = [0, 0], sizes = [8, 8], strides = [1, 1]} : vector<8x32xbf16> to vector<8x8xbf16>
    %cst_28 = arith.constant dense<0.000000e+00> : vector<8x8xf32>
    %32 = tpu.matmul %29, %30, %cst_28 {dimension_numbers = #tpu.dot_dimension_numbers<[1], [1], [0], [0], [0, 0, 1, 0], [], []>} : vector<8x8xbf16>, vector<8x8xbf16>, vector<8x8xf32> -> vector<8x8xf32>
    %cst_29 = arith.constant 0.353553385 : f32
    %33 = vector.broadcast %cst_29 : f32 to vector<8x8xf32>
    %34 = arith.mulf %32, %33 : vector<8x8xf32>
    %cst_30 = arith.constant dense<0xFF800000> : vector<8xf32>
    %35 = vector.multi_reduction <maximumf>, %34, %cst_30 [1] : vector<8x8xf32> to vector<8xf32>
    %36 = vector.shape_cast %35 : vector<8xf32> to vector<8x1xf32>
    %37 = vector.broadcast %36 : vector<8x1xf32> to vector<8x8xf32>
    %38 = arith.subf %34, %37 : vector<8x8xf32>
    %39 = math.exp %38 : vector<8x8xf32>
    %cst_31 = arith.constant dense<0.000000e+00> : vector<8xf32>
    %40 = vector.multi_reduction <add>, %39, %cst_31 [1] : vector<8x8xf32> to vector<8xf32>
    %41 = vector.shape_cast %40 : vector<8xf32> to vector<8x1xf32>
    %42 = tpu.reciprocal %41 {approx = true} : vector<8x1xf32> -> vector<8x1xf32>
    %43 = vector.broadcast %42 : vector<8x1xf32> to vector<8x8xf32>
    %44 = arith.mulf %39, %43 : vector<8x8xf32>
    %45 = arith.truncf %44 : vector<8x8xf32> to vector<8x8xbf16>
    %cst_32 = arith.constant dense<0.000000e+00> : vector<8x8xf32>
    %46 = tpu.matmul %45, %31, %cst_32 {dimension_numbers = #tpu.dot_dimension_numbers<[1], [0], [0], [1], [0, 0, 1, 1], [], []>} : vector<8x8xbf16>, vector<8x8xbf16>, vector<8x8xf32> -> vector<8x8xf32>
    %47 = arith.truncf %46 : vector<8x8xf32> to vector<8x8xbf16>
    %48 = vector.extract_strided_slice %7 {offsets = [0, 0], sizes = [8, 32], strides = [1, 1]} : vector<32x32xbf16> to vector<8x32xbf16>
    %cst_33 = arith.constant dense<0.000000e+00> : vector<8x32xf32>
    %49 = tpu.matmul %47, %48, %cst_33 {dimension_numbers = #tpu.dot_dimension_numbers<[1], [0], [0], [1], [0, 0, 1, 1], [], []>} : vector<8x8xbf16>, vector<8x32xbf16>, vector<8x32xf32> -> vector<8x32xf32>
    %50 = arith.addf %28, %49 : vector<8x32xf32>
    %51 = vector.extract_strided_slice %19 {offsets = [0, 8], sizes = [8, 8], strides = [1, 1]} : vector<8x32xbf16> to vector<8x8xbf16>
    %52 = vector.extract_strided_slice %23 {offsets = [0, 8], sizes = [8, 8], strides = [1, 1]} : vector<8x32xbf16> to vector<8x8xbf16>
    %53 = vector.extract_strided_slice %27 {offsets = [0, 8], sizes = [8, 8], strides = [1, 1]} : vector<8x32xbf16> to vector<8x8xbf16>
    %cst_34 = arith.constant dense<0.000000e+00> : vector<8x8xf32>
    %54 = tpu.matmul %51, %52, %cst_34 {dimension_numbers = #tpu.dot_dimension_numbers<[1], [1], [0], [0], [0, 0, 1, 0], [], []>} : vector<8x8xbf16>, vector<8x8xbf16>, vector<8x8xf32> -> vector<8x8xf32>
    %cst_35 = arith.constant 0.353553385 : f32
    %55 = vector.broadcast %cst_35 : f32 to vector<8x8xf32>
    %56 = arith.mulf %54, %55 : vector<8x8xf32>
    %cst_36 = arith.constant dense<0xFF800000> : vector<8xf32>
    %57 = vector.multi_reduction <maximumf>, %56, %cst_36 [1] : vector<8x8xf32> to vector<8xf32>
    %58 = vector.shape_cast %57 : vector<8xf32> to vector<8x1xf32>
    %59 = vector.broadcast %58 : vector<8x1xf32> to vector<8x8xf32>
    %60 = arith.subf %56, %59 : vector<8x8xf32>
    %61 = math.exp %60 : vector<8x8xf32>
    %cst_37 = arith.constant dense<0.000000e+00> : vector<8xf32>
    %62 = vector.multi_reduction <add>, %61, %cst_37 [1] : vector<8x8xf32> to vector<8xf32>
    %63 = vector.shape_cast %62 : vector<8xf32> to vector<8x1xf32>
    %64 = tpu.reciprocal %63 {approx = true} : vector<8x1xf32> -> vector<8x1xf32>
    %65 = vector.broadcast %64 : vector<8x1xf32> to vector<8x8xf32>
    %66 = arith.mulf %61, %65 : vector<8x8xf32>
    %67 = arith.truncf %66 : vector<8x8xf32> to vector<8x8xbf16>
    %cst_38 = arith.constant dense<0.000000e+00> : vector<8x8xf32>
    %68 = tpu.matmul %67, %53, %cst_38 {dimension_numbers = #tpu.dot_dimension_numbers<[1], [0], [0], [1], [0, 0, 1, 1], [], []>} : vector<8x8xbf16>, vector<8x8xbf16>, vector<8x8xf32> -> vector<8x8xf32>
    %69 = arith.truncf %68 : vector<8x8xf32> to vector<8x8xbf16>
    %70 = vector.extract_strided_slice %7 {offsets = [8, 0], sizes = [8, 32], strides = [1, 1]} : vector<32x32xbf16> to vector<8x32xbf16>
    %cst_39 = arith.constant dense<0.000000e+00> : vector<8x32xf32>
    %71 = tpu.matmul %69, %70, %cst_39 {dimension_numbers = #tpu.dot_dimension_numbers<[1], [0], [0], [1], [0, 0, 1, 1], [], []>} : vector<8x8xbf16>, vector<8x32xbf16>, vector<8x32xf32> -> vector<8x32xf32>
    %72 = arith.addf %50, %71 : vector<8x32xf32>
    %73 = vector.extract_strided_slice %19 {offsets = [0, 16], sizes = [8, 8], strides = [1, 1]} : vector<8x32xbf16> to vector<8x8xbf16>
    %74 = vector.extract_strided_slice %23 {offsets = [0, 16], sizes = [8, 8], strides = [1, 1]} : vector<8x32xbf16> to vector<8x8xbf16>
    %75 = vector.extract_strided_slice %27 {offsets = [0, 16], sizes = [8, 8], strides = [1, 1]} : vector<8x32xbf16> to vector<8x8xbf16>
    %cst_40 = arith.constant dense<0.000000e+00> : vector<8x8xf32>
    %76 = tpu.matmul %73, %74, %cst_40 {dimension_numbers = #tpu.dot_dimension_numbers<[1], [1], [0], [0], [0, 0, 1, 0], [], []>} : vector<8x8xbf16>, vector<8x8xbf16>, vector<8x8xf32> -> vector<8x8xf32>
    %cst_41 = arith.constant 0.353553385 : f32
    %77 = vector.broadcast %cst_41 : f32 to vector<8x8xf32>
    %78 = arith.mulf %76, %77 : vector<8x8xf32>
    %cst_42 = arith.constant dense<0xFF800000> : vector<8xf32>
    %79 = vector.multi_reduction <maximumf>, %78, %cst_42 [1] : vector<8x8xf32> to vector<8xf32>
    %80 = vector.shape_cast %79 : vector<8xf32> to vector<8x1xf32>
    %81 = vector.broadcast %80 : vector<8x1xf32> to vector<8x8xf32>
    %82 = arith.subf %78, %81 : vector<8x8xf32>
    %83 = math.exp %82 : vector<8x8xf32>
    %cst_43 = arith.constant dense<0.000000e+00> : vector<8xf32>
    %84 = vector.multi_reduction <add>, %83, %cst_43 [1] : vector<8x8xf32> to vector<8xf32>
    %85 = vector.shape_cast %84 : vector<8xf32> to vector<8x1xf32>
    %86 = tpu.reciprocal %85 {approx = true} : vector<8x1xf32> -> vector<8x1xf32>
    %87 = vector.broadcast %86 : vector<8x1xf32> to vector<8x8xf32>
    %88 = arith.mulf %83, %87 : vector<8x8xf32>
    %89 = arith.truncf %88 : vector<8x8xf32> to vector<8x8xbf16>
    %cst_44 = arith.constant dense<0.000000e+00> : vector<8x8xf32>
    %90 = tpu.matmul %89, %75, %cst_44 {dimension_numbers = #tpu.dot_dimension_numbers<[1], [0], [0], [1], [0, 0, 1, 1], [], []>} : vector<8x8xbf16>, vector<8x8xbf16>, vector<8x8xf32> -> vector<8x8xf32>
    %91 = arith.truncf %90 : vector<8x8xf32> to vector<8x8xbf16>
    %92 = vector.extract_strided_slice %7 {offsets = [16, 0], sizes = [8, 32], strides = [1, 1]} : vector<32x32xbf16> to vector<8x32xbf16>
    %cst_45 = arith.constant dense<0.000000e+00> : vector<8x32xf32>
    %93 = tpu.matmul %91, %92, %cst_45 {dimension_numbers = #tpu.dot_dimension_numbers<[1], [0], [0], [1], [0, 0, 1, 1], [], []>} : vector<8x8xbf16>, vector<8x32xbf16>, vector<8x32xf32> -> vector<8x32xf32>
    %94 = arith.addf %72, %93 : vector<8x32xf32>
    %95 = vector.extract_strided_slice %19 {offsets = [0, 24], sizes = [8, 8], strides = [1, 1]} : vector<8x32xbf16> to vector<8x8xbf16>
    %96 = vector.extract_strided_slice %23 {offsets = [0, 24], sizes = [8, 8], strides = [1, 1]} : vector<8x32xbf16> to vector<8x8xbf16>
    %97 = vector.extract_strided_slice %27 {offsets = [0, 24], sizes = [8, 8], strides = [1, 1]} : vector<8x32xbf16> to vector<8x8xbf16>
    %cst_46 = arith.constant dense<0.000000e+00> : vector<8x8xf32>
    %98 = tpu.matmul %95, %96, %cst_46 {dimension_numbers = #tpu.dot_dimension_numbers<[1], [1], [0], [0], [0, 0, 1, 0], [], []>} : vector<8x8xbf16>, vector<8x8xbf16>, vector<8x8xf32> -> vector<8x8xf32>
    %cst_47 = arith.constant 0.353553385 : f32
    %99 = vector.broadcast %cst_47 : f32 to vector<8x8xf32>
    %100 = arith.mulf %98, %99 : vector<8x8xf32>
    %cst_48 = arith.constant dense<0xFF800000> : vector<8xf32>
    %101 = vector.multi_reduction <maximumf>, %100, %cst_48 [1] : vector<8x8xf32> to vector<8xf32>
    %102 = vector.shape_cast %101 : vector<8xf32> to vector<8x1xf32>
    %103 = vector.broadcast %102 : vector<8x1xf32> to vector<8x8xf32>
    %104 = arith.subf %100, %103 : vector<8x8xf32>
    %105 = math.exp %104 : vector<8x8xf32>
    %cst_49 = arith.constant dense<0.000000e+00> : vector<8xf32>
    %106 = vector.multi_reduction <add>, %105, %cst_49 [1] : vector<8x8xf32> to vector<8xf32>
    %107 = vector.shape_cast %106 : vector<8xf32> to vector<8x1xf32>
    %108 = tpu.reciprocal %107 {approx = true} : vector<8x1xf32> -> vector<8x1xf32>
    %109 = vector.broadcast %108 : vector<8x1xf32> to vector<8x8xf32>
    %110 = arith.mulf %105, %109 : vector<8x8xf32>
    %111 = arith.truncf %110 : vector<8x8xf32> to vector<8x8xbf16>
    %cst_50 = arith.constant dense<0.000000e+00> : vector<8x8xf32>
    %112 = tpu.matmul %111, %97, %cst_50 {dimension_numbers = #tpu.dot_dimension_numbers<[1], [0], [0], [1], [0, 0, 1, 1], [], []>} : vector<8x8xbf16>, vector<8x8xbf16>, vector<8x8xf32> -> vector<8x8xf32>
    %113 = arith.truncf %112 : vector<8x8xf32> to vector<8x8xbf16>
    %114 = vector.extract_strided_slice %7 {offsets = [24, 0], sizes = [8, 32], strides = [1, 1]} : vector<32x32xbf16> to vector<8x32xbf16>
    %cst_51 = arith.constant dense<0.000000e+00> : vector<8x32xf32>
    %115 = tpu.matmul %113, %114, %cst_51 {dimension_numbers = #tpu.dot_dimension_numbers<[1], [0], [0], [1], [0, 0, 1, 1], [], []>} : vector<8x8xbf16>, vector<8x32xbf16>, vector<8x32xf32> -> vector<8x32xf32>
    %116 = arith.addf %94, %115 : vector<8x32xf32>
    %117 = arith.addf %1, %116 : vector<8x32xf32>
    %118 = vector.broadcast %11 : vector<1x32xf32> to vector<8x32xf32>
    %119 = arith.addf %117, %118 : vector<8x32xf32>
    %cst_52 = arith.constant dense<0.000000e+00> : vector<8xf32>
    %120 = vector.multi_reduction <add>, %119, %cst_52 [1] : vector<8x32xf32> to vector<8xf32>
    %121 = vector.shape_cast %120 : vector<8xf32> to vector<8x1xf32>
    %cst_53 = arith.constant 3.200000e+01 : f32
    %122 = vector.broadcast %cst_53 : f32 to vector<8x1xf32>
    %123 = arith.divf %121, %122 : vector<8x1xf32>
    %124 = vector.broadcast %123 : vector<8x1xf32> to vector<8x32xf32>
    %125 = arith.subf %119, %124 : vector<8x32xf32>
    %126 = arith.mulf %125, %125 : vector<8x32xf32>
    %cst_54 = arith.constant dense<0.000000e+00> : vector<8xf32>
    %127 = vector.multi_reduction <add>, %126, %cst_54 [1] : vector<8x32xf32> to vector<8xf32>
    %128 = vector.shape_cast %127 : vector<8xf32> to vector<8x1xf32>
    %cst_55 = arith.constant 3.200000e+01 : f32
    %129 = vector.broadcast %cst_55 : f32 to vector<8x1xf32>
    %130 = arith.divf %128, %129 : vector<8x1xf32>
    %131 = vector.broadcast %123 : vector<8x1xf32> to vector<8x32xf32>
    %132 = arith.subf %119, %131 : vector<8x32xf32>
    %cst_56 = arith.constant 9.99999974E-6 : f32
    %133 = vector.broadcast %cst_56 : f32 to vector<8x1xf32>
    %134 = arith.addf %130, %133 : vector<8x1xf32>
    %135 = math.rsqrt %134 : vector<8x1xf32>
    %136 = vector.broadcast %135 : vector<8x1xf32> to vector<8x32xf32>
    %137 = arith.mulf %132, %136 : vector<8x32xf32>
    %138 = vector.broadcast %12 : vector<1x32xf32> to vector<8x32xf32>
    %139 = arith.mulf %137, %138 : vector<8x32xf32>
    %140 = vector.broadcast %13 : vector<1x32xf32> to vector<8x32xf32>
    %141 = arith.addf %139, %140 : vector<8x32xf32>
    %c0_57 = arith.constant 0 : index
    %c0_58 = arith.constant 0 : index
    %142 = vector.load %arg13[%c0_57, %c0_58] : memref<32x32xbf16, #tpu.memory_space<vmem>>, vector<32x32xbf16>
    %c0_59 = arith.constant 0 : index
    %c0_60 = arith.constant 0 : index
    %143 = vector.load %arg14[%c0_59, %c0_60] : memref<32x32xbf16, #tpu.memory_space<vmem>>, vector<32x32xbf16>
    %c0_61 = arith.constant 0 : index
    %c0_62 = arith.constant 0 : index
    %144 = vector.load %arg15[%c0_61, %c0_62] : memref<32x32xbf16, #tpu.memory_space<vmem>>, vector<32x32xbf16>
    %c0_63 = arith.constant 0 : index
    %c0_64 = arith.constant 0 : index
    %145 = vector.load %arg16[%c0_63, %c0_64] : memref<32x32xbf16, #tpu.memory_space<vmem>>, vector<32x32xbf16>
    %c0_65 = arith.constant 0 : index
    %c0_66 = arith.constant 0 : index
    %146 = vector.load %arg17[%c0_65, %c0_66] : memref<1x32xf32, #tpu.memory_space<vmem>>, vector<1x32xf32>
    %c0_67 = arith.constant 0 : index
    %c0_68 = arith.constant 0 : index
    %147 = vector.load %arg18[%c0_67, %c0_68] : memref<1x32xf32, #tpu.memory_space<vmem>>, vector<1x32xf32>
    %c0_69 = arith.constant 0 : index
    %c0_70 = arith.constant 0 : index
    %148 = vector.load %arg19[%c0_69, %c0_70] : memref<1x32xf32, #tpu.memory_space<vmem>>, vector<1x32xf32>
    %c0_71 = arith.constant 0 : index
    %c0_72 = arith.constant 0 : index
    %149 = vector.load %arg20[%c0_71, %c0_72] : memref<1x32xf32, #tpu.memory_space<vmem>>, vector<1x32xf32>
    %c0_73 = arith.constant 0 : index
    %c0_74 = arith.constant 0 : index
    %150 = vector.load %arg21[%c0_73, %c0_74] : memref<1x32xf32, #tpu.memory_space<vmem>>, vector<1x32xf32>
    %c0_75 = arith.constant 0 : index
    %c0_76 = arith.constant 0 : index
    %151 = vector.load %arg22[%c0_75, %c0_76] : memref<1x32xf32, #tpu.memory_space<vmem>>, vector<1x32xf32>
    %152 = arith.truncf %141 : vector<8x32xf32> to vector<8x32xbf16>
    %153 = arith.truncf %3 : vector<8x32xf32> to vector<8x32xbf16>
    %cst_77 = arith.constant dense<0.000000e+00> : vector<8x32xf32>
    %154 = tpu.matmul %152, %142, %cst_77 {dimension_numbers = #tpu.dot_dimension_numbers<[1], [0], [0], [1], [0, 0, 1, 1], [], []>} : vector<8x32xbf16>, vector<32x32xbf16>, vector<8x32xf32> -> vector<8x32xf32>
    %155 = vector.broadcast %146 : vector<1x32xf32> to vector<8x32xf32>
    %156 = arith.addf %154, %155 : vector<8x32xf32>
    %157 = arith.truncf %156 : vector<8x32xf32> to vector<8x32xbf16>
    %cst_78 = arith.constant dense<0.000000e+00> : vector<8x32xf32>
    %158 = tpu.matmul %153, %143, %cst_78 {dimension_numbers = #tpu.dot_dimension_numbers<[1], [0], [0], [1], [0, 0, 1, 1], [], []>} : vector<8x32xbf16>, vector<32x32xbf16>, vector<8x32xf32> -> vector<8x32xf32>
    %159 = vector.broadcast %147 : vector<1x32xf32> to vector<8x32xf32>
    %160 = arith.addf %158, %159 : vector<8x32xf32>
    %161 = arith.truncf %160 : vector<8x32xf32> to vector<8x32xbf16>
    %cst_79 = arith.constant dense<0.000000e+00> : vector<8x32xf32>
    %162 = tpu.matmul %153, %144, %cst_79 {dimension_numbers = #tpu.dot_dimension_numbers<[1], [0], [0], [1], [0, 0, 1, 1], [], []>} : vector<8x32xbf16>, vector<32x32xbf16>, vector<8x32xf32> -> vector<8x32xf32>
    %163 = vector.broadcast %148 : vector<1x32xf32> to vector<8x32xf32>
    %164 = arith.addf %162, %163 : vector<8x32xf32>
    %165 = arith.truncf %164 : vector<8x32xf32> to vector<8x32xbf16>
    %cst_80 = arith.constant 0.000000e+00 : f32
    %166 = vector.broadcast %cst_80 : f32 to vector<8x32xf32>
    %167 = vector.extract_strided_slice %157 {offsets = [0, 0], sizes = [8, 8], strides = [1, 1]} : vector<8x32xbf16> to vector<8x8xbf16>
    %168 = vector.extract_strided_slice %161 {offsets = [0, 0], sizes = [8, 8], strides = [1, 1]} : vector<8x32xbf16> to vector<8x8xbf16>
    %169 = vector.extract_strided_slice %165 {offsets = [0, 0], sizes = [8, 8], strides = [1, 1]} : vector<8x32xbf16> to vector<8x8xbf16>
    %cst_81 = arith.constant dense<0.000000e+00> : vector<8x8xf32>
    %170 = tpu.matmul %167, %168, %cst_81 {dimension_numbers = #tpu.dot_dimension_numbers<[1], [1], [0], [0], [0, 0, 1, 0], [], []>} : vector<8x8xbf16>, vector<8x8xbf16>, vector<8x8xf32> -> vector<8x8xf32>
    %cst_82 = arith.constant 0.353553385 : f32
    %171 = vector.broadcast %cst_82 : f32 to vector<8x8xf32>
    %172 = arith.mulf %170, %171 : vector<8x8xf32>
    %cst_83 = arith.constant dense<0xFF800000> : vector<8xf32>
    %173 = vector.multi_reduction <maximumf>, %172, %cst_83 [1] : vector<8x8xf32> to vector<8xf32>
    %174 = vector.shape_cast %173 : vector<8xf32> to vector<8x1xf32>
    %175 = vector.broadcast %174 : vector<8x1xf32> to vector<8x8xf32>
    %176 = arith.subf %172, %175 : vector<8x8xf32>
    %177 = math.exp %176 : vector<8x8xf32>
    %cst_84 = arith.constant dense<0.000000e+00> : vector<8xf32>
    %178 = vector.multi_reduction <add>, %177, %cst_84 [1] : vector<8x8xf32> to vector<8xf32>
    %179 = vector.shape_cast %178 : vector<8xf32> to vector<8x1xf32>
    %180 = tpu.reciprocal %179 {approx = true} : vector<8x1xf32> -> vector<8x1xf32>
    %181 = vector.broadcast %180 : vector<8x1xf32> to vector<8x8xf32>
    %182 = arith.mulf %177, %181 : vector<8x8xf32>
    %183 = arith.truncf %182 : vector<8x8xf32> to vector<8x8xbf16>
    %cst_85 = arith.constant dense<0.000000e+00> : vector<8x8xf32>
    %184 = tpu.matmul %183, %169, %cst_85 {dimension_numbers = #tpu.dot_dimension_numbers<[1], [0], [0], [1], [0, 0, 1, 1], [], []>} : vector<8x8xbf16>, vector<8x8xbf16>, vector<8x8xf32> -> vector<8x8xf32>
    %185 = arith.truncf %184 : vector<8x8xf32> to vector<8x8xbf16>
    %186 = vector.extract_strided_slice %145 {offsets = [0, 0], sizes = [8, 32], strides = [1, 1]} : vector<32x32xbf16> to vector<8x32xbf16>
    %cst_86 = arith.constant dense<0.000000e+00> : vector<8x32xf32>
    %187 = tpu.matmul %185, %186, %cst_86 {dimension_numbers = #tpu.dot_dimension_numbers<[1], [0], [0], [1], [0, 0, 1, 1], [], []>} : vector<8x8xbf16>, vector<8x32xbf16>, vector<8x32xf32> -> vector<8x32xf32>
    %188 = arith.addf %166, %187 : vector<8x32xf32>
    %189 = vector.extract_strided_slice %157 {offsets = [0, 8], sizes = [8, 8], strides = [1, 1]} : vector<8x32xbf16> to vector<8x8xbf16>
    %190 = vector.extract_strided_slice %161 {offsets = [0, 8], sizes = [8, 8], strides = [1, 1]} : vector<8x32xbf16> to vector<8x8xbf16>
    %191 = vector.extract_strided_slice %165 {offsets = [0, 8], sizes = [8, 8], strides = [1, 1]} : vector<8x32xbf16> to vector<8x8xbf16>
    %cst_87 = arith.constant dense<0.000000e+00> : vector<8x8xf32>
    %192 = tpu.matmul %189, %190, %cst_87 {dimension_numbers = #tpu.dot_dimension_numbers<[1], [1], [0], [0], [0, 0, 1, 0], [], []>} : vector<8x8xbf16>, vector<8x8xbf16>, vector<8x8xf32> -> vector<8x8xf32>
    %cst_88 = arith.constant 0.353553385 : f32
    %193 = vector.broadcast %cst_88 : f32 to vector<8x8xf32>
    %194 = arith.mulf %192, %193 : vector<8x8xf32>
    %cst_89 = arith.constant dense<0xFF800000> : vector<8xf32>
    %195 = vector.multi_reduction <maximumf>, %194, %cst_89 [1] : vector<8x8xf32> to vector<8xf32>
    %196 = vector.shape_cast %195 : vector<8xf32> to vector<8x1xf32>
    %197 = vector.broadcast %196 : vector<8x1xf32> to vector<8x8xf32>
    %198 = arith.subf %194, %197 : vector<8x8xf32>
    %199 = math.exp %198 : vector<8x8xf32>
    %cst_90 = arith.constant dense<0.000000e+00> : vector<8xf32>
    %200 = vector.multi_reduction <add>, %199, %cst_90 [1] : vector<8x8xf32> to vector<8xf32>
    %201 = vector.shape_cast %200 : vector<8xf32> to vector<8x1xf32>
    %202 = tpu.reciprocal %201 {approx = true} : vector<8x1xf32> -> vector<8x1xf32>
    %203 = vector.broadcast %202 : vector<8x1xf32> to vector<8x8xf32>
    %204 = arith.mulf %199, %203 : vector<8x8xf32>
    %205 = arith.truncf %204 : vector<8x8xf32> to vector<8x8xbf16>
    %cst_91 = arith.constant dense<0.000000e+00> : vector<8x8xf32>
    %206 = tpu.matmul %205, %191, %cst_91 {dimension_numbers = #tpu.dot_dimension_numbers<[1], [0], [0], [1], [0, 0, 1, 1], [], []>} : vector<8x8xbf16>, vector<8x8xbf16>, vector<8x8xf32> -> vector<8x8xf32>
    %207 = arith.truncf %206 : vector<8x8xf32> to vector<8x8xbf16>
    %208 = vector.extract_strided_slice %145 {offsets = [8, 0], sizes = [8, 32], strides = [1, 1]} : vector<32x32xbf16> to vector<8x32xbf16>
    %cst_92 = arith.constant dense<0.000000e+00> : vector<8x32xf32>
    %209 = tpu.matmul %207, %208, %cst_92 {dimension_numbers = #tpu.dot_dimension_numbers<[1], [0], [0], [1], [0, 0, 1, 1], [], []>} : vector<8x8xbf16>, vector<8x32xbf16>, vector<8x32xf32> -> vector<8x32xf32>
    %210 = arith.addf %188, %209 : vector<8x32xf32>
    %211 = vector.extract_strided_slice %157 {offsets = [0, 16], sizes = [8, 8], strides = [1, 1]} : vector<8x32xbf16> to vector<8x8xbf16>
    %212 = vector.extract_strided_slice %161 {offsets = [0, 16], sizes = [8, 8], strides = [1, 1]} : vector<8x32xbf16> to vector<8x8xbf16>
    %213 = vector.extract_strided_slice %165 {offsets = [0, 16], sizes = [8, 8], strides = [1, 1]} : vector<8x32xbf16> to vector<8x8xbf16>
    %cst_93 = arith.constant dense<0.000000e+00> : vector<8x8xf32>
    %214 = tpu.matmul %211, %212, %cst_93 {dimension_numbers = #tpu.dot_dimension_numbers<[1], [1], [0], [0], [0, 0, 1, 0], [], []>} : vector<8x8xbf16>, vector<8x8xbf16>, vector<8x8xf32> -> vector<8x8xf32>
    %cst_94 = arith.constant 0.353553385 : f32
    %215 = vector.broadcast %cst_94 : f32 to vector<8x8xf32>
    %216 = arith.mulf %214, %215 : vector<8x8xf32>
    %cst_95 = arith.constant dense<0xFF800000> : vector<8xf32>
    %217 = vector.multi_reduction <maximumf>, %216, %cst_95 [1] : vector<8x8xf32> to vector<8xf32>
    %218 = vector.shape_cast %217 : vector<8xf32> to vector<8x1xf32>
    %219 = vector.broadcast %218 : vector<8x1xf32> to vector<8x8xf32>
    %220 = arith.subf %216, %219 : vector<8x8xf32>
    %221 = math.exp %220 : vector<8x8xf32>
    %cst_96 = arith.constant dense<0.000000e+00> : vector<8xf32>
    %222 = vector.multi_reduction <add>, %221, %cst_96 [1] : vector<8x8xf32> to vector<8xf32>
    %223 = vector.shape_cast %222 : vector<8xf32> to vector<8x1xf32>
    %224 = tpu.reciprocal %223 {approx = true} : vector<8x1xf32> -> vector<8x1xf32>
    %225 = vector.broadcast %224 : vector<8x1xf32> to vector<8x8xf32>
    %226 = arith.mulf %221, %225 : vector<8x8xf32>
    %227 = arith.truncf %226 : vector<8x8xf32> to vector<8x8xbf16>
    %cst_97 = arith.constant dense<0.000000e+00> : vector<8x8xf32>
    %228 = tpu.matmul %227, %213, %cst_97 {dimension_numbers = #tpu.dot_dimension_numbers<[1], [0], [0], [1], [0, 0, 1, 1], [], []>} : vector<8x8xbf16>, vector<8x8xbf16>, vector<8x8xf32> -> vector<8x8xf32>
    %229 = arith.truncf %228 : vector<8x8xf32> to vector<8x8xbf16>
    %230 = vector.extract_strided_slice %145 {offsets = [16, 0], sizes = [8, 32], strides = [1, 1]} : vector<32x32xbf16> to vector<8x32xbf16>
    %cst_98 = arith.constant dense<0.000000e+00> : vector<8x32xf32>
    %231 = tpu.matmul %229, %230, %cst_98 {dimension_numbers = #tpu.dot_dimension_numbers<[1], [0], [0], [1], [0, 0, 1, 1], [], []>} : vector<8x8xbf16>, vector<8x32xbf16>, vector<8x32xf32> -> vector<8x32xf32>
    %232 = arith.addf %210, %231 : vector<8x32xf32>
    %233 = vector.extract_strided_slice %157 {offsets = [0, 24], sizes = [8, 8], strides = [1, 1]} : vector<8x32xbf16> to vector<8x8xbf16>
    %234 = vector.extract_strided_slice %161 {offsets = [0, 24], sizes = [8, 8], strides = [1, 1]} : vector<8x32xbf16> to vector<8x8xbf16>
    %235 = vector.extract_strided_slice %165 {offsets = [0, 24], sizes = [8, 8], strides = [1, 1]} : vector<8x32xbf16> to vector<8x8xbf16>
    %cst_99 = arith.constant dense<0.000000e+00> : vector<8x8xf32>
    %236 = tpu.matmul %233, %234, %cst_99 {dimension_numbers = #tpu.dot_dimension_numbers<[1], [1], [0], [0], [0, 0, 1, 0], [], []>} : vector<8x8xbf16>, vector<8x8xbf16>, vector<8x8xf32> -> vector<8x8xf32>
    %cst_100 = arith.constant 0.353553385 : f32
    %237 = vector.broadcast %cst_100 : f32 to vector<8x8xf32>
    %238 = arith.mulf %236, %237 : vector<8x8xf32>
    %cst_101 = arith.constant dense<0xFF800000> : vector<8xf32>
    %239 = vector.multi_reduction <maximumf>, %238, %cst_101 [1] : vector<8x8xf32> to vector<8xf32>
    %240 = vector.shape_cast %239 : vector<8xf32> to vector<8x1xf32>
    %241 = vector.broadcast %240 : vector<8x1xf32> to vector<8x8xf32>
    %242 = arith.subf %238, %241 : vector<8x8xf32>
    %243 = math.exp %242 : vector<8x8xf32>
    %cst_102 = arith.constant dense<0.000000e+00> : vector<8xf32>
    %244 = vector.multi_reduction <add>, %243, %cst_102 [1] : vector<8x8xf32> to vector<8xf32>
    %245 = vector.shape_cast %244 : vector<8xf32> to vector<8x1xf32>
    %246 = tpu.reciprocal %245 {approx = true} : vector<8x1xf32> -> vector<8x1xf32>
    %247 = vector.broadcast %246 : vector<8x1xf32> to vector<8x8xf32>
    %248 = arith.mulf %243, %247 : vector<8x8xf32>
    %249 = arith.truncf %248 : vector<8x8xf32> to vector<8x8xbf16>
    %cst_103 = arith.constant dense<0.000000e+00> : vector<8x8xf32>
    %250 = tpu.matmul %249, %235, %cst_103 {dimension_numbers = #tpu.dot_dimension_numbers<[1], [0], [0], [1], [0, 0, 1, 1], [], []>} : vector<8x8xbf16>, vector<8x8xbf16>, vector<8x8xf32> -> vector<8x8xf32>
    %251 = arith.truncf %250 : vector<8x8xf32> to vector<8x8xbf16>
    %252 = vector.extract_strided_slice %145 {offsets = [24, 0], sizes = [8, 32], strides = [1, 1]} : vector<32x32xbf16> to vector<8x32xbf16>
    %cst_104 = arith.constant dense<0.000000e+00> : vector<8x32xf32>
    %253 = tpu.matmul %251, %252, %cst_104 {dimension_numbers = #tpu.dot_dimension_numbers<[1], [0], [0], [1], [0, 0, 1, 1], [], []>} : vector<8x8xbf16>, vector<8x32xbf16>, vector<8x32xf32> -> vector<8x32xf32>
    %254 = arith.addf %232, %253 : vector<8x32xf32>
    %255 = arith.addf %141, %254 : vector<8x32xf32>
    %256 = vector.broadcast %149 : vector<1x32xf32> to vector<8x32xf32>
    %257 = arith.addf %255, %256 : vector<8x32xf32>
    %cst_105 = arith.constant dense<0.000000e+00> : vector<8xf32>
    %258 = vector.multi_reduction <add>, %257, %cst_105 [1] : vector<8x32xf32> to vector<8xf32>
    %259 = vector.shape_cast %258 : vector<8xf32> to vector<8x1xf32>
    %cst_106 = arith.constant 3.200000e+01 : f32
    %260 = vector.broadcast %cst_106 : f32 to vector<8x1xf32>
    %261 = arith.divf %259, %260 : vector<8x1xf32>
    %262 = vector.broadcast %261 : vector<8x1xf32> to vector<8x32xf32>
    %263 = arith.subf %257, %262 : vector<8x32xf32>
    %264 = arith.mulf %263, %263 : vector<8x32xf32>
    %cst_107 = arith.constant dense<0.000000e+00> : vector<8xf32>
    %265 = vector.multi_reduction <add>, %264, %cst_107 [1] : vector<8x32xf32> to vector<8xf32>
    %266 = vector.shape_cast %265 : vector<8xf32> to vector<8x1xf32>
    %cst_108 = arith.constant 3.200000e+01 : f32
    %267 = vector.broadcast %cst_108 : f32 to vector<8x1xf32>
    %268 = arith.divf %266, %267 : vector<8x1xf32>
    %269 = vector.broadcast %261 : vector<8x1xf32> to vector<8x32xf32>
    %270 = arith.subf %257, %269 : vector<8x32xf32>
    %cst_109 = arith.constant 9.99999974E-6 : f32
    %271 = vector.broadcast %cst_109 : f32 to vector<8x1xf32>
    %272 = arith.addf %268, %271 : vector<8x1xf32>
    %273 = math.rsqrt %272 : vector<8x1xf32>
    %274 = vector.broadcast %273 : vector<8x1xf32> to vector<8x32xf32>
    %275 = arith.mulf %270, %274 : vector<8x32xf32>
    %276 = vector.broadcast %150 : vector<1x32xf32> to vector<8x32xf32>
    %277 = arith.mulf %275, %276 : vector<8x32xf32>
    %278 = vector.broadcast %151 : vector<1x32xf32> to vector<8x32xf32>
    %279 = arith.addf %277, %278 : vector<8x32xf32>
    %c0_110 = arith.constant 0 : index
    %c0_111 = arith.constant 0 : index
    %280 = vector.load %arg23[%c0_110, %c0_111] : memref<32x64xbf16, #tpu.memory_space<vmem>>, vector<32x64xbf16>
    %c0_112 = arith.constant 0 : index
    %c0_113 = arith.constant 0 : index
    %281 = vector.load %arg24[%c0_112, %c0_113] : memref<1x64xf32, #tpu.memory_space<vmem>>, vector<1x64xf32>
    %c0_114 = arith.constant 0 : index
    %c0_115 = arith.constant 0 : index
    %282 = vector.load %arg25[%c0_114, %c0_115] : memref<64x32xbf16, #tpu.memory_space<vmem>>, vector<64x32xbf16>
    %c0_116 = arith.constant 0 : index
    %c0_117 = arith.constant 0 : index
    %283 = vector.load %arg26[%c0_116, %c0_117] : memref<1x32xf32, #tpu.memory_space<vmem>>, vector<1x32xf32>
    %c0_118 = arith.constant 0 : index
    %c0_119 = arith.constant 0 : index
    %284 = vector.load %arg27[%c0_118, %c0_119] : memref<1x32xf32, #tpu.memory_space<vmem>>, vector<1x32xf32>
    %c0_120 = arith.constant 0 : index
    %c0_121 = arith.constant 0 : index
    %285 = vector.load %arg28[%c0_120, %c0_121] : memref<1x32xf32, #tpu.memory_space<vmem>>, vector<1x32xf32>
    %286 = arith.truncf %279 : vector<8x32xf32> to vector<8x32xbf16>
    %cst_122 = arith.constant dense<0.000000e+00> : vector<8x64xf32>
    %287 = tpu.matmul %286, %280, %cst_122 {dimension_numbers = #tpu.dot_dimension_numbers<[1], [0], [0], [1], [0, 0, 1, 1], [], []>} : vector<8x32xbf16>, vector<32x64xbf16>, vector<8x64xf32> -> vector<8x64xf32>
    %288 = vector.broadcast %281 : vector<1x64xf32> to vector<8x64xf32>
    %289 = arith.addf %287, %288 : vector<8x64xf32>
    %cst_123 = arith.constant 0.000000e+00 : f32
    %290 = vector.broadcast %cst_123 : f32 to vector<8x64xf32>
    %291 = arith.maximumf %289, %290 : vector<8x64xf32>
    %292 = arith.truncf %291 : vector<8x64xf32> to vector<8x64xbf16>
    %cst_124 = arith.constant dense<0.000000e+00> : vector<8x32xf32>
    %293 = tpu.matmul %292, %282, %cst_124 {dimension_numbers = #tpu.dot_dimension_numbers<[1], [0], [0], [1], [0, 0, 1, 1], [], []>} : vector<8x64xbf16>, vector<64x32xbf16>, vector<8x32xf32> -> vector<8x32xf32>
    %294 = vector.broadcast %283 : vector<1x32xf32> to vector<8x32xf32>
    %295 = arith.addf %293, %294 : vector<8x32xf32>
    %296 = arith.addf %279, %295 : vector<8x32xf32>
    %cst_125 = arith.constant dense<0.000000e+00> : vector<8xf32>
    %297 = vector.multi_reduction <add>, %296, %cst_125 [1] : vector<8x32xf32> to vector<8xf32>
    %298 = vector.shape_cast %297 : vector<8xf32> to vector<8x1xf32>
    %cst_126 = arith.constant 3.200000e+01 : f32
    %299 = vector.broadcast %cst_126 : f32 to vector<8x1xf32>
    %300 = arith.divf %298, %299 : vector<8x1xf32>
    %301 = vector.broadcast %300 : vector<8x1xf32> to vector<8x32xf32>
    %302 = arith.subf %296, %301 : vector<8x32xf32>
    %303 = arith.mulf %302, %302 : vector<8x32xf32>
    %cst_127 = arith.constant dense<0.000000e+00> : vector<8xf32>
    %304 = vector.multi_reduction <add>, %303, %cst_127 [1] : vector<8x32xf32> to vector<8xf32>
    %305 = vector.shape_cast %304 : vector<8xf32> to vector<8x1xf32>
    %cst_128 = arith.constant 3.200000e+01 : f32
    %306 = vector.broadcast %cst_128 : f32 to vector<8x1xf32>
    %307 = arith.divf %305, %306 : vector<8x1xf32>
    %308 = vector.broadcast %300 : vector<8x1xf32> to vector<8x32xf32>
    %309 = arith.subf %296, %308 : vector<8x32xf32>
    %cst_129 = arith.constant 9.99999974E-6 : f32
    %310 = vector.broadcast %cst_129 : f32 to vector<8x1xf32>
    %311 = arith.addf %307, %310 : vector<8x1xf32>
    %312 = math.rsqrt %311 : vector<8x1xf32>
    %313 = vector.broadcast %312 : vector<8x1xf32> to vector<8x32xf32>
    %314 = arith.mulf %309, %313 : vector<8x32xf32>
    %315 = vector.broadcast %284 : vector<1x32xf32> to vector<8x32xf32>
    %316 = arith.mulf %314, %315 : vector<8x32xf32>
    %317 = vector.broadcast %285 : vector<1x32xf32> to vector<8x32xf32>
    %318 = arith.addf %316, %317 : vector<8x32xf32>
    %c0_130 = arith.constant 0 : index
    %c0_131 = arith.constant 0 : index
    %c0_132 = arith.constant 0 : index
    %319 = vector.load %arg29[%c0_130, %c0_131, %c0_132] : memref<1x8x32xf32, #tpu.memory_space<vmem>>, vector<1x8x32xf32>
    %320 = vector.shape_cast %319 : vector<1x8x32xf32> to vector<8x32xf32>
    %321 = vector.shape_cast %318 : vector<8x32xf32> to vector<1x8x32xf32>
    tpu.vector_store %arg29[%c0_130, %c0_131, %c0_132], %321 {strides = array<i32>} : memref<1x8x32xf32, #tpu.memory_space<vmem>>, vector<1x8x32xf32>,
    return
  }
  func.func @transform_0(%arg0: i32) -> (i32, i32, i32) {
    %c0_i32 = arith.constant 0 : i32
    %c0_i32_0 = arith.constant 0 : i32
    %c0_i32_1 = arith.constant 0 : i32
    return %arg0, %c0_i32, %c0_i32_0 : i32, i32, i32
  }
  func.func @transform_1(%arg0: i32) -> (i32, i32, i32) {
    %c0_i32 = arith.constant 0 : i32
    %c0_i32_0 = arith.constant 0 : i32
    %c0_i32_1 = arith.constant 0 : i32
    return %arg0, %c0_i32, %c0_i32_0 : i32, i32, i32
  }
  func.func @transform_2(%arg0: i32) -> (i32, i32) {
    %c0_i32 = arith.constant 0 : i32
    %c0_i32_0 = arith.constant 0 : i32
    %c0_i32_1 = arith.constant 0 : i32
    return %c0_i32, %c0_i32_0 : i32, i32
  }
  func.func @transform_3(%arg0: i32) -> (i32, i32) {
    %c0_i32 = arith.constant 0 : i32
    %c0_i32_0 = arith.constant 0 : i32
    %c0_i32_1 = arith.constant 0 : i32
    return %c0_i32, %c0_i32_0 : i32, i32
  }
  func.func @transform_4(%arg0: i32) -> (i32, i32) {
    %c0_i32 = arith.constant 0 : i32
    %c0_i32_0 = arith.constant 0 : i32
    %c0_i32_1 = arith.constant 0 : i32
    return %c0_i32, %c0_i32_0 : i32, i32
  }
  func.func @transform_5(%arg0: i32) -> (i32, i32) {
    %c0_i32 = arith.constant 0 : i32
    %c0_i32_0 = arith.constant 0 : i32
    %c0_i32_1 = arith.constant 0 : i32
    return %c0_i32, %c0_i32_0 : i32, i32
  }
  func.func @transform_6(%arg0: i32) -> (i32, i32) {
    %c0_i32 = arith.constant 0 : i32
    %c0_i32_0 = arith.constant 0 : i32
    %c0_i32_1 = arith.constant 0 : i32
    return %c0_i32, %c0_i32_0 : i32, i32
  }
  func.func @transform_7(%arg0: i32) -> (i32, i32) {
    %c0_i32 = arith.constant 0 : i32
    %c0_i32_0 = arith.constant 0 : i32
    %c0_i32_1 = arith.constant 0 : i32
    return %c0_i32, %c0_i32_0 : i32, i32
  }
  func.func @transform_8(%arg0: i32) -> (i32, i32) {
    %c0_i32 = arith.constant 0 : i32
    %c0_i32_0 = arith.constant 0 : i32
    %c0_i32_1 = arith.constant 0 : i32
    return %c0_i32, %c0_i32_0 : i32, i32
  }
  func.func @transform_9(%arg0: i32) -> (i32, i32) {
    %c0_i32 = arith.constant 0 : i32
    %c0_i32_0 = arith.constant 0 : i32
    %c0_i32_1 = arith.constant 0 : i32
    return %c0_i32, %c0_i32_0 : i32, i32
  }
  func.func @transform_10(%arg0: i32) -> (i32, i32) {
    %c0_i32 = arith.constant 0 : i32
    %c0_i32_0 = arith.constant 0 : i32
    %c0_i32_1 = arith.constant 0 : i32
    return %c0_i32, %c0_i32_0 : i32, i32
  }
  func.func @transform_11(%arg0: i32) -> (i32, i32) {
    %c0_i32 = arith.constant 0 : i32
    %c0_i32_0 = arith.constant 0 : i32
    %c0_i32_1 = arith.constant 0 : i32
    return %c0_i32, %c0_i32_0 : i32, i32
  }
  func.func @transform_12(%arg0: i32) -> (i32, i32) {
    %c0_i32 = arith.constant 0 : i32
    %c0_i32_0 = arith.constant 0 : i32
    %c0_i32_1 = arith.constant 0 : i32
    return %c0_i32, %c0_i32_0 : i32, i32
  }
  func.func @transform_13(%arg0: i32) -> (i32, i32) {
    %c0_i32 = arith.constant 0 : i32
    %c0_i32_0 = arith.constant 0 : i32
    %c0_i32_1 = arith.constant 0 : i32
    return %c0_i32, %c0_i32_0 : i32, i32
  }
  func.func @transform_14(%arg0: i32) -> (i32, i32) {
    %c0_i32 = arith.constant 0 : i32
    %c0_i32_0 = arith.constant 0 : i32
    %c0_i32_1 = arith.constant 0 : i32
    return %c0_i32, %c0_i32_0 : i32, i32
  }
  func.func @transform_15(%arg0: i32) -> (i32, i32) {
    %c0_i32 = arith.constant 0 : i32
    %c0_i32_0 = arith.constant 0 : i32
    %c0_i32_1 = arith.constant 0 : i32
    return %c0_i32, %c0_i32_0 : i32, i32
  }
  func.func @transform_16(%arg0: i32) -> (i32, i32) {
    %c0_i32 = arith.constant 0 : i32
    %c0_i32_0 = arith.constant 0 : i32
    %c0_i32_1 = arith.constant 0 : i32
    return %c0_i32, %c0_i32_0 : i32, i32
  }
  func.func @transform_17(%arg0: i32) -> (i32, i32) {
    %c0_i32 = arith.constant 0 : i32
    %c0_i32_0 = arith.constant 0 : i32
    %c0_i32_1 = arith.constant 0 : i32
    return %c0_i32, %c0_i32_0 : i32, i32
  }
  func.func @transform_18(%arg0: i32) -> (i32, i32) {
    %c0_i32 = arith.constant 0 : i32
    %c0_i32_0 = arith.constant 0 : i32
    %c0_i32_1 = arith.constant 0 : i32
    return %c0_i32, %c0_i32_0 : i32, i32
  }
  func.func @transform_19(%arg0: i32) -> (i32, i32) {
    %c0_i32 = arith.constant 0 : i32
    %c0_i32_0 = arith.constant 0 : i32
    %c0_i32_1 = arith.constant 0 : i32
    return %c0_i32, %c0_i32_0 : i32, i32
  }
  func.func @transform_20(%arg0: i32) -> (i32, i32) {
    %c0_i32 = arith.constant 0 : i32
    %c0_i32_0 = arith.constant 0 : i32
    %c0_i32_1 = arith.constant 0 : i32
    return %c0_i32, %c0_i32_0 : i32, i32
  }
  func.func @transform_21(%arg0: i32) -> (i32, i32) {
    %c0_i32 = arith.constant 0 : i32
    %c0_i32_0 = arith.constant 0 : i32
    %c0_i32_1 = arith.constant 0 : i32
    return %c0_i32, %c0_i32_0 : i32, i32
  }
  func.func @transform_22(%arg0: i32) -> (i32, i32) {
    %c0_i32 = arith.constant 0 : i32
    %c0_i32_0 = arith.constant 0 : i32
    %c0_i32_1 = arith.constant 0 : i32
    return %c0_i32, %c0_i32_0 : i32, i32
  }
  func.func @transform_23(%arg0: i32) -> (i32, i32) {
    %c0_i32 = arith.constant 0 : i32
    %c0_i32_0 = arith.constant 0 : i32
    %c0_i32_1 = arith.constant 0 : i32
    return %c0_i32, %c0_i32_0 : i32, i32
  }
  func.func @transform_24(%arg0: i32) -> (i32, i32) {
    %c0_i32 = arith.constant 0 : i32
    %c0_i32_0 = arith.constant 0 : i32
    %c0_i32_1 = arith.constant 0 : i32
    return %c0_i32, %c0_i32_0 : i32, i32
  }
  func.func @transform_25(%arg0: i32) -> (i32, i32) {
    %c0_i32 = arith.constant 0 : i32
    %c0_i32_0 = arith.constant 0 : i32
    %c0_i32_1 = arith.constant 0 : i32
    return %c0_i32, %c0_i32_0 : i32, i32
  }
  func.func @transform_26(%arg0: i32) -> (i32, i32) {
    %c0_i32 = arith.constant 0 : i32
    %c0_i32_0 = arith.constant 0 : i32
    %c0_i32_1 = arith.constant 0 : i32
    return %c0_i32, %c0_i32_0 : i32, i32
  }
  func.func @transform_27(%arg0: i32) -> (i32, i32) {
    %c0_i32 = arith.constant 0 : i32
    %c0_i32_0 = arith.constant 0 : i32
    %c0_i32_1 = arith.constant 0 : i32
    return %c0_i32, %c0_i32_0 : i32, i32
  }
  func.func @transform_28(%arg0: i32) -> (i32, i32, i32) {
    %c0_i32 = arith.constant 0 : i32
    %c0_i32_0 = arith.constant 0 : i32
    %c0_i32_1 = arith.constant 0 : i32
    return %arg0, %c0_i32, %c0_i32_0 : i32, i32, i32
  }
}

module attributes {stable_mosaic.version = 11 : i64} {
  func.func @_decoder_layer_kernel(%arg0: i32, %arg1: memref<1x8x32xf32, #tpu.memory_space<vmem>>, %arg2: memref<1x8x32xf32, #tpu.memory_space<vmem>>, %arg3: memref<32x32xbf16, #tpu.memory_space<vmem>>, %arg4: memref<32x32xbf16, #tpu.memory_space<vmem>>, %arg5: memref<32x32xbf16, #tpu.memory_space<vmem>>, %arg6: memref<32x32xbf16, #tpu.memory_space<vmem>>, %arg7: memref<1x32xf32, #tpu.memory_space<vmem>>, %arg8: memref<1x32xf32, #tpu.memory_space<vmem>>, %arg9: memref<1x32xf32, #tpu.memory_space<vmem>>, %arg10: memref<1x32xf32, #tpu.memory_space<vmem>>, %arg11: memref<1x32xf32, #tpu.memory_space<vmem>>, %arg12: memref<1x32xf32, #tpu.memory_space<vmem>>, %arg13: memref<32x32xbf16, #tpu.memory_space<vmem>>, %arg14: memref<32x32xbf16, #tpu.memory_space<vmem>>, %arg15: memref<32x32xbf16, #tpu.memory_space<vmem>>, %arg16: memref<32x32xbf16, #tpu.memory_space<vmem>>, %arg17: memref<1x32xf32, #tpu.memory_space<vmem>>, %arg18: memref<1x32xf32, #tpu.memory_space<vmem>>, %arg19: memref<1x32xf32, #tpu.memory_space<vmem>>, %arg20: memref<1x32xf32, #tpu.memory_space<vmem>>, %arg21: memref<1x32xf32, #tpu.memory_space<vmem>>, %arg22: memref<1x32xf32, #tpu.memory_space<vmem>>, %arg23: memref<32x64xbf16, #tpu.memory_space<vmem>>, %arg24: memref<1x64xf32, #tpu.memory_space<vmem>>, %arg25: memref<64x32xbf16, #tpu.memory_space<vmem>>, %arg26: memref<1x32xf32, #tpu.memory_space<vmem>>, %arg27: memref<1x32xf32, #tpu.memory_space<vmem>>, %arg28: memref<1x32xf32, #tpu.memory_space<vmem>>, %arg29: memref<1x8x32xf32, #tpu.memory_space<vmem>>) attributes {dimension_semantics = [#tpu.dimension_semantics<parallel>], iteration_bounds = array<i64: 2>, scalar_prefetch = 0 : i64, scratch_operands = 0 : i64, tpu.core_type = #tpu.core_type<tc>, window_params = [{transform_indices = @transform_0, window_bounds = array<i64: 1, 8, 32>}, {transform_indices = @transform_1, window_bounds = array<i64: 1, 8, 32>}, {pipeline_mode = #tpu.pipeline_mode<synchronous>, transform_indices = @transform_2, window_bounds = array<i64: 32, 32>}, {pipeline_mode = #tpu.pipeline_mode<synchronous>, transform_indices = @transform_3, window_bounds = array<i64: 32, 32>}, {pipeline_mode = #tpu.pipeline_mode<synchronous>, transform_indices = @transform_4, window_bounds = array<i64: 32, 32>}, {pipeline_mode = #tpu.pipeline_mode<synchronous>, transform_indices = @transform_5, window_bounds = array<i64: 32, 32>}, {pipeline_mode = #tpu.pipeline_mode<synchronous>, transform_indices = @transform_6, window_bounds = array<i64: 1, 32>}, {pipeline_mode = #tpu.pipeline_mode<synchronous>, transform_indices = @transform_7, window_bounds = array<i64: 1, 32>}, {pipeline_mode = #tpu.pipeline_mode<synchronous>, transform_indices = @transform_8, window_bounds = array<i64: 1, 32>}, {pipeline_mode = #tpu.pipeline_mode<synchronous>, transform_indices = @transform_9, window_bounds = array<i64: 1, 32>}, {pipeline_mode = #tpu.pipeline_mode<synchronous>, transform_indices = @transform_10, window_bounds = array<i64: 1, 32>}, {pipeline_mode = #tpu.pipeline_mode<synchronous>, transform_indices = @transform_11, window_bounds = array<i64: 1, 32>}, {pipeline_mode = #tpu.pipeline_mode<synchronous>, transform_indices = @transform_12, window_bounds = array<i64: 32, 32>}, {pipeline_mode = #tpu.pipeline_mode<synchronous>, transform_indices = @transform_13, window_bounds = array<i64: 32, 32>}, {pipeline_mode = #tpu.pipeline_mode<synchronous>, transform_indices = @transform_14, window_bounds = array<i64: 32, 32>}, {pipeline_mode = #tpu.pipeline_mode<synchronous>, transform_indices = @transform_15, window_bounds = array<i64: 32, 32>}, {pipeline_mode = #tpu.pipeline_mode<synchronous>, transform_indices = @transform_16, window_bounds = array<i64: 1, 32>}, {pipeline_mode = #tpu.pipeline_mode<synchronous>, transform_indices = @transform_17, window_bounds = array<i64: 1, 32>}, {pipeline_mode = #tpu.pipeline_mode<synchronous>, transform_indices = @transform_18, window_bounds = array<i64: 1, 32>}, {pipeline_mode = #tpu.pipeline_mode<synchronous>, transform_indices = @transform_19, window_bounds = array<i64: 1, 32>}, {pipeline_mode = #tpu.pipeline_mode<synchronous>, transform_indices = @transform_20, window_bounds = array<i64: 1, 32>}, {pipeline_mode = #tpu.pipeline_mode<synchronous>, transform_indices = @transform_21, window_bounds = array<i64: 1, 32>}, {pipeline_mode = #tpu.pipeline_mode<synchronous>, transform_indices = @transform_22, window_bounds = array<i64: 32, 64>}, {pipeline_mode = #tpu.pipeline_mode<synchronous>, transform_indices = @transform_23, window_bounds = array<i64: 1, 64>}, {pipeline_mode = #tpu.pipeline_mode<synchronous>, transform_indices = @transform_24, window_bounds = array<i64: 64, 32>}, {pipeline_mode = #tpu.pipeline_mode<synchronous>, transform_indices = @transform_25, window_bounds = array<i64: 1, 32>}, {pipeline_mode = #tpu.pipeline_mode<synchronous>, transform_indices = @transform_26, window_bounds = array<i64: 1, 32>}, {pipeline_mode = #tpu.pipeline_mode<synchronous>, transform_indices = @transform_27, window_bounds = array<i64: 1, 32>}, {transform_indices = @transform_28, window_bounds = array<i64: 1, 8, 32>}]} {
    %c0 = arith.constant 0 : index
    %c0_0 = arith.constant 0 : index
    %c0_1 = arith.constant 0 : index
    %0 = vector.load %arg1[%c0, %c0_0, %c0_1] : memref<1x8x32xf32, #tpu.memory_space<vmem>>, vector<1x8x32xf32>
    %1 = vector.shape_cast %0 : vector<1x8x32xf32> to vector<8x32xf32>
    %c0_2 = arith.constant 0 : index
    %c0_3 = arith.constant 0 : index
    %c0_4 = arith.constant 0 : index
    %2 = vector.load %arg2[%c0_2, %c0_3, %c0_4] : memref<1x8x32xf32, #tpu.memory_space<vmem>>, vector<1x8x32xf32>
    %3 = vector.shape_cast %2 : vector<1x8x32xf32> to vector<8x32xf32>
    %c0_5 = arith.constant 0 : index
    %c0_6 = arith.constant 0 : index
    %4 = vector.load %arg3[%c0_5, %c0_6] : memref<32x32xbf16, #tpu.memory_space<vmem>>, vector<32x32xbf16>
    %c0_7 = arith.constant 0 : index
    %c0_8 = arith.constant 0 : index
    %5 = vector.load %arg4[%c0_7, %c0_8] : memref<32x32xbf16, #tpu.memory_space<vmem>>, vector<32x32xbf16>
    %c0_9 = arith.constant 0 : index
    %c0_10 = arith.constant 0 : index
    %6 = vector.load %arg5[%c0_9, %c0_10] : memref<32x32xbf16, #tpu.memory_space<vmem>>, vector<32x32xbf16>
    %c0_11 = arith.constant 0 : index
    %c0_12 = arith.constant 0 : index
    %7 = vector.load %arg6[%c0_11, %c0_12] : memref<32x32xbf16, #tpu.memory_space<vmem>>, vector<32x32xbf16>
    %c0_13 = arith.constant 0 : index
    %c0_14 = arith.constant 0 : index
    %8 = vector.load %arg7[%c0_13, %c0_14] : memref<1x32xf32, #tpu.memory_space<vmem>>, vector<1x32xf32>
    %c0_15 = arith.constant 0 : index
    %c0_16 = arith.constant 0 : index
    %9 = vector.load %arg8[%c0_15, %c0_16] : memref<1x32xf32, #tpu.memory_space<vmem>>, vector<1x32xf32>
    %c0_17 = arith.constant 0 : index
    %c0_18 = arith.constant 0 : index
    %10 = vector.load %arg9[%c0_17, %c0_18] : memref<1x32xf32, #tpu.memory_space<vmem>>, vector<1x32xf32>
    %c0_19 = arith.constant 0 : index
    %c0_20 = arith.constant 0 : index
    %11 = vector.load %arg10[%c0_19, %c0_20] : memref<1x32xf32, #tpu.memory_space<vmem>>, vector<1x32xf32>
    %c0_21 = arith.constant 0 : index
    %c0_22 = arith.constant 0 : index
    %12 = vector.load %arg11[%c0_21, %c0_22] : memref<1x32xf32, #tpu.memory_space<vmem>>, vector<1x32xf32>
    %c0_23 = arith.constant 0 : index
    %c0_24 = arith.constant 0 : index
    %13 = vector.load %arg12[%c0_23, %c0_24] : memref<1x32xf32, #tpu.memory_space<vmem>>, vector<1x32xf32>
    %14 = arith.truncf %1 : vector<8x32xf32> to vector<8x32xbf16>
    %15 = arith.truncf %1 : vector<8x32xf32> to vector<8x32xbf16>
    %cst = arith.constant dense<0.000000e+00> : vector<8x32xf32>
    %16 = tpu.matmul %14, %4, %cst {dimension_numbers = #tpu.dot_dimension_numbers<[1], [0], [0], [1], [0, 0, 1, 1], [], []>} : vector<8x32xbf16>, vector<32x32xbf16>, vector<8x32xf32> -> vector<8x32xf32>
    %17 = vector.broadcast %8 : vector<1x32xf32> to vector<8x32xf32>
    %18 = arith.addf %16, %17 : vector<8x32xf32>
    %19 = arith.truncf %18 : vector<8x32xf32> to vector<8x32xbf16>
    %cst_25 = arith.constant dense<0.000000e+00> : vector<8x32xf32>
    %20 = tpu.matmul %15, %5, %cst_25 {dimension_numbers = #tpu.dot_dimension_numbers<[1], [0], [0], [1], [0, 0, 1, 1], [], []>} : vector<8x32xbf16>, vector<32x32xbf16>, vector<8x32xf32> -> vector<8x32xf32>
    %21 = vector.broadcast %9 : vector<1x32xf32> to vector<8x32xf32>
    %22 = arith.addf %20, %21 : vector<8x32xf32>
    %23 = arith.truncf %22 : vector<8x32xf32> to vector<8x32xbf16>
    %cst_26 = arith.constant dense<0.000000e+00> : vector<8x32xf32>
    %24 = tpu.matmul %15, %6, %cst_26 {dimension_numbers = #tpu.dot_dimension_numbers<[1], [0], [0], [1], [0, 0, 1, 1], [], []>} : vector<8x32xbf16>, vector<32x32xbf16>, vector<8x32xf32> -> vector<8x32xf32>
    %25 = vector.broadcast %10 : vector<1x32xf32> to vector<8x32xf32>
    %26 = arith.addf %24, %25 : vector<8x32xf32>
    %27 = arith.truncf %26 : vector<8x32xf32> to vector<8x32xbf16>
    %cst_27 = arith.constant 0.000000e+00 : f32
    %28 = vector.broadcast %cst_27 : f32 to vector<8x32xf32>
    %29 = vector.extract_strided_slice %19 {offsets = [0, 0], sizes = [8, 8], strides = [1, 1]} : vector<8x32xbf16> to vector<8x8xbf16>
    %30 = vector.extract_strided_slice %23 {offsets = [0, 0], sizes = [8, 8], strides = [1, 1]} : vector<8x32xbf16> to vector<8x8xbf16>
    %31 = vector.extract_strided_slice %27 {offsets = [0, 0], sizes = [8, 8], strides = [1, 1]} : vector<8x32xbf16> to vector<8x8xbf16>
    %cst_28 = arith.constant dense<0.000000e+00> : vector<8x8xf32>
    %32 = tpu.matmul %29, %30, %cst_28 {dimension_numbers = #tpu.dot_dimension_numbers<[1], [1], [0], [0], [0, 0, 1, 0], [], []>} : vector<8x8xbf16>, vector<8x8xbf16>, vector<8x8xf32> -> vector<8x8xf32>
    %cst_29 = arith.constant 0.353553385 : f32
    %33 = vector.broadcast %cst_29 : f32 to vector<8x8xf32>
    %34 = arith.mulf %32, %33 : vector<8x8xf32>
    %cst_30 = arith.constant dense<0xFF800000> : vector<8xf32>
    %35 = vector.multi_reduction <maximumf>, %34, %cst_30 [1] : vector<8x8xf32> to vector<8xf32>
    %36 = vector.shape_cast %35 : vector<8xf32> to vector<8x1xf32>
    %37 = vector.broadcast %36 : vector<8x1xf32> to vector<8x8xf32>
    %38 = arith.subf %34, %37 : vector<8x8xf32>
    %39 = math.exp %38 : vector<8x8xf32>
    %cst_31 = arith.constant dense<0.000000e+00> : vector<8xf32>
    %40 = vector.multi_reduction <add>, %39, %cst_31 [1] : vector<8x8xf32> to vector<8xf32>
    %41 = vector.shape_cast %40 : vector<8xf32> to vector<8x1xf32>
    %42 = tpu.reciprocal %41 {approx = true} : vector<8x1xf32> -> vector<8x1xf32>
    %43 = vector.broadcast %42 : vector<8x1xf32> to vector<8x8xf32>
    %44 = arith.mulf %39, %43 : vector<8x8xf32>
    %45 = arith.truncf %44 : vector<8x8xf32> to vector<8x8xbf16>
    %cst_32 = arith.constant dense<0.000000e+00> : vector<8x8xf32>
    %46 = tpu.matmul %45, %31, %cst_32 {dimension_numbers = #tpu.dot_dimension_numbers<[1], [0], [0], [1], [0, 0, 1, 1], [], []>} : vector<8x8xbf16>, vector<8x8xbf16>, vector<8x8xf32> -> vector<8x8xf32>
    %47 = arith.truncf %46 : vector<8x8xf32> to vector<8x8xbf16>
    %48 = vector.extract_strided_slice %7 {offsets = [0, 0], sizes = [8, 32], strides = [1, 1]} : vector<32x32xbf16> to vector<8x32xbf16>
    %cst_33 = arith.constant dense<0.000000e+00> : vector<8x32xf32>
    %49 = tpu.matmul %47, %48, %cst_33 {dimension_numbers = #tpu.dot_dimension_numbers<[1], [0], [0], [1], [0, 0, 1, 1], [], []>} : vector<8x8xbf16>, vector<8x32xbf16>, vector<8x32xf32> -> vector<8x32xf32>
    %50 = arith.addf %28, %49 : vector<8x32xf32>
    %51 = vector.extract_strided_slice %19 {offsets = [0, 8], sizes = [8, 8], strides = [1, 1]} : vector<8x32xbf16> to vector<8x8xbf16>
    %52 = vector.extract_strided_slice %23 {offsets = [0, 8], sizes = [8, 8], strides = [1, 1]} : vector<8x32xbf16> to vector<8x8xbf16>
    %53 = vector.extract_strided_slice %27 {offsets = [0, 8], sizes = [8, 8], strides = [1, 1]} : vector<8x32xbf16> to vector<8x8xbf16>
    %cst_34 = arith.constant dense<0.000000e+00> : vector<8x8xf32>
    %54 = tpu.matmul %51, %52, %cst_34 {dimension_numbers = #tpu.dot_dimension_numbers<[1], [1], [0], [0], [0, 0, 1, 0], [], []>} : vector<8x8xbf16>, vector<8x8xbf16>, vector<8x8xf32> -> vector<8x8xf32>
    %cst_35 = arith.constant 0.353553385 : f32
    %55 = vector.broadcast %cst_35 : f32 to vector<8x8xf32>
    %56 = arith.mulf %54, %55 : vector<8x8xf32>
    %cst_36 = arith.constant dense<0xFF800000> : vector<8xf32>
    %57 = vector.multi_reduction <maximumf>, %56, %cst_36 [1] : vector<8x8xf32> to vector<8xf32>
    %58 = vector.shape_cast %57 : vector<8xf32> to vector<8x1xf32>
    %59 = vector.broadcast %58 : vector<8x1xf32> to vector<8x8xf32>
    %60 = arith.subf %56, %59 : vector<8x8xf32>
    %61 = math.exp %60 : vector<8x8xf32>
    %cst_37 = arith.constant dense<0.000000e+00> : vector<8xf32>
    %62 = vector.multi_reduction <add>, %61, %cst_37 [1] : vector<8x8xf32> to vector<8xf32>
    %63 = vector.shape_cast %62 : vector<8xf32> to vector<8x1xf32>
    %64 = tpu.reciprocal %63 {approx = true} : vector<8x1xf32> -> vector<8x1xf32>
    %65 = vector.broadcast %64 : vector<8x1xf32> to vector<8x8xf32>
    %66 = arith.mulf %61, %65 : vector<8x8xf32>
    %67 = arith.truncf %66 : vector<8x8xf32> to vector<8x8xbf16>
    %cst_38 = arith.constant dense<0.000000e+00> : vector<8x8xf32>
    %68 = tpu.matmul %67, %53, %cst_38 {dimension_numbers = #tpu.dot_dimension_numbers<[1], [0], [0], [1], [0, 0, 1, 1], [], []>} : vector<8x8xbf16>, vector<8x8xbf16>, vector<8x8xf32> -> vector<8x8xf32>
    %69 = arith.truncf %68 : vector<8x8xf32> to vector<8x8xbf16>
    %70 = vector.extract_strided_slice %7 {offsets = [8, 0], sizes = [8, 32], strides = [1, 1]} : vector<32x32xbf16> to vector<8x32xbf16>
    %cst_39 = arith.constant dense<0.000000e+00> : vector<8x32xf32>
    %71 = tpu.matmul %69, %70, %cst_39 {dimension_numbers = #tpu.dot_dimension_numbers<[1], [0], [0], [1], [0, 0, 1, 1], [], []>} : vector<8x8xbf16>, vector<8x32xbf16>, vector<8x32xf32> -> vector<8x32xf32>
    %72 = arith.addf %50, %71 : vector<8x32xf32>
    %73 = vector.extract_strided_slice %19 {offsets = [0, 16], sizes = [8, 8], strides = [1, 1]} : vector<8x32xbf16> to vector<8x8xbf16>
    %74 = vector.extract_strided_slice %23 {offsets = [0, 16], sizes = [8, 8], strides = [1, 1]} : vector<8x32xbf16> to vector<8x8xbf16>
    %75 = vector.extract_strided_slice %27 {offsets = [0, 16], sizes = [8, 8], strides = [1, 1]} : vector<8x32xbf16> to vector<8x8xbf16>
    %cst_40 = arith.constant dense<0.000000e+00> : vector<8x8xf32>
    %76 = tpu.matmul %73, %74, %cst_40 {dimension_numbers = #tpu.dot_dimension_numbers<[1], [1], [0], [0], [0, 0, 1, 0], [], []>} : vector<8x8xbf16>, vector<8x8xbf16>, vector<8x8xf32> -> vector<8x8xf32>
    %cst_41 = arith.constant 0.353553385 : f32
    %77 = vector.broadcast %cst_41 : f32 to vector<8x8xf32>
    %78 = arith.mulf %76, %77 : vector<8x8xf32>
    %cst_42 = arith.constant dense<0xFF800000> : vector<8xf32>
    %79 = vector.multi_reduction <maximumf>, %78, %cst_42 [1] : vector<8x8xf32> to vector<8xf32>
    %80 = vector.shape_cast %79 : vector<8xf32> to vector<8x1xf32>
    %81 = vector.broadcast %80 : vector<8x1xf32> to vector<8x8xf32>
    %82 = arith.subf %78, %81 : vector<8x8xf32>
    %83 = math.exp %82 : vector<8x8xf32>
    %cst_43 = arith.constant dense<0.000000e+00> : vector<8xf32>
    %84 = vector.multi_reduction <add>, %83, %cst_43 [1] : vector<8x8xf32> to vector<8xf32>
    %85 = vector.shape_cast %84 : vector<8xf32> to vector<8x1xf32>
    %86 = tpu.reciprocal %85 {approx = true} : vector<8x1xf32> -> vector<8x1xf32>
    %87 = vector.broadcast %86 : vector<8x1xf32> to vector<8x8xf32>
    %88 = arith.mulf %83, %87 : vector<8x8xf32>
    %89 = arith.truncf %88 : vector<8x8xf32> to vector<8x8xbf16>
    %cst_44 = arith.constant dense<0.000000e+00> : vector<8x8xf32>
    %90 = tpu.matmul %89, %75, %cst_44 {dimension_numbers = #tpu.dot_dimension_numbers<[1], [0], [0], [1], [0, 0, 1, 1], [], []>} : vector<8x8xbf16>, vector<8x8xbf16>, vector<8x8xf32> -> vector<8x8xf32>
    %91 = arith.truncf %90 : vector<8x8xf32> to vector<8x8xbf16>
    %92 = vector.extract_strided_slice %7 {offsets = [16, 0], sizes = [8, 32], strides = [1, 1]} : vector<32x32xbf16> to vector<8x32xbf16>
    %cst_45 = arith.constant dense<0.000000e+00> : vector<8x32xf32>
    %93 = tpu.matmul %91, %92, %cst_45 {dimension_numbers = #tpu.dot_dimension_numbers<[1], [0], [0], [1], [0, 0, 1, 1], [], []>} : vector<8x8xbf16>, vector<8x32xbf16>, vector<8x32xf32> -> vector<8x32xf32>
    %94 = arith.addf %72, %93 : vector<8x32xf32>
    %95 = vector.extract_strided_slice %19 {offsets = [0, 24], sizes = [8, 8], strides = [1, 1]} : vector<8x32xbf16> to vector<8x8xbf16>
    %96 = vector.extract_strided_slice %23 {offsets = [0, 24], sizes = [8, 8], strides = [1, 1]} : vector<8x32xbf16> to vector<8x8xbf16>
    %97 = vector.extract_strided_slice %27 {offsets = [0, 24], sizes = [8, 8], strides = [1, 1]} : vector<8x32xbf16> to vector<8x8xbf16>
    %cst_46 = arith.constant dense<0.000000e+00> : vector<8x8xf32>
    %98 = tpu.matmul %95, %96, %cst_46 {dimension_numbers = #tpu.dot_dimension_numbers<[1], [1], [0], [0], [0, 0, 1, 0], [], []>} : vector<8x8xbf16>, vector<8x8xbf16>, vector<8x8xf32> -> vector<8x8xf32>
    %cst_47 = arith.constant 0.353553385 : f32
    %99 = vector.broadcast %cst_47 : f32 to vector<8x8xf32>
    %100 = arith.mulf %98, %99 : vector<8x8xf32>
    %cst_48 = arith.constant dense<0xFF800000> : vector<8xf32>
    %101 = vector.multi_reduction <maximumf>, %100, %cst_48 [1] : vector<8x8xf32> to vector<8xf32>
    %102 = vector.shape_cast %101 : vector<8xf32> to vector<8x1xf32>
    %103 = vector.broadcast %102 : vector<8x1xf32> to vector<8x8xf32>
    %104 = arith.subf %100, %103 : vector<8x8xf32>
    %105 = math.exp %104 : vector<8x8xf32>
    %cst_49 = arith.constant dense<0.000000e+00> : vector<8xf32>
    %106 = vector.multi_reduction <add>, %105, %cst_49 [1] : vector<8x8xf32> to vector<8xf32>
    %107 = vector.shape_cast %106 : vector<8xf32> to vector<8x1xf32>
    %108 = tpu.reciprocal %107 {approx = true} : vector<8x1xf32> -> vector<8x1xf32>
    %109 = vector.broadcast %108 : vector<8x1xf32> to vector<8x8xf32>
    %110 = arith.mulf %105, %109 : vector<8x8xf32>
    %111 = arith.truncf %110 : vector<8x8xf32> to vector<8x8xbf16>
    %cst_50 = arith.constant dense<0.000000e+00> : vector<8x8xf32>
    %112 = tpu.matmul %111, %97, %cst_50 {dimension_numbers = #tpu.dot_dimension_numbers<[1], [0], [0], [1], [0, 0, 1, 1], [], []>} : vector<8x8xbf16>, vector<8x8xbf16>, vector<8x8xf32> -> vector<8x8xf32>
    %113 = arith.truncf %112 : vector<8x8xf32> to vector<8x8xbf16>
    %114 = vector.extract_strided_slice %7 {offsets = [24, 0], sizes = [8, 32], strides = [1, 1]} : vector<32x32xbf16> to vector<8x32xbf16>
    %cst_51 = arith.constant dense<0.000000e+00> : vector<8x32xf32>
    %115 = tpu.matmul %113, %114, %cst_51 {dimension_numbers = #tpu.dot_dimension_numbers<[1], [0], [0], [1], [0, 0, 1, 1], [], []>} : vector<8x8xbf16>, vector<8x32xbf16>, vector<8x32xf32> -> vector<8x32xf32>
    %116 = arith.addf %94, %115 : vector<8x32xf32>
    %117 = arith.addf %1, %116 : vector<8x32xf32>
    %118 = vector.broadcast %11 : vector<1x32xf32> to vector<8x32xf32>
    %119 = arith.addf %117, %118 : vector<8x32xf32>
    %cst_52 = arith.constant dense<0.000000e+00> : vector<8xf32>
    %120 = vector.multi_reduction <add>, %119, %cst_52 [1] : vector<8x32xf32> to vector<8xf32>
    %121 = vector.shape_cast %120 : vector<8xf32> to vector<8x1xf32>
    %cst_53 = arith.constant 3.200000e+01 : f32
    %122 = vector.broadcast %cst_53 : f32 to vector<8x1xf32>
    %123 = arith.divf %121, %122 : vector<8x1xf32>
    %124 = vector.broadcast %123 : vector<8x1xf32> to vector<8x32xf32>
    %125 = arith.subf %119, %124 : vector<8x32xf32>
    %126 = arith.mulf %125, %125 : vector<8x32xf32>
    %cst_54 = arith.constant dense<0.000000e+00> : vector<8xf32>
    %127 = vector.multi_reduction <add>, %126, %cst_54 [1] : vector<8x32xf32> to vector<8xf32>
    %128 = vector.shape_cast %127 : vector<8xf32> to vector<8x1xf32>
    %cst_55 = arith.constant 3.200000e+01 : f32
    %129 = vector.broadcast %cst_55 : f32 to vector<8x1xf32>
    %130 = arith.divf %128, %129 : vector<8x1xf32>
    %131 = vector.broadcast %123 : vector<8x1xf32> to vector<8x32xf32>
    %132 = arith.subf %119, %131 : vector<8x32xf32>
    %cst_56 = arith.constant 9.99999974E-6 : f32
    %133 = vector.broadcast %cst_56 : f32 to vector<8x1xf32>
    %134 = arith.addf %130, %133 : vector<8x1xf32>
    %135 = math.rsqrt %134 : vector<8x1xf32>
    %136 = vector.broadcast %135 : vector<8x1xf32> to vector<8x32xf32>
    %137 = arith.mulf %132, %136 : vector<8x32xf32>
    %138 = vector.broadcast %12 : vector<1x32xf32> to vector<8x32xf32>
    %139 = arith.mulf %137, %138 : vector<8x32xf32>
    %140 = vector.broadcast %13 : vector<1x32xf32> to vector<8x32xf32>
    %141 = arith.addf %139, %140 : vector<8x32xf32>
    %c0_57 = arith.constant 0 : index
    %c0_58 = arith.constant 0 : index
    %142 = vector.load %arg13[%c0_57, %c0_58] : memref<32x32xbf16, #tpu.memory_space<vmem>>, vector<32x32xbf16>
    %c0_59 = arith.constant 0 : index
    %c0_60 = arith.constant 0 : index
    %143 = vector.load %arg14[%c0_59, %c0_60] : memref<32x32xbf16, #tpu.memory_space<vmem>>, vector<32x32xbf16>
    %c0_61 = arith.constant 0 : index
    %c0_62 = arith.constant 0 : index
    %144 = vector.load %arg15[%c0_61, %c0_62] : memref<32x32xbf16, #tpu.memory_space<vmem>>, vector<32x32xbf16>
    %c0_63 = arith.constant 0 : index
    %c0_64 = arith.constant 0 : index
    %145 = vector.load %arg16[%c0_63, %c0_64] : memref<32x32xbf16, #tpu.memory_space<vmem>>, vector<32x32xbf16>
    %c0_65 = arith.constant 0 : index
    %c0_66 = arith.constant 0 : index
    %146 = vector.load %arg17[%c0_65, %c0_66] : memref<1x32xf32, #tpu.memory_space<vmem>>, vector<1x32xf32>
    %c0_67 = arith.constant 0 : index
    %c0_68 = arith.constant 0 : index
    %147 = vector.load %arg18[%c0_67, %c0_68] : memref<1x32xf32, #tpu.memory_space<vmem>>, vector<1x32xf32>
    %c0_69 = arith.constant 0 : index
    %c0_70 = arith.constant 0 : index
    %148 = vector.load %arg19[%c0_69, %c0_70] : memref<1x32xf32, #tpu.memory_space<vmem>>, vector<1x32xf32>
    %c0_71 = arith.constant 0 : index
    %c0_72 = arith.constant 0 : index
    %149 = vector.load %arg20[%c0_71, %c0_72] : memref<1x32xf32, #tpu.memory_space<vmem>>, vector<1x32xf32>
    %c0_73 = arith.constant 0 : index
    %c0_74 = arith.constant 0 : index
    %150 = vector.load %arg21[%c0_73, %c0_74] : memref<1x32xf32, #tpu.memory_space<vmem>>, vector<1x32xf32>
    %c0_75 = arith.constant 0 : index
    %c0_76 = arith.constant 0 : index
    %151 = vector.load %arg22[%c0_75, %c0_76] : memref<1x32xf32, #tpu.memory_space<vmem>>, vector<1x32xf32>
    %152 = arith.truncf %141 : vector<8x32xf32> to vector<8x32xbf16>
    %153 = arith.truncf %3 : vector<8x32xf32> to vector<8x32xbf16>
    %cst_77 = arith.constant dense<0.000000e+00> : vector<8x32xf32>
    %154 = tpu.matmul %152, %142, %cst_77 {dimension_numbers = #tpu.dot_dimension_numbers<[1], [0], [0], [1], [0, 0, 1, 1], [], []>} : vector<8x32xbf16>, vector<32x32xbf16>, vector<8x32xf32> -> vector<8x32xf32>
    %155 = vector.broadcast %146 : vector<1x32xf32> to vector<8x32xf32>
    %156 = arith.addf %154, %155 : vector<8x32xf32>
    %157 = arith.truncf %156 : vector<8x32xf32> to vector<8x32xbf16>
    %cst_78 = arith.constant dense<0.000000e+00> : vector<8x32xf32>
    %158 = tpu.matmul %153, %143, %cst_78 {dimension_numbers = #tpu.dot_dimension_numbers<[1], [0], [0], [1], [0, 0, 1, 1], [], []>} : vector<8x32xbf16>, vector<32x32xbf16>, vector<8x32xf32> -> vector<8x32xf32>
    %159 = vector.broadcast %147 : vector<1x32xf32> to vector<8x32xf32>
    %160 = arith.addf %158, %159 : vector<8x32xf32>
    %161 = arith.truncf %160 : vector<8x32xf32> to vector<8x32xbf16>
    %cst_79 = arith.constant dense<0.000000e+00> : vector<8x32xf32>
    %162 = tpu.matmul %153, %144, %cst_79 {dimension_numbers = #tpu.dot_dimension_numbers<[1], [0], [0], [1], [0, 0, 1, 1], [], []>} : vector<8x32xbf16>, vector<32x32xbf16>, vector<8x32xf32> -> vector<8x32xf32>
    %163 = vector.broadcast %148 : vector<1x32xf32> to vector<8x32xf32>
    %164 = arith.addf %162, %163 : vector<8x32xf32>
    %165 = arith.truncf %164 : vector<8x32xf32> to vector<8x32xbf16>
    %cst_80 = arith.constant 0.000000e+00 : f32
    %166 = vector.broadcast %cst_80 : f32 to vector<8x32xf32>
    %167 = vector.extract_strided_slice %157 {offsets = [0, 0], sizes = [8, 8], strides = [1, 1]} : vector<8x32xbf16> to vector<8x8xbf16>
    %168 = vector.extract_strided_slice %161 {offsets = [0, 0], sizes = [8, 8], strides = [1, 1]} : vector<8x32xbf16> to vector<8x8xbf16>
    %169 = vector.extract_strided_slice %165 {offsets = [0, 0], sizes = [8, 8], strides = [1, 1]} : vector<8x32xbf16> to vector<8x8xbf16>
    %cst_81 = arith.constant dense<0.000000e+00> : vector<8x8xf32>
    %170 = tpu.matmul %167, %168, %cst_81 {dimension_numbers = #tpu.dot_dimension_numbers<[1], [1], [0], [0], [0, 0, 1, 0], [], []>} : vector<8x8xbf16>, vector<8x8xbf16>, vector<8x8xf32> -> vector<8x8xf32>
    %cst_82 = arith.constant 0.353553385 : f32
    %171 = vector.broadcast %cst_82 : f32 to vector<8x8xf32>
    %172 = arith.mulf %170, %171 : vector<8x8xf32>
    %cst_83 = arith.constant dense<0xFF800000> : vector<8xf32>
    %173 = vector.multi_reduction <maximumf>, %172, %cst_83 [1] : vector<8x8xf32> to vector<8xf32>
    %174 = vector.shape_cast %173 : vector<8xf32> to vector<8x1xf32>
    %175 = vector.broadcast %174 : vector<8x1xf32> to vector<8x8xf32>
    %176 = arith.subf %172, %175 : vector<8x8xf32>
    %177 = math.exp %176 : vector<8x8xf32>
    %cst_84 = arith.constant dense<0.000000e+00> : vector<8xf32>
    %178 = vector.multi_reduction <add>, %177, %cst_84 [1] : vector<8x8xf32> to vector<8xf32>
    %179 = vector.shape_cast %178 : vector<8xf32> to vector<8x1xf32>
    %180 = tpu.reciprocal %179 {approx = true} : vector<8x1xf32> -> vector<8x1xf32>
    %181 = vector.broadcast %180 : vector<8x1xf32> to vector<8x8xf32>
    %182 = arith.mulf %177, %181 : vector<8x8xf32>
    %183 = arith.truncf %182 : vector<8x8xf32> to vector<8x8xbf16>
    %cst_85 = arith.constant dense<0.000000e+00> : vector<8x8xf32>
    %184 = tpu.matmul %183, %169, %cst_85 {dimension_numbers = #tpu.dot_dimension_numbers<[1], [0], [0], [1], [0, 0, 1, 1], [], []>} : vector<8x8xbf16>, vector<8x8xbf16>, vector<8x8xf32> -> vector<8x8xf32>
    %185 = arith.truncf %184 : vector<8x8xf32> to vector<8x8xbf16>
    %186 = vector.extract_strided_slice %145 {offsets = [0, 0], sizes = [8, 32], strides = [1, 1]} : vector<32x32xbf16> to vector<8x32xbf16>
    %cst_86 = arith.constant dense<0.000000e+00> : vector<8x32xf32>
    %187 = tpu.matmul %185, %186, %cst_86 {dimension_numbers = #tpu.dot_dimension_numbers<[1], [0], [0], [1], [0, 0, 1, 1], [], []>} : vector<8x8xbf16>, vector<8x32xbf16>, vector<8x32xf32> -> vector<8x32xf32>
    %188 = arith.addf %166, %187 : vector<8x32xf32>
    %189 = vector.extract_strided_slice %157 {offsets = [0, 8], sizes = [8, 8], strides = [1, 1]} : vector<8x32xbf16> to vector<8x8xbf16>
    %190 = vector.extract_strided_slice %161 {offsets = [0, 8], sizes = [8, 8], strides = [1, 1]} : vector<8x32xbf16> to vector<8x8xbf16>
    %191 = vector.extract_strided_slice %165 {offsets = [0, 8], sizes = [8, 8], strides = [1, 1]} : vector<8x32xbf16> to vector<8x8xbf16>
    %cst_87 = arith.constant dense<0.000000e+00> : vector<8x8xf32>
    %192 = tpu.matmul %189, %190, %cst_87 {dimension_numbers = #tpu.dot_dimension_numbers<[1], [1], [0], [0], [0, 0, 1, 0], [], []>} : vector<8x8xbf16>, vector<8x8xbf16>, vector<8x8xf32> -> vector<8x8xf32>
    %cst_88 = arith.constant 0.353553385 : f32
    %193 = vector.broadcast %cst_88 : f32 to vector<8x8xf32>
    %194 = arith.mulf %192, %193 : vector<8x8xf32>
    %cst_89 = arith.constant dense<0xFF800000> : vector<8xf32>
    %195 = vector.multi_reduction <maximumf>, %194, %cst_89 [1] : vector<8x8xf32> to vector<8xf32>
    %196 = vector.shape_cast %195 : vector<8xf32> to vector<8x1xf32>
    %197 = vector.broadcast %196 : vector<8x1xf32> to vector<8x8xf32>
    %198 = arith.subf %194, %197 : vector<8x8xf32>
    %199 = math.exp %198 : vector<8x8xf32>
    %cst_90 = arith.constant dense<0.000000e+00> : vector<8xf32>
    %200 = vector.multi_reduction <add>, %199, %cst_90 [1] : vector<8x8xf32> to vector<8xf32>
    %201 = vector.shape_cast %200 : vector<8xf32> to vector<8x1xf32>
    %202 = tpu.reciprocal %201 {approx = true} : vector<8x1xf32> -> vector<8x1xf32>
    %203 = vector.broadcast %202 : vector<8x1xf32> to vector<8x8xf32>
    %204 = arith.mulf %199, %203 : vector<8x8xf32>
    %205 = arith.truncf %204 : vector<8x8xf32> to vector<8x8xbf16>
    %cst_91 = arith.constant dense<0.000000e+00> : vector<8x8xf32>
    %206 = tpu.matmul %205, %191, %cst_91 {dimension_numbers = #tpu.dot_dimension_numbers<[1], [0], [0], [1], [0, 0, 1, 1], [], []>} : vector<8x8xbf16>, vector<8x8xbf16>, vector<8x8xf32> -> vector<8x8xf32>
    %207 = arith.truncf %206 : vector<8x8xf32> to vector<8x8xbf16>
    %208 = vector.extract_strided_slice %145 {offsets = [8, 0], sizes = [8, 32], strides = [1, 1]} : vector<32x32xbf16> to vector<8x32xbf16>
    %cst_92 = arith.constant dense<0.000000e+00> : vector<8x32xf32>
    %209 = tpu.matmul %207, %208, %cst_92 {dimension_numbers = #tpu.dot_dimension_numbers<[1], [0], [0], [1], [0, 0, 1, 1], [], []>} : vector<8x8xbf16>, vector<8x32xbf16>, vector<8x32xf32> -> vector<8x32xf32>
    %210 = arith.addf %188, %209 : vector<8x32xf32>
    %211 = vector.extract_strided_slice %157 {offsets = [0, 16], sizes = [8, 8], strides = [1, 1]} : vector<8x32xbf16> to vector<8x8xbf16>
    %212 = vector.extract_strided_slice %161 {offsets = [0, 16], sizes = [8, 8], strides = [1, 1]} : vector<8x32xbf16> to vector<8x8xbf16>
    %213 = vector.extract_strided_slice %165 {offsets = [0, 16], sizes = [8, 8], strides = [1, 1]} : vector<8x32xbf16> to vector<8x8xbf16>
    %cst_93 = arith.constant dense<0.000000e+00> : vector<8x8xf32>
    %214 = tpu.matmul %211, %212, %cst_93 {dimension_numbers = #tpu.dot_dimension_numbers<[1], [1], [0], [0], [0, 0, 1, 0], [], []>} : vector<8x8xbf16>, vector<8x8xbf16>, vector<8x8xf32> -> vector<8x8xf32>
    %cst_94 = arith.constant 0.353553385 : f32
    %215 = vector.broadcast %cst_94 : f32 to vector<8x8xf32>
    %216 = arith.mulf %214, %215 : vector<8x8xf32>
    %cst_95 = arith.constant dense<0xFF800000> : vector<8xf32>
    %217 = vector.multi_reduction <maximumf>, %216, %cst_95 [1] : vector<8x8xf32> to vector<8xf32>
    %218 = vector.shape_cast %217 : vector<8xf32> to vector<8x1xf32>
    %219 = vector.broadcast %218 : vector<8x1xf32> to vector<8x8xf32>
    %220 = arith.subf %216, %219 : vector<8x8xf32>
    %221 = math.exp %220 : vector<8x8xf32>
    %cst_96 = arith.constant dense<0.000000e+00> : vector<8xf32>
    %222 = vector.multi_reduction <add>, %221, %cst_96 [1] : vector<8x8xf32> to vector<8xf32>
    %223 = vector.shape_cast %222 : vector<8xf32> to vector<8x1xf32>
    %224 = tpu.reciprocal %223 {approx = true} : vector<8x1xf32> -> vector<8x1xf32>
    %225 = vector.broadcast %224 : vector<8x1xf32> to vector<8x8xf32>
    %226 = arith.mulf %221, %225 : vector<8x8xf32>
    %227 = arith.truncf %226 : vector<8x8xf32> to vector<8x8xbf16>
    %cst_97 = arith.constant dense<0.000000e+00> : vector<8x8xf32>
    %228 = tpu.matmul %227, %213, %cst_97 {dimension_numbers = #tpu.dot_dimension_numbers<[1], [0], [0], [1], [0, 0, 1, 1], [], []>} : vector<8x8xbf16>, vector<8x8xbf16>, vector<8x8xf32> -> vector<8x8xf32>
    %229 = arith.truncf %228 : vector<8x8xf32> to vector<8x8xbf16>
    %230 = vector.extract_strided_slice %145 {offsets = [16, 0], sizes = [8, 32], strides = [1, 1]} : vector<32x32xbf16> to vector<8x32xbf16>
    %cst_98 = arith.constant dense<0.000000e+00> : vector<8x32xf32>
    %231 = tpu.matmul %229, %230, %cst_98 {dimension_numbers = #tpu.dot_dimension_numbers<[1], [0], [0], [1], [0, 0, 1, 1], [], []>} : vector<8x8xbf16>, vector<8x32xbf16>, vector<8x32xf32> -> vector<8x32xf32>
    %232 = arith.addf %210, %231 : vector<8x32xf32>
    %233 = vector.extract_strided_slice %157 {offsets = [0, 24], sizes = [8, 8], strides = [1, 1]} : vector<8x32xbf16> to vector<8x8xbf16>
    %234 = vector.extract_strided_slice %161 {offsets = [0, 24], sizes = [8, 8], strides = [1, 1]} : vector<8x32xbf16> to vector<8x8xbf16>
    %235 = vector.extract_strided_slice %165 {offsets = [0, 24], sizes = [8, 8], strides = [1, 1]} : vector<8x32xbf16> to vector<8x8xbf16>
    %cst_99 = arith.constant dense<0.000000e+00> : vector<8x8xf32>
    %236 = tpu.matmul %233, %234, %cst_99 {dimension_numbers = #tpu.dot_dimension_numbers<[1], [1], [0], [0], [0, 0, 1, 0], [], []>} : vector<8x8xbf16>, vector<8x8xbf16>, vector<8x8xf32> -> vector<8x8xf32>
    %cst_100 = arith.constant 0.353553385 : f32
    %237 = vector.broadcast %cst_100 : f32 to vector<8x8xf32>
    %238 = arith.mulf %236, %237 : vector<8x8xf32>
    %cst_101 = arith.constant dense<0xFF800000> : vector<8xf32>
    %239 = vector.multi_reduction <maximumf>, %238, %cst_101 [1] : vector<8x8xf32> to vector<8xf32>
    %240 = vector.shape_cast %239 : vector<8xf32> to vector<8x1xf32>
    %241 = vector.broadcast %240 : vector<8x1xf32> to vector<8x8xf32>
    %242 = arith.subf %238, %241 : vector<8x8xf32>
    %243 = math.exp %242 : vector<8x8xf32>
    %cst_102 = arith.constant dense<0.000000e+00> : vector<8xf32>
    %244 = vector.multi_reduction <add>, %243, %cst_102 [1] : vector<8x8xf32> to vector<8xf32>
    %245 = vector.shape_cast %244 : vector<8xf32> to vector<8x1xf32>
    %246 = tpu.reciprocal %245 {approx = true} : vector<8x1xf32> -> vector<8x1xf32>
    %247 = vector.broadcast %246 : vector<8x1xf32> to vector<8x8xf32>
    %248 = arith.mulf %243, %247 : vector<8x8xf32>
    %249 = arith.truncf %248 : vector<8x8xf32> to vector<8x8xbf16>
    %cst_103 = arith.constant dense<0.000000e+00> : vector<8x8xf32>
    %250 = tpu.matmul %249, %235, %cst_103 {dimension_numbers = #tpu.dot_dimension_numbers<[1], [0], [0], [1], [0, 0, 1, 1], [], []>} : vector<8x8xbf16>, vector<8x8xbf16>, vector<8x8xf32> -> vector<8x8xf32>
    %251 = arith.truncf %250 : vector<8x8xf32> to vector<8x8xbf16>
    %252 = vector.extract_strided_slice %145 {offsets = [24, 0], sizes = [8, 32], strides = [1, 1]} : vector<32x32xbf16> to vector<8x32xbf16>
    %cst_104 = arith.constant dense<0.000000e+00> : vector<8x32xf32>
    %253 = tpu.matmul %251, %252, %cst_104 {dimension_numbers = #tpu.dot_dimension_numbers<[1], [0], [0], [1], [0, 0, 1, 1], [], []>} : vector<8x8xbf16>, vector<8x32xbf16>, vector<8x32xf32> -> vector<8x32xf32>
    %254 = arith.addf %232, %253 : vector<8x32xf32>
    %255 = arith.addf %141, %254 : vector<8x32xf32>
    %256 = vector.broadcast %149 : vector<1x32xf32> to vector<8x32xf32>
    %257 = arith.addf %255, %256 : vector<8x32xf32>
    %cst_105 = arith.constant dense<0.000000e+00> : vector<8xf32>
    %258 = vector.multi_reduction <add>, %257, %cst_105 [1] : vector<8x32xf32> to vector<8xf32>
    %259 = vector.shape_cast %258 : vector<8xf32> to vector<8x1xf32>
    %cst_106 = arith.constant 3.200000e+01 : f32
    %260 = vector.broadcast %cst_106 : f32 to vector<8x1xf32>
    %261 = arith.divf %259, %260 : vector<8x1xf32>
    %262 = vector.broadcast %261 : vector<8x1xf32> to vector<8x32xf32>
    %263 = arith.subf %257, %262 : vector<8x32xf32>
    %264 = arith.mulf %263, %263 : vector<8x32xf32>
    %cst_107 = arith.constant dense<0.000000e+00> : vector<8xf32>
    %265 = vector.multi_reduction <add>, %264, %cst_107 [1] : vector<8x32xf32> to vector<8xf32>
    %266 = vector.shape_cast %265 : vector<8xf32> to vector<8x1xf32>
    %cst_108 = arith.constant 3.200000e+01 : f32
    %267 = vector.broadcast %cst_108 : f32 to vector<8x1xf32>
    %268 = arith.divf %266, %267 : vector<8x1xf32>
    %269 = vector.broadcast %261 : vector<8x1xf32> to vector<8x32xf32>
    %270 = arith.subf %257, %269 : vector<8x32xf32>
    %cst_109 = arith.constant 9.99999974E-6 : f32
    %271 = vector.broadcast %cst_109 : f32 to vector<8x1xf32>
    %272 = arith.addf %268, %271 : vector<8x1xf32>
    %273 = math.rsqrt %272 : vector<8x1xf32>
    %274 = vector.broadcast %273 : vector<8x1xf32> to vector<8x32xf32>
    %275 = arith.mulf %270, %274 : vector<8x32xf32>
    %276 = vector.broadcast %150 : vector<1x32xf32> to vector<8x32xf32>
    %277 = arith.mulf %275, %276 : vector<8x32xf32>
    %278 = vector.broadcast %151 : vector<1x32xf32> to vector<8x32xf32>
    %279 = arith.addf %277, %278 : vector<8x32xf32>
    %c0_110 = arith.constant 0 : index
    %c0_111 = arith.constant 0 : index
    %280 = vector.load %arg23[%c0_110, %c0_111] : memref<32x64xbf16, #tpu.memory_space<vmem>>, vector<32x64xbf16>
    %c0_112 = arith.constant 0 : index
    %c0_113 = arith.constant 0 : index
    %281 = vector.load %arg24[%c0_112, %c0_113] : memref<1x64xf32, #tpu.memory_space<vmem>>, vector<1x64xf32>
    %c0_114 = arith.constant 0 : index
    %c0_115 = arith.constant 0 : index
    %282 = vector.load %arg25[%c0_114, %c0_115] : memref<64x32xbf16, #tpu.memory_space<vmem>>, vector<64x32xbf16>
    %c0_116 = arith.constant 0 : index
    %c0_117 = arith.constant 0 : index
    %283 = vector.load %arg26[%c0_116, %c0_117] : memref<1x32xf32, #tpu.memory_space<vmem>>, vector<1x32xf32>
    %c0_118 = arith.constant 0 : index
    %c0_119 = arith.constant 0 : index
    %284 = vector.load %arg27[%c0_118, %c0_119] : memref<1x32xf32, #tpu.memory_space<vmem>>, vector<1x32xf32>
    %c0_120 = arith.constant 0 : index
    %c0_121 = arith.constant 0 : index
    %285 = vector.load %arg28[%c0_120, %c0_121] : memref<1x32xf32, #tpu.memory_space<vmem>>, vector<1x32xf32>
    %286 = arith.truncf %279 : vector<8x32xf32> to vector<8x32xbf16>
    %cst_122 = arith.constant dense<0.000000e+00> : vector<8x64xf32>
    %287 = tpu.matmul %286, %280, %cst_122 {dimension_numbers = #tpu.dot_dimension_numbers<[1], [0], [0], [1], [0, 0, 1, 1], [], []>} : vector<8x32xbf16>, vector<32x64xbf16>, vector<8x64xf32> -> vector<8x64xf32>
    %288 = vector.broadcast %281 : vector<1x64xf32> to vector<8x64xf32>
    %289 = arith.addf %287, %288 : vector<8x64xf32>
    %cst_123 = arith.constant 0.000000e+00 : f32
    %290 = vector.broadcast %cst_123 : f32 to vector<8x64xf32>
    %291 = arith.maximumf %289, %290 : vector<8x64xf32>
    %292 = arith.truncf %291 : vector<8x64xf32> to vector<8x64xbf16>
    %cst_124 = arith.constant dense<0.000000e+00> : vector<8x32xf32>
    %293 = tpu.matmul %292, %282, %cst_124 {dimension_numbers = #tpu.dot_dimension_numbers<[1], [0], [0], [1], [0, 0, 1, 1], [], []>} : vector<8x64xbf16>, vector<64x32xbf16>, vector<8x32xf32> -> vector<8x32xf32>
    %294 = vector.broadcast %283 : vector<1x32xf32> to vector<8x32xf32>
    %295 = arith.addf %293, %294 : vector<8x32xf32>
    %296 = arith.addf %279, %295 : vector<8x32xf32>
    %cst_125 = arith.constant dense<0.000000e+00> : vector<8xf32>
    %297 = vector.multi_reduction <add>, %296, %cst_125 [1] : vector<8x32xf32> to vector<8xf32>
    %298 = vector.shape_cast %297 : vector<8xf32> to vector<8x1xf32>
    %cst_126 = arith.constant 3.200000e+01 : f32
    %299 = vector.broadcast %cst_126 : f32 to vector<8x1xf32>
    %300 = arith.divf %298, %299 : vector<8x1xf32>
    %301 = vector.broadcast %300 : vector<8x1xf32> to vector<8x32xf32>
    %302 = arith.subf %296, %301 : vector<8x32xf32>
    %303 = arith.mulf %302, %302 : vector<8x32xf32>
    %cst_127 = arith.constant dense<0.000000e+00> : vector<8xf32>
    %304 = vector.multi_reduction <add>, %303, %cst_127 [1] : vector<8x32xf32> to vector<8xf32>
    %305 = vector.shape_cast %304 : vector<8xf32> to vector<8x1xf32>
    %cst_128 = arith.constant 3.200000e+01 : f32
    %306 = vector.broadcast %cst_128 : f32 to vector<8x1xf32>
    %307 = arith.divf %305, %306 : vector<8x1xf32>
    %308 = vector.broadcast %300 : vector<8x1xf32> to vector<8x32xf32>
    %309 = arith.subf %296, %308 : vector<8x32xf32>
    %cst_129 = arith.constant 9.99999974E-6 : f32
    %310 = vector.broadcast %cst_129 : f32 to vector<8x1xf32>
    %311 = arith.addf %307, %310 : vector<8x1xf32>
    %312 = math.rsqrt %311 : vector<8x1xf32>
    %313 = vector.broadcast %312 : vector<8x1xf32> to vector<8x32xf32>
    %314 = arith.mulf %309, %313 : vector<8x32xf32>
    %315 = vector.broadcast %284 : vector<1x32xf32> to vector<8x32xf32>
    %316 = arith.mulf %314, %315 : vector<8x32xf32>
    %317 = vector.broadcast %285 : vector<1x32xf32> to vector<8x32xf32>
    %318 = arith.addf %316, %317 : vector<8x32xf32>
    %c0_130 = arith.constant 0 : index
    %c0_131 = arith.constant 0 : index
    %c0_132 = arith.constant 0 : index
    %319 = vector.load %arg29[%c0_130, %c0_131, %c0_132] : memref<1x8x32xf32, #tpu.memory_space<vmem>>, vector<1x8x32xf32>
    %320 = vector.shape_cast %319 : vector<1x8x32xf32> to vector<8x32xf32>
    %321 = vector.shape_cast %318 : vector<8x32xf32> to vector<1x8x32xf32>
    tpu.vector_store %arg29[%c0_130, %c0_131, %c0_132], %321 {strides = array<i32>} : memref<1x8x32xf32, #tpu.memory_space<vmem>>, vector<1x8x32xf32>,
    return
  }
  func.func @transform_0(%arg0: i32) -> (i32, i32, i32) {
    %c0_i32 = arith.constant 0 : i32
    %c0_i32_0 = arith.constant 0 : i32
    %c0_i32_1 = arith.constant 0 : i32
    return %arg0, %c0_i32, %c0_i32_0 : i32, i32, i32
  }
  func.func @transform_1(%arg0: i32) -> (i32, i32, i32) {
    %c0_i32 = arith.constant 0 : i32
    %c0_i32_0 = arith.constant 0 : i32
    %c0_i32_1 = arith.constant 0 : i32
    return %arg0, %c0_i32, %c0_i32_0 : i32, i32, i32
  }
  func.func @transform_2(%arg0: i32) -> (i32, i32) {
    %c0_i32 = arith.constant 0 : i32
    %c0_i32_0 = arith.constant 0 : i32
    %c0_i32_1 = arith.constant 0 : i32
    return %c0_i32, %c0_i32_0 : i32, i32
  }
  func.func @transform_3(%arg0: i32) -> (i32, i32) {
    %c0_i32 = arith.constant 0 : i32
    %c0_i32_0 = arith.constant 0 : i32
    %c0_i32_1 = arith.constant 0 : i32
    return %c0_i32, %c0_i32_0 : i32, i32
  }
  func.func @transform_4(%arg0: i32) -> (i32, i32) {
    %c0_i32 = arith.constant 0 : i32
    %c0_i32_0 = arith.constant 0 : i32
    %c0_i32_1 = arith.constant 0 : i32
    return %c0_i32, %c0_i32_0 : i32, i32
  }
  func.func @transform_5(%arg0: i32) -> (i32, i32) {
    %c0_i32 = arith.constant 0 : i32
    %c0_i32_0 = arith.constant 0 : i32
    %c0_i32_1 = arith.constant 0 : i32
    return %c0_i32, %c0_i32_0 : i32, i32
  }
  func.func @transform_6(%arg0: i32) -> (i32, i32) {
    %c0_i32 = arith.constant 0 : i32
    %c0_i32_0 = arith.constant 0 : i32
    %c0_i32_1 = arith.constant 0 : i32
    return %c0_i32, %c0_i32_0 : i32, i32
  }
  func.func @transform_7(%arg0: i32) -> (i32, i32) {
    %c0_i32 = arith.constant 0 : i32
    %c0_i32_0 = arith.constant 0 : i32
    %c0_i32_1 = arith.constant 0 : i32
    return %c0_i32, %c0_i32_0 : i32, i32
  }
  func.func @transform_8(%arg0: i32) -> (i32, i32) {
    %c0_i32 = arith.constant 0 : i32
    %c0_i32_0 = arith.constant 0 : i32
    %c0_i32_1 = arith.constant 0 : i32
    return %c0_i32, %c0_i32_0 : i32, i32
  }
  func.func @transform_9(%arg0: i32) -> (i32, i32) {
    %c0_i32 = arith.constant 0 : i32
    %c0_i32_0 = arith.constant 0 : i32
    %c0_i32_1 = arith.constant 0 : i32
    return %c0_i32, %c0_i32_0 : i32, i32
  }
  func.func @transform_10(%arg0: i32) -> (i32, i32) {
    %c0_i32 = arith.constant 0 : i32
    %c0_i32_0 = arith.constant 0 : i32
    %c0_i32_1 = arith.constant 0 : i32
    return %c0_i32, %c0_i32_0 : i32, i32
  }
  func.func @transform_11(%arg0: i32) -> (i32, i32) {
    %c0_i32 = arith.constant 0 : i32
    %c0_i32_0 = arith.constant 0 : i32
    %c0_i32_1 = arith.constant 0 : i32
    return %c0_i32, %c0_i32_0 : i32, i32
  }
  func.func @transform_12(%arg0: i32) -> (i32, i32) {
    %c0_i32 = arith.constant 0 : i32
    %c0_i32_0 = arith.constant 0 : i32
    %c0_i32_1 = arith.constant 0 : i32
    return %c0_i32, %c0_i32_0 : i32, i32
  }
  func.func @transform_13(%arg0: i32) -> (i32, i32) {
    %c0_i32 = arith.constant 0 : i32
    %c0_i32_0 = arith.constant 0 : i32
    %c0_i32_1 = arith.constant 0 : i32
    return %c0_i32, %c0_i32_0 : i32, i32
  }
  func.func @transform_14(%arg0: i32) -> (i32, i32) {
    %c0_i32 = arith.constant 0 : i32
    %c0_i32_0 = arith.constant 0 : i32
    %c0_i32_1 = arith.constant 0 : i32
    return %c0_i32, %c0_i32_0 : i32, i32
  }
  func.func @transform_15(%arg0: i32) -> (i32, i32) {
    %c0_i32 = arith.constant 0 : i32
    %c0_i32_0 = arith.constant 0 : i32
    %c0_i32_1 = arith.constant 0 : i32
    return %c0_i32, %c0_i32_0 : i32, i32
  }
  func.func @transform_16(%arg0: i32) -> (i32, i32) {
    %c0_i32 = arith.constant 0 : i32
    %c0_i32_0 = arith.constant 0 : i32
    %c0_i32_1 = arith.constant 0 : i32
    return %c0_i32, %c0_i32_0 : i32, i32
  }
  func.func @transform_17(%arg0: i32) -> (i32, i32) {
    %c0_i32 = arith.constant 0 : i32
    %c0_i32_0 = arith.constant 0 : i32
    %c0_i32_1 = arith.constant 0 : i32
    return %c0_i32, %c0_i32_0 : i32, i32
  }
  func.func @transform_18(%arg0: i32) -> (i32, i32) {
    %c0_i32 = arith.constant 0 : i32
    %c0_i32_0 = arith.constant 0 : i32
    %c0_i32_1 = arith.constant 0 : i32
    return %c0_i32, %c0_i32_0 : i32, i32
  }
  func.func @transform_19(%arg0: i32) -> (i32, i32) {
    %c0_i32 = arith.constant 0 : i32
    %c0_i32_0 = arith.constant 0 : i32
    %c0_i32_1 = arith.constant 0 : i32
    return %c0_i32, %c0_i32_0 : i32, i32
  }
  func.func @transform_20(%arg0: i32) -> (i32, i32) {
    %c0_i32 = arith.constant 0 : i32
    %c0_i32_0 = arith.constant 0 : i32
    %c0_i32_1 = arith.constant 0 : i32
    return %c0_i32, %c0_i32_0 : i32, i32
  }
  func.func @transform_21(%arg0: i32) -> (i32, i32) {
    %c0_i32 = arith.constant 0 : i32
    %c0_i32_0 = arith.constant 0 : i32
    %c0_i32_1 = arith.constant 0 : i32
    return %c0_i32, %c0_i32_0 : i32, i32
  }
  func.func @transform_22(%arg0: i32) -> (i32, i32) {
    %c0_i32 = arith.constant 0 : i32
    %c0_i32_0 = arith.constant 0 : i32
    %c0_i32_1 = arith.constant 0 : i32
    return %c0_i32, %c0_i32_0 : i32, i32
  }
  func.func @transform_23(%arg0: i32) -> (i32, i32) {
    %c0_i32 = arith.constant 0 : i32
    %c0_i32_0 = arith.constant 0 : i32
    %c0_i32_1 = arith.constant 0 : i32
    return %c0_i32, %c0_i32_0 : i32, i32
  }
  func.func @transform_24(%arg0: i32) -> (i32, i32) {
    %c0_i32 = arith.constant 0 : i32
    %c0_i32_0 = arith.constant 0 : i32
    %c0_i32_1 = arith.constant 0 : i32
    return %c0_i32, %c0_i32_0 : i32, i32
  }
  func.func @transform_25(%arg0: i32) -> (i32, i32) {
    %c0_i32 = arith.constant 0 : i32
    %c0_i32_0 = arith.constant 0 : i32
    %c0_i32_1 = arith.constant 0 : i32
    return %c0_i32, %c0_i32_0 : i32, i32
  }
  func.func @transform_26(%arg0: i32) -> (i32, i32) {
    %c0_i32 = arith.constant 0 : i32
    %c0_i32_0 = arith.constant 0 : i32
    %c0_i32_1 = arith.constant 0 : i32
    return %c0_i32, %c0_i32_0 : i32, i32
  }
  func.func @transform_27(%arg0: i32) -> (i32, i32) {
    %c0_i32 = arith.constant 0 : i32
    %c0_i32_0 = arith.constant 0 : i32
    %c0_i32_1 = arith.constant 0 : i32
    return %c0_i32, %c0_i32_0 : i32, i32
  }
  func.func @transform_28(%arg0: i32) -> (i32, i32, i32) {
    %c0_i32 = arith.constant 0 : i32
    %c0_i32_0 = arith.constant 0 : i32
    %c0_i32_1 = arith.constant 0 : i32
    return %arg0, %c0_i32, %c0_i32_0 : i32, i32, i32
  }
}

module attributes {stable_mosaic.version = 11 : i64} {
  func.func @_logits_kernel(%arg0: i32, %arg1: i32, %arg2: memref<8x32xf32, #tpu.memory_space<vmem>>, %arg3: memref<32x128xbf16, #tpu.memory_space<vmem>>, %arg4: memref<1x128xf32, #tpu.memory_space<vmem>>, %arg5: memref<8x128xf32, #tpu.memory_space<vmem>>) attributes {dimension_semantics = [#tpu.dimension_semantics<parallel>, #tpu.dimension_semantics<parallel>], iteration_bounds = array<i64: 2, 1>, scalar_prefetch = 0 : i64, scratch_operands = 0 : i64, tpu.core_type = #tpu.core_type<tc>, window_params = [{transform_indices = @transform_0, window_bounds = array<i64: 8, 32>}, {transform_indices = @transform_1, window_bounds = array<i64: 32, 128>}, {transform_indices = @transform_2, window_bounds = array<i64: 1, 128>}, {transform_indices = @transform_3, window_bounds = array<i64: 8, 128>}]} {
    %c0 = arith.constant 0 : index
    %c0_0 = arith.constant 0 : index
    %0 = vector.load %arg2[%c0, %c0_0] : memref<8x32xf32, #tpu.memory_space<vmem>>, vector<8x32xf32>
    %1 = arith.truncf %0 : vector<8x32xf32> to vector<8x32xbf16>
    %c0_1 = arith.constant 0 : index
    %c0_2 = arith.constant 0 : index
    %2 = vector.load %arg3[%c0_1, %c0_2] : memref<32x128xbf16, #tpu.memory_space<vmem>>, vector<32x128xbf16>
    %cst = arith.constant dense<0.000000e+00> : vector<8x128xf32>
    %3 = tpu.matmul %1, %2, %cst {dimension_numbers = #tpu.dot_dimension_numbers<[1], [0], [0], [1], [0, 0, 1, 1], [], []>} : vector<8x32xbf16>, vector<32x128xbf16>, vector<8x128xf32> -> vector<8x128xf32>
    %c0_3 = arith.constant 0 : index
    %c0_4 = arith.constant 0 : index
    %4 = vector.load %arg4[%c0_3, %c0_4] : memref<1x128xf32, #tpu.memory_space<vmem>>, vector<1x128xf32>
    %5 = vector.broadcast %4 : vector<1x128xf32> to vector<8x128xf32>
    %6 = arith.addf %3, %5 : vector<8x128xf32>
    %c0_5 = arith.constant 0 : index
    %c0_6 = arith.constant 0 : index
    %7 = vector.load %arg5[%c0_5, %c0_6] : memref<8x128xf32, #tpu.memory_space<vmem>>, vector<8x128xf32>
    tpu.vector_store %arg5[%c0_5, %c0_6], %6 {strides = array<i32>} : memref<8x128xf32, #tpu.memory_space<vmem>>, vector<8x128xf32>,
    return
  }
  func.func @transform_0(%arg0: i32, %arg1: i32) -> (i32, i32) {
    %c0_i32 = arith.constant 0 : i32
    %c0_i32_0 = arith.constant 0 : i32
    return %arg0, %c0_i32 : i32, i32
  }
  func.func @transform_1(%arg0: i32, %arg1: i32) -> (i32, i32) {
    %c0_i32 = arith.constant 0 : i32
    %c0_i32_0 = arith.constant 0 : i32
    return %c0_i32, %arg1 : i32, i32
  }
  func.func @transform_2(%arg0: i32, %arg1: i32) -> (i32, i32) {
    %c0_i32 = arith.constant 0 : i32
    %c0_i32_0 = arith.constant 0 : i32
    return %c0_i32, %arg1 : i32, i32
  }
  func.func @transform_3(%arg0: i32, %arg1: i32) -> (i32, i32) {
    %c0_i32 = arith.constant 0 : i32
    return %arg0, %arg1 : i32, i32
  }
}

</mosaic_0001>

<llo_original>
// kernel: transformer_seq2seq.5
$region0: #{transformer_seq2seq.5}
  #allocation0 [shape = 'u32[]', space=smem, size = 0x4, offset = 0x4, fixed_abs, tag = 'smem constant byte address 0x4 - core index']
  #allocation1 [shape = 'u32[72,128]{1,0:T(1,128)}', space=vmem, size = 0x9000, scoped, tag = 'internal scratch']
  %s0 = inlined_call_operand.vmem [shape: f32[2,8,32], index: 0, kind: input, shape index: {}]
  %s1 = inlined_call_operand.vmem [shape: bf16[32,32], index: 1, kind: input, shape index: {}]
  %s2 = inlined_call_operand.vmem [shape: bf16[32,32], index: 2, kind: input, shape index: {}]
  %s3 = inlined_call_operand.vmem [shape: bf16[32,32], index: 3, kind: input, shape index: {}]
  %s4 = inlined_call_operand.vmem [shape: bf16[32,32], index: 4, kind: input, shape index: {}]
  %s5 = inlined_call_operand.vmem [shape: f32[1,32], index: 5, kind: input, shape index: {}]
  %s6 = inlined_call_operand.vmem [shape: f32[1,32], index: 6, kind: input, shape index: {}]
  %s7 = inlined_call_operand.vmem [shape: f32[1,32], index: 7, kind: input, shape index: {}]
  %s8 = inlined_call_operand.vmem [shape: f32[1,32], index: 8, kind: input, shape index: {}]
  %s9 = inlined_call_operand.vmem [shape: f32[1,32], index: 9, kind: input, shape index: {}]
  %s10 = inlined_call_operand.vmem [shape: f32[1,32], index: 10, kind: input, shape index: {}]
  %s11 = inlined_call_operand.vmem [shape: bf16[32,64], index: 11, kind: input, shape index: {}]
  %s12 = inlined_call_operand.vmem [shape: f32[1,64], index: 12, kind: input, shape index: {}]
  %s13 = inlined_call_operand.vmem [shape: bf16[64,32], index: 13, kind: input, shape index: {}]
  %s14 = inlined_call_operand.vmem [shape: f32[1,32], index: 14, kind: input, shape index: {}]
  %s15 = inlined_call_operand.vmem [shape: f32[1,32], index: 15, kind: input, shape index: {}]
  %s16 = inlined_call_operand.vmem [shape: f32[1,32], index: 16, kind: input, shape index: {}]
  %s17 = inlined_call_operand.vmem [shape: f32[2,8,32], index: 17, kind: output, shape index: {}]
  %s18 = sld [smem:[#allocation0]]
  $region101: #{transformer_seq2seq.5} parent=0
    _
  %s20 = ssub.s32 1, %s18
  %s21 = scalar_select 0, %s20, %s18
  loop: start=0, step=1, limit=4
  $region2: #{transformer_seq2seq.5} parent=0 // loop_pre_header
    _
  $region3: #{transformer_seq2seq.5} parent=0 // loop_header
    %s23 = sphi 0, %s27
    %p24 = scmp.ge.s32.totalorder %s23, 4
    %s33 = sphi 0, %s35
    %s36 = sphi 0, %s33
    %s37 = sphi 0, %s36
    %s53 = sphi 0, %s37
    %s57 = sphi 0, %s57
    %s59 = sphi 0, %s57
    %s60 = sphi 0, %s59
    %s74 = sphi 0, %s60
    %s78 = sphi 0, %s78
    %s80 = sphi 0, %s78
    %s81 = sphi 0, %s80
    %s95 = sphi 0, %s81
    %s99 = sphi 0, %s99
    %s101 = sphi 0, %s99
    %s102 = sphi 0, %s101
    %s116 = sphi 0, %s102
    %s120 = sphi 0, %s120
    %s122 = sphi 0, %s120
    %s123 = sphi 0, %s122
    %s137 = sphi 0, %s123
    %s141 = sphi 0, %s141
    %s143 = sphi 0, %s141
    %s144 = sphi 0, %s143
    %s158 = sphi 0, %s144
    %s162 = sphi 0, %s162
    %s164 = sphi 0, %s162
    %s165 = sphi 0, %s164
    %s179 = sphi 0, %s165
    %s183 = sphi 0, %s183
    %s185 = sphi 0, %s183
    %s186 = sphi 0, %s185
    %s200 = sphi 0, %s186
    %s204 = sphi 0, %s204
    %s206 = sphi 0, %s204
    %s207 = sphi 0, %s206
    %s221 = sphi 0, %s207
    %s225 = sphi 0, %s225
    %s227 = sphi 0, %s225
    %s228 = sphi 0, %s227
    %s242 = sphi 0, %s228
    %s246 = sphi 0, %s246
    %s248 = sphi 0, %s246
    %s249 = sphi 0, %s248
    %s263 = sphi 0, %s249
    %s267 = sphi 0, %s267
    %s269 = sphi 0, %s267
    %s270 = sphi 0, %s269
    %s284 = sphi 0, %s270
    %s288 = sphi 0, %s288
    %s290 = sphi 0, %s288
    %s291 = sphi 0, %s290
    %s305 = sphi 0, %s291
    %s309 = sphi 0, %s309
    %s311 = sphi 0, %s309
    %s312 = sphi 0, %s311
    %s326 = sphi 0, %s312
    %s330 = sphi 0, %s330
    %s332 = sphi 0, %s330
    %s333 = sphi 0, %s332
    %s347 = sphi 0, %s333
    %s351 = sphi 0, %s351
    %s353 = sphi 0, %s351
    %s354 = sphi 0, %s353
    %s368 = sphi 0, %s354
    %s372 = sphi 0, %s372
    %s374 = sphi 0, %s372
    %s375 = sphi 0, %s374
    %s389 = sphi 0, %s375
    %s395 = sphi 0, %s397
    %s398 = sphi 0, %s395
    %s399 = sphi 0, %s398
    %s415 = sphi 0, %s399
  $region4: #{transformer_seq2seq.5} parent=0 // loop_header_branch
    %26 = sbr.rel (%p24) target = $region8
  $region5: #{transformer_seq2seq.5} parent=0 // loop_body
    %s28 = ssub.s32 %s23, 1
    %s29 = ssub.s32 %s23, 2
    %s30 = sadd.s32 %s23, 1
    %s31 = ssub.s32 %s23, %s30
    %p32 = scmp.eq.s32.totalorder %s31, 0
    %s34 = sadd.s32 %s33, 1
    %s35 = scalar_select %p32, %s33, %s34
    %p38 = pneg %p32
    %p39 = scmp.eq.s32.totalorder %s23, 1
    %p40 = por %p38, %p39
    %p41 = scmp.ne.s32.totalorder %s33, %s36
    %p42 = scmp.eq.s32.totalorder %s23, 0
    %p43 = por %p41, %p42
    %p44 = scmp.ne.s32.totalorder %s33, %s36
    %p45 = scmp.eq.s32.totalorder %s28, 1
    %p46 = por %p44, %p45
    %p47 = scmp.ne.s32.totalorder %s36, %s37
    %p48 = scmp.eq.s32.totalorder %s28, 0
    %p49 = por %p47, %p48
    %p50 = scmp.ne.s32.totalorder %s36, %s37
    %p51 = scmp.eq.s32.totalorder %s29, 1
    %p52 = por %p50, %p51
    %p54 = scmp.ne.s32.totalorder %s37, %s53
    %p55 = scmp.eq.s32.totalorder %s29, 0
    %p56 = por %p54, %p55
    %s58 = sadd.s32 %s57, 1
    %p61 = scmp.eq.s32.totalorder %s23, 1
    %p62 = scmp.ne.s32.totalorder %s57, %s59
    %p63 = scmp.eq.s32.totalorder %s23, 0
    %p64 = por %p62, %p63
    %p65 = scmp.ne.s32.totalorder %s57, %s59
    %p66 = scmp.eq.s32.totalorder %s28, 1
    %p67 = por %p65, %p66
    %p68 = scmp.ne.s32.totalorder %s59, %s60
    %p69 = scmp.eq.s32.totalorder %s28, 0
    %p70 = por %p68, %p69
    %p71 = scmp.ne.s32.totalorder %s59, %s60
    %p72 = scmp.eq.s32.totalorder %s29, 1
    %p73 = por %p71, %p72
    %p75 = scmp.ne.s32.totalorder %s60, %s74
    %p76 = scmp.eq.s32.totalorder %s29, 0
    %p77 = por %p75, %p76
    %s79 = sadd.s32 %s78, 1
    %p82 = scmp.eq.s32.totalorder %s23, 1
    %p83 = scmp.ne.s32.totalorder %s78, %s80
    %p84 = scmp.eq.s32.totalorder %s23, 0
    %p85 = por %p83, %p84
    %p86 = scmp.ne.s32.totalorder %s78, %s80
    %p87 = scmp.eq.s32.totalorder %s28, 1
    %p88 = por %p86, %p87
    %p89 = scmp.ne.s32.totalorder %s80, %s81
    %p90 = scmp.eq.s32.totalorder %s28, 0
    %p91 = por %p89, %p90
    %p92 = scmp.ne.s32.totalorder %s80, %s81
    %p93 = scmp.eq.s32.totalorder %s29, 1
    %p94 = por %p92, %p93
    %p96 = scmp.ne.s32.totalorder %s81, %s95
    %p97 = scmp.eq.s32.totalorder %s29, 0
    %p98 = por %p96, %p97
    %s100 = sadd.s32 %s99, 1
    %p103 = scmp.eq.s32.totalorder %s23, 1
    %p104 = scmp.ne.s32.totalorder %s99, %s101
    %p105 = scmp.eq.s32.totalorder %s23, 0
    %p106 = por %p104, %p105
    %p107 = scmp.ne.s32.totalorder %s99, %s101
    %p108 = scmp.eq.s32.totalorder %s28, 1
    %p109 = por %p107, %p108
    %p110 = scmp.ne.s32.totalorder %s101, %s102
    %p111 = scmp.eq.s32.totalorder %s28, 0
    %p112 = por %p110, %p111
    %p113 = scmp.ne.s32.totalorder %s101, %s102
    %p114 = scmp.eq.s32.totalorder %s29, 1
    %p115 = por %p113, %p114
    %p117 = scmp.ne.s32.totalorder %s102, %s116
    %p118 = scmp.eq.s32.totalorder %s29, 0
    %p119 = por %p117, %p118
    %s121 = sadd.s32 %s120, 1
    %p124 = scmp.eq.s32.totalorder %s23, 1
    %p125 = scmp.ne.s32.totalorder %s120, %s122
    %p126 = scmp.eq.s32.totalorder %s23, 0
    %p127 = por %p125, %p126
    %p128 = scmp.ne.s32.totalorder %s120, %s122
    %p129 = scmp.eq.s32.totalorder %s28, 1
    %p130 = por %p128, %p129
    %p131 = scmp.ne.s32.totalorder %s122, %s123
    %p132 = scmp.eq.s32.totalorder %s28, 0
    %p133 = por %p131, %p132
    %p134 = scmp.ne.s32.totalorder %s122, %s123
    %p135 = scmp.eq.s32.totalorder %s29, 1
    %p136 = por %p134, %p135
    %p138 = scmp.ne.s32.totalorder %s123, %s137
    %p139 = scmp.eq.s32.totalorder %s29, 0
    %p140 = por %p138, %p139
    %s142 = sadd.s32 %s141, 1
    %p145 = scmp.eq.s32.totalorder %s23, 1
    %p146 = scmp.ne.s32.totalorder %s141, %s143
    %p147 = scmp.eq.s32.totalorder %s23, 0
    %p148 = por %p146, %p147
    %p149 = scmp.ne.s32.totalorder %s141, %s143
    %p150 = scmp.eq.s32.totalorder %s28, 1
    %p151 = por %p149, %p150
    %p152 = scmp.ne.s32.totalorder %s143, %s144
    %p153 = scmp.eq.s32.totalorder %s28, 0
    %p154 = por %p152, %p153
    %p155 = scmp.ne.s32.totalorder %s143, %s144
    %p156 = scmp.eq.s32.totalorder %s29, 1
    %p157 = por %p155, %p156
    %p159 = scmp.ne.s32.totalorder %s144, %s158
    %p160 = scmp.eq.s32.totalorder %s29, 0
    %p161 = por %p159, %p160
    %s163 = sadd.s32 %s162, 1
    %p166 = scmp.eq.s32.totalorder %s23, 1
    %p167 = scmp.ne.s32.totalorder %s162, %s164
    %p168 = scmp.eq.s32.totalorder %s23, 0
    %p169 = por %p167, %p168
    %p170 = scmp.ne.s32.totalorder %s162, %s164
    %p171 = scmp.eq.s32.totalorder %s28, 1
    %p172 = por %p170, %p171
    %p173 = scmp.ne.s32.totalorder %s164, %s165
    %p174 = scmp.eq.s32.totalorder %s28, 0
    %p175 = por %p173, %p174
    %p176 = scmp.ne.s32.totalorder %s164, %s165
    %p177 = scmp.eq.s32.totalorder %s29, 1
    %p178 = por %p176, %p177
    %p180 = scmp.ne.s32.totalorder %s165, %s179
    %p181 = scmp.eq.s32.totalorder %s29, 0
    %p182 = por %p180, %p181
    %s184 = sadd.s32 %s183, 1
    %p187 = scmp.eq.s32.totalorder %s23, 1
    %p188 = scmp.ne.s32.totalorder %s183, %s185
    %p189 = scmp.eq.s32.totalorder %s23, 0
    %p190 = por %p188, %p189
    %p191 = scmp.ne.s32.totalorder %s183, %s185
    %p192 = scmp.eq.s32.totalorder %s28, 1
    %p193 = por %p191, %p192
    %p194 = scmp.ne.s32.totalorder %s185, %s186
    %p195 = scmp.eq.s32.totalorder %s28, 0
    %p196 = por %p194, %p195
    %p197 = scmp.ne.s32.totalorder %s185, %s186
    %p198 = scmp.eq.s32.totalorder %s29, 1
    %p199 = por %p197, %p198
    %p201 = scmp.ne.s32.totalorder %s186, %s200
    %p202 = scmp.eq.s32.totalorder %s29, 0
    %p203 = por %p201, %p202
    %s205 = sadd.s32 %s204, 1
    %p208 = scmp.eq.s32.totalorder %s23, 1
    %p209 = scmp.ne.s32.totalorder %s204, %s206
    %p210 = scmp.eq.s32.totalorder %s23, 0
    %p211 = por %p209, %p210
    %p212 = scmp.ne.s32.totalorder %s204, %s206
    %p213 = scmp.eq.s32.totalorder %s28, 1
    %p214 = por %p212, %p213
    %p215 = scmp.ne.s32.totalorder %s206, %s207
    %p216 = scmp.eq.s32.totalorder %s28, 0
    %p217 = por %p215, %p216
    %p218 = scmp.ne.s32.totalorder %s206, %s207
    %p219 = scmp.eq.s32.totalorder %s29, 1
    %p220 = por %p218, %p219
    %p222 = scmp.ne.s32.totalorder %s207, %s221
    %p223 = scmp.eq.s32.totalorder %s29, 0
    %p224 = por %p222, %p223
    %s226 = sadd.s32 %s225, 1
    %p229 = scmp.eq.s32.totalorder %s23, 1
    %p230 = scmp.ne.s32.totalorder %s225, %s227
    %p231 = scmp.eq.s32.totalorder %s23, 0
    %p232 = por %p230, %p231
    %p233 = scmp.ne.s32.totalorder %s225, %s227
    %p234 = scmp.eq.s32.totalorder %s28, 1
    %p235 = por %p233, %p234
    %p236 = scmp.ne.s32.totalorder %s227, %s228
    %p237 = scmp.eq.s32.totalorder %s28, 0
    %p238 = por %p236, %p237
    %p239 = scmp.ne.s32.totalorder %s227, %s228
    %p240 = scmp.eq.s32.totalorder %s29, 1
    %p241 = por %p239, %p240
    %p243 = scmp.ne.s32.totalorder %s228, %s242
    %p244 = scmp.eq.s32.totalorder %s29, 0
    %p245 = por %p243, %p244
    %s247 = sadd.s32 %s246, 1
    %p250 = scmp.eq.s32.totalorder %s23, 1
    %p251 = scmp.ne.s32.totalorder %s246, %s248
    %p252 = scmp.eq.s32.totalorder %s23, 0
    %p253 = por %p251, %p252
    %p254 = scmp.ne.s32.totalorder %s246, %s248
    %p255 = scmp.eq.s32.totalorder %s28, 1
    %p256 = por %p254, %p255
    %p257 = scmp.ne.s32.totalorder %s248, %s249
    %p258 = scmp.eq.s32.totalorder %s28, 0
    %p259 = por %p257, %p258
    %p260 = scmp.ne.s32.totalorder %s248, %s249
    %p261 = scmp.eq.s32.totalorder %s29, 1
    %p262 = por %p260, %p261
    %p264 = scmp.ne.s32.totalorder %s249, %s263
    %p265 = scmp.eq.s32.totalorder %s29, 0
    %p266 = por %p264, %p265
    %s268 = sadd.s32 %s267, 1
    %p271 = scmp.eq.s32.totalorder %s23, 1
    %p272 = scmp.ne.s32.totalorder %s267, %s269
    %p273 = scmp.eq.s32.totalorder %s23, 0
    %p274 = por %p272, %p273
    %p275 = scmp.ne.s32.totalorder %s267, %s269
    %p276 = scmp.eq.s32.totalorder %s28, 1
    %p277 = por %p275, %p276
    %p278 = scmp.ne.s32.totalorder %s269, %s270
    %p279 = scmp.eq.s32.totalorder %s28, 0
    %p280 = por %p278, %p279
    %p281 = scmp.ne.s32.totalorder %s269, %s270
    %p282 = scmp.eq.s32.totalorder %s29, 1
    %p283 = por %p281, %p282
    %p285 = scmp.ne.s32.totalorder %s270, %s284
    %p286 = scmp.eq.s32.totalorder %s29, 0
    %p287 = por %p285, %p286
    %s289 = sadd.s32 %s288, 1
    %p292 = scmp.eq.s32.totalorder %s23, 1
    %p293 = scmp.ne.s32.totalorder %s288, %s290
    %p294 = scmp.eq.s32.totalorder %s23, 0
    %p295 = por %p293, %p294
    %p296 = scmp.ne.s32.totalorder %s288, %s290
    %p297 = scmp.eq.s32.totalorder %s28, 1
    %p298 = por %p296, %p297
    %p299 = scmp.ne.s32.totalorder %s290, %s291
    %p300 = scmp.eq.s32.totalorder %s28, 0
    %p301 = por %p299, %p300
    %p302 = scmp.ne.s32.totalorder %s290, %s291
    %p303 = scmp.eq.s32.totalorder %s29, 1
    %p304 = por %p302, %p303
    %p306 = scmp.ne.s32.totalorder %s291, %s305
    %p307 = scmp.eq.s32.totalorder %s29, 0
    %p308 = por %p306, %p307
    %s310 = sadd.s32 %s309, 1
    %p313 = scmp.eq.s32.totalorder %s23, 1
    %p314 = scmp.ne.s32.totalorder %s309, %s311
    %p315 = scmp.eq.s32.totalorder %s23, 0
    %p316 = por %p314, %p315
    %p317 = scmp.ne.s32.totalorder %s309, %s311
    %p318 = scmp.eq.s32.totalorder %s28, 1
    %p319 = por %p317, %p318
    %p320 = scmp.ne.s32.totalorder %s311, %s312
    %p321 = scmp.eq.s32.totalorder %s28, 0
    %p322 = por %p320, %p321
    %p323 = scmp.ne.s32.totalorder %s311, %s312
    %p324 = scmp.eq.s32.totalorder %s29, 1
    %p325 = por %p323, %p324
    %p327 = scmp.ne.s32.totalorder %s312, %s326
    %p328 = scmp.eq.s32.totalorder %s29, 0
    %p329 = por %p327, %p328
    %s331 = sadd.s32 %s330, 1
    %p334 = scmp.eq.s32.totalorder %s23, 1
    %p335 = scmp.ne.s32.totalorder %s330, %s332
    %p336 = scmp.eq.s32.totalorder %s23, 0
    %p337 = por %p335, %p336
    %p338 = scmp.ne.s32.totalorder %s330, %s332
    %p339 = scmp.eq.s32.totalorder %s28, 1
    %p340 = por %p338, %p339
    %p341 = scmp.ne.s32.totalorder %s332, %s333
    %p342 = scmp.eq.s32.totalorder %s28, 0
    %p343 = por %p341, %p342
    %p344 = scmp.ne.s32.totalorder %s332, %s333
    %p345 = scmp.eq.s32.totalorder %s29, 1
    %p346 = por %p344, %p345
    %p348 = scmp.ne.s32.totalorder %s333, %s347
    %p349 = scmp.eq.s32.totalorder %s29, 0
    %p350 = por %p348, %p349
    %s352 = sadd.s32 %s351, 1
    %p355 = scmp.eq.s32.totalorder %s23, 1
    %p356 = scmp.ne.s32.totalorder %s351, %s353
    %p357 = scmp.eq.s32.totalorder %s23, 0
    %p358 = por %p356, %p357
    %p359 = scmp.ne.s32.totalorder %s351, %s353
    %p360 = scmp.eq.s32.totalorder %s28, 1
    %p361 = por %p359, %p360
    %p362 = scmp.ne.s32.totalorder %s353, %s354
    %p363 = scmp.eq.s32.totalorder %s28, 0
    %p364 = por %p362, %p363
    %p365 = scmp.ne.s32.totalorder %s353, %s354
    %p366 = scmp.eq.s32.totalorder %s29, 1
    %p367 = por %p365, %p366
    %p369 = scmp.ne.s32.totalorder %s354, %s368
    %p370 = scmp.eq.s32.totalorder %s29, 0
    %p371 = por %p369, %p370
    %s373 = sadd.s32 %s372, 1
    %p376 = scmp.eq.s32.totalorder %s23, 1
    %p377 = scmp.ne.s32.totalorder %s372, %s374
    %p378 = scmp.eq.s32.totalorder %s23, 0
    %p379 = por %p377, %p378
    %p380 = scmp.ne.s32.totalorder %s372, %s374
    %p381 = scmp.eq.s32.totalorder %s28, 1
    %p382 = por %p380, %p381
    %p383 = scmp.ne.s32.totalorder %s374, %s375
    %p384 = scmp.eq.s32.totalorder %s28, 0
    %p385 = por %p383, %p384
    %p386 = scmp.ne.s32.totalorder %s374, %s375
    %p387 = scmp.eq.s32.totalorder %s29, 1
    %p388 = por %p386, %p387
    %p390 = scmp.ne.s32.totalorder %s375, %s389
    %p391 = scmp.eq.s32.totalorder %s29, 0
    %p392 = por %p390, %p391
    %s393 = ssub.s32 %s23, %s30
    %p394 = scmp.eq.s32.totalorder %s393, 0
    %s396 = sadd.s32 %s395, 1
    %s397 = scalar_select %p394, %s395, %s396
    %p400 = pneg %p394
    %p401 = scmp.eq.s32.totalorder %s23, 1
    %p402 = por %p400, %p401
    %p403 = scmp.ne.s32.totalorder %s395, %s398
    %p404 = scmp.eq.s32.totalorder %s23, 0
    %p405 = por %p403, %p404
    %p406 = scmp.ne.s32.totalorder %s395, %s398
    %p407 = scmp.eq.s32.totalorder %s28, 1
    %p408 = por %p406, %p407
    %p409 = scmp.ne.s32.totalorder %s398, %s399
    %p410 = scmp.eq.s32.totalorder %s28, 0
    %p411 = por %p409, %p410
    %p412 = scmp.ne.s32.totalorder %s398, %s399
    %p413 = scmp.eq.s32.totalorder %s29, 1
    %p414 = por %p412, %p413
    %p416 = scmp.ne.s32.totalorder %s399, %s415
    %p417 = scmp.eq.s32.totalorder %s29, 0
    %p418 = por %p416, %p417
    %p419 = scmp.le.s32.totalorder 1, %s23
    %p420 = scmp.lt.s32.totalorder %s23, 3
    %p421 = pnand %p419, %p420
    %p422 = pneg %p421
    // Predicated region
    $region9: #{transformer_seq2seq.5} parent=5 // pred_check
      _
    $region10: #{transformer_seq2seq.5} parent=5 // pred_check_branch
      %424 = sbr.rel (%p421) target = $region12
    $region11: #{transformer_seq2seq.5} parent=5 // pred_region
      %s425 = ssub.s32 %s23, 1
      // Predicated region
      $region13: #{transformer_seq2seq.5} parent=11 // pred_check
        %p426 = pneg %p70
      $region14: #{transformer_seq2seq.5} parent=11 // pred_check_branch
        %428 = sbr.rel (%p426) target = $region16
      $region15: #{transformer_seq2seq.5} parent=11 // pred_region
        _
      $region16: #{transformer_seq2seq.5} parent=11 // pred_fallthru
        _
      // Predicated region
      $region17: #{transformer_seq2seq.5} parent=11 // pred_check
        %p429 = pneg %p91
      $region18: #{transformer_seq2seq.5} parent=11 // pred_check_branch
        %431 = sbr.rel (%p429) target = $region20
      $region19: #{transformer_seq2seq.5} parent=11 // pred_region
        _
      $region20: #{transformer_seq2seq.5} parent=11 // pred_fallthru
        _
      // Predicated region
      $region21: #{transformer_seq2seq.5} parent=11 // pred_check
        %p432 = pneg %p112
      $region22: #{transformer_seq2seq.5} parent=11 // pred_check_branch
        %434 = sbr.rel (%p432) target = $region24
      $region23: #{transformer_seq2seq.5} parent=11 // pred_region
        _
      $region24: #{transformer_seq2seq.5} parent=11 // pred_fallthru
        _
      // Predicated region
      $region25: #{transformer_seq2seq.5} parent=11 // pred_check
        %p435 = pneg %p133
      $region26: #{transformer_seq2seq.5} parent=11 // pred_check_branch
        %437 = sbr.rel (%p435) target = $region28
      $region27: #{transformer_seq2seq.5} parent=11 // pred_region
        _
      $region28: #{transformer_seq2seq.5} parent=11 // pred_fallthru
        _
      // Predicated region
      $region29: #{transformer_seq2seq.5} parent=11 // pred_check
        %p438 = pneg %p154
      $region30: #{transformer_seq2seq.5} parent=11 // pred_check_branch
        %440 = sbr.rel (%p438) target = $region32
      $region31: #{transformer_seq2seq.5} parent=11 // pred_region
        _
      $region32: #{transformer_seq2seq.5} parent=11 // pred_fallthru
        _
      // Predicated region
      $region33: #{transformer_seq2seq.5} parent=11 // pred_check
        %p441 = pneg %p175
      $region34: #{transformer_seq2seq.5} parent=11 // pred_check_branch
        %443 = sbr.rel (%p441) target = $region36
      $region35: #{transformer_seq2seq.5} parent=11 // pred_region
        _
      $region36: #{transformer_seq2seq.5} parent=11 // pred_fallthru
        _
      // Predicated region
      $region37: #{transformer_seq2seq.5} parent=11 // pred_check
        %p444 = pneg %p196
      $region38: #{transformer_seq2seq.5} parent=11 // pred_check_branch
        %446 = sbr.rel (%p444) target = $region40
      $region39: #{transformer_seq2seq.5} parent=11 // pred_region
        _
      $region40: #{transformer_seq2seq.5} parent=11 // pred_fallthru
        _
      // Predicated region
      $region41: #{transformer_seq2seq.5} parent=11 // pred_check
        %p447 = pneg %p217
      $region42: #{transformer_seq2seq.5} parent=11 // pred_check_branch
        %449 = sbr.rel (%p447) target = $region44
      $region43: #{transformer_seq2seq.5} parent=11 // pred_region
        _
      $region44: #{transformer_seq2seq.5} parent=11 // pred_fallthru
        _
      // Predicated region
      $region45: #{transformer_seq2seq.5} parent=11 // pred_check
        %p450 = pneg %p238
      $region46: #{transformer_seq2seq.5} parent=11 // pred_check_branch
        %452 = sbr.rel (%p450) target = $region48
      $region47: #{transformer_seq2seq.5} parent=11 // pred_region
        _
      $region48: #{transformer_seq2seq.5} parent=11 // pred_fallthru
        _
      // Predicated region
      $region49: #{transformer_seq2seq.5} parent=11 // pred_check
        %p453 = pneg %p259
      $region50: #{transformer_seq2seq.5} parent=11 // pred_check_branch
        %455 = sbr.rel (%p453) target = $region52
      $region51: #{transformer_seq2seq.5} parent=11 // pred_region
        _
      $region52: #{transformer_seq2seq.5} parent=11 // pred_fallthru
        _
      // Predicated region
      $region53: #{transformer_seq2seq.5} parent=11 // pred_check
        %p456 = pneg %p280
      $region54: #{transformer_seq2seq.5} parent=11 // pred_check_branch
        %458 = sbr.rel (%p456) target = $region56
      $region55: #{transformer_seq2seq.5} parent=11 // pred_region
        _
      $region56: #{transformer_seq2seq.5} parent=11 // pred_fallthru
        _
      // Predicated region
      $region57: #{transformer_seq2seq.5} parent=11 // pred_check
        %p459 = pneg %p301
      $region58: #{transformer_seq2seq.5} parent=11 // pred_check_branch
        %461 = sbr.rel (%p459) target = $region60
      $region59: #{transformer_seq2seq.5} parent=11 // pred_region
        _
      $region60: #{transformer_seq2seq.5} parent=11 // pred_fallthru
        _
      // Predicated region
      $region61: #{transformer_seq2seq.5} parent=11 // pred_check
        %p462 = pneg %p322
      $region62: #{transformer_seq2seq.5} parent=11 // pred_check_branch
        %464 = sbr.rel (%p462) target = $region64
      $region63: #{transformer_seq2seq.5} parent=11 // pred_region
        _
      $region64: #{transformer_seq2seq.5} parent=11 // pred_fallthru
        _
      // Predicated region
      $region65: #{transformer_seq2seq.5} parent=11 // pred_check
        %p465 = pneg %p343
      $region66: #{transformer_seq2seq.5} parent=11 // pred_check_branch
        %467 = sbr.rel (%p465) target = $region68
      $region67: #{transformer_seq2seq.5} parent=11 // pred_region
        _
      $region68: #{transformer_seq2seq.5} parent=11 // pred_fallthru
        _
      // Predicated region
      $region69: #{transformer_seq2seq.5} parent=11 // pred_check
        %p468 = pneg %p364
      $region70: #{transformer_seq2seq.5} parent=11 // pred_check_branch
        %470 = sbr.rel (%p468) target = $region72
      $region71: #{transformer_seq2seq.5} parent=11 // pred_region
        _
      $region72: #{transformer_seq2seq.5} parent=11 // pred_fallthru
        _
      // Predicated region
      $region73: #{transformer_seq2seq.5} parent=11 // pred_check
        %p471 = pneg %p385
      $region74: #{transformer_seq2seq.5} parent=11 // pred_check_branch
        %473 = sbr.rel (%p471) target = $region76
      $region75: #{transformer_seq2seq.5} parent=11 // pred_region
        _
      $region76: #{transformer_seq2seq.5} parent=11 // pred_fallthru
        _
    $region12: #{transformer_seq2seq.5} parent=5 // pred_fallthru
      _
    %p474 = scmp.lt.s32.totalorder %s23, 2
    // Predicated region
    $region77: #{transformer_seq2seq.5} parent=5 // pred_check
      %p475 = pneg %p474
    $region78: #{transformer_seq2seq.5} parent=5 // pred_check_branch
      %477 = sbr.rel (%p475) target = $region80
    $region79: #{transformer_seq2seq.5} parent=5 // pred_region
      // Predicated region
      $region81: #{transformer_seq2seq.5} parent=79 // pred_check
        %p478 = pneg %p43
      $region82: #{transformer_seq2seq.5} parent=79 // pred_check_branch
        %480 = sbr.rel (%p478) target = $region84
      $region83: #{transformer_seq2seq.5} parent=79 // pred_region
        %p481 = scmp.lt.s32.totalorder %s23, 1
        %s482 = scalar_select %p481, %s23, 1
        %s483 = smul.addr %s482, 8
        %s484 = scalar_lea.vmem %s0, %s483
      $region84: #{transformer_seq2seq.5} parent=79 // pred_fallthru
        _
    $region80: #{transformer_seq2seq.5} parent=5 // pred_fallthru
      _
    %p485 = scmp.le.s32.totalorder 1, %s23
    %p486 = scmp.lt.s32.totalorder %s23, 3
    %p487 = pnand %p485, %p486
    %p488 = pneg %p487
    // Predicated region
    $region85: #{transformer_seq2seq.5} parent=5 // pred_check
      _
    $region86: #{transformer_seq2seq.5} parent=5 // pred_check_branch
      %490 = sbr.rel (%p487) target = $region88
    $region87: #{transformer_seq2seq.5} parent=5 // pred_region
      %s491 = ssub.s32 %s23, 1
      %p492 = scmp.lt.s32.totalorder %s28, 1
      %s493 = scalar_select %p492, %s28, 1
      %s494 = smul.addr %s493, 8
      %s495 = scalar_lea.vmem %s0, %s494
      %p496 = pneg %p49
      %p497 = pneg %p46
      %p498 = pneg %p70
      %p499 = pneg %p67
      %p500 = pneg %p91
      %p501 = pneg %p88
      %p502 = pneg %p112
      %p503 = pneg %p109
      %p504 = pneg %p133
      %p505 = pneg %p130
      %p506 = pneg %p154
      %p507 = pneg %p151
      %p508 = pneg %p175
      %p509 = pneg %p172
      %p510 = pneg %p196
      %p511 = pneg %p193
      %p512 = pneg %p217
      %p513 = pneg %p214
      %p514 = pneg %p238
      %p515 = pneg %p235
      %p516 = pneg %p259
      %p517 = pneg %p256
      %p518 = pneg %p280
      %p519 = pneg %p277
      %p520 = pneg %p301
      %p521 = pneg %p298
      %p522 = pneg %p322
      %p523 = pneg %p319
      %p524 = pneg %p343
      %p525 = pneg %p340
      %p526 = pneg %p364
      %p527 = pneg %p361
      %p528 = pneg %p385
      %p529 = pneg %p382
      %p530 = pneg %p411
      %p531 = pneg %p408
      %p532 = scmp.lt.s32.totalorder %s28, 1
      %s533 = scalar_select %p532, %s28, 1
      %s534 = smul.addr %s533, 8
      %s535 = scalar_lea.vmem %s17, %s534
      %p536 = scmp.lt.s32.totalorder %s28, 1
      %s537 = scalar_select %p536, %s28, 1
      %s538 = smul.addr %s537, 8
      %s539 = scalar_lea.vmem %s0, %s538
      %p540 = scmp.lt.s32.totalorder %s28, 1
      %s541 = scalar_select %p540, %s28, 1
      %s542 = smul.addr %s541, 8
      %s543 = scalar_lea.vmem %s17, %s542
      %v545 = vld [vmem:[%s539] sm:$0xff]
      %v546 = vld [vmem:[%s1] sm:$0xf]
      %v547 = vld [vmem:[%s1 + $0x4] sm:$0xf]
      %v548 = vld [vmem:[%s1 + $0x8] sm:$0xf]
      %v549 = vld [vmem:[%s1 + $0xc] sm:$0xf]
      %v550 = vld [vmem:[%s2] sm:$0xf]
      %v551 = vld [vmem:[%s2 + $0x4] sm:$0xf]
      %v552 = vld [vmem:[%s2 + $0x8] sm:$0xf]
      %v553 = vld [vmem:[%s2 + $0xc] sm:$0xf]
      %v554 = vld [vmem:[%s3] sm:$0xf]
      %v555 = vld [vmem:[%s3 + $0x4] sm:$0xf]
      %v556 = vld [vmem:[%s3 + $0x8] sm:$0xf]
      %v557 = vld [vmem:[%s3 + $0xc] sm:$0xf]
      %v558 = vld [vmem:[%s4] sm:$0xf]
      %v559 = vld [vmem:[%s4 + $0x4] sm:$0xf]
      %v560 = vld [vmem:[%s4 + $0x8] sm:$0xf]
      %v561 = vld [vmem:[%s4 + $0xc] sm:$0xf]
      %v562 = vld [vmem:[%s5] sm:$0x1]
      %v563 = vld [vmem:[%s6] sm:$0x1]
      %v564 = vld [vmem:[%s7] sm:$0x1]
      %v565 = vld [vmem:[%s8] sm:$0x1]
      %v566 = vld [vmem:[%s9] sm:$0x1]
      %v567 = vld [vmem:[%s10] sm:$0x1]
      %v568 = vpack.c.bf16 %v545, %v545
      %v570 = vperm.slane %v562, 0
      %v576 = vunpack.c.l.b16 %v546
      %v577 = vunpack.c.l.b16 %v547
      %v578 = vunpack.c.l.b16 %v548
      %v579 = vunpack.c.l.b16 %v549
      %v580 = vpack.c.b16 %v577, %v576
      %v581 = vpack.c.b16 %v579, %v578
      %vm584 = vcmask 261120
      %v586 = vsel %vm584, %v568, 0
      %588 = vmatpush.bf16.msra.mxu0 0
      %589 = vmatpush.bf16.msra.mxu0 0
      %590 = vmatpush.bf16.msra.mxu0 0
      %591 = vmatpush.bf16.msra.mxu0 0
      %592 = vmatpush.bf16.msra.mxu0 0
      %593 = vmatpush.bf16.msra.mxu0 0
      %594 = vmatpush.bf16.msra.mxu0 %v581
      %595 = vmatpush.bf16.msra.mxu0 %v580
      %596 = vmatmul.bf16.gmra.mxu0 %v586
      %v597 = vpop.f32.mrf.mxu0
      %v598 = vadd.f32 %v570, %v597
      %v599 = vpop.f32.mrf.mxu0
      %600 = vdwg.mxu0
      %v601 = vpack.c.bf16 %v598, %v598
      %v603 = vperm.slane %v563, 0
      %v609 = vunpack.c.l.b16 %v550
      %v610 = vunpack.c.l.b16 %v551
      %v611 = vunpack.c.l.b16 %v552
      %v612 = vunpack.c.l.b16 %v553
      %v613 = vpack.c.b16 %v610, %v609
      %v614 = vpack.c.b16 %v612, %v611
      %617 = vmatpush.bf16.msra.mxu0 0
      %618 = vmatpush.bf16.msra.mxu0 0
      %619 = vmatpush.bf16.msra.mxu0 0
      %620 = vmatpush.bf16.msra.mxu0 0
      %621 = vmatpush.bf16.msra.mxu0 0
      %622 = vmatpush.bf16.msra.mxu0 0
      %623 = vmatpush.bf16.msra.mxu0 %v614
      %624 = vmatpush.bf16.msra.mxu0 %v613
      %625 = vmatmul.bf16.gmra.mxu0 %v586
      %v626 = vpop.f32.mrf.mxu0
      %v627 = vadd.f32 %v603, %v626
      %v628 = vpop.f32.mrf.mxu0
      %629 = vdwg.mxu0
      %v630 = vpack.c.bf16 %v627, %v627
      %v632 = vperm.slane %v564, 0
      %v638 = vunpack.c.l.b16 %v554
      %v639 = vunpack.c.l.b16 %v555
      %v640 = vunpack.c.l.b16 %v556
      %v641 = vunpack.c.l.b16 %v557
      %v642 = vpack.c.b16 %v639, %v638
      %v643 = vpack.c.b16 %v641, %v640
      %646 = vmatpush.bf16.msra.mxu0 0
      %647 = vmatpush.bf16.msra.mxu0 0
      %648 = vmatpush.bf16.msra.mxu0 0
      %649 = vmatpush.bf16.msra.mxu0 0
      %650 = vmatpush.bf16.msra.mxu0 0
      %651 = vmatpush.bf16.msra.mxu0 0
      %652 = vmatpush.bf16.msra.mxu0 %v643
      %653 = vmatpush.bf16.msra.mxu0 %v642
      %654 = vmatmul.bf16.gmra.mxu0 %v586
      %v655 = vpop.f32.mrf.mxu0
      %v656 = vadd.f32 %v632, %v655
      %v657 = vpop.f32.mrf.mxu0
      %658 = vdwg.mxu0
      %v659 = vpack.c.bf16 %v656, %v656
      %vm660 = vcmask 64512
      %v662 = vsel %vm660, %v601, 0
      %v665 = vsel %vm660, %v630, 0
      %667 = vmatpush.bf16.xpose.msra.mxu0 0
      %668 = vmatpush.bf16.xpose.msra.mxu0 0
      %669 = vmatpush.bf16.xpose.msra.mxu0 0
      %670 = vmatpush.bf16.xpose.msra.mxu0 0
      %671 = vmatpush.bf16.xpose.msra.mxu0 0
      %672 = vmatpush.bf16.xpose.msra.mxu0 0
      %673 = vmatpush.bf16.xpose.msra.mxu0 0
      %674 = vmatpush.bf16.xpose.msra.mxu0 %v665
      %675 = vmatmul.bf16.gmra.mxu0 %v662
      %v676 = vpop.f32.mrf.mxu0
      %v677 = vadd.f32 0.0, %v676
      %v678 = vpop.f32.mrf.mxu0
      %679 = vdwg.mxu0
      %v680 = vmul.f32 %v677, 0.35355338
      %v681 = vsel %vm660, %v680, -inf
      %682 = vmax.xlane.f32.xlu0 %v681
      %v683 = vpop.xlane.xlu0 %682
      %v684 = vsub.f32 %v680, %v683
      %v685 = vmul.f32 %v684, 1.442695
      %v686 = vpow.pop %v685
      %v687 = vsel %vm660, %v686, 0.0
      %688 = vadd.xlane.f32.xlu0 %v687
      %v689 = vpop.xlane.xlu0 %688
      %v690 = vrcp.pop %v689
      %v691 = vmul.f32 %v686, %v690
      %v692 = vpack.c.bf16 %v691, %v691
      %v694 = vsel %vm660, %v692, 0
      %vm696 = vcmask 1043456
      %v698 = vsel %vm696, %v659, 0
      %700 = vmatpush.bf16.msra.mxu0 0
      %701 = vmatpush.bf16.msra.mxu0 0
      %702 = vmatpush.bf16.msra.mxu0 0
      %703 = vmatpush.bf16.msra.mxu0 0
      %704 = vmatpush.bf16.msra.mxu0 0
      %705 = vmatpush.bf16.msra.mxu0 0
      %706 = vmatpush.bf16.msra.mxu0 0
      %707 = vmatpush.bf16.msra.mxu0 %v698
      %708 = vmatmul.bf16.gmra.mxu0 %v694
      %v709 = vpop.f32.mrf.mxu0
      %v710 = vadd.f32 0.0, %v709
      %v711 = vpop.f32.mrf.mxu0
      %712 = vdwg.mxu0
      %v713 = vpack.c.bf16 %v710, %v710
      %v715 = vunpack.c.l.b16 %v601
      %v716 = vpack.c.b16 %v715, %v715
      %717 = vrot.lane.b32.xlu0 %v716, 120
      %v718 = vpop.permute.xlu0 %717
      %v720 = vunpack.c.l.b16 %v630
      %v721 = vpack.c.b16 %v720, %v720
      %722 = vrot.lane.b32.xlu0 %v721, 120
      %v723 = vpop.permute.xlu0 %722
      %v725 = vsel %vm660, %v718, 0
      %v728 = vsel %vm660, %v723, 0
      %730 = vmatpush.bf16.xpose.msra.mxu0 0
      %731 = vmatpush.bf16.xpose.msra.mxu0 0
      %732 = vmatpush.bf16.xpose.msra.mxu0 0
      %733 = vmatpush.bf16.xpose.msra.mxu0 0
      %734 = vmatpush.bf16.xpose.msra.mxu0 0
      %735 = vmatpush.bf16.xpose.msra.mxu0 0
      %736 = vmatpush.bf16.xpose.msra.mxu0 0
      %737 = vmatpush.bf16.xpose.msra.mxu0 %v728
      %738 = vmatmul.bf16.gmra.mxu0 %v725
      %v739 = vpop.f32.mrf.mxu0
      %v740 = vadd.f32 0.0, %v739
      %v741 = vpop.f32.mrf.mxu0
      %742 = vdwg.mxu0
      %v743 = vmul.f32 %v740, 0.35355338
      %v744 = vsel %vm660, %v743, -inf
      %745 = vmax.xlane.f32.xlu0 %v744
      %v746 = vpop.xlane.xlu0 %745
      %v747 = vsub.f32 %v743, %v746
      %v748 = vmul.f32 %v747, 1.442695
      %v749 = vpow.pop %v748
      %v750 = vsel %vm660, %v749, 0.0
      %751 = vadd.xlane.f32.xlu0 %v750
      %v752 = vpop.xlane.xlu0 %751
      %v753 = vrcp.pop %v752
      %v754 = vmul.f32 %v749, %v753
      %v755 = vpack.c.bf16 %v754, %v754
      %v757 = vunpack.c.l.b16 %v659
      %v758 = vpack.c.b16 %v757, %v757
      %759 = vrot.lane.b32.xlu0 %v758, 120
      %v760 = vpop.permute.xlu0 %759
      %v762 = vsel %vm660, %v755, 0
      %v765 = vsel %vm696, %v760, 0
      %767 = vmatpush.bf16.msra.mxu0 0
      %768 = vmatpush.bf16.msra.mxu0 0
      %769 = vmatpush.bf16.msra.mxu0 0
      %770 = vmatpush.bf16.msra.mxu0 0
      %771 = vmatpush.bf16.msra.mxu0 0
      %772 = vmatpush.bf16.msra.mxu0 0
      %773 = vmatpush.bf16.msra.mxu0 0
      %774 = vmatpush.bf16.msra.mxu0 %v765
      %775 = vmatmul.bf16.gmra.mxu0 %v762
      %v776 = vpop.f32.mrf.mxu0
      %v777 = vadd.f32 0.0, %v776
      %v778 = vpop.f32.mrf.mxu0
      %779 = vdwg.mxu0
      %v780 = vpack.c.bf16 %v777, %v777
      %v782 = vsel %vm660, %v780, 0
      %v785 = vsel %vm696, %v559, 0
      %787 = vmatpush.bf16.msra.mxu0 0
      %788 = vmatpush.bf16.msra.mxu0 0
      %789 = vmatpush.bf16.msra.mxu0 0
      %790 = vmatpush.bf16.msra.mxu0 0
      %791 = vmatpush.bf16.msra.mxu0 0
      %792 = vmatpush.bf16.msra.mxu0 0
      %793 = vmatpush.bf16.msra.mxu0 0
      %794 = vmatpush.bf16.msra.mxu0 %v785
      %795 = vmatmul.bf16.gmra.mxu0 %v782
      %v796 = vpop.f32.mrf.mxu0
      %v797 = vadd.f32 0.0, %v796
      %v798 = vpop.f32.mrf.mxu0
      %799 = vdwg.mxu0
      %v801 = vsel %vm660, %v713, 0
      %v804 = vsel %vm696, %v558, 0
      %806 = vmatpush.bf16.msra.mxu0 0
      %807 = vmatpush.bf16.msra.mxu0 0
      %808 = vmatpush.bf16.msra.mxu0 0
      %809 = vmatpush.bf16.msra.mxu0 0
      %810 = vmatpush.bf16.msra.mxu0 0
      %811 = vmatpush.bf16.msra.mxu0 0
      %812 = vmatpush.bf16.msra.mxu0 0
      %813 = vmatpush.bf16.msra.mxu0 %v804
      %814 = vmatmul.bf16.gmra.mxu0 %v801
      %v815 = vpop.f32.mrf.mxu0
      %v816 = vadd.f32 %v797, %v815
      %v817 = vpop.f32.mrf.mxu0
      %818 = vdwg.mxu0
      %819 = vrot.lane.b32.xlu0 %v716, 112
      %v820 = vpop.permute.xlu0 %819
      %821 = vrot.lane.b32.xlu0 %v721, 112
      %v822 = vpop.permute.xlu0 %821
      %v824 = vsel %vm660, %v820, 0
      %v827 = vsel %vm660, %v822, 0
      %829 = vmatpush.bf16.xpose.msra.mxu0 0
      %830 = vmatpush.bf16.xpose.msra.mxu0 0
      %831 = vmatpush.bf16.xpose.msra.mxu0 0
      %832 = vmatpush.bf16.xpose.msra.mxu0 0
      %833 = vmatpush.bf16.xpose.msra.mxu0 0
      %834 = vmatpush.bf16.xpose.msra.mxu0 0
      %835 = vmatpush.bf16.xpose.msra.mxu0 0
      %836 = vmatpush.bf16.xpose.msra.mxu0 %v827
      %837 = vmatmul.bf16.gmra.mxu0 %v824
      %v838 = vpop.f32.mrf.mxu0
      %v839 = vadd.f32 0.0, %v838
      %v840 = vpop.f32.mrf.mxu0
      %841 = vdwg.mxu0
      %v842 = vmul.f32 %v839, 0.35355338
      %v843 = vsel %vm660, %v842, -inf
      %844 = vmax.xlane.f32.xlu0 %v843
      %v845 = vpop.xlane.xlu0 %844
      %v846 = vsub.f32 %v842, %v845
      %v847 = vmul.f32 %v846, 1.442695
      %v848 = vpow.pop %v847
      %v849 = vsel %vm660, %v848, 0.0
      %850 = vadd.xlane.f32.xlu0 %v849
      %v851 = vpop.xlane.xlu0 %850
      %v852 = vrcp.pop %v851
      %v853 = vmul.f32 %v848, %v852
      %v854 = vpack.c.bf16 %v853, %v853
      %855 = vrot.lane.b32.xlu0 %v758, 112
      %v856 = vpop.permute.xlu0 %855
      %v858 = vsel %vm660, %v854, 0
      %v861 = vsel %vm696, %v856, 0
      %863 = vmatpush.bf16.msra.mxu0 0
      %864 = vmatpush.bf16.msra.mxu0 0
      %865 = vmatpush.bf16.msra.mxu0 0
      %866 = vmatpush.bf16.msra.mxu0 0
      %867 = vmatpush.bf16.msra.mxu0 0
      %868 = vmatpush.bf16.msra.mxu0 0
      %869 = vmatpush.bf16.msra.mxu0 0
      %870 = vmatpush.bf16.msra.mxu0 %v861
      %871 = vmatmul.bf16.gmra.mxu0 %v858
      %v872 = vpop.f32.mrf.mxu0
      %v873 = vadd.f32 0.0, %v872
      %v874 = vpop.f32.mrf.mxu0
      %875 = vdwg.mxu0
      %v876 = vpack.c.bf16 %v873, %v873
      %v878 = vsel %vm660, %v876, 0
      %v881 = vsel %vm696, %v560, 0
      %883 = vmatpush.bf16.msra.mxu0 0
      %884 = vmatpush.bf16.msra.mxu0 0
      %885 = vmatpush.bf16.msra.mxu0 0
      %886 = vmatpush.bf16.msra.mxu0 0
      %887 = vmatpush.bf16.msra.mxu0 0
      %888 = vmatpush.bf16.msra.mxu0 0
      %889 = vmatpush.bf16.msra.mxu0 0
      %890 = vmatpush.bf16.msra.mxu0 %v881
      %891 = vmatmul.bf16.gmra.mxu0 %v878
      %v892 = vpop.f32.mrf.mxu0
      %v893 = vadd.f32 0.0, %v892
      %v894 = vpop.f32.mrf.mxu0
      %895 = vdwg.mxu0
      %v896 = vadd.f32 %v816, %v893
      %897 = vrot.lane.b32.xlu0 %v716, 104
      %v898 = vpop.permute.xlu0 %897
      %899 = vrot.lane.b32.xlu0 %v721, 104
      %v900 = vpop.permute.xlu0 %899
      %v902 = vsel %vm660, %v898, 0
      %v905 = vsel %vm660, %v900, 0
      %907 = vmatpush.bf16.xpose.msra.mxu0 0
      %908 = vmatpush.bf16.xpose.msra.mxu0 0
      %909 = vmatpush.bf16.xpose.msra.mxu0 0
      %910 = vmatpush.bf16.xpose.msra.mxu0 0
      %911 = vmatpush.bf16.xpose.msra.mxu0 0
      %912 = vmatpush.bf16.xpose.msra.mxu0 0
      %913 = vmatpush.bf16.xpose.msra.mxu0 0
      %914 = vmatpush.bf16.xpose.msra.mxu0 %v905
      %915 = vmatmul.bf16.gmra.mxu0 %v902
      %v916 = vpop.f32.mrf.mxu0
      %v917 = vadd.f32 0.0, %v916
      %v918 = vpop.f32.mrf.mxu0
      %919 = vdwg.mxu0
      %v920 = vmul.f32 %v917, 0.35355338
      %v921 = vsel %vm660, %v920, -inf
      %922 = vmax.xlane.f32.xlu0 %v921
      %v923 = vpop.xlane.xlu0 %922
      %v924 = vsub.f32 %v920, %v923
      %v925 = vmul.f32 %v924, 1.442695
      %v926 = vpow.pop %v925
      %v927 = vsel %vm660, %v926, 0.0
      %928 = vadd.xlane.f32.xlu0 %v927
      %v929 = vpop.xlane.xlu0 %928
      %v930 = vrcp.pop %v929
      %v931 = vmul.f32 %v926, %v930
      %v932 = vpack.c.bf16 %v931, %v931
      %933 = vrot.lane.b32.xlu0 %v758, 104
      %v934 = vpop.permute.xlu0 %933
      %v936 = vsel %vm660, %v932, 0
      %v939 = vsel %vm696, %v934, 0
      %941 = vmatpush.bf16.msra.mxu0 0
      %942 = vmatpush.bf16.msra.mxu0 0
      %943 = vmatpush.bf16.msra.mxu0 0
      %944 = vmatpush.bf16.msra.mxu0 0
      %945 = vmatpush.bf16.msra.mxu0 0
      %946 = vmatpush.bf16.msra.mxu0 0
      %947 = vmatpush.bf16.msra.mxu0 0
      %948 = vmatpush.bf16.msra.mxu0 %v939
      %949 = vmatmul.bf16.gmra.mxu0 %v936
      %v950 = vpop.f32.mrf.mxu0
      %v951 = vadd.f32 0.0, %v950
      %v952 = vpop.f32.mrf.mxu0
      %953 = vdwg.mxu0
      %v954 = vpack.c.bf16 %v951, %v951
      %v956 = vsel %vm660, %v954, 0
      %v959 = vsel %vm696, %v561, 0
      %961 = vmatpush.bf16.msra.mxu0 0
      %962 = vmatpush.bf16.msra.mxu0 0
      %963 = vmatpush.bf16.msra.mxu0 0
      %964 = vmatpush.bf16.msra.mxu0 0
      %965 = vmatpush.bf16.msra.mxu0 0
      %966 = vmatpush.bf16.msra.mxu0 0
      %967 = vmatpush.bf16.msra.mxu0 0
      %968 = vmatpush.bf16.msra.mxu0 %v959
      %969 = vmatmul.bf16.gmra.mxu0 %v956
      %v970 = vpop.f32.mrf.mxu0
      %v971 = vadd.f32 0.0, %v970
      %v972 = vpop.f32.mrf.mxu0
      %973 = vdwg.mxu0
      %v974 = vadd.f32 %v896, %v971
      %v975 = vadd.f32 %v545, %v974
      %v977 = vperm.slane %v565, 0
      %v979 = vadd.f32 %v975, %v977
      %v980 = vsel %vm584, %v979, 0.0
      %981 = vadd.xlane.f32.xlu0 %v980
      %v982 = vpop.xlane.xlu0 %981
      %v983 = vrcp.pop 32.0
      %v984 = vmul.f32 32.0, %v983
      %v985 = vsub.f32 1.0, %v984
      %v986 = vmul.f32 %v983, %v985
      %v987 = vadd.f32 %v983, %v986
      %vm988 = vweird.f32 %v983
      %v989 = vsel %vm988, %v983, %v987
      %v990 = vmul.f32 %v982, %v989
      %v991 = vsub.f32 %v979, %v990
      %v992 = vmul.f32 %v991, %v991
      %v993 = vsel %vm584, %v992, 0.0
      %994 = vadd.xlane.f32.xlu0 %v993
      %v995 = vpop.xlane.xlu0 %994
      %v996 = vmul.f32 %v995, %v989
      %v997 = vadd.f32 %v996, 1e-05
      %v998 = vrsqrt.pop %v997
      %v999 = vmul.f32 %v998, %v997
      %v1000 = vmul.f32 %v999, %v998
      %v1001 = vmul.f32 0.5, %v1000
      %v1002 = vsub.f32 1.5, %v1001
      %v1003 = vmul.f32 %v998, %v1002
      %vm1004 = vweird.f32 %v997
      %vm1005 = vweird.f32 %v998
      %vm1006 = vmor %vm1004, %vm1005
      %v1007 = vsel %vm1006, %v998, %v1003
      %v1008 = vmul.f32 %v991, %v1007
      %v1010 = vperm.slane %v566, 0
      %v1012 = vmul.f32 %v1008, %v1010
      %v1014 = vperm.slane %v567, 0
      %v1016 = vadd.f32 %v1012, %v1014
      %v1017 = vld [vmem:[%s11] sm:$0xf]
      %v1018 = vld [vmem:[%s11 + $0x4] sm:$0xf]
      %v1019 = vld [vmem:[%s11 + $0x8] sm:$0xf]
      %v1020 = vld [vmem:[%s11 + $0xc] sm:$0xf]
      %v1021 = vld [vmem:[%s12] sm:$0x1]
      %v1022 = vld [vmem:[%s13] sm:$0xf]
      %v1023 = vld [vmem:[%s13 + $0x4] sm:$0xf]
      %v1024 = vld [vmem:[%s13 + $0x8] sm:$0xf]
      %v1025 = vld [vmem:[%s13 + $0xc] sm:$0xf]
      %v1026 = vld [vmem:[%s13 + $0x10] sm:$0xf]
      %v1027 = vld [vmem:[%s13 + $0x14] sm:$0xf]
      %v1028 = vld [vmem:[%s13 + $0x18] sm:$0xf]
      %v1029 = vld [vmem:[%s13 + $0x1c] sm:$0xf]
      %v1030 = vld [vmem:[%s14] sm:$0x1]
      %v1031 = vld [vmem:[%s15] sm:$0x1]
      %v1032 = vld [vmem:[%s16] sm:$0x1]
      %v1033 = vpack.c.bf16 %v1016, %v1016
      %v1035 = vperm.slane %v1021, 0
      %v1041 = vunpack.c.l.b16 %v1017
      %v1042 = vunpack.c.l.b16 %v1018
      %v1043 = vunpack.c.l.b16 %v1019
      %v1044 = vunpack.c.l.b16 %v1020
      %v1045 = vpack.c.b16 %v1042, %v1041
      %v1046 = vpack.c.b16 %v1044, %v1043
      %v1050 = vsel %vm584, %v1033, 0
      %1052 = vmatpush.bf16.msra.mxu0 0
      %1053 = vmatpush.bf16.msra.mxu0 0
      %1054 = vmatpush.bf16.msra.mxu0 0
      %1055 = vmatpush.bf16.msra.mxu0 0
      %1056 = vmatpush.bf16.msra.mxu0 0
      %1057 = vmatpush.bf16.msra.mxu0 0
      %1058 = vmatpush.bf16.msra.mxu0 %v1046
      %1059 = vmatpush.bf16.msra.mxu0 %v1045
      %1060 = vmatmul.bf16.gmra.mxu0 %v1050
      %v1061 = vpop.f32.mrf.mxu0
      %v1062 = vadd.f32 %v1035, %v1061
      %v1063 = vpop.f32.mrf.mxu0
      %1064 = vdwg.mxu0
      %v1065 = vmax.f32 %v1062, 0.0
      %v1066 = vpack.c.bf16 %v1065, %v1065
      %v1068 = vperm.slane %v1030, 0
      %v1078 = vunpack.c.l.b16 %v1022
      %v1079 = vunpack.c.l.b16 %v1023
      %v1080 = vunpack.c.l.b16 %v1024
      %v1081 = vunpack.c.l.b16 %v1025
      %v1082 = vunpack.c.l.b16 %v1026
      %v1083 = vunpack.c.l.b16 %v1027
      %v1084 = vunpack.c.l.b16 %v1028
      %v1085 = vunpack.c.l.b16 %v1029
      %v1086 = vpack.c.b16 %v1079, %v1078
      %v1087 = vpack.c.b16 %v1081, %v1080
      %v1088 = vpack.c.b16 %v1083, %v1082
      %v1089 = vpack.c.b16 %v1085, %v1084
      %vm1094 = vcmask 523264
      %v1096 = vsel %vm1094, %v1066, 0
      %1098 = vmatpush.bf16.msra.mxu0 0
      %1099 = vmatpush.bf16.msra.mxu0 0
      %1100 = vmatpush.bf16.msra.mxu0 0
      %1101 = vmatpush.bf16.msra.mxu0 0
      %1102 = vmatpush.bf16.msra.mxu0 %v1089
      %1103 = vmatpush.bf16.msra.mxu0 %v1088
      %1104 = vmatpush.bf16.msra.mxu0 %v1087
      %1105 = vmatpush.bf16.msra.mxu0 %v1086
      %1106 = vmatmul.bf16.gmra.mxu0 %v1096
      %v1107 = vpop.f32.mrf.mxu0
      %v1108 = vadd.f32 %v1068, %v1107
      %v1109 = vpop.f32.mrf.mxu0
      %1110 = vdwg.mxu0
      %v1111 = vadd.f32 %v1016, %v1108
      %v1112 = vsel %vm584, %v1111, 0.0
      %1113 = vadd.xlane.f32.xlu0 %v1112
      %v1114 = vpop.xlane.xlu0 %1113
      %v1115 = vmul.f32 %v1114, %v989
      %v1116 = vsub.f32 %v1111, %v1115
      %v1117 = vmul.f32 %v1116, %v1116
      %v1118 = vsel %vm584, %v1117, 0.0
      %1119 = vadd.xlane.f32.xlu0 %v1118
      %v1120 = vpop.xlane.xlu0 %1119
      %v1121 = vmul.f32 %v1120, %v989
      %v1122 = vadd.f32 %v1121, 1e-05
      %v1123 = vrsqrt.pop %v1122
      %v1124 = vmul.f32 %v1123, %v1122
      %v1125 = vmul.f32 %v1124, %v1123
      %v1126 = vmul.f32 0.5, %v1125
      %v1127 = vsub.f32 1.5, %v1126
      %v1128 = vmul.f32 %v1123, %v1127
      %vm1129 = vweird.f32 %v1122
      %vm1130 = vweird.f32 %v1123
      %vm1131 = vmor %vm1129, %vm1130
      %v1132 = vsel %vm1131, %v1123, %v1128
      %v1133 = vmul.f32 %v1116, %v1132
      %v1135 = vperm.slane %v1031, 0
      %v1137 = vmul.f32 %v1133, %v1135
      %v1139 = vperm.slane %v1032, 0
      %v1141 = vadd.f32 %v1137, %v1139
      %1142 = vst.msk [vmem:[%s543] sm:$0xff] %vm584, %v1141
      %p1143 = scmp.lt.s32.totalorder %s28, 1
      %s1144 = scalar_select %p1143, %s28, 1
      %s1145 = smul.addr %s1144, 8
      %s1146 = scalar_lea.vmem %s17, %s1145
      // Predicated region
      $region89: #{transformer_seq2seq.5} parent=87 // pred_check
        %p1147 = pneg %p408
      $region90: #{transformer_seq2seq.5} parent=87 // pred_check_branch
        %1149 = sbr.rel (%p1147) target = $region92
      $region91: #{transformer_seq2seq.5} parent=87 // pred_region
        _
      $region92: #{transformer_seq2seq.5} parent=87 // pred_fallthru
        _
    $region88: #{transformer_seq2seq.5} parent=5 // pred_fallthru
      _
    %p1150 = scmp.le.s32.totalorder 2, %s23
    // Predicated region
    $region93: #{transformer_seq2seq.5} parent=5 // pred_check
      %p1151 = pneg %p1150
    $region94: #{transformer_seq2seq.5} parent=5 // pred_check_branch
      %1153 = sbr.rel (%p1151) target = $region96
    $region95: #{transformer_seq2seq.5} parent=5 // pred_region
      %s1154 = ssub.s32 %s23, 2
      // Predicated region
      $region97: #{transformer_seq2seq.5} parent=95 // pred_check
        %p1155 = pneg %p414
      $region98: #{transformer_seq2seq.5} parent=95 // pred_check_branch
        %1157 = sbr.rel (%p1155) target = $region100
      $region99: #{transformer_seq2seq.5} parent=95 // pred_region
        %p1158 = scmp.lt.s32.totalorder %s29, 1
        %s1159 = scalar_select %p1158, %s29, 1
        %s1160 = smul.addr %s1159, 8
        %s1161 = scalar_lea.vmem %s17, %s1160
      $region100: #{transformer_seq2seq.5} parent=95 // pred_fallthru
        _
    $region96: #{transformer_seq2seq.5} parent=5 // pred_fallthru
      _
  $region6: #{transformer_seq2seq.5} parent=0 // loop_footer
    %s27 = sadd.s32 1, %s23
  $region7: #{transformer_seq2seq.5} parent=0 // loop_footer_branch
    %22 = sbr.rel target = $region3
  $region8: #{transformer_seq2seq.5} parent=0 // loop_exit
    _

// kernel: transformer_seq2seq.6
$region0: #{transformer_seq2seq.6}
  #allocation0 [shape = 'u32[]', space=smem, size = 0x4, offset = 0x4, fixed_abs, tag = 'smem constant byte address 0x4 - core index']
  #allocation1 [shape = 'u32[72,128]{1,0:T(1,128)}', space=vmem, size = 0x9000, scoped, tag = 'internal scratch']
  %s0 = inlined_call_operand.vmem [shape: f32[2,8,32], index: 0, kind: input, shape index: {}]
  %s1 = inlined_call_operand.vmem [shape: bf16[32,32], index: 1, kind: input, shape index: {}]
  %s2 = inlined_call_operand.vmem [shape: bf16[32,32], index: 2, kind: input, shape index: {}]
  %s3 = inlined_call_operand.vmem [shape: bf16[32,32], index: 3, kind: input, shape index: {}]
  %s4 = inlined_call_operand.vmem [shape: bf16[32,32], index: 4, kind: input, shape index: {}]
  %s5 = inlined_call_operand.hbm [shape: f32[1,32], index: 5, kind: input, shape index: {}]
  %s6 = inlined_call_operand.hbm [shape: f32[1,32], index: 6, kind: input, shape index: {}]
  %s7 = inlined_call_operand.hbm [shape: f32[1,32], index: 7, kind: input, shape index: {}]
  %s8 = inlined_call_operand.hbm [shape: f32[1,32], index: 8, kind: input, shape index: {}]
  %s9 = inlined_call_operand.hbm [shape: f32[1,32], index: 9, kind: input, shape index: {}]
  %s10 = inlined_call_operand.hbm [shape: f32[1,32], index: 10, kind: input, shape index: {}]
  %s11 = inlined_call_operand.vmem [shape: bf16[32,64], index: 11, kind: input, shape index: {}]
  %s12 = inlined_call_operand.hbm [shape: f32[1,64], index: 12, kind: input, shape index: {}]
  %s13 = inlined_call_operand.vmem [shape: bf16[64,32], index: 13, kind: input, shape index: {}]
  %s14 = inlined_call_operand.hbm [shape: f32[1,32], index: 14, kind: input, shape index: {}]
  %s15 = inlined_call_operand.hbm [shape: f32[1,32], index: 15, kind: input, shape index: {}]
  %s16 = inlined_call_operand.hbm [shape: f32[1,32], index: 16, kind: input, shape index: {}]
  %s17 = inlined_call_operand.vmem [shape: f32[2,8,32], index: 17, kind: output, shape index: {}]
  %s18 = sld [smem:[#allocation0]]
  $region141: #{transformer_seq2seq.6} parent=0
    _
  %s20 = ssub.s32 1, %s18
  %s21 = scalar_select 0, %s20, %s18
  $region1: #{transformer_seq2seq.6} parent=0
    #allocation2 [shape = 'u8[512]{0}', space=vmem, size = 0x400, scoped, tag = 'input window, operand 5, single buffered']
    #allocation3 [shape = 's32[2]{0}', space=sflag, size = 0x8, scoped, tag = 'scoped memory for transformer_seq2seq.6']
    #allocation4 [shape = 'u8[512]{0}', space=vmem, size = 0x400, scoped, tag = 'input window, operand 6, single buffered']
    #allocation5 [shape = 's32[1]{0}', space=sflag, size = 0x4, scoped, tag = 'scoped memory for transformer_seq2seq.6']
    #allocation6 [shape = 'u8[512]{0}', space=vmem, size = 0x400, scoped, tag = 'input window, operand 7, single buffered']
    #allocation7 [shape = 'u8[512]{0}', space=vmem, size = 0x400, scoped, tag = 'input window, operand 8, single buffered']
    #allocation8 [shape = 's32[1]{0}', space=sflag, size = 0x4, scoped, tag = 'scoped memory for transformer_seq2seq.6']
    #allocation9 [shape = 'u8[512]{0}', space=vmem, size = 0x400, scoped, tag = 'input window, operand 9, single buffered']
    #allocation10 [shape = 'u8[512]{0}', space=vmem, size = 0x400, scoped, tag = 'input window, operand 10, single buffered']
    #allocation11 [shape = 's32[1]{0}', space=sflag, size = 0x4, scoped, tag = 'scoped memory for transformer_seq2seq.6']
    #allocation12 [shape = 'u8[512]{0}', space=vmem, size = 0x400, scoped, tag = 'input window, operand 12, single buffered']
    #allocation13 [shape = 'u8[512]{0}', space=vmem, size = 0x400, scoped, tag = 'input window, operand 14, single buffered']
    #allocation14 [shape = 's32[1]{0}', space=sflag, size = 0x4, scoped, tag = 'scoped memory for transformer_seq2seq.6']
    #allocation15 [shape = 'u8[512]{0}', space=vmem, size = 0x400, scoped, tag = 'input window, operand 15, single buffered']
    #allocation16 [shape = 'u8[512]{0}', space=vmem, size = 0x400, scoped, tag = 'input window, operand 16, single buffered']
    #allocation17 [shape = 's32[1]{0}', space=sflag, size = 0x4, scoped, tag = 'scoped memory for transformer_seq2seq.6']
    %22 = vsyncpa [#allocation3], 0
    %23 = vsyncpa [#allocation5], 0
    %24 = vsyncpa [#allocation8], 0
    %25 = vsyncpa [#allocation11], 0
    %26 = vsyncpa [#allocation14], 0
    %27 = vsyncpa [#allocation17], 0
    loop: start=0, step=1, limit=4
    $region2: #{transformer_seq2seq.6} parent=1 // loop_pre_header
      _
    $region3: #{transformer_seq2seq.6} parent=1 // loop_header
      %s29 = sphi 0, %s33
      %p30 = scmp.ge.s32.totalorder %s29, 4
      %s39 = sphi 0, %s41
      %s42 = sphi 0, %s39
      %s43 = sphi 0, %s42
      %s59 = sphi 0, %s43
      %s63 = sphi 0, %s63
      %s65 = sphi 0, %s63
      %s66 = sphi 0, %s65
      %s80 = sphi 0, %s66
      %s84 = sphi 0, %s84
      %s86 = sphi 0, %s84
      %s87 = sphi 0, %s86
      %s101 = sphi 0, %s87
      %s105 = sphi 0, %s105
      %s107 = sphi 0, %s105
      %s108 = sphi 0, %s107
      %s122 = sphi 0, %s108
      %s126 = sphi 0, %s126
      %s128 = sphi 0, %s126
      %s129 = sphi 0, %s128
      %s143 = sphi 0, %s129
      %s147 = sphi 0, %s147
      %s149 = sphi 0, %s147
      %s150 = sphi 0, %s149
      %s164 = sphi 0, %s150
      %s168 = sphi 0, %s168
      %s170 = sphi 0, %s168
      %s171 = sphi 0, %s170
      %s185 = sphi 0, %s171
      %s189 = sphi 0, %s189
      %s191 = sphi 0, %s189
      %s192 = sphi 0, %s191
      %s206 = sphi 0, %s192
      %s210 = sphi 0, %s210
      %s212 = sphi 0, %s210
      %s213 = sphi 0, %s212
      %s227 = sphi 0, %s213
      %s231 = sphi 0, %s231
      %s233 = sphi 0, %s231
      %s234 = sphi 0, %s233
      %s248 = sphi 0, %s234
      %s252 = sphi 0, %s252
      %s254 = sphi 0, %s252
      %s255 = sphi 0, %s254
      %s269 = sphi 0, %s255
      %s273 = sphi 0, %s273
      %s275 = sphi 0, %s273
      %s276 = sphi 0, %s275
      %s290 = sphi 0, %s276
      %s294 = sphi 0, %s294
      %s296 = sphi 0, %s294
      %s297 = sphi 0, %s296
      %s311 = sphi 0, %s297
      %s315 = sphi 0, %s315
      %s317 = sphi 0, %s315
      %s318 = sphi 0, %s317
      %s332 = sphi 0, %s318
      %s336 = sphi 0, %s336
      %s338 = sphi 0, %s336
      %s339 = sphi 0, %s338
      %s353 = sphi 0, %s339
      %s357 = sphi 0, %s357
      %s359 = sphi 0, %s357
      %s360 = sphi 0, %s359
      %s374 = sphi 0, %s360
      %s378 = sphi 0, %s378
      %s380 = sphi 0, %s378
      %s381 = sphi 0, %s380
      %s395 = sphi 0, %s381
      %s401 = sphi 0, %s403
      %s404 = sphi 0, %s401
      %s405 = sphi 0, %s404
      %s421 = sphi 0, %s405
    $region4: #{transformer_seq2seq.6} parent=1 // loop_header_branch
      %32 = sbr.rel (%p30) target = $region8
    $region5: #{transformer_seq2seq.6} parent=1 // loop_body
      %s34 = ssub.s32 %s29, 1
      %s35 = ssub.s32 %s29, 2
      %s36 = sadd.s32 %s29, 1
      %s37 = ssub.s32 %s29, %s36
      %p38 = scmp.eq.s32.totalorder %s37, 0
      %s40 = sadd.s32 %s39, 1
      %s41 = scalar_select %p38, %s39, %s40
      %p44 = pneg %p38
      %p45 = scmp.eq.s32.totalorder %s29, 1
      %p46 = por %p44, %p45
      %p47 = scmp.ne.s32.totalorder %s39, %s42
      %p48 = scmp.eq.s32.totalorder %s29, 0
      %p49 = por %p47, %p48
      %p50 = scmp.ne.s32.totalorder %s39, %s42
      %p51 = scmp.eq.s32.totalorder %s34, 1
      %p52 = por %p50, %p51
      %p53 = scmp.ne.s32.totalorder %s42, %s43
      %p54 = scmp.eq.s32.totalorder %s34, 0
      %p55 = por %p53, %p54
      %p56 = scmp.ne.s32.totalorder %s42, %s43
      %p57 = scmp.eq.s32.totalorder %s35, 1
      %p58 = por %p56, %p57
      %p60 = scmp.ne.s32.totalorder %s43, %s59
      %p61 = scmp.eq.s32.totalorder %s35, 0
      %p62 = por %p60, %p61
      %s64 = sadd.s32 %s63, 1
      %p67 = scmp.eq.s32.totalorder %s29, 1
      %p68 = scmp.ne.s32.totalorder %s63, %s65
      %p69 = scmp.eq.s32.totalorder %s29, 0
      %p70 = por %p68, %p69
      %p71 = scmp.ne.s32.totalorder %s63, %s65
      %p72 = scmp.eq.s32.totalorder %s34, 1
      %p73 = por %p71, %p72
      %p74 = scmp.ne.s32.totalorder %s65, %s66
      %p75 = scmp.eq.s32.totalorder %s34, 0
      %p76 = por %p74, %p75
      %p77 = scmp.ne.s32.totalorder %s65, %s66
      %p78 = scmp.eq.s32.totalorder %s35, 1
      %p79 = por %p77, %p78
      %p81 = scmp.ne.s32.totalorder %s66, %s80
      %p82 = scmp.eq.s32.totalorder %s35, 0
      %p83 = por %p81, %p82
      %s85 = sadd.s32 %s84, 1
      %p88 = scmp.eq.s32.totalorder %s29, 1
      %p89 = scmp.ne.s32.totalorder %s84, %s86
      %p90 = scmp.eq.s32.totalorder %s29, 0
      %p91 = por %p89, %p90
      %p92 = scmp.ne.s32.totalorder %s84, %s86
      %p93 = scmp.eq.s32.totalorder %s34, 1
      %p94 = por %p92, %p93
      %p95 = scmp.ne.s32.totalorder %s86, %s87
      %p96 = scmp.eq.s32.totalorder %s34, 0
      %p97 = por %p95, %p96
      %p98 = scmp.ne.s32.totalorder %s86, %s87
      %p99 = scmp.eq.s32.totalorder %s35, 1
      %p100 = por %p98, %p99
      %p102 = scmp.ne.s32.totalorder %s87, %s101
      %p103 = scmp.eq.s32.totalorder %s35, 0
      %p104 = por %p102, %p103
      %s106 = sadd.s32 %s105, 1
      %p109 = scmp.eq.s32.totalorder %s29, 1
      %p110 = scmp.ne.s32.totalorder %s105, %s107
      %p111 = scmp.eq.s32.totalorder %s29, 0
      %p112 = por %p110, %p111
      %p113 = scmp.ne.s32.totalorder %s105, %s107
      %p114 = scmp.eq.s32.totalorder %s34, 1
      %p115 = por %p113, %p114
      %p116 = scmp.ne.s32.totalorder %s107, %s108
      %p117 = scmp.eq.s32.totalorder %s34, 0
      %p118 = por %p116, %p117
      %p119 = scmp.ne.s32.totalorder %s107, %s108
      %p120 = scmp.eq.s32.totalorder %s35, 1
      %p121 = por %p119, %p120
      %p123 = scmp.ne.s32.totalorder %s108, %s122
      %p124 = scmp.eq.s32.totalorder %s35, 0
      %p125 = por %p123, %p124
      %s127 = sadd.s32 %s126, 1
      %p130 = scmp.eq.s32.totalorder %s29, 1
      %p131 = scmp.ne.s32.totalorder %s126, %s128
      %p132 = scmp.eq.s32.totalorder %s29, 0
      %p133 = por %p131, %p132
      %p134 = scmp.ne.s32.totalorder %s126, %s128
      %p135 = scmp.eq.s32.totalorder %s34, 1
      %p136 = por %p134, %p135
      %p137 = scmp.ne.s32.totalorder %s128, %s129
      %p138 = scmp.eq.s32.totalorder %s34, 0
      %p139 = por %p137, %p138
      %p140 = scmp.ne.s32.totalorder %s128, %s129
      %p141 = scmp.eq.s32.totalorder %s35, 1
      %p142 = por %p140, %p141
      %p144 = scmp.ne.s32.totalorder %s129, %s143
      %p145 = scmp.eq.s32.totalorder %s35, 0
      %p146 = por %p144, %p145
      %s148 = sadd.s32 %s147, 1
      %p151 = scmp.eq.s32.totalorder %s29, 1
      %p152 = scmp.ne.s32.totalorder %s147, %s149
      %p153 = scmp.eq.s32.totalorder %s29, 0
      %p154 = por %p152, %p153
      %p155 = scmp.ne.s32.totalorder %s147, %s149
      %p156 = scmp.eq.s32.totalorder %s34, 1
      %p157 = por %p155, %p156
      %p158 = scmp.ne.s32.totalorder %s149, %s150
      %p159 = scmp.eq.s32.totalorder %s34, 0
      %p160 = por %p158, %p159
      %p161 = scmp.ne.s32.totalorder %s149, %s150
      %p162 = scmp.eq.s32.totalorder %s35, 1
      %p163 = por %p161, %p162
      %p165 = scmp.ne.s32.totalorder %s150, %s164
      %p166 = scmp.eq.s32.totalorder %s35, 0
      %p167 = por %p165, %p166
      %s169 = sadd.s32 %s168, 1
      %p172 = scmp.eq.s32.totalorder %s29, 1
      %p173 = scmp.ne.s32.totalorder %s168, %s170
      %p174 = scmp.eq.s32.totalorder %s29, 0
      %p175 = por %p173, %p174
      %p176 = scmp.ne.s32.totalorder %s168, %s170
      %p177 = scmp.eq.s32.totalorder %s34, 1
      %p178 = por %p176, %p177
      %p179 = scmp.ne.s32.totalorder %s170, %s171
      %p180 = scmp.eq.s32.totalorder %s34, 0
      %p181 = por %p179, %p180
      %p182 = scmp.ne.s32.totalorder %s170, %s171
      %p183 = scmp.eq.s32.totalorder %s35, 1
      %p184 = por %p182, %p183
      %p186 = scmp.ne.s32.totalorder %s171, %s185
      %p187 = scmp.eq.s32.totalorder %s35, 0
      %p188 = por %p186, %p187
      %s190 = sadd.s32 %s189, 1
      %p193 = scmp.eq.s32.totalorder %s29, 1
      %p194 = scmp.ne.s32.totalorder %s189, %s191
      %p195 = scmp.eq.s32.totalorder %s29, 0
      %p196 = por %p194, %p195
      %p197 = scmp.ne.s32.totalorder %s189, %s191
      %p198 = scmp.eq.s32.totalorder %s34, 1
      %p199 = por %p197, %p198
      %p200 = scmp.ne.s32.totalorder %s191, %s192
      %p201 = scmp.eq.s32.totalorder %s34, 0
      %p202 = por %p200, %p201
      %p203 = scmp.ne.s32.totalorder %s191, %s192
      %p204 = scmp.eq.s32.totalorder %s35, 1
      %p205 = por %p203, %p204
      %p207 = scmp.ne.s32.totalorder %s192, %s206
      %p208 = scmp.eq.s32.totalorder %s35, 0
      %p209 = por %p207, %p208
      %s211 = sadd.s32 %s210, 1
      %p214 = scmp.eq.s32.totalorder %s29, 1
      %p215 = scmp.ne.s32.totalorder %s210, %s212
      %p216 = scmp.eq.s32.totalorder %s29, 0
      %p217 = por %p215, %p216
      %p218 = scmp.ne.s32.totalorder %s210, %s212
      %p219 = scmp.eq.s32.totalorder %s34, 1
      %p220 = por %p218, %p219
      %p221 = scmp.ne.s32.totalorder %s212, %s213
      %p222 = scmp.eq.s32.totalorder %s34, 0
      %p223 = por %p221, %p222
      %p224 = scmp.ne.s32.totalorder %s212, %s213
      %p225 = scmp.eq.s32.totalorder %s35, 1
      %p226 = por %p224, %p225
      %p228 = scmp.ne.s32.totalorder %s213, %s227
      %p229 = scmp.eq.s32.totalorder %s35, 0
      %p230 = por %p228, %p229
      %s232 = sadd.s32 %s231, 1
      %p235 = scmp.eq.s32.totalorder %s29, 1
      %p236 = scmp.ne.s32.totalorder %s231, %s233
      %p237 = scmp.eq.s32.totalorder %s29, 0
      %p238 = por %p236, %p237
      %p239 = scmp.ne.s32.totalorder %s231, %s233
      %p240 = scmp.eq.s32.totalorder %s34, 1
      %p241 = por %p239, %p240
      %p242 = scmp.ne.s32.totalorder %s233, %s234
      %p243 = scmp.eq.s32.totalorder %s34, 0
      %p244 = por %p242, %p243
      %p245 = scmp.ne.s32.totalorder %s233, %s234
      %p246 = scmp.eq.s32.totalorder %s35, 1
      %p247 = por %p245, %p246
      %p249 = scmp.ne.s32.totalorder %s234, %s248
      %p250 = scmp.eq.s32.totalorder %s35, 0
      %p251 = por %p249, %p250
      %s253 = sadd.s32 %s252, 1
      %p256 = scmp.eq.s32.totalorder %s29, 1
      %p257 = scmp.ne.s32.totalorder %s252, %s254
      %p258 = scmp.eq.s32.totalorder %s29, 0
      %p259 = por %p257, %p258
      %p260 = scmp.ne.s32.totalorder %s252, %s254
      %p261 = scmp.eq.s32.totalorder %s34, 1
      %p262 = por %p260, %p261
      %p263 = scmp.ne.s32.totalorder %s254, %s255
      %p264 = scmp.eq.s32.totalorder %s34, 0
      %p265 = por %p263, %p264
      %p266 = scmp.ne.s32.totalorder %s254, %s255
      %p267 = scmp.eq.s32.totalorder %s35, 1
      %p268 = por %p266, %p267
      %p270 = scmp.ne.s32.totalorder %s255, %s269
      %p271 = scmp.eq.s32.totalorder %s35, 0
      %p272 = por %p270, %p271
      %s274 = sadd.s32 %s273, 1
      %p277 = scmp.eq.s32.totalorder %s29, 1
      %p278 = scmp.ne.s32.totalorder %s273, %s275
      %p279 = scmp.eq.s32.totalorder %s29, 0
      %p280 = por %p278, %p279
      %p281 = scmp.ne.s32.totalorder %s273, %s275
      %p282 = scmp.eq.s32.totalorder %s34, 1
      %p283 = por %p281, %p282
      %p284 = scmp.ne.s32.totalorder %s275, %s276
      %p285 = scmp.eq.s32.totalorder %s34, 0
      %p286 = por %p284, %p285
      %p287 = scmp.ne.s32.totalorder %s275, %s276
      %p288 = scmp.eq.s32.totalorder %s35, 1
      %p289 = por %p287, %p288
      %p291 = scmp.ne.s32.totalorder %s276, %s290
      %p292 = scmp.eq.s32.totalorder %s35, 0
      %p293 = por %p291, %p292
      %s295 = sadd.s32 %s294, 1
      %p298 = scmp.eq.s32.totalorder %s29, 1
      %p299 = scmp.ne.s32.totalorder %s294, %s296
      %p300 = scmp.eq.s32.totalorder %s29, 0
      %p301 = por %p299, %p300
      %p302 = scmp.ne.s32.totalorder %s294, %s296
      %p303 = scmp.eq.s32.totalorder %s34, 1
      %p304 = por %p302, %p303
      %p305 = scmp.ne.s32.totalorder %s296, %s297
      %p306 = scmp.eq.s32.totalorder %s34, 0
      %p307 = por %p305, %p306
      %p308 = scmp.ne.s32.totalorder %s296, %s297
      %p309 = scmp.eq.s32.totalorder %s35, 1
      %p310 = por %p308, %p309
      %p312 = scmp.ne.s32.totalorder %s297, %s311
      %p313 = scmp.eq.s32.totalorder %s35, 0
      %p314 = por %p312, %p313
      %s316 = sadd.s32 %s315, 1
      %p319 = scmp.eq.s32.totalorder %s29, 1
      %p320 = scmp.ne.s32.totalorder %s315, %s317
      %p321 = scmp.eq.s32.totalorder %s29, 0
      %p322 = por %p320, %p321
      %p323 = scmp.ne.s32.totalorder %s315, %s317
      %p324 = scmp.eq.s32.totalorder %s34, 1
      %p325 = por %p323, %p324
      %p326 = scmp.ne.s32.totalorder %s317, %s318
      %p327 = scmp.eq.s32.totalorder %s34, 0
      %p328 = por %p326, %p327
      %p329 = scmp.ne.s32.totalorder %s317, %s318
      %p330 = scmp.eq.s32.totalorder %s35, 1
      %p331 = por %p329, %p330
      %p333 = scmp.ne.s32.totalorder %s318, %s332
      %p334 = scmp.eq.s32.totalorder %s35, 0
      %p335 = por %p333, %p334
      %s337 = sadd.s32 %s336, 1
      %p340 = scmp.eq.s32.totalorder %s29, 1
      %p341 = scmp.ne.s32.totalorder %s336, %s338
      %p342 = scmp.eq.s32.totalorder %s29, 0
      %p343 = por %p341, %p342
      %p344 = scmp.ne.s32.totalorder %s336, %s338
      %p345 = scmp.eq.s32.totalorder %s34, 1
      %p346 = por %p344, %p345
      %p347 = scmp.ne.s32.totalorder %s338, %s339
      %p348 = scmp.eq.s32.totalorder %s34, 0
      %p349 = por %p347, %p348
      %p350 = scmp.ne.s32.totalorder %s338, %s339
      %p351 = scmp.eq.s32.totalorder %s35, 1
      %p352 = por %p350, %p351
      %p354 = scmp.ne.s32.totalorder %s339, %s353
      %p355 = scmp.eq.s32.totalorder %s35, 0
      %p356 = por %p354, %p355
      %s358 = sadd.s32 %s357, 1
      %p361 = scmp.eq.s32.totalorder %s29, 1
      %p362 = scmp.ne.s32.totalorder %s357, %s359
      %p363 = scmp.eq.s32.totalorder %s29, 0
      %p364 = por %p362, %p363
      %p365 = scmp.ne.s32.totalorder %s357, %s359
      %p366 = scmp.eq.s32.totalorder %s34, 1
      %p367 = por %p365, %p366
      %p368 = scmp.ne.s32.totalorder %s359, %s360
      %p369 = scmp.eq.s32.totalorder %s34, 0
      %p370 = por %p368, %p369
      %p371 = scmp.ne.s32.totalorder %s359, %s360
      %p372 = scmp.eq.s32.totalorder %s35, 1
      %p373 = por %p371, %p372
      %p375 = scmp.ne.s32.totalorder %s360, %s374
      %p376 = scmp.eq.s32.totalorder %s35, 0
      %p377 = por %p375, %p376
      %s379 = sadd.s32 %s378, 1
      %p382 = scmp.eq.s32.totalorder %s29, 1
      %p383 = scmp.ne.s32.totalorder %s378, %s380
      %p384 = scmp.eq.s32.totalorder %s29, 0
      %p385 = por %p383, %p384
      %p386 = scmp.ne.s32.totalorder %s378, %s380
      %p387 = scmp.eq.s32.totalorder %s34, 1
      %p388 = por %p386, %p387
      %p389 = scmp.ne.s32.totalorder %s380, %s381
      %p390 = scmp.eq.s32.totalorder %s34, 0
      %p391 = por %p389, %p390
      %p392 = scmp.ne.s32.totalorder %s380, %s381
      %p393 = scmp.eq.s32.totalorder %s35, 1
      %p394 = por %p392, %p393
      %p396 = scmp.ne.s32.totalorder %s381, %s395
      %p397 = scmp.eq.s32.totalorder %s35, 0
      %p398 = por %p396, %p397
      %s399 = ssub.s32 %s29, %s36
      %p400 = scmp.eq.s32.totalorder %s399, 0
      %s402 = sadd.s32 %s401, 1
      %s403 = scalar_select %p400, %s401, %s402
      %p406 = pneg %p400
      %p407 = scmp.eq.s32.totalorder %s29, 1
      %p408 = por %p406, %p407
      %p409 = scmp.ne.s32.totalorder %s401, %s404
      %p410 = scmp.eq.s32.totalorder %s29, 0
      %p411 = por %p409, %p410
      %p412 = scmp.ne.s32.totalorder %s401, %s404
      %p413 = scmp.eq.s32.totalorder %s34, 1
      %p414 = por %p412, %p413
      %p415 = scmp.ne.s32.totalorder %s404, %s405
      %p416 = scmp.eq.s32.totalorder %s34, 0
      %p417 = por %p415, %p416
      %p418 = scmp.ne.s32.totalorder %s404, %s405
      %p419 = scmp.eq.s32.totalorder %s35, 1
      %p420 = por %p418, %p419
      %p422 = scmp.ne.s32.totalorder %s405, %s421
      %p423 = scmp.eq.s32.totalorder %s35, 0
      %p424 = por %p422, %p423
      %p425 = scmp.le.s32.totalorder 1, %s29
      %p426 = scmp.lt.s32.totalorder %s29, 3
      %p427 = pnand %p425, %p426
      %p428 = pneg %p427
      // Predicated region
      $region9: #{transformer_seq2seq.6} parent=5 // pred_check
        _
      $region10: #{transformer_seq2seq.6} parent=5 // pred_check_branch
        %430 = sbr.rel (%p427) target = $region12
      $region11: #{transformer_seq2seq.6} parent=5 // pred_region
        %s431 = ssub.s32 %s29, 1
        // Predicated region
        $region13: #{transformer_seq2seq.6} parent=11 // pred_check
          %p432 = pneg %p76
        $region14: #{transformer_seq2seq.6} parent=11 // pred_check_branch
          %434 = sbr.rel (%p432) target = $region16
        $region15: #{transformer_seq2seq.6} parent=11 // pred_region
          _
        $region16: #{transformer_seq2seq.6} parent=11 // pred_fallthru
          _
        // Predicated region
        $region17: #{transformer_seq2seq.6} parent=11 // pred_check
          %p435 = pneg %p97
        $region18: #{transformer_seq2seq.6} parent=11 // pred_check_branch
          %437 = sbr.rel (%p435) target = $region20
        $region19: #{transformer_seq2seq.6} parent=11 // pred_region
          _
        $region20: #{transformer_seq2seq.6} parent=11 // pred_fallthru
          _
        // Predicated region
        $region21: #{transformer_seq2seq.6} parent=11 // pred_check
          %p438 = pneg %p118
        $region22: #{transformer_seq2seq.6} parent=11 // pred_check_branch
          %440 = sbr.rel (%p438) target = $region24
        $region23: #{transformer_seq2seq.6} parent=11 // pred_region
          _
        $region24: #{transformer_seq2seq.6} parent=11 // pred_fallthru
          _
        // Predicated region
        $region25: #{transformer_seq2seq.6} parent=11 // pred_check
          %p441 = pneg %p139
        $region26: #{transformer_seq2seq.6} parent=11 // pred_check_branch
          %443 = sbr.rel (%p441) target = $region28
        $region27: #{transformer_seq2seq.6} parent=11 // pred_region
          _
        $region28: #{transformer_seq2seq.6} parent=11 // pred_fallthru
          _
        // Predicated region
        $region29: #{transformer_seq2seq.6} parent=11 // pred_check
          %p444 = pneg %p160
        $region30: #{transformer_seq2seq.6} parent=11 // pred_check_branch
          %446 = sbr.rel (%p444) target = $region32
        $region31: #{transformer_seq2seq.6} parent=11 // pred_region
          %448 = vsyncadd [#allocation3], 0
          %s450 = sshll.u32 %s5, 4
          %s451 = int_to_ptr.hbm [resolvable:$true] %s450
          %s452 = sshll.u32 [#allocation2], 4
          %s453 = int_to_ptr.vmem [resolvable:$true] %s452
          %455 = dma.hbm_to_vmem [thread:$0]  %s451, 16, %s453, [#allocation3]
        $region32: #{transformer_seq2seq.6} parent=11 // pred_fallthru
          _
        // Predicated region
        $region33: #{transformer_seq2seq.6} parent=11 // pred_check
          %p456 = pneg %p181
        $region34: #{transformer_seq2seq.6} parent=11 // pred_check_branch
          %458 = sbr.rel (%p456) target = $region36
        $region35: #{transformer_seq2seq.6} parent=11 // pred_region
          %460 = vsyncadd [#allocation5], 0
          %s462 = sshll.u32 %s6, 4
          %s463 = int_to_ptr.hbm [resolvable:$true] %s462
          %s464 = sshll.u32 [#allocation4], 4
          %s465 = int_to_ptr.vmem [resolvable:$true] %s464
          %467 = dma.hbm_to_vmem [thread:$0]  %s463, 16, %s465, [#allocation5]
        $region36: #{transformer_seq2seq.6} parent=11 // pred_fallthru
          _
        // Predicated region
        $region37: #{transformer_seq2seq.6} parent=11 // pred_check
          %p468 = pneg %p202
        $region38: #{transformer_seq2seq.6} parent=11 // pred_check_branch
          %470 = sbr.rel (%p468) target = $region40
        $region39: #{transformer_seq2seq.6} parent=11 // pred_region
          %472 = vsyncadd [#allocation5], 0
          %s474 = sshll.u32 %s7, 4
          %s475 = int_to_ptr.hbm [resolvable:$true] %s474
          %s476 = sshll.u32 [#allocation6], 4
          %s477 = int_to_ptr.vmem [resolvable:$true] %s476
          %479 = dma.hbm_to_vmem [thread:$0]  %s475, 16, %s477, [#allocation5]
        $region40: #{transformer_seq2seq.6} parent=11 // pred_fallthru
          _
        // Predicated region
        $region41: #{transformer_seq2seq.6} parent=11 // pred_check
          %p480 = pneg %p223
        $region42: #{transformer_seq2seq.6} parent=11 // pred_check_branch
          %482 = sbr.rel (%p480) target = $region44
        $region43: #{transformer_seq2seq.6} parent=11 // pred_region
          %484 = vsyncadd [#allocation8], 0
          %s486 = sshll.u32 %s8, 4
          %s487 = int_to_ptr.hbm [resolvable:$true] %s486
          %s488 = sshll.u32 [#allocation7], 4
          %s489 = int_to_ptr.vmem [resolvable:$true] %s488
          %491 = dma.hbm_to_vmem [thread:$0]  %s487, 16, %s489, [#allocation8]
        $region44: #{transformer_seq2seq.6} parent=11 // pred_fallthru
          _
        // Predicated region
        $region45: #{transformer_seq2seq.6} parent=11 // pred_check
          %p492 = pneg %p244
        $region46: #{transformer_seq2seq.6} parent=11 // pred_check_branch
          %494 = sbr.rel (%p492) target = $region48
        $region47: #{transformer_seq2seq.6} parent=11 // pred_region
          %496 = vsyncadd [#allocation8], 0
          %s498 = sshll.u32 %s9, 4
          %s499 = int_to_ptr.hbm [resolvable:$true] %s498
          %s500 = sshll.u32 [#allocation9], 4
          %s501 = int_to_ptr.vmem [resolvable:$true] %s500
          %503 = dma.hbm_to_vmem [thread:$0]  %s499, 16, %s501, [#allocation8]
        $region48: #{transformer_seq2seq.6} parent=11 // pred_fallthru
          _
        // Predicated region
        $region49: #{transformer_seq2seq.6} parent=11 // pred_check
          %p504 = pneg %p265
        $region50: #{transformer_seq2seq.6} parent=11 // pred_check_branch
          %506 = sbr.rel (%p504) target = $region52
        $region51: #{transformer_seq2seq.6} parent=11 // pred_region
          %508 = vsyncadd [#allocation11], 0
          %s510 = sshll.u32 %s10, 4
          %s511 = int_to_ptr.hbm [resolvable:$true] %s510
          %s512 = sshll.u32 [#allocation10], 4
          %s513 = int_to_ptr.vmem [resolvable:$true] %s512
          %515 = dma.hbm_to_vmem [thread:$0]  %s511, 16, %s513, [#allocation11]
        $region52: #{transformer_seq2seq.6} parent=11 // pred_fallthru
          _
        // Predicated region
        $region53: #{transformer_seq2seq.6} parent=11 // pred_check
          %p516 = pneg %p286
        $region54: #{transformer_seq2seq.6} parent=11 // pred_check_branch
          %518 = sbr.rel (%p516) target = $region56
        $region55: #{transformer_seq2seq.6} parent=11 // pred_region
          _
        $region56: #{transformer_seq2seq.6} parent=11 // pred_fallthru
          _
        // Predicated region
        $region57: #{transformer_seq2seq.6} parent=11 // pred_check
          %p519 = pneg %p307
        $region58: #{transformer_seq2seq.6} parent=11 // pred_check_branch
          %521 = sbr.rel (%p519) target = $region60
        $region59: #{transformer_seq2seq.6} parent=11 // pred_region
          %523 = vsyncadd [#allocation11], 0
          %s525 = sshll.u32 %s12, 4
          %s526 = int_to_ptr.hbm [resolvable:$true] %s525
          %s527 = sshll.u32 [#allocation12], 4
          %s528 = int_to_ptr.vmem [resolvable:$true] %s527
          %530 = dma.hbm_to_vmem [thread:$0]  %s526, 16, %s528, [#allocation11]
        $region60: #{transformer_seq2seq.6} parent=11 // pred_fallthru
          _
        // Predicated region
        $region61: #{transformer_seq2seq.6} parent=11 // pred_check
          %p531 = pneg %p328
        $region62: #{transformer_seq2seq.6} parent=11 // pred_check_branch
          %533 = sbr.rel (%p531) target = $region64
        $region63: #{transformer_seq2seq.6} parent=11 // pred_region
          _
        $region64: #{transformer_seq2seq.6} parent=11 // pred_fallthru
          _
        // Predicated region
        $region65: #{transformer_seq2seq.6} parent=11 // pred_check
          %p534 = pneg %p349
        $region66: #{transformer_seq2seq.6} parent=11 // pred_check_branch
          %536 = sbr.rel (%p534) target = $region68
        $region67: #{transformer_seq2seq.6} parent=11 // pred_region
          %538 = vsyncadd [#allocation14], 0
          %s540 = sshll.u32 %s14, 4
          %s541 = int_to_ptr.hbm [resolvable:$true] %s540
          %s542 = sshll.u32 [#allocation13], 4
          %s543 = int_to_ptr.vmem [resolvable:$true] %s542
          %545 = dma.hbm_to_vmem [thread:$0]  %s541, 16, %s543, [#allocation14]
        $region68: #{transformer_seq2seq.6} parent=11 // pred_fallthru
          _
        // Predicated region
        $region69: #{transformer_seq2seq.6} parent=11 // pred_check
          %p546 = pneg %p370
        $region70: #{transformer_seq2seq.6} parent=11 // pred_check_branch
          %548 = sbr.rel (%p546) target = $region72
        $region71: #{transformer_seq2seq.6} parent=11 // pred_region
          %550 = vsyncadd [#allocation14], 0
          %s552 = sshll.u32 %s15, 4
          %s553 = int_to_ptr.hbm [resolvable:$true] %s552
          %s554 = sshll.u32 [#allocation15], 4
          %s555 = int_to_ptr.vmem [resolvable:$true] %s554
          %557 = dma.hbm_to_vmem [thread:$0]  %s553, 16, %s555, [#allocation14]
        $region72: #{transformer_seq2seq.6} parent=11 // pred_fallthru
          _
        // Predicated region
        $region73: #{transformer_seq2seq.6} parent=11 // pred_check
          %p558 = pneg %p391
        $region74: #{transformer_seq2seq.6} parent=11 // pred_check_branch
          %560 = sbr.rel (%p558) target = $region76
        $region75: #{transformer_seq2seq.6} parent=11 // pred_region
          %562 = vsyncadd [#allocation17], 0
          %s564 = sshll.u32 %s16, 4
          %s565 = int_to_ptr.hbm [resolvable:$true] %s564
          %s566 = sshll.u32 [#allocation16], 4
          %s567 = int_to_ptr.vmem [resolvable:$true] %s566
          %569 = dma.hbm_to_vmem [thread:$0]  %s565, 16, %s567, [#allocation17]
        $region76: #{transformer_seq2seq.6} parent=11 // pred_fallthru
          _
      $region12: #{transformer_seq2seq.6} parent=5 // pred_fallthru
        _
      %p570 = scmp.lt.s32.totalorder %s29, 2
      // Predicated region
      $region77: #{transformer_seq2seq.6} parent=5 // pred_check
        %p571 = pneg %p570
      $region78: #{transformer_seq2seq.6} parent=5 // pred_check_branch
        %573 = sbr.rel (%p571) target = $region80
      $region79: #{transformer_seq2seq.6} parent=5 // pred_region
        // Predicated region
        $region81: #{transformer_seq2seq.6} parent=79 // pred_check
          %p574 = pneg %p49
        $region82: #{transformer_seq2seq.6} parent=79 // pred_check_branch
          %576 = sbr.rel (%p574) target = $region84
        $region83: #{transformer_seq2seq.6} parent=79 // pred_region
          %p577 = scmp.lt.s32.totalorder %s29, 1
          %s578 = scalar_select %p577, %s29, 1
          %s579 = smul.addr %s578, 8
          %s580 = scalar_lea.vmem %s0, %s579
        $region84: #{transformer_seq2seq.6} parent=79 // pred_fallthru
          _
      $region80: #{transformer_seq2seq.6} parent=5 // pred_fallthru
        _
      %p581 = scmp.le.s32.totalorder 1, %s29
      %p582 = scmp.lt.s32.totalorder %s29, 3
      %p583 = pnand %p581, %p582
      %p584 = pneg %p583
      // Predicated region
      $region85: #{transformer_seq2seq.6} parent=5 // pred_check
        _
      $region86: #{transformer_seq2seq.6} parent=5 // pred_check_branch
        %586 = sbr.rel (%p583) target = $region88
      $region87: #{transformer_seq2seq.6} parent=5 // pred_region
        %s587 = ssub.s32 %s29, 1
        // Predicated region
        $region89: #{transformer_seq2seq.6} parent=87 // pred_check
          %p588 = pneg %p160
        $region90: #{transformer_seq2seq.6} parent=87 // pred_check_branch
          %590 = sbr.rel (%p588) target = $region92
        $region91: #{transformer_seq2seq.6} parent=87 // pred_region
          %592 = dma.done [#allocation3], 16
        $region92: #{transformer_seq2seq.6} parent=87 // pred_fallthru
          _
        // Predicated region
        $region93: #{transformer_seq2seq.6} parent=87 // pred_check
          %p593 = pneg %p181
        $region94: #{transformer_seq2seq.6} parent=87 // pred_check_branch
          %595 = sbr.rel (%p593) target = $region96
        $region95: #{transformer_seq2seq.6} parent=87 // pred_region
          %597 = dma.done [#allocation5], 16
        $region96: #{transformer_seq2seq.6} parent=87 // pred_fallthru
          _
        // Predicated region
        $region97: #{transformer_seq2seq.6} parent=87 // pred_check
          %p598 = pneg %p202
        $region98: #{transformer_seq2seq.6} parent=87 // pred_check_branch
          %600 = sbr.rel (%p598) target = $region100
        $region99: #{transformer_seq2seq.6} parent=87 // pred_region
          %602 = dma.done [#allocation5], 16
        $region100: #{transformer_seq2seq.6} parent=87 // pred_fallthru
          _
        // Predicated region
        $region101: #{transformer_seq2seq.6} parent=87 // pred_check
          %p603 = pneg %p223
        $region102: #{transformer_seq2seq.6} parent=87 // pred_check_branch
          %605 = sbr.rel (%p603) target = $region104
        $region103: #{transformer_seq2seq.6} parent=87 // pred_region
          %607 = dma.done [#allocation8], 16
        $region104: #{transformer_seq2seq.6} parent=87 // pred_fallthru
          _
        // Predicated region
        $region105: #{transformer_seq2seq.6} parent=87 // pred_check
          %p608 = pneg %p244
        $region106: #{transformer_seq2seq.6} parent=87 // pred_check_branch
          %610 = sbr.rel (%p608) target = $region108
        $region107: #{transformer_seq2seq.6} parent=87 // pred_region
          %612 = dma.done [#allocation8], 16
        $region108: #{transformer_seq2seq.6} parent=87 // pred_fallthru
          _
        // Predicated region
        $region109: #{transformer_seq2seq.6} parent=87 // pred_check
          %p613 = pneg %p265
        $region110: #{transformer_seq2seq.6} parent=87 // pred_check_branch
          %615 = sbr.rel (%p613) target = $region112
        $region111: #{transformer_seq2seq.6} parent=87 // pred_region
          %617 = dma.done [#allocation11], 16
        $region112: #{transformer_seq2seq.6} parent=87 // pred_fallthru
          _
        // Predicated region
        $region113: #{transformer_seq2seq.6} parent=87 // pred_check
          %p618 = pneg %p307
        $region114: #{transformer_seq2seq.6} parent=87 // pred_check_branch
          %620 = sbr.rel (%p618) target = $region116
        $region115: #{transformer_seq2seq.6} parent=87 // pred_region
          %622 = dma.done [#allocation11], 16
        $region116: #{transformer_seq2seq.6} parent=87 // pred_fallthru
          _
        // Predicated region
        $region117: #{transformer_seq2seq.6} parent=87 // pred_check
          %p623 = pneg %p349
        $region118: #{transformer_seq2seq.6} parent=87 // pred_check_branch
          %625 = sbr.rel (%p623) target = $region120
        $region119: #{transformer_seq2seq.6} parent=87 // pred_region
          %627 = dma.done [#allocation14], 16
        $region120: #{transformer_seq2seq.6} parent=87 // pred_fallthru
          _
        // Predicated region
        $region121: #{transformer_seq2seq.6} parent=87 // pred_check
          %p628 = pneg %p370
        $region122: #{transformer_seq2seq.6} parent=87 // pred_check_branch
          %630 = sbr.rel (%p628) target = $region124
        $region123: #{transformer_seq2seq.6} parent=87 // pred_region
          %632 = dma.done [#allocation14], 16
        $region124: #{transformer_seq2seq.6} parent=87 // pred_fallthru
          _
        // Predicated region
        $region125: #{transformer_seq2seq.6} parent=87 // pred_check
          %p633 = pneg %p391
        $region126: #{transformer_seq2seq.6} parent=87 // pred_check_branch
          %635 = sbr.rel (%p633) target = $region128
        $region127: #{transformer_seq2seq.6} parent=87 // pred_region
          %637 = dma.done [#allocation17], 16
        $region128: #{transformer_seq2seq.6} parent=87 // pred_fallthru
          _
        %p638 = scmp.lt.s32.totalorder %s34, 1
        %s639 = scalar_select %p638, %s34, 1
        %s640 = smul.addr %s639, 8
        %s641 = scalar_lea.vmem %s0, %s640
        %p642 = pneg %p55
        %p643 = pneg %p52
        %p644 = pneg %p76
        %p645 = pneg %p73
        %p646 = pneg %p97
        %p647 = pneg %p94
        %p648 = pneg %p118
        %p649 = pneg %p115
        %p650 = pneg %p139
        %p651 = pneg %p136
        %p652 = pneg %p160
        %p653 = pneg %p157
        %p654 = pneg %p181
        %p655 = pneg %p178
        %p656 = pneg %p202
        %p657 = pneg %p199
        %p658 = pneg %p223
        %p659 = pneg %p220
        %p660 = pneg %p244
        %p661 = pneg %p241
        %p662 = pneg %p265
        %p663 = pneg %p262
        %p664 = pneg %p286
        %p665 = pneg %p283
        %p666 = pneg %p307
        %p667 = pneg %p304
        %p668 = pneg %p328
        %p669 = pneg %p325
        %p670 = pneg %p349
        %p671 = pneg %p346
        %p672 = pneg %p370
        %p673 = pneg %p367
        %p674 = pneg %p391
        %p675 = pneg %p388
        %p676 = pneg %p417
        %p677 = pneg %p414
        %p678 = scmp.lt.s32.totalorder %s34, 1
        %s679 = scalar_select %p678, %s34, 1
        %s680 = smul.addr %s679, 8
        %s681 = scalar_lea.vmem %s17, %s680
        %p682 = scmp.lt.s32.totalorder %s34, 1
        %s683 = scalar_select %p682, %s34, 1
        %s684 = smul.addr %s683, 8
        %s685 = scalar_lea.vmem %s0, %s684
        %p686 = scmp.lt.s32.totalorder %s34, 1
        %s687 = scalar_select %p686, %s34, 1
        %s688 = smul.addr %s687, 8
        %s689 = scalar_lea.vmem %s17, %s688
        %v691 = vld [vmem:[%s685] sm:$0xff]
        %v692 = vld [vmem:[%s1] sm:$0xf]
        %v693 = vld [vmem:[%s1 + $0x4] sm:$0xf]
        %v694 = vld [vmem:[%s1 + $0x8] sm:$0xf]
        %v695 = vld [vmem:[%s1 + $0xc] sm:$0xf]
        %v696 = vld [vmem:[%s2] sm:$0xf]
        %v697 = vld [vmem:[%s2 + $0x4] sm:$0xf]
        %v698 = vld [vmem:[%s2 + $0x8] sm:$0xf]
        %v699 = vld [vmem:[%s2 + $0xc] sm:$0xf]
        %v700 = vld [vmem:[%s3] sm:$0xf]
        %v701 = vld [vmem:[%s3 + $0x4] sm:$0xf]
        %v702 = vld [vmem:[%s3 + $0x8] sm:$0xf]
        %v703 = vld [vmem:[%s3 + $0xc] sm:$0xf]
        %v704 = vld [vmem:[%s4] sm:$0xf]
        %v705 = vld [vmem:[%s4 + $0x4] sm:$0xf]
        %v706 = vld [vmem:[%s4 + $0x8] sm:$0xf]
        %v707 = vld [vmem:[%s4 + $0xc] sm:$0xf]
        %v708 = vld [vmem:[#allocation2] sm:$0x1]
        %v709 = vld [vmem:[#allocation4] sm:$0x1]
        %v710 = vld [vmem:[#allocation6] sm:$0x1]
        %v711 = vld [vmem:[#allocation7] sm:$0x1]
        %v712 = vld [vmem:[#allocation9] sm:$0x1]
        %v713 = vld [vmem:[#allocation10] sm:$0x1]
        %v714 = vpack.c.bf16 %v691, %v691
        %v716 = vperm.slane %v708, 0
        %v722 = vunpack.c.l.b16 %v692
        %v723 = vunpack.c.l.b16 %v693
        %v724 = vunpack.c.l.b16 %v694
        %v725 = vunpack.c.l.b16 %v695
        %v726 = vpack.c.b16 %v723, %v722
        %v727 = vpack.c.b16 %v725, %v724
        %vm730 = vcmask 261120
        %v732 = vsel %vm730, %v714, 0
        %734 = vmatpush.bf16.msra.mxu0 0
        %735 = vmatpush.bf16.msra.mxu0 0
        %736 = vmatpush.bf16.msra.mxu0 0
        %737 = vmatpush.bf16.msra.mxu0 0
        %738 = vmatpush.bf16.msra.mxu0 0
        %739 = vmatpush.bf16.msra.mxu0 0
        %740 = vmatpush.bf16.msra.mxu0 %v727
        %741 = vmatpush.bf16.msra.mxu0 %v726
        %742 = vmatmul.bf16.gmra.mxu0 %v732
        %v743 = vpop.f32.mrf.mxu0
        %v744 = vadd.f32 %v716, %v743
        %v745 = vpop.f32.mrf.mxu0
        %746 = vdwg.mxu0
        %v747 = vpack.c.bf16 %v744, %v744
        %v749 = vperm.slane %v709, 0
        %v755 = vunpack.c.l.b16 %v696
        %v756 = vunpack.c.l.b16 %v697
        %v757 = vunpack.c.l.b16 %v698
        %v758 = vunpack.c.l.b16 %v699
        %v759 = vpack.c.b16 %v756, %v755
        %v760 = vpack.c.b16 %v758, %v757
        %763 = vmatpush.bf16.msra.mxu0 0
        %764 = vmatpush.bf16.msra.mxu0 0
        %765 = vmatpush.bf16.msra.mxu0 0
        %766 = vmatpush.bf16.msra.mxu0 0
        %767 = vmatpush.bf16.msra.mxu0 0
        %768 = vmatpush.bf16.msra.mxu0 0
        %769 = vmatpush.bf16.msra.mxu0 %v760
        %770 = vmatpush.bf16.msra.mxu0 %v759
        %771 = vmatmul.bf16.gmra.mxu0 %v732
        %v772 = vpop.f32.mrf.mxu0
        %v773 = vadd.f32 %v749, %v772
        %v774 = vpop.f32.mrf.mxu0
        %775 = vdwg.mxu0
        %v776 = vpack.c.bf16 %v773, %v773
        %v778 = vperm.slane %v710, 0
        %v784 = vunpack.c.l.b16 %v700
        %v785 = vunpack.c.l.b16 %v701
        %v786 = vunpack.c.l.b16 %v702
        %v787 = vunpack.c.l.b16 %v703
        %v788 = vpack.c.b16 %v785, %v784
        %v789 = vpack.c.b16 %v787, %v786
        %792 = vmatpush.bf16.msra.mxu0 0
        %793 = vmatpush.bf16.msra.mxu0 0
        %794 = vmatpush.bf16.msra.mxu0 0
        %795 = vmatpush.bf16.msra.mxu0 0
        %796 = vmatpush.bf16.msra.mxu0 0
        %797 = vmatpush.bf16.msra.mxu0 0
        %798 = vmatpush.bf16.msra.mxu0 %v789
        %799 = vmatpush.bf16.msra.mxu0 %v788
        %800 = vmatmul.bf16.gmra.mxu0 %v732
        %v801 = vpop.f32.mrf.mxu0
        %v802 = vadd.f32 %v778, %v801
        %v803 = vpop.f32.mrf.mxu0
        %804 = vdwg.mxu0
        %v805 = vpack.c.bf16 %v802, %v802
        %vm806 = vcmask 64512
        %v808 = vsel %vm806, %v747, 0
        %v811 = vsel %vm806, %v776, 0
        %813 = vmatpush.bf16.xpose.msra.mxu0 0
        %814 = vmatpush.bf16.xpose.msra.mxu0 0
        %815 = vmatpush.bf16.xpose.msra.mxu0 0
        %816 = vmatpush.bf16.xpose.msra.mxu0 0
        %817 = vmatpush.bf16.xpose.msra.mxu0 0
        %818 = vmatpush.bf16.xpose.msra.mxu0 0
        %819 = vmatpush.bf16.xpose.msra.mxu0 0
        %820 = vmatpush.bf16.xpose.msra.mxu0 %v811
        %821 = vmatmul.bf16.gmra.mxu0 %v808
        %v822 = vpop.f32.mrf.mxu0
        %v823 = vadd.f32 0.0, %v822
        %v824 = vpop.f32.mrf.mxu0
        %825 = vdwg.mxu0
        %v826 = vmul.f32 %v823, 0.35355338
        %v827 = vsel %vm806, %v826, -inf
        %828 = vmax.xlane.f32.xlu0 %v827
        %v829 = vpop.xlane.xlu0 %828
        %v830 = vsub.f32 %v826, %v829
        %v831 = vmul.f32 %v830, 1.442695
        %v832 = vpow.pop %v831
        %v833 = vsel %vm806, %v832, 0.0
        %834 = vadd.xlane.f32.xlu0 %v833
        %v835 = vpop.xlane.xlu0 %834
        %v836 = vrcp.pop %v835
        %v837 = vmul.f32 %v832, %v836
        %v838 = vpack.c.bf16 %v837, %v837
        %v840 = vsel %vm806, %v838, 0
        %vm842 = vcmask 1043456
        %v844 = vsel %vm842, %v805, 0
        %846 = vmatpush.bf16.msra.mxu0 0
        %847 = vmatpush.bf16.msra.mxu0 0
        %848 = vmatpush.bf16.msra.mxu0 0
        %849 = vmatpush.bf16.msra.mxu0 0
        %850 = vmatpush.bf16.msra.mxu0 0
        %851 = vmatpush.bf16.msra.mxu0 0
        %852 = vmatpush.bf16.msra.mxu0 0
        %853 = vmatpush.bf16.msra.mxu0 %v844
        %854 = vmatmul.bf16.gmra.mxu0 %v840
        %v855 = vpop.f32.mrf.mxu0
        %v856 = vadd.f32 0.0, %v855
        %v857 = vpop.f32.mrf.mxu0
        %858 = vdwg.mxu0
        %v859 = vpack.c.bf16 %v856, %v856
        %v861 = vunpack.c.l.b16 %v747
        %v862 = vpack.c.b16 %v861, %v861
        %863 = vrot.lane.b32.xlu0 %v862, 120
        %v864 = vpop.permute.xlu0 %863
        %v866 = vunpack.c.l.b16 %v776
        %v867 = vpack.c.b16 %v866, %v866
        %868 = vrot.lane.b32.xlu0 %v867, 120
        %v869 = vpop.permute.xlu0 %868
        %v871 = vsel %vm806, %v864, 0
        %v874 = vsel %vm806, %v869, 0
        %876 = vmatpush.bf16.xpose.msra.mxu0 0
        %877 = vmatpush.bf16.xpose.msra.mxu0 0
        %878 = vmatpush.bf16.xpose.msra.mxu0 0
        %879 = vmatpush.bf16.xpose.msra.mxu0 0
        %880 = vmatpush.bf16.xpose.msra.mxu0 0
        %881 = vmatpush.bf16.xpose.msra.mxu0 0
        %882 = vmatpush.bf16.xpose.msra.mxu0 0
        %883 = vmatpush.bf16.xpose.msra.mxu0 %v874
        %884 = vmatmul.bf16.gmra.mxu0 %v871
        %v885 = vpop.f32.mrf.mxu0
        %v886 = vadd.f32 0.0, %v885
        %v887 = vpop.f32.mrf.mxu0
        %888 = vdwg.mxu0
        %v889 = vmul.f32 %v886, 0.35355338
        %v890 = vsel %vm806, %v889, -inf
        %891 = vmax.xlane.f32.xlu0 %v890
        %v892 = vpop.xlane.xlu0 %891
        %v893 = vsub.f32 %v889, %v892
        %v894 = vmul.f32 %v893, 1.442695
        %v895 = vpow.pop %v894
        %v896 = vsel %vm806, %v895, 0.0
        %897 = vadd.xlane.f32.xlu0 %v896
        %v898 = vpop.xlane.xlu0 %897
        %v899 = vrcp.pop %v898
        %v900 = vmul.f32 %v895, %v899
        %v901 = vpack.c.bf16 %v900, %v900
        %v903 = vunpack.c.l.b16 %v805
        %v904 = vpack.c.b16 %v903, %v903
        %905 = vrot.lane.b32.xlu0 %v904, 120
        %v906 = vpop.permute.xlu0 %905
        %v908 = vsel %vm806, %v901, 0
        %v911 = vsel %vm842, %v906, 0
        %913 = vmatpush.bf16.msra.mxu0 0
        %914 = vmatpush.bf16.msra.mxu0 0
        %915 = vmatpush.bf16.msra.mxu0 0
        %916 = vmatpush.bf16.msra.mxu0 0
        %917 = vmatpush.bf16.msra.mxu0 0
        %918 = vmatpush.bf16.msra.mxu0 0
        %919 = vmatpush.bf16.msra.mxu0 0
        %920 = vmatpush.bf16.msra.mxu0 %v911
        %921 = vmatmul.bf16.gmra.mxu0 %v908
        %v922 = vpop.f32.mrf.mxu0
        %v923 = vadd.f32 0.0, %v922
        %v924 = vpop.f32.mrf.mxu0
        %925 = vdwg.mxu0
        %v926 = vpack.c.bf16 %v923, %v923
        %v928 = vsel %vm806, %v926, 0
        %v931 = vsel %vm842, %v705, 0
        %933 = vmatpush.bf16.msra.mxu0 0
        %934 = vmatpush.bf16.msra.mxu0 0
        %935 = vmatpush.bf16.msra.mxu0 0
        %936 = vmatpush.bf16.msra.mxu0 0
        %937 = vmatpush.bf16.msra.mxu0 0
        %938 = vmatpush.bf16.msra.mxu0 0
        %939 = vmatpush.bf16.msra.mxu0 0
        %940 = vmatpush.bf16.msra.mxu0 %v931
        %941 = vmatmul.bf16.gmra.mxu0 %v928
        %v942 = vpop.f32.mrf.mxu0
        %v943 = vadd.f32 0.0, %v942
        %v944 = vpop.f32.mrf.mxu0
        %945 = vdwg.mxu0
        %v947 = vsel %vm806, %v859, 0
        %v950 = vsel %vm842, %v704, 0
        %952 = vmatpush.bf16.msra.mxu0 0
        %953 = vmatpush.bf16.msra.mxu0 0
        %954 = vmatpush.bf16.msra.mxu0 0
        %955 = vmatpush.bf16.msra.mxu0 0
        %956 = vmatpush.bf16.msra.mxu0 0
        %957 = vmatpush.bf16.msra.mxu0 0
        %958 = vmatpush.bf16.msra.mxu0 0
        %959 = vmatpush.bf16.msra.mxu0 %v950
        %960 = vmatmul.bf16.gmra.mxu0 %v947
        %v961 = vpop.f32.mrf.mxu0
        %v962 = vadd.f32 %v943, %v961
        %v963 = vpop.f32.mrf.mxu0
        %964 = vdwg.mxu0
        %965 = vrot.lane.b32.xlu0 %v862, 112
        %v966 = vpop.permute.xlu0 %965
        %967 = vrot.lane.b32.xlu0 %v867, 112
        %v968 = vpop.permute.xlu0 %967
        %v970 = vsel %vm806, %v966, 0
        %v973 = vsel %vm806, %v968, 0
        %975 = vmatpush.bf16.xpose.msra.mxu0 0
        %976 = vmatpush.bf16.xpose.msra.mxu0 0
        %977 = vmatpush.bf16.xpose.msra.mxu0 0
        %978 = vmatpush.bf16.xpose.msra.mxu0 0
        %979 = vmatpush.bf16.xpose.msra.mxu0 0
        %980 = vmatpush.bf16.xpose.msra.mxu0 0
        %981 = vmatpush.bf16.xpose.msra.mxu0 0
        %982 = vmatpush.bf16.xpose.msra.mxu0 %v973
        %983 = vmatmul.bf16.gmra.mxu0 %v970
        %v984 = vpop.f32.mrf.mxu0
        %v985 = vadd.f32 0.0, %v984
        %v986 = vpop.f32.mrf.mxu0
        %987 = vdwg.mxu0
        %v988 = vmul.f32 %v985, 0.35355338
        %v989 = vsel %vm806, %v988, -inf
        %990 = vmax.xlane.f32.xlu0 %v989
        %v991 = vpop.xlane.xlu0 %990
        %v992 = vsub.f32 %v988, %v991
        %v993 = vmul.f32 %v992, 1.442695
        %v994 = vpow.pop %v993
        %v995 = vsel %vm806, %v994, 0.0
        %996 = vadd.xlane.f32.xlu0 %v995
        %v997 = vpop.xlane.xlu0 %996
        %v998 = vrcp.pop %v997
        %v999 = vmul.f32 %v994, %v998
        %v1000 = vpack.c.bf16 %v999, %v999
        %1001 = vrot.lane.b32.xlu0 %v904, 112
        %v1002 = vpop.permute.xlu0 %1001
        %v1004 = vsel %vm806, %v1000, 0
        %v1007 = vsel %vm842, %v1002, 0
        %1009 = vmatpush.bf16.msra.mxu0 0
        %1010 = vmatpush.bf16.msra.mxu0 0
        %1011 = vmatpush.bf16.msra.mxu0 0
        %1012 = vmatpush.bf16.msra.mxu0 0
        %1013 = vmatpush.bf16.msra.mxu0 0
        %1014 = vmatpush.bf16.msra.mxu0 0
        %1015 = vmatpush.bf16.msra.mxu0 0
        %1016 = vmatpush.bf16.msra.mxu0 %v1007
        %1017 = vmatmul.bf16.gmra.mxu0 %v1004
        %v1018 = vpop.f32.mrf.mxu0
        %v1019 = vadd.f32 0.0, %v1018
        %v1020 = vpop.f32.mrf.mxu0
        %1021 = vdwg.mxu0
        %v1022 = vpack.c.bf16 %v1019, %v1019
        %v1024 = vsel %vm806, %v1022, 0
        %v1027 = vsel %vm842, %v706, 0
        %1029 = vmatpush.bf16.msra.mxu0 0
        %1030 = vmatpush.bf16.msra.mxu0 0
        %1031 = vmatpush.bf16.msra.mxu0 0
        %1032 = vmatpush.bf16.msra.mxu0 0
        %1033 = vmatpush.bf16.msra.mxu0 0
        %1034 = vmatpush.bf16.msra.mxu0 0
        %1035 = vmatpush.bf16.msra.mxu0 0
        %1036 = vmatpush.bf16.msra.mxu0 %v1027
        %1037 = vmatmul.bf16.gmra.mxu0 %v1024
        %v1038 = vpop.f32.mrf.mxu0
        %v1039 = vadd.f32 0.0, %v1038
        %v1040 = vpop.f32.mrf.mxu0
        %1041 = vdwg.mxu0
        %v1042 = vadd.f32 %v962, %v1039
        %1043 = vrot.lane.b32.xlu0 %v862, 104
        %v1044 = vpop.permute.xlu0 %1043
        %1045 = vrot.lane.b32.xlu0 %v867, 104
        %v1046 = vpop.permute.xlu0 %1045
        %v1048 = vsel %vm806, %v1044, 0
        %v1051 = vsel %vm806, %v1046, 0
        %1053 = vmatpush.bf16.xpose.msra.mxu0 0
        %1054 = vmatpush.bf16.xpose.msra.mxu0 0
        %1055 = vmatpush.bf16.xpose.msra.mxu0 0
        %1056 = vmatpush.bf16.xpose.msra.mxu0 0
        %1057 = vmatpush.bf16.xpose.msra.mxu0 0
        %1058 = vmatpush.bf16.xpose.msra.mxu0 0
        %1059 = vmatpush.bf16.xpose.msra.mxu0 0
        %1060 = vmatpush.bf16.xpose.msra.mxu0 %v1051
        %1061 = vmatmul.bf16.gmra.mxu0 %v1048
        %v1062 = vpop.f32.mrf.mxu0
        %v1063 = vadd.f32 0.0, %v1062
        %v1064 = vpop.f32.mrf.mxu0
        %1065 = vdwg.mxu0
        %v1066 = vmul.f32 %v1063, 0.35355338
        %v1067 = vsel %vm806, %v1066, -inf
        %1068 = vmax.xlane.f32.xlu0 %v1067
        %v1069 = vpop.xlane.xlu0 %1068
        %v1070 = vsub.f32 %v1066, %v1069
        %v1071 = vmul.f32 %v1070, 1.442695
        %v1072 = vpow.pop %v1071
        %v1073 = vsel %vm806, %v1072, 0.0
        %1074 = vadd.xlane.f32.xlu0 %v1073
        %v1075 = vpop.xlane.xlu0 %1074
        %v1076 = vrcp.pop %v1075
        %v1077 = vmul.f32 %v1072, %v1076
        %v1078 = vpack.c.bf16 %v1077, %v1077
        %1079 = vrot.lane.b32.xlu0 %v904, 104
        %v1080 = vpop.permute.xlu0 %1079
        %v1082 = vsel %vm806, %v1078, 0
        %v1085 = vsel %vm842, %v1080, 0
        %1087 = vmatpush.bf16.msra.mxu0 0
        %1088 = vmatpush.bf16.msra.mxu0 0
        %1089 = vmatpush.bf16.msra.mxu0 0
        %1090 = vmatpush.bf16.msra.mxu0 0
        %1091 = vmatpush.bf16.msra.mxu0 0
        %1092 = vmatpush.bf16.msra.mxu0 0
        %1093 = vmatpush.bf16.msra.mxu0 0
        %1094 = vmatpush.bf16.msra.mxu0 %v1085
        %1095 = vmatmul.bf16.gmra.mxu0 %v1082
        %v1096 = vpop.f32.mrf.mxu0
        %v1097 = vadd.f32 0.0, %v1096
        %v1098 = vpop.f32.mrf.mxu0
        %1099 = vdwg.mxu0
        %v1100 = vpack.c.bf16 %v1097, %v1097
        %v1102 = vsel %vm806, %v1100, 0
        %v1105 = vsel %vm842, %v707, 0
        %1107 = vmatpush.bf16.msra.mxu0 0
        %1108 = vmatpush.bf16.msra.mxu0 0
        %1109 = vmatpush.bf16.msra.mxu0 0
        %1110 = vmatpush.bf16.msra.mxu0 0
        %1111 = vmatpush.bf16.msra.mxu0 0
        %1112 = vmatpush.bf16.msra.mxu0 0
        %1113 = vmatpush.bf16.msra.mxu0 0
        %1114 = vmatpush.bf16.msra.mxu0 %v1105
        %1115 = vmatmul.bf16.gmra.mxu0 %v1102
        %v1116 = vpop.f32.mrf.mxu0
        %v1117 = vadd.f32 0.0, %v1116
        %v1118 = vpop.f32.mrf.mxu0
        %1119 = vdwg.mxu0
        %v1120 = vadd.f32 %v1042, %v1117
        %v1121 = vadd.f32 %v691, %v1120
        %v1123 = vperm.slane %v711, 0
        %v1125 = vadd.f32 %v1121, %v1123
        %v1126 = vsel %vm730, %v1125, 0.0
        %1127 = vadd.xlane.f32.xlu0 %v1126
        %v1128 = vpop.xlane.xlu0 %1127
        %v1129 = vrcp.pop 32.0
        %v1130 = vmul.f32 32.0, %v1129
        %v1131 = vsub.f32 1.0, %v1130
        %v1132 = vmul.f32 %v1129, %v1131
        %v1133 = vadd.f32 %v1129, %v1132
        %vm1134 = vweird.f32 %v1129
        %v1135 = vsel %vm1134, %v1129, %v1133
        %v1136 = vmul.f32 %v1128, %v1135
        %v1137 = vsub.f32 %v1125, %v1136
        %v1138 = vmul.f32 %v1137, %v1137
        %v1139 = vsel %vm730, %v1138, 0.0
        %1140 = vadd.xlane.f32.xlu0 %v1139
        %v1141 = vpop.xlane.xlu0 %1140
        %v1142 = vmul.f32 %v1141, %v1135
        %v1143 = vadd.f32 %v1142, 1e-05
        %v1144 = vrsqrt.pop %v1143
        %v1145 = vmul.f32 %v1144, %v1143
        %v1146 = vmul.f32 %v1145, %v1144
        %v1147 = vmul.f32 0.5, %v1146
        %v1148 = vsub.f32 1.5, %v1147
        %v1149 = vmul.f32 %v1144, %v1148
        %vm1150 = vweird.f32 %v1143
        %vm1151 = vweird.f32 %v1144
        %vm1152 = vmor %vm1150, %vm1151
        %v1153 = vsel %vm1152, %v1144, %v1149
        %v1154 = vmul.f32 %v1137, %v1153
        %v1156 = vperm.slane %v712, 0
        %v1158 = vmul.f32 %v1154, %v1156
        %v1160 = vperm.slane %v713, 0
        %v1162 = vadd.f32 %v1158, %v1160
        %v1163 = vld [vmem:[%s11] sm:$0xf]
        %v1164 = vld [vmem:[%s11 + $0x4] sm:$0xf]
        %v1165 = vld [vmem:[%s11 + $0x8] sm:$0xf]
        %v1166 = vld [vmem:[%s11 + $0xc] sm:$0xf]
        %v1167 = vld [vmem:[#allocation12] sm:$0x1]
        %v1168 = vld [vmem:[%s13] sm:$0xf]
        %v1169 = vld [vmem:[%s13 + $0x4] sm:$0xf]
        %v1170 = vld [vmem:[%s13 + $0x8] sm:$0xf]
        %v1171 = vld [vmem:[%s13 + $0xc] sm:$0xf]
        %v1172 = vld [vmem:[%s13 + $0x10] sm:$0xf]
        %v1173 = vld [vmem:[%s13 + $0x14] sm:$0xf]
        %v1174 = vld [vmem:[%s13 + $0x18] sm:$0xf]
        %v1175 = vld [vmem:[%s13 + $0x1c] sm:$0xf]
        %v1176 = vld [vmem:[#allocation13] sm:$0x1]
        %v1177 = vld [vmem:[#allocation15] sm:$0x1]
        %v1178 = vld [vmem:[#allocation16] sm:$0x1]
        %v1179 = vpack.c.bf16 %v1162, %v1162
        %v1181 = vperm.slane %v1167, 0
        %v1187 = vunpack.c.l.b16 %v1163
        %v1188 = vunpack.c.l.b16 %v1164
        %v1189 = vunpack.c.l.b16 %v1165
        %v1190 = vunpack.c.l.b16 %v1166
        %v1191 = vpack.c.b16 %v1188, %v1187
        %v1192 = vpack.c.b16 %v1190, %v1189
        %v1196 = vsel %vm730, %v1179, 0
        %1198 = vmatpush.bf16.msra.mxu0 0
        %1199 = vmatpush.bf16.msra.mxu0 0
        %1200 = vmatpush.bf16.msra.mxu0 0
        %1201 = vmatpush.bf16.msra.mxu0 0
        %1202 = vmatpush.bf16.msra.mxu0 0
        %1203 = vmatpush.bf16.msra.mxu0 0
        %1204 = vmatpush.bf16.msra.mxu0 %v1192
        %1205 = vmatpush.bf16.msra.mxu0 %v1191
        %1206 = vmatmul.bf16.gmra.mxu0 %v1196
        %v1207 = vpop.f32.mrf.mxu0
        %v1208 = vadd.f32 %v1181, %v1207
        %v1209 = vpop.f32.mrf.mxu0
        %1210 = vdwg.mxu0
        %v1211 = vmax.f32 %v1208, 0.0
        %v1212 = vpack.c.bf16 %v1211, %v1211
        %v1214 = vperm.slane %v1176, 0
        %v1224 = vunpack.c.l.b16 %v1168
        %v1225 = vunpack.c.l.b16 %v1169
        %v1226 = vunpack.c.l.b16 %v1170
        %v1227 = vunpack.c.l.b16 %v1171
        %v1228 = vunpack.c.l.b16 %v1172
        %v1229 = vunpack.c.l.b16 %v1173
        %v1230 = vunpack.c.l.b16 %v1174
        %v1231 = vunpack.c.l.b16 %v1175
        %v1232 = vpack.c.b16 %v1225, %v1224
        %v1233 = vpack.c.b16 %v1227, %v1226
        %v1234 = vpack.c.b16 %v1229, %v1228
        %v1235 = vpack.c.b16 %v1231, %v1230
        %vm1240 = vcmask 523264
        %v1242 = vsel %vm1240, %v1212, 0
        %1244 = vmatpush.bf16.msra.mxu0 0
        %1245 = vmatpush.bf16.msra.mxu0 0
        %1246 = vmatpush.bf16.msra.mxu0 0
        %1247 = vmatpush.bf16.msra.mxu0 0
        %1248 = vmatpush.bf16.msra.mxu0 %v1235
        %1249 = vmatpush.bf16.msra.mxu0 %v1234
        %1250 = vmatpush.bf16.msra.mxu0 %v1233
        %1251 = vmatpush.bf16.msra.mxu0 %v1232
        %1252 = vmatmul.bf16.gmra.mxu0 %v1242
        %v1253 = vpop.f32.mrf.mxu0
        %v1254 = vadd.f32 %v1214, %v1253
        %v1255 = vpop.f32.mrf.mxu0
        %1256 = vdwg.mxu0
        %v1257 = vadd.f32 %v1162, %v1254
        %v1258 = vsel %vm730, %v1257, 0.0
        %1259 = vadd.xlane.f32.xlu0 %v1258
        %v1260 = vpop.xlane.xlu0 %1259
        %v1261 = vmul.f32 %v1260, %v1135
        %v1262 = vsub.f32 %v1257, %v1261
        %v1263 = vmul.f32 %v1262, %v1262
        %v1264 = vsel %vm730, %v1263, 0.0
        %1265 = vadd.xlane.f32.xlu0 %v1264
        %v1266 = vpop.xlane.xlu0 %1265
        %v1267 = vmul.f32 %v1266, %v1135
        %v1268 = vadd.f32 %v1267, 1e-05
        %v1269 = vrsqrt.pop %v1268
        %v1270 = vmul.f32 %v1269, %v1268
        %v1271 = vmul.f32 %v1270, %v1269
        %v1272 = vmul.f32 0.5, %v1271
        %v1273 = vsub.f32 1.5, %v1272
        %v1274 = vmul.f32 %v1269, %v1273
        %vm1275 = vweird.f32 %v1268
        %vm1276 = vweird.f32 %v1269
        %vm1277 = vmor %vm1275, %vm1276
        %v1278 = vsel %vm1277, %v1269, %v1274
        %v1279 = vmul.f32 %v1262, %v1278
        %v1281 = vperm.slane %v1177, 0
        %v1283 = vmul.f32 %v1279, %v1281
        %v1285 = vperm.slane %v1178, 0
        %v1287 = vadd.f32 %v1283, %v1285
        %1288 = vst.msk [vmem:[%s689] sm:$0xff] %vm730, %v1287
        %p1289 = scmp.lt.s32.totalorder %s34, 1
        %s1290 = scalar_select %p1289, %s34, 1
        %s1291 = smul.addr %s1290, 8
        %s1292 = scalar_lea.vmem %s17, %s1291
        // Predicated region
        $region129: #{transformer_seq2seq.6} parent=87 // pred_check
          %p1293 = pneg %p414
        $region130: #{transformer_seq2seq.6} parent=87 // pred_check_branch
          %1295 = sbr.rel (%p1293) target = $region132
        $region131: #{transformer_seq2seq.6} parent=87 // pred_region
          _
        $region132: #{transformer_seq2seq.6} parent=87 // pred_fallthru
          _
      $region88: #{transformer_seq2seq.6} parent=5 // pred_fallthru
        _
      %p1296 = scmp.le.s32.totalorder 2, %s29
      // Predicated region
      $region133: #{transformer_seq2seq.6} parent=5 // pred_check
        %p1297 = pneg %p1296
      $region134: #{transformer_seq2seq.6} parent=5 // pred_check_branch
        %1299 = sbr.rel (%p1297) target = $region136
      $region135: #{transformer_seq2seq.6} parent=5 // pred_region
        %s1300 = ssub.s32 %s29, 2
        // Predicated region
        $region137: #{transformer_seq2seq.6} parent=135 // pred_check
          %p1301 = pneg %p420
        $region138: #{transformer_seq2seq.6} parent=135 // pred_check_branch
          %1303 = sbr.rel (%p1301) target = $region140
        $region139: #{transformer_seq2seq.6} parent=135 // pred_region
          %p1304 = scmp.lt.s32.totalorder %s35, 1
          %s1305 = scalar_select %p1304, %s35, 1
          %s1306 = smul.addr %s1305, 8
          %s1307 = scalar_lea.vmem %s17, %s1306
        $region140: #{transformer_seq2seq.6} parent=135 // pred_fallthru
          _
      $region136: #{transformer_seq2seq.6} parent=5 // pred_fallthru
        _
    $region6: #{transformer_seq2seq.6} parent=1 // loop_footer
      %s33 = sadd.s32 1, %s29
    $region7: #{transformer_seq2seq.6} parent=1 // loop_footer_branch
      %28 = sbr.rel target = $region3
    $region8: #{transformer_seq2seq.6} parent=1 // loop_exit
      _
    %1308 = vsyncpa [#allocation3], 1
    %s1309 = scalar_lea.sflag [#allocation3], 1
    %1310 = vsyncpa %s1309, 1
    %1311 = vsyncpa [#allocation5], 1
    %1312 = vsyncpa [#allocation8], 1
    %1313 = vsyncpa [#allocation11], 1
    %1314 = vsyncpa [#allocation14], 1
    %1315 = vsyncpa [#allocation17], 1

// kernel: transformer_seq2seq.8
$region0: #{transformer_seq2seq.8}
  #allocation0 [shape = 'u32[]', space=smem, size = 0x4, offset = 0x4, fixed_abs, tag = 'smem constant byte address 0x4 - core index']
  #allocation1 [shape = 'u32[72,128]{1,0:T(1,128)}', space=vmem, size = 0x9000, scoped, tag = 'internal scratch']
  %s0 = inlined_call_operand.vmem [shape: f32[2,8,32], index: 0, kind: input, shape index: {}]
  %s1 = inlined_call_operand.vmem [shape: f32[2,8,32], index: 1, kind: input, shape index: {}]
  %s2 = inlined_call_operand.vmem [shape: bf16[32,32], index: 2, kind: input, shape index: {}]
  %s3 = inlined_call_operand.vmem [shape: bf16[32,32], index: 3, kind: input, shape index: {}]
  %s4 = inlined_call_operand.vmem [shape: bf16[32,32], index: 4, kind: input, shape index: {}]
  %s5 = inlined_call_operand.vmem [shape: bf16[32,32], index: 5, kind: input, shape index: {}]
  %s6 = inlined_call_operand.hbm [shape: f32[1,32], index: 6, kind: input, shape index: {}]
  %s7 = inlined_call_operand.hbm [shape: f32[1,32], index: 7, kind: input, shape index: {}]
  %s8 = inlined_call_operand.hbm [shape: f32[1,32], index: 8, kind: input, shape index: {}]
  %s9 = inlined_call_operand.hbm [shape: f32[1,32], index: 9, kind: input, shape index: {}]
  %s10 = inlined_call_operand.hbm [shape: f32[1,32], index: 10, kind: input, shape index: {}]
  %s11 = inlined_call_operand.hbm [shape: f32[1,32], index: 11, kind: input, shape index: {}]
  %s12 = inlined_call_operand.vmem [shape: bf16[32,32], index: 12, kind: input, shape index: {}]
  %s13 = inlined_call_operand.vmem [shape: bf16[32,32], index: 13, kind: input, shape index: {}]
  %s14 = inlined_call_operand.vmem [shape: bf16[32,32], index: 14, kind: input, shape index: {}]
  %s15 = inlined_call_operand.vmem [shape: bf16[32,32], index: 15, kind: input, shape index: {}]
  %s16 = inlined_call_operand.hbm [shape: f32[1,32], index: 16, kind: input, shape index: {}]
  %s17 = inlined_call_operand.hbm [shape: f32[1,32], index: 17, kind: input, shape index: {}]
  %s18 = inlined_call_operand.hbm [shape: f32[1,32], index: 18, kind: input, shape index: {}]
  %s19 = inlined_call_operand.hbm [shape: f32[1,32], index: 19, kind: input, shape index: {}]
  %s20 = inlined_call_operand.hbm [shape: f32[1,32], index: 20, kind: input, shape index: {}]
  %s21 = inlined_call_operand.hbm [shape: f32[1,32], index: 21, kind: input, shape index: {}]
  %s22 = inlined_call_operand.vmem [shape: bf16[32,64], index: 22, kind: input, shape index: {}]
  %s23 = inlined_call_operand.hbm [shape: f32[1,64], index: 23, kind: input, shape index: {}]
  %s24 = inlined_call_operand.vmem [shape: bf16[64,32], index: 24, kind: input, shape index: {}]
  %s25 = inlined_call_operand.hbm [shape: f32[1,32], index: 25, kind: input, shape index: {}]
  %s26 = inlined_call_operand.hbm [shape: f32[1,32], index: 26, kind: input, shape index: {}]
  %s27 = inlined_call_operand.hbm [shape: f32[1,32], index: 27, kind: input, shape index: {}]
  %s28 = inlined_call_operand.vmem [shape: f32[2,8,32], index: 28, kind: output, shape index: {}]
  %s29 = sld [smem:[#allocation0]]
  $region209: #{transformer_seq2seq.8} parent=0
    _
  %s31 = ssub.s32 1, %s29
  %s32 = scalar_select 0, %s31, %s29
  $region1: #{transformer_seq2seq.8} parent=0
    #allocation2 [shape = 'u8[512]{0}', space=vmem, size = 0x400, scoped, tag = 'input window, operand 6, single buffered']
    #allocation3 [shape = 's32[2]{0}', space=sflag, size = 0x8, scoped, tag = 'scoped memory for transformer_seq2seq.8']
    #allocation4 [shape = 'u8[512]{0}', space=vmem, size = 0x400, scoped, tag = 'input window, operand 7, single buffered']
    #allocation5 [shape = 's32[1]{0}', space=sflag, size = 0x4, scoped, tag = 'scoped memory for transformer_seq2seq.8']
    #allocation6 [shape = 'u8[512]{0}', space=vmem, size = 0x400, scoped, tag = 'input window, operand 8, single buffered']
    #allocation7 [shape = 'u8[512]{0}', space=vmem, size = 0x400, scoped, tag = 'input window, operand 9, single buffered']
    #allocation8 [shape = 's32[1]{0}', space=sflag, size = 0x4, scoped, tag = 'scoped memory for transformer_seq2seq.8']
    #allocation9 [shape = 'u8[512]{0}', space=vmem, size = 0x400, scoped, tag = 'input window, operand 10, single buffered']
    #allocation10 [shape = 'u8[512]{0}', space=vmem, size = 0x400, scoped, tag = 'input window, operand 11, single buffered']
    #allocation11 [shape = 's32[1]{0}', space=sflag, size = 0x4, scoped, tag = 'scoped memory for transformer_seq2seq.8']
    #allocation12 [shape = 'u8[512]{0}', space=vmem, size = 0x400, scoped, tag = 'input window, operand 16, single buffered']
    #allocation13 [shape = 'u8[512]{0}', space=vmem, size = 0x400, scoped, tag = 'input window, operand 17, single buffered']
    #allocation14 [shape = 's32[1]{0}', space=sflag, size = 0x4, scoped, tag = 'scoped memory for transformer_seq2seq.8']
    #allocation15 [shape = 'u8[512]{0}', space=vmem, size = 0x400, scoped, tag = 'input window, operand 18, single buffered']
    #allocation16 [shape = 'u8[512]{0}', space=vmem, size = 0x400, scoped, tag = 'input window, operand 19, single buffered']
    #allocation17 [shape = 's32[1]{0}', space=sflag, size = 0x4, scoped, tag = 'scoped memory for transformer_seq2seq.8']
    #allocation18 [shape = 'u8[512]{0}', space=vmem, size = 0x400, scoped, tag = 'input window, operand 20, single buffered']
    #allocation19 [shape = 'u8[512]{0}', space=vmem, size = 0x400, scoped, tag = 'input window, operand 21, single buffered']
    #allocation20 [shape = 's32[1]{0}', space=sflag, size = 0x4, scoped, tag = 'scoped memory for transformer_seq2seq.8']
    #allocation21 [shape = 'u8[512]{0}', space=vmem, size = 0x400, scoped, tag = 'input window, operand 23, single buffered']
    #allocation22 [shape = 'u8[512]{0}', space=vmem, size = 0x400, scoped, tag = 'input window, operand 25, single buffered']
    #allocation23 [shape = 's32[1]{0}', space=sflag, size = 0x4, scoped, tag = 'scoped memory for transformer_seq2seq.8']
    #allocation24 [shape = 'u8[512]{0}', space=vmem, size = 0x400, scoped, tag = 'input window, operand 26, single buffered']
    #allocation25 [shape = 'u8[512]{0}', space=vmem, size = 0x400, scoped, tag = 'input window, operand 27, single buffered']
    #allocation26 [shape = 's32[1]{0}', space=sflag, size = 0x4, scoped, tag = 'scoped memory for transformer_seq2seq.8']
    %33 = vsyncpa [#allocation3], 0
    %34 = vsyncpa [#allocation5], 0
    %35 = vsyncpa [#allocation8], 0
    %36 = vsyncpa [#allocation11], 0
    %37 = vsyncpa [#allocation14], 0
    %38 = vsyncpa [#allocation17], 0
    %39 = vsyncpa [#allocation20], 0
    %40 = vsyncpa [#allocation23], 0
    %41 = vsyncpa [#allocation26], 0
    loop: start=0, step=1, limit=4
    $region2: #{transformer_seq2seq.8} parent=1 // loop_pre_header
      _
    $region3: #{transformer_seq2seq.8} parent=1 // loop_header
      %s43 = sphi 0, %s47
      %p44 = scmp.ge.s32.totalorder %s43, 4
      %s53 = sphi 0, %s55
      %s56 = sphi 0, %s53
      %s57 = sphi 0, %s56
      %s73 = sphi 0, %s57
      %s79 = sphi 0, %s81
      %s82 = sphi 0, %s79
      %s83 = sphi 0, %s82
      %s99 = sphi 0, %s83
      %s103 = sphi 0, %s103
      %s105 = sphi 0, %s103
      %s106 = sphi 0, %s105
      %s120 = sphi 0, %s106
      %s124 = sphi 0, %s124
      %s126 = sphi 0, %s124
      %s127 = sphi 0, %s126
      %s141 = sphi 0, %s127
      %s145 = sphi 0, %s145
      %s147 = sphi 0, %s145
      %s148 = sphi 0, %s147
      %s162 = sphi 0, %s148
      %s166 = sphi 0, %s166
      %s168 = sphi 0, %s166
      %s169 = sphi 0, %s168
      %s183 = sphi 0, %s169
      %s187 = sphi 0, %s187
      %s189 = sphi 0, %s187
      %s190 = sphi 0, %s189
      %s204 = sphi 0, %s190
      %s208 = sphi 0, %s208
      %s210 = sphi 0, %s208
      %s211 = sphi 0, %s210
      %s225 = sphi 0, %s211
      %s229 = sphi 0, %s229
      %s231 = sphi 0, %s229
      %s232 = sphi 0, %s231
      %s246 = sphi 0, %s232
      %s250 = sphi 0, %s250
      %s252 = sphi 0, %s250
      %s253 = sphi 0, %s252
      %s267 = sphi 0, %s253
      %s271 = sphi 0, %s271
      %s273 = sphi 0, %s271
      %s274 = sphi 0, %s273
      %s288 = sphi 0, %s274
      %s292 = sphi 0, %s292
      %s294 = sphi 0, %s292
      %s295 = sphi 0, %s294
      %s309 = sphi 0, %s295
      %s313 = sphi 0, %s313
      %s315 = sphi 0, %s313
      %s316 = sphi 0, %s315
      %s330 = sphi 0, %s316
      %s334 = sphi 0, %s334
      %s336 = sphi 0, %s334
      %s337 = sphi 0, %s336
      %s351 = sphi 0, %s337
      %s355 = sphi 0, %s355
      %s357 = sphi 0, %s355
      %s358 = sphi 0, %s357
      %s372 = sphi 0, %s358
      %s376 = sphi 0, %s376
      %s378 = sphi 0, %s376
      %s379 = sphi 0, %s378
      %s393 = sphi 0, %s379
      %s397 = sphi 0, %s397
      %s399 = sphi 0, %s397
      %s400 = sphi 0, %s399
      %s414 = sphi 0, %s400
      %s418 = sphi 0, %s418
      %s420 = sphi 0, %s418
      %s421 = sphi 0, %s420
      %s435 = sphi 0, %s421
      %s439 = sphi 0, %s439
      %s441 = sphi 0, %s439
      %s442 = sphi 0, %s441
      %s456 = sphi 0, %s442
      %s460 = sphi 0, %s460
      %s462 = sphi 0, %s460
      %s463 = sphi 0, %s462
      %s477 = sphi 0, %s463
      %s481 = sphi 0, %s481
      %s483 = sphi 0, %s481
      %s484 = sphi 0, %s483
      %s498 = sphi 0, %s484
      %s502 = sphi 0, %s502
      %s504 = sphi 0, %s502
      %s505 = sphi 0, %s504
      %s519 = sphi 0, %s505
      %s523 = sphi 0, %s523
      %s525 = sphi 0, %s523
      %s526 = sphi 0, %s525
      %s540 = sphi 0, %s526
      %s544 = sphi 0, %s544
      %s546 = sphi 0, %s544
      %s547 = sphi 0, %s546
      %s561 = sphi 0, %s547
      %s565 = sphi 0, %s565
      %s567 = sphi 0, %s565
      %s568 = sphi 0, %s567
      %s582 = sphi 0, %s568
      %s586 = sphi 0, %s586
      %s588 = sphi 0, %s586
      %s589 = sphi 0, %s588
      %s603 = sphi 0, %s589
      %s607 = sphi 0, %s607
      %s609 = sphi 0, %s607
      %s610 = sphi 0, %s609
      %s624 = sphi 0, %s610
      %s628 = sphi 0, %s628
      %s630 = sphi 0, %s628
      %s631 = sphi 0, %s630
      %s645 = sphi 0, %s631
      %s651 = sphi 0, %s653
      %s654 = sphi 0, %s651
      %s655 = sphi 0, %s654
      %s671 = sphi 0, %s655
    $region4: #{transformer_seq2seq.8} parent=1 // loop_header_branch
      %46 = sbr.rel (%p44) target = $region8
    $region5: #{transformer_seq2seq.8} parent=1 // loop_body
      %s48 = ssub.s32 %s43, 1
      %s49 = ssub.s32 %s43, 2
      %s50 = sadd.s32 %s43, 1
      %s51 = ssub.s32 %s43, %s50
      %p52 = scmp.eq.s32.totalorder %s51, 0
      %s54 = sadd.s32 %s53, 1
      %s55 = scalar_select %p52, %s53, %s54
      %p58 = pneg %p52
      %p59 = scmp.eq.s32.totalorder %s43, 1
      %p60 = por %p58, %p59
      %p61 = scmp.ne.s32.totalorder %s53, %s56
      %p62 = scmp.eq.s32.totalorder %s43, 0
      %p63 = por %p61, %p62
      %p64 = scmp.ne.s32.totalorder %s53, %s56
      %p65 = scmp.eq.s32.totalorder %s48, 1
      %p66 = por %p64, %p65
      %p67 = scmp.ne.s32.totalorder %s56, %s57
      %p68 = scmp.eq.s32.totalorder %s48, 0
      %p69 = por %p67, %p68
      %p70 = scmp.ne.s32.totalorder %s56, %s57
      %p71 = scmp.eq.s32.totalorder %s49, 1
      %p72 = por %p70, %p71
      %p74 = scmp.ne.s32.totalorder %s57, %s73
      %p75 = scmp.eq.s32.totalorder %s49, 0
      %p76 = por %p74, %p75
      %s77 = ssub.s32 %s43, %s50
      %p78 = scmp.eq.s32.totalorder %s77, 0
      %s80 = sadd.s32 %s79, 1
      %s81 = scalar_select %p78, %s79, %s80
      %p84 = pneg %p78
      %p85 = scmp.eq.s32.totalorder %s43, 1
      %p86 = por %p84, %p85
      %p87 = scmp.ne.s32.totalorder %s79, %s82
      %p88 = scmp.eq.s32.totalorder %s43, 0
      %p89 = por %p87, %p88
      %p90 = scmp.ne.s32.totalorder %s79, %s82
      %p91 = scmp.eq.s32.totalorder %s48, 1
      %p92 = por %p90, %p91
      %p93 = scmp.ne.s32.totalorder %s82, %s83
      %p94 = scmp.eq.s32.totalorder %s48, 0
      %p95 = por %p93, %p94
      %p96 = scmp.ne.s32.totalorder %s82, %s83
      %p97 = scmp.eq.s32.totalorder %s49, 1
      %p98 = por %p96, %p97
      %p100 = scmp.ne.s32.totalorder %s83, %s99
      %p101 = scmp.eq.s32.totalorder %s49, 0
      %p102 = por %p100, %p101
      %s104 = sadd.s32 %s103, 1
      %p107 = scmp.eq.s32.totalorder %s43, 1
      %p108 = scmp.ne.s32.totalorder %s103, %s105
      %p109 = scmp.eq.s32.totalorder %s43, 0
      %p110 = por %p108, %p109
      %p111 = scmp.ne.s32.totalorder %s103, %s105
      %p112 = scmp.eq.s32.totalorder %s48, 1
      %p113 = por %p111, %p112
      %p114 = scmp.ne.s32.totalorder %s105, %s106
      %p115 = scmp.eq.s32.totalorder %s48, 0
      %p116 = por %p114, %p115
      %p117 = scmp.ne.s32.totalorder %s105, %s106
      %p118 = scmp.eq.s32.totalorder %s49, 1
      %p119 = por %p117, %p118
      %p121 = scmp.ne.s32.totalorder %s106, %s120
      %p122 = scmp.eq.s32.totalorder %s49, 0
      %p123 = por %p121, %p122
      %s125 = sadd.s32 %s124, 1
      %p128 = scmp.eq.s32.totalorder %s43, 1
      %p129 = scmp.ne.s32.totalorder %s124, %s126
      %p130 = scmp.eq.s32.totalorder %s43, 0
      %p131 = por %p129, %p130
      %p132 = scmp.ne.s32.totalorder %s124, %s126
      %p133 = scmp.eq.s32.totalorder %s48, 1
      %p134 = por %p132, %p133
      %p135 = scmp.ne.s32.totalorder %s126, %s127
      %p136 = scmp.eq.s32.totalorder %s48, 0
      %p137 = por %p135, %p136
      %p138 = scmp.ne.s32.totalorder %s126, %s127
      %p139 = scmp.eq.s32.totalorder %s49, 1
      %p140 = por %p138, %p139
      %p142 = scmp.ne.s32.totalorder %s127, %s141
      %p143 = scmp.eq.s32.totalorder %s49, 0
      %p144 = por %p142, %p143
      %s146 = sadd.s32 %s145, 1
      %p149 = scmp.eq.s32.totalorder %s43, 1
      %p150 = scmp.ne.s32.totalorder %s145, %s147
      %p151 = scmp.eq.s32.totalorder %s43, 0
      %p152 = por %p150, %p151
      %p153 = scmp.ne.s32.totalorder %s145, %s147
      %p154 = scmp.eq.s32.totalorder %s48, 1
      %p155 = por %p153, %p154
      %p156 = scmp.ne.s32.totalorder %s147, %s148
      %p157 = scmp.eq.s32.totalorder %s48, 0
      %p158 = por %p156, %p157
      %p159 = scmp.ne.s32.totalorder %s147, %s148
      %p160 = scmp.eq.s32.totalorder %s49, 1
      %p161 = por %p159, %p160
      %p163 = scmp.ne.s32.totalorder %s148, %s162
      %p164 = scmp.eq.s32.totalorder %s49, 0
      %p165 = por %p163, %p164
      %s167 = sadd.s32 %s166, 1
      %p170 = scmp.eq.s32.totalorder %s43, 1
      %p171 = scmp.ne.s32.totalorder %s166, %s168
      %p172 = scmp.eq.s32.totalorder %s43, 0
      %p173 = por %p171, %p172
      %p174 = scmp.ne.s32.totalorder %s166, %s168
      %p175 = scmp.eq.s32.totalorder %s48, 1
      %p176 = por %p174, %p175
      %p177 = scmp.ne.s32.totalorder %s168, %s169
      %p178 = scmp.eq.s32.totalorder %s48, 0
      %p179 = por %p177, %p178
      %p180 = scmp.ne.s32.totalorder %s168, %s169
      %p181 = scmp.eq.s32.totalorder %s49, 1
      %p182 = por %p180, %p181
      %p184 = scmp.ne.s32.totalorder %s169, %s183
      %p185 = scmp.eq.s32.totalorder %s49, 0
      %p186 = por %p184, %p185
      %s188 = sadd.s32 %s187, 1
      %p191 = scmp.eq.s32.totalorder %s43, 1
      %p192 = scmp.ne.s32.totalorder %s187, %s189
      %p193 = scmp.eq.s32.totalorder %s43, 0
      %p194 = por %p192, %p193
      %p195 = scmp.ne.s32.totalorder %s187, %s189
      %p196 = scmp.eq.s32.totalorder %s48, 1
      %p197 = por %p195, %p196
      %p198 = scmp.ne.s32.totalorder %s189, %s190
      %p199 = scmp.eq.s32.totalorder %s48, 0
      %p200 = por %p198, %p199
      %p201 = scmp.ne.s32.totalorder %s189, %s190
      %p202 = scmp.eq.s32.totalorder %s49, 1
      %p203 = por %p201, %p202
      %p205 = scmp.ne.s32.totalorder %s190, %s204
      %p206 = scmp.eq.s32.totalorder %s49, 0
      %p207 = por %p205, %p206
      %s209 = sadd.s32 %s208, 1
      %p212 = scmp.eq.s32.totalorder %s43, 1
      %p213 = scmp.ne.s32.totalorder %s208, %s210
      %p214 = scmp.eq.s32.totalorder %s43, 0
      %p215 = por %p213, %p214
      %p216 = scmp.ne.s32.totalorder %s208, %s210
      %p217 = scmp.eq.s32.totalorder %s48, 1
      %p218 = por %p216, %p217
      %p219 = scmp.ne.s32.totalorder %s210, %s211
      %p220 = scmp.eq.s32.totalorder %s48, 0
      %p221 = por %p219, %p220
      %p222 = scmp.ne.s32.totalorder %s210, %s211
      %p223 = scmp.eq.s32.totalorder %s49, 1
      %p224 = por %p222, %p223
      %p226 = scmp.ne.s32.totalorder %s211, %s225
      %p227 = scmp.eq.s32.totalorder %s49, 0
      %p228 = por %p226, %p227
      %s230 = sadd.s32 %s229, 1
      %p233 = scmp.eq.s32.totalorder %s43, 1
      %p234 = scmp.ne.s32.totalorder %s229, %s231
      %p235 = scmp.eq.s32.totalorder %s43, 0
      %p236 = por %p234, %p235
      %p237 = scmp.ne.s32.totalorder %s229, %s231
      %p238 = scmp.eq.s32.totalorder %s48, 1
      %p239 = por %p237, %p238
      %p240 = scmp.ne.s32.totalorder %s231, %s232
      %p241 = scmp.eq.s32.totalorder %s48, 0
      %p242 = por %p240, %p241
      %p243 = scmp.ne.s32.totalorder %s231, %s232
      %p244 = scmp.eq.s32.totalorder %s49, 1
      %p245 = por %p243, %p244
      %p247 = scmp.ne.s32.totalorder %s232, %s246
      %p248 = scmp.eq.s32.totalorder %s49, 0
      %p249 = por %p247, %p248
      %s251 = sadd.s32 %s250, 1
      %p254 = scmp.eq.s32.totalorder %s43, 1
      %p255 = scmp.ne.s32.totalorder %s250, %s252
      %p256 = scmp.eq.s32.totalorder %s43, 0
      %p257 = por %p255, %p256
      %p258 = scmp.ne.s32.totalorder %s250, %s252
      %p259 = scmp.eq.s32.totalorder %s48, 1
      %p260 = por %p258, %p259
      %p261 = scmp.ne.s32.totalorder %s252, %s253
      %p262 = scmp.eq.s32.totalorder %s48, 0
      %p263 = por %p261, %p262
      %p264 = scmp.ne.s32.totalorder %s252, %s253
      %p265 = scmp.eq.s32.totalorder %s49, 1
      %p266 = por %p264, %p265
      %p268 = scmp.ne.s32.totalorder %s253, %s267
      %p269 = scmp.eq.s32.totalorder %s49, 0
      %p270 = por %p268, %p269
      %s272 = sadd.s32 %s271, 1
      %p275 = scmp.eq.s32.totalorder %s43, 1
      %p276 = scmp.ne.s32.totalorder %s271, %s273
      %p277 = scmp.eq.s32.totalorder %s43, 0
      %p278 = por %p276, %p277
      %p279 = scmp.ne.s32.totalorder %s271, %s273
      %p280 = scmp.eq.s32.totalorder %s48, 1
      %p281 = por %p279, %p280
      %p282 = scmp.ne.s32.totalorder %s273, %s274
      %p283 = scmp.eq.s32.totalorder %s48, 0
      %p284 = por %p282, %p283
      %p285 = scmp.ne.s32.totalorder %s273, %s274
      %p286 = scmp.eq.s32.totalorder %s49, 1
      %p287 = por %p285, %p286
      %p289 = scmp.ne.s32.totalorder %s274, %s288
      %p290 = scmp.eq.s32.totalorder %s49, 0
      %p291 = por %p289, %p290
      %s293 = sadd.s32 %s292, 1
      %p296 = scmp.eq.s32.totalorder %s43, 1
      %p297 = scmp.ne.s32.totalorder %s292, %s294
      %p298 = scmp.eq.s32.totalorder %s43, 0
      %p299 = por %p297, %p298
      %p300 = scmp.ne.s32.totalorder %s292, %s294
      %p301 = scmp.eq.s32.totalorder %s48, 1
      %p302 = por %p300, %p301
      %p303 = scmp.ne.s32.totalorder %s294, %s295
      %p304 = scmp.eq.s32.totalorder %s48, 0
      %p305 = por %p303, %p304
      %p306 = scmp.ne.s32.totalorder %s294, %s295
      %p307 = scmp.eq.s32.totalorder %s49, 1
      %p308 = por %p306, %p307
      %p310 = scmp.ne.s32.totalorder %s295, %s309
      %p311 = scmp.eq.s32.totalorder %s49, 0
      %p312 = por %p310, %p311
      %s314 = sadd.s32 %s313, 1
      %p317 = scmp.eq.s32.totalorder %s43, 1
      %p318 = scmp.ne.s32.totalorder %s313, %s315
      %p319 = scmp.eq.s32.totalorder %s43, 0
      %p320 = por %p318, %p319
      %p321 = scmp.ne.s32.totalorder %s313, %s315
      %p322 = scmp.eq.s32.totalorder %s48, 1
      %p323 = por %p321, %p322
      %p324 = scmp.ne.s32.totalorder %s315, %s316
      %p325 = scmp.eq.s32.totalorder %s48, 0
      %p326 = por %p324, %p325
      %p327 = scmp.ne.s32.totalorder %s315, %s316
      %p328 = scmp.eq.s32.totalorder %s49, 1
      %p329 = por %p327, %p328
      %p331 = scmp.ne.s32.totalorder %s316, %s330
      %p332 = scmp.eq.s32.totalorder %s49, 0
      %p333 = por %p331, %p332
      %s335 = sadd.s32 %s334, 1
      %p338 = scmp.eq.s32.totalorder %s43, 1
      %p339 = scmp.ne.s32.totalorder %s334, %s336
      %p340 = scmp.eq.s32.totalorder %s43, 0
      %p341 = por %p339, %p340
      %p342 = scmp.ne.s32.totalorder %s334, %s336
      %p343 = scmp.eq.s32.totalorder %s48, 1
      %p344 = por %p342, %p343
      %p345 = scmp.ne.s32.totalorder %s336, %s337
      %p346 = scmp.eq.s32.totalorder %s48, 0
      %p347 = por %p345, %p346
      %p348 = scmp.ne.s32.totalorder %s336, %s337
      %p349 = scmp.eq.s32.totalorder %s49, 1
      %p350 = por %p348, %p349
      %p352 = scmp.ne.s32.totalorder %s337, %s351
      %p353 = scmp.eq.s32.totalorder %s49, 0
      %p354 = por %p352, %p353
      %s356 = sadd.s32 %s355, 1
      %p359 = scmp.eq.s32.totalorder %s43, 1
      %p360 = scmp.ne.s32.totalorder %s355, %s357
      %p361 = scmp.eq.s32.totalorder %s43, 0
      %p362 = por %p360, %p361
      %p363 = scmp.ne.s32.totalorder %s355, %s357
      %p364 = scmp.eq.s32.totalorder %s48, 1
      %p365 = por %p363, %p364
      %p366 = scmp.ne.s32.totalorder %s357, %s358
      %p367 = scmp.eq.s32.totalorder %s48, 0
      %p368 = por %p366, %p367
      %p369 = scmp.ne.s32.totalorder %s357, %s358
      %p370 = scmp.eq.s32.totalorder %s49, 1
      %p371 = por %p369, %p370
      %p373 = scmp.ne.s32.totalorder %s358, %s372
      %p374 = scmp.eq.s32.totalorder %s49, 0
      %p375 = por %p373, %p374
      %s377 = sadd.s32 %s376, 1
      %p380 = scmp.eq.s32.totalorder %s43, 1
      %p381 = scmp.ne.s32.totalorder %s376, %s378
      %p382 = scmp.eq.s32.totalorder %s43, 0
      %p383 = por %p381, %p382
      %p384 = scmp.ne.s32.totalorder %s376, %s378
      %p385 = scmp.eq.s32.totalorder %s48, 1
      %p386 = por %p384, %p385
      %p387 = scmp.ne.s32.totalorder %s378, %s379
      %p388 = scmp.eq.s32.totalorder %s48, 0
      %p389 = por %p387, %p388
      %p390 = scmp.ne.s32.totalorder %s378, %s379
      %p391 = scmp.eq.s32.totalorder %s49, 1
      %p392 = por %p390, %p391
      %p394 = scmp.ne.s32.totalorder %s379, %s393
      %p395 = scmp.eq.s32.totalorder %s49, 0
      %p396 = por %p394, %p395
      %s398 = sadd.s32 %s397, 1
      %p401 = scmp.eq.s32.totalorder %s43, 1
      %p402 = scmp.ne.s32.totalorder %s397, %s399
      %p403 = scmp.eq.s32.totalorder %s43, 0
      %p404 = por %p402, %p403
      %p405 = scmp.ne.s32.totalorder %s397, %s399
      %p406 = scmp.eq.s32.totalorder %s48, 1
      %p407 = por %p405, %p406
      %p408 = scmp.ne.s32.totalorder %s399, %s400
      %p409 = scmp.eq.s32.totalorder %s48, 0
      %p410 = por %p408, %p409
      %p411 = scmp.ne.s32.totalorder %s399, %s400
      %p412 = scmp.eq.s32.totalorder %s49, 1
      %p413 = por %p411, %p412
      %p415 = scmp.ne.s32.totalorder %s400, %s414
      %p416 = scmp.eq.s32.totalorder %s49, 0
      %p417 = por %p415, %p416
      %s419 = sadd.s32 %s418, 1
      %p422 = scmp.eq.s32.totalorder %s43, 1
      %p423 = scmp.ne.s32.totalorder %s418, %s420
      %p424 = scmp.eq.s32.totalorder %s43, 0
      %p425 = por %p423, %p424
      %p426 = scmp.ne.s32.totalorder %s418, %s420
      %p427 = scmp.eq.s32.totalorder %s48, 1
      %p428 = por %p426, %p427
      %p429 = scmp.ne.s32.totalorder %s420, %s421
      %p430 = scmp.eq.s32.totalorder %s48, 0
      %p431 = por %p429, %p430
      %p432 = scmp.ne.s32.totalorder %s420, %s421
      %p433 = scmp.eq.s32.totalorder %s49, 1
      %p434 = por %p432, %p433
      %p436 = scmp.ne.s32.totalorder %s421, %s435
      %p437 = scmp.eq.s32.totalorder %s49, 0
      %p438 = por %p436, %p437
      %s440 = sadd.s32 %s439, 1
      %p443 = scmp.eq.s32.totalorder %s43, 1
      %p444 = scmp.ne.s32.totalorder %s439, %s441
      %p445 = scmp.eq.s32.totalorder %s43, 0
      %p446 = por %p444, %p445
      %p447 = scmp.ne.s32.totalorder %s439, %s441
      %p448 = scmp.eq.s32.totalorder %s48, 1
      %p449 = por %p447, %p448
      %p450 = scmp.ne.s32.totalorder %s441, %s442
      %p451 = scmp.eq.s32.totalorder %s48, 0
      %p452 = por %p450, %p451
      %p453 = scmp.ne.s32.totalorder %s441, %s442
      %p454 = scmp.eq.s32.totalorder %s49, 1
      %p455 = por %p453, %p454
      %p457 = scmp.ne.s32.totalorder %s442, %s456
      %p458 = scmp.eq.s32.totalorder %s49, 0
      %p459 = por %p457, %p458
      %s461 = sadd.s32 %s460, 1
      %p464 = scmp.eq.s32.totalorder %s43, 1
      %p465 = scmp.ne.s32.totalorder %s460, %s462
      %p466 = scmp.eq.s32.totalorder %s43, 0
      %p467 = por %p465, %p466
      %p468 = scmp.ne.s32.totalorder %s460, %s462
      %p469 = scmp.eq.s32.totalorder %s48, 1
      %p470 = por %p468, %p469
      %p471 = scmp.ne.s32.totalorder %s462, %s463
      %p472 = scmp.eq.s32.totalorder %s48, 0
      %p473 = por %p471, %p472
      %p474 = scmp.ne.s32.totalorder %s462, %s463
      %p475 = scmp.eq.s32.totalorder %s49, 1
      %p476 = por %p474, %p475
      %p478 = scmp.ne.s32.totalorder %s463, %s477
      %p479 = scmp.eq.s32.totalorder %s49, 0
      %p480 = por %p478, %p479
      %s482 = sadd.s32 %s481, 1
      %p485 = scmp.eq.s32.totalorder %s43, 1
      %p486 = scmp.ne.s32.totalorder %s481, %s483
      %p487 = scmp.eq.s32.totalorder %s43, 0
      %p488 = por %p486, %p487
      %p489 = scmp.ne.s32.totalorder %s481, %s483
      %p490 = scmp.eq.s32.totalorder %s48, 1
      %p491 = por %p489, %p490
      %p492 = scmp.ne.s32.totalorder %s483, %s484
      %p493 = scmp.eq.s32.totalorder %s48, 0
      %p494 = por %p492, %p493
      %p495 = scmp.ne.s32.totalorder %s483, %s484
      %p496 = scmp.eq.s32.totalorder %s49, 1
      %p497 = por %p495, %p496
      %p499 = scmp.ne.s32.totalorder %s484, %s498
      %p500 = scmp.eq.s32.totalorder %s49, 0
      %p501 = por %p499, %p500
      %s503 = sadd.s32 %s502, 1
      %p506 = scmp.eq.s32.totalorder %s43, 1
      %p507 = scmp.ne.s32.totalorder %s502, %s504
      %p508 = scmp.eq.s32.totalorder %s43, 0
      %p509 = por %p507, %p508
      %p510 = scmp.ne.s32.totalorder %s502, %s504
      %p511 = scmp.eq.s32.totalorder %s48, 1
      %p512 = por %p510, %p511
      %p513 = scmp.ne.s32.totalorder %s504, %s505
      %p514 = scmp.eq.s32.totalorder %s48, 0
      %p515 = por %p513, %p514
      %p516 = scmp.ne.s32.totalorder %s504, %s505
      %p517 = scmp.eq.s32.totalorder %s49, 1
      %p518 = por %p516, %p517
      %p520 = scmp.ne.s32.totalorder %s505, %s519
      %p521 = scmp.eq.s32.totalorder %s49, 0
      %p522 = por %p520, %p521
      %s524 = sadd.s32 %s523, 1
      %p527 = scmp.eq.s32.totalorder %s43, 1
      %p528 = scmp.ne.s32.totalorder %s523, %s525
      %p529 = scmp.eq.s32.totalorder %s43, 0
      %p530 = por %p528, %p529
      %p531 = scmp.ne.s32.totalorder %s523, %s525
      %p532 = scmp.eq.s32.totalorder %s48, 1
      %p533 = por %p531, %p532
      %p534 = scmp.ne.s32.totalorder %s525, %s526
      %p535 = scmp.eq.s32.totalorder %s48, 0
      %p536 = por %p534, %p535
      %p537 = scmp.ne.s32.totalorder %s525, %s526
      %p538 = scmp.eq.s32.totalorder %s49, 1
      %p539 = por %p537, %p538
      %p541 = scmp.ne.s32.totalorder %s526, %s540
      %p542 = scmp.eq.s32.totalorder %s49, 0
      %p543 = por %p541, %p542
      %s545 = sadd.s32 %s544, 1
      %p548 = scmp.eq.s32.totalorder %s43, 1
      %p549 = scmp.ne.s32.totalorder %s544, %s546
      %p550 = scmp.eq.s32.totalorder %s43, 0
      %p551 = por %p549, %p550
      %p552 = scmp.ne.s32.totalorder %s544, %s546
      %p553 = scmp.eq.s32.totalorder %s48, 1
      %p554 = por %p552, %p553
      %p555 = scmp.ne.s32.totalorder %s546, %s547
      %p556 = scmp.eq.s32.totalorder %s48, 0
      %p557 = por %p555, %p556
      %p558 = scmp.ne.s32.totalorder %s546, %s547
      %p559 = scmp.eq.s32.totalorder %s49, 1
      %p560 = por %p558, %p559
      %p562 = scmp.ne.s32.totalorder %s547, %s561
      %p563 = scmp.eq.s32.totalorder %s49, 0
      %p564 = por %p562, %p563
      %s566 = sadd.s32 %s565, 1
      %p569 = scmp.eq.s32.totalorder %s43, 1
      %p570 = scmp.ne.s32.totalorder %s565, %s567
      %p571 = scmp.eq.s32.totalorder %s43, 0
      %p572 = por %p570, %p571
      %p573 = scmp.ne.s32.totalorder %s565, %s567
      %p574 = scmp.eq.s32.totalorder %s48, 1
      %p575 = por %p573, %p574
      %p576 = scmp.ne.s32.totalorder %s567, %s568
      %p577 = scmp.eq.s32.totalorder %s48, 0
      %p578 = por %p576, %p577
      %p579 = scmp.ne.s32.totalorder %s567, %s568
      %p580 = scmp.eq.s32.totalorder %s49, 1
      %p581 = por %p579, %p580
      %p583 = scmp.ne.s32.totalorder %s568, %s582
      %p584 = scmp.eq.s32.totalorder %s49, 0
      %p585 = por %p583, %p584
      %s587 = sadd.s32 %s586, 1
      %p590 = scmp.eq.s32.totalorder %s43, 1
      %p591 = scmp.ne.s32.totalorder %s586, %s588
      %p592 = scmp.eq.s32.totalorder %s43, 0
      %p593 = por %p591, %p592
      %p594 = scmp.ne.s32.totalorder %s586, %s588
      %p595 = scmp.eq.s32.totalorder %s48, 1
      %p596 = por %p594, %p595
      %p597 = scmp.ne.s32.totalorder %s588, %s589
      %p598 = scmp.eq.s32.totalorder %s48, 0
      %p599 = por %p597, %p598
      %p600 = scmp.ne.s32.totalorder %s588, %s589
      %p601 = scmp.eq.s32.totalorder %s49, 1
      %p602 = por %p600, %p601
      %p604 = scmp.ne.s32.totalorder %s589, %s603
      %p605 = scmp.eq.s32.totalorder %s49, 0
      %p606 = por %p604, %p605
      %s608 = sadd.s32 %s607, 1
      %p611 = scmp.eq.s32.totalorder %s43, 1
      %p612 = scmp.ne.s32.totalorder %s607, %s609
      %p613 = scmp.eq.s32.totalorder %s43, 0
      %p614 = por %p612, %p613
      %p615 = scmp.ne.s32.totalorder %s607, %s609
      %p616 = scmp.eq.s32.totalorder %s48, 1
      %p617 = por %p615, %p616
      %p618 = scmp.ne.s32.totalorder %s609, %s610
      %p619 = scmp.eq.s32.totalorder %s48, 0
      %p620 = por %p618, %p619
      %p621 = scmp.ne.s32.totalorder %s609, %s610
      %p622 = scmp.eq.s32.totalorder %s49, 1
      %p623 = por %p621, %p622
      %p625 = scmp.ne.s32.totalorder %s610, %s624
      %p626 = scmp.eq.s32.totalorder %s49, 0
      %p627 = por %p625, %p626
      %s629 = sadd.s32 %s628, 1
      %p632 = scmp.eq.s32.totalorder %s43, 1
      %p633 = scmp.ne.s32.totalorder %s628, %s630
      %p634 = scmp.eq.s32.totalorder %s43, 0
      %p635 = por %p633, %p634
      %p636 = scmp.ne.s32.totalorder %s628, %s630
      %p637 = scmp.eq.s32.totalorder %s48, 1
      %p638 = por %p636, %p637
      %p639 = scmp.ne.s32.totalorder %s630, %s631
      %p640 = scmp.eq.s32.totalorder %s48, 0
      %p641 = por %p639, %p640
      %p642 = scmp.ne.s32.totalorder %s630, %s631
      %p643 = scmp.eq.s32.totalorder %s49, 1
      %p644 = por %p642, %p643
      %p646 = scmp.ne.s32.totalorder %s631, %s645
      %p647 = scmp.eq.s32.totalorder %s49, 0
      %p648 = por %p646, %p647
      %s649 = ssub.s32 %s43, %s50
      %p650 = scmp.eq.s32.totalorder %s649, 0
      %s652 = sadd.s32 %s651, 1
      %s653 = scalar_select %p650, %s651, %s652
      %p656 = pneg %p650
      %p657 = scmp.eq.s32.totalorder %s43, 1
      %p658 = por %p656, %p657
      %p659 = scmp.ne.s32.totalorder %s651, %s654
      %p660 = scmp.eq.s32.totalorder %s43, 0
      %p661 = por %p659, %p660
      %p662 = scmp.ne.s32.totalorder %s651, %s654
      %p663 = scmp.eq.s32.totalorder %s48, 1
      %p664 = por %p662, %p663
      %p665 = scmp.ne.s32.totalorder %s654, %s655
      %p666 = scmp.eq.s32.totalorder %s48, 0
      %p667 = por %p665, %p666
      %p668 = scmp.ne.s32.totalorder %s654, %s655
      %p669 = scmp.eq.s32.totalorder %s49, 1
      %p670 = por %p668, %p669
      %p672 = scmp.ne.s32.totalorder %s655, %s671
      %p673 = scmp.eq.s32.totalorder %s49, 0
      %p674 = por %p672, %p673
      %p675 = scmp.le.s32.totalorder 1, %s43
      %p676 = scmp.lt.s32.totalorder %s43, 3
      %p677 = pnand %p675, %p676
      %p678 = pneg %p677
      // Predicated region
      $region9: #{transformer_seq2seq.8} parent=5 // pred_check
        _
      $region10: #{transformer_seq2seq.8} parent=5 // pred_check_branch
        %680 = sbr.rel (%p677) target = $region12
      $region11: #{transformer_seq2seq.8} parent=5 // pred_region
        %s681 = ssub.s32 %s43, 1
        // Predicated region
        $region13: #{transformer_seq2seq.8} parent=11 // pred_check
          %p682 = pneg %p116
        $region14: #{transformer_seq2seq.8} parent=11 // pred_check_branch
          %684 = sbr.rel (%p682) target = $region16
        $region15: #{transformer_seq2seq.8} parent=11 // pred_region
          _
        $region16: #{transformer_seq2seq.8} parent=11 // pred_fallthru
          _
        // Predicated region
        $region17: #{transformer_seq2seq.8} parent=11 // pred_check
          %p685 = pneg %p137
        $region18: #{transformer_seq2seq.8} parent=11 // pred_check_branch
          %687 = sbr.rel (%p685) target = $region20
        $region19: #{transformer_seq2seq.8} parent=11 // pred_region
          _
        $region20: #{transformer_seq2seq.8} parent=11 // pred_fallthru
          _
        // Predicated region
        $region21: #{transformer_seq2seq.8} parent=11 // pred_check
          %p688 = pneg %p158
        $region22: #{transformer_seq2seq.8} parent=11 // pred_check_branch
          %690 = sbr.rel (%p688) target = $region24
        $region23: #{transformer_seq2seq.8} parent=11 // pred_region
          _
        $region24: #{transformer_seq2seq.8} parent=11 // pred_fallthru
          _
        // Predicated region
        $region25: #{transformer_seq2seq.8} parent=11 // pred_check
          %p691 = pneg %p179
        $region26: #{transformer_seq2seq.8} parent=11 // pred_check_branch
          %693 = sbr.rel (%p691) target = $region28
        $region27: #{transformer_seq2seq.8} parent=11 // pred_region
          _
        $region28: #{transformer_seq2seq.8} parent=11 // pred_fallthru
          _
        // Predicated region
        $region29: #{transformer_seq2seq.8} parent=11 // pred_check
          %p694 = pneg %p200
        $region30: #{transformer_seq2seq.8} parent=11 // pred_check_branch
          %696 = sbr.rel (%p694) target = $region32
        $region31: #{transformer_seq2seq.8} parent=11 // pred_region
          %698 = vsyncadd [#allocation3], 0
          %s700 = sshll.u32 %s6, 4
          %s701 = int_to_ptr.hbm [resolvable:$true] %s700
          %s702 = sshll.u32 [#allocation2], 4
          %s703 = int_to_ptr.vmem [resolvable:$true] %s702
          %705 = dma.hbm_to_vmem [thread:$0]  %s701, 16, %s703, [#allocation3]
        $region32: #{transformer_seq2seq.8} parent=11 // pred_fallthru
          _
        // Predicated region
        $region33: #{transformer_seq2seq.8} parent=11 // pred_check
          %p706 = pneg %p221
        $region34: #{transformer_seq2seq.8} parent=11 // pred_check_branch
          %708 = sbr.rel (%p706) target = $region36
        $region35: #{transformer_seq2seq.8} parent=11 // pred_region
          %710 = vsyncadd [#allocation5], 0
          %s712 = sshll.u32 %s7, 4
          %s713 = int_to_ptr.hbm [resolvable:$true] %s712
          %s714 = sshll.u32 [#allocation4], 4
          %s715 = int_to_ptr.vmem [resolvable:$true] %s714
          %717 = dma.hbm_to_vmem [thread:$0]  %s713, 16, %s715, [#allocation5]
        $region36: #{transformer_seq2seq.8} parent=11 // pred_fallthru
          _
        // Predicated region
        $region37: #{transformer_seq2seq.8} parent=11 // pred_check
          %p718 = pneg %p242
        $region38: #{transformer_seq2seq.8} parent=11 // pred_check_branch
          %720 = sbr.rel (%p718) target = $region40
        $region39: #{transformer_seq2seq.8} parent=11 // pred_region
          %722 = vsyncadd [#allocation5], 0
          %s724 = sshll.u32 %s8, 4
          %s725 = int_to_ptr.hbm [resolvable:$true] %s724
          %s726 = sshll.u32 [#allocation6], 4
          %s727 = int_to_ptr.vmem [resolvable:$true] %s726
          %729 = dma.hbm_to_vmem [thread:$0]  %s725, 16, %s727, [#allocation5]
        $region40: #{transformer_seq2seq.8} parent=11 // pred_fallthru
          _
        // Predicated region
        $region41: #{transformer_seq2seq.8} parent=11 // pred_check
          %p730 = pneg %p263
        $region42: #{transformer_seq2seq.8} parent=11 // pred_check_branch
          %732 = sbr.rel (%p730) target = $region44
        $region43: #{transformer_seq2seq.8} parent=11 // pred_region
          %734 = vsyncadd [#allocation8], 0
          %s736 = sshll.u32 %s9, 4
          %s737 = int_to_ptr.hbm [resolvable:$true] %s736
          %s738 = sshll.u32 [#allocation7], 4
          %s739 = int_to_ptr.vmem [resolvable:$true] %s738
          %741 = dma.hbm_to_vmem [thread:$0]  %s737, 16, %s739, [#allocation8]
        $region44: #{transformer_seq2seq.8} parent=11 // pred_fallthru
          _
        // Predicated region
        $region45: #{transformer_seq2seq.8} parent=11 // pred_check
          %p742 = pneg %p284
        $region46: #{transformer_seq2seq.8} parent=11 // pred_check_branch
          %744 = sbr.rel (%p742) target = $region48
        $region47: #{transformer_seq2seq.8} parent=11 // pred_region
          %746 = vsyncadd [#allocation8], 0
          %s748 = sshll.u32 %s10, 4
          %s749 = int_to_ptr.hbm [resolvable:$true] %s748
          %s750 = sshll.u32 [#allocation9], 4
          %s751 = int_to_ptr.vmem [resolvable:$true] %s750
          %753 = dma.hbm_to_vmem [thread:$0]  %s749, 16, %s751, [#allocation8]
        $region48: #{transformer_seq2seq.8} parent=11 // pred_fallthru
          _
        // Predicated region
        $region49: #{transformer_seq2seq.8} parent=11 // pred_check
          %p754 = pneg %p305
        $region50: #{transformer_seq2seq.8} parent=11 // pred_check_branch
          %756 = sbr.rel (%p754) target = $region52
        $region51: #{transformer_seq2seq.8} parent=11 // pred_region
          %758 = vsyncadd [#allocation11], 0
          %s760 = sshll.u32 %s11, 4
          %s761 = int_to_ptr.hbm [resolvable:$true] %s760
          %s762 = sshll.u32 [#allocation10], 4
          %s763 = int_to_ptr.vmem [resolvable:$true] %s762
          %765 = dma.hbm_to_vmem [thread:$0]  %s761, 16, %s763, [#allocation11]
        $region52: #{transformer_seq2seq.8} parent=11 // pred_fallthru
          _
        // Predicated region
        $region53: #{transformer_seq2seq.8} parent=11 // pred_check
          %p766 = pneg %p326
        $region54: #{transformer_seq2seq.8} parent=11 // pred_check_branch
          %768 = sbr.rel (%p766) target = $region56
        $region55: #{transformer_seq2seq.8} parent=11 // pred_region
          _
        $region56: #{transformer_seq2seq.8} parent=11 // pred_fallthru
          _
        // Predicated region
        $region57: #{transformer_seq2seq.8} parent=11 // pred_check
          %p769 = pneg %p347
        $region58: #{transformer_seq2seq.8} parent=11 // pred_check_branch
          %771 = sbr.rel (%p769) target = $region60
        $region59: #{transformer_seq2seq.8} parent=11 // pred_region
          _
        $region60: #{transformer_seq2seq.8} parent=11 // pred_fallthru
          _
        // Predicated region
        $region61: #{transformer_seq2seq.8} parent=11 // pred_check
          %p772 = pneg %p368
        $region62: #{transformer_seq2seq.8} parent=11 // pred_check_branch
          %774 = sbr.rel (%p772) target = $region64
        $region63: #{transformer_seq2seq.8} parent=11 // pred_region
          _
        $region64: #{transformer_seq2seq.8} parent=11 // pred_fallthru
          _
        // Predicated region
        $region65: #{transformer_seq2seq.8} parent=11 // pred_check
          %p775 = pneg %p389
        $region66: #{transformer_seq2seq.8} parent=11 // pred_check_branch
          %777 = sbr.rel (%p775) target = $region68
        $region67: #{transformer_seq2seq.8} parent=11 // pred_region
          _
        $region68: #{transformer_seq2seq.8} parent=11 // pred_fallthru
          _
        // Predicated region
        $region69: #{transformer_seq2seq.8} parent=11 // pred_check
          %p778 = pneg %p410
        $region70: #{transformer_seq2seq.8} parent=11 // pred_check_branch
          %780 = sbr.rel (%p778) target = $region72
        $region71: #{transformer_seq2seq.8} parent=11 // pred_region
          %782 = vsyncadd [#allocation11], 0
          %s784 = sshll.u32 %s16, 4
          %s785 = int_to_ptr.hbm [resolvable:$true] %s784
          %s786 = sshll.u32 [#allocation12], 4
          %s787 = int_to_ptr.vmem [resolvable:$true] %s786
          %789 = dma.hbm_to_vmem [thread:$0]  %s785, 16, %s787, [#allocation11]
        $region72: #{transformer_seq2seq.8} parent=11 // pred_fallthru
          _
        // Predicated region
        $region73: #{transformer_seq2seq.8} parent=11 // pred_check
          %p790 = pneg %p431
        $region74: #{transformer_seq2seq.8} parent=11 // pred_check_branch
          %792 = sbr.rel (%p790) target = $region76
        $region75: #{transformer_seq2seq.8} parent=11 // pred_region
          %794 = vsyncadd [#allocation14], 0
          %s796 = sshll.u32 %s17, 4
          %s797 = int_to_ptr.hbm [resolvable:$true] %s796
          %s798 = sshll.u32 [#allocation13], 4
          %s799 = int_to_ptr.vmem [resolvable:$true] %s798
          %801 = dma.hbm_to_vmem [thread:$0]  %s797, 16, %s799, [#allocation14]
        $region76: #{transformer_seq2seq.8} parent=11 // pred_fallthru
          _
        // Predicated region
        $region77: #{transformer_seq2seq.8} parent=11 // pred_check
          %p802 = pneg %p452
        $region78: #{transformer_seq2seq.8} parent=11 // pred_check_branch
          %804 = sbr.rel (%p802) target = $region80
        $region79: #{transformer_seq2seq.8} parent=11 // pred_region
          %806 = vsyncadd [#allocation14], 0
          %s808 = sshll.u32 %s18, 4
          %s809 = int_to_ptr.hbm [resolvable:$true] %s808
          %s810 = sshll.u32 [#allocation15], 4
          %s811 = int_to_ptr.vmem [resolvable:$true] %s810
          %813 = dma.hbm_to_vmem [thread:$0]  %s809, 16, %s811, [#allocation14]
        $region80: #{transformer_seq2seq.8} parent=11 // pred_fallthru
          _
        // Predicated region
        $region81: #{transformer_seq2seq.8} parent=11 // pred_check
          %p814 = pneg %p473
        $region82: #{transformer_seq2seq.8} parent=11 // pred_check_branch
          %816 = sbr.rel (%p814) target = $region84
        $region83: #{transformer_seq2seq.8} parent=11 // pred_region
          %818 = vsyncadd [#allocation17], 0
          %s820 = sshll.u32 %s19, 4
          %s821 = int_to_ptr.hbm [resolvable:$true] %s820
          %s822 = sshll.u32 [#allocation16], 4
          %s823 = int_to_ptr.vmem [resolvable:$true] %s822
          %825 = dma.hbm_to_vmem [thread:$0]  %s821, 16, %s823, [#allocation17]
        $region84: #{transformer_seq2seq.8} parent=11 // pred_fallthru
          _
        // Predicated region
        $region85: #{transformer_seq2seq.8} parent=11 // pred_check
          %p826 = pneg %p494
        $region86: #{transformer_seq2seq.8} parent=11 // pred_check_branch
          %828 = sbr.rel (%p826) target = $region88
        $region87: #{transformer_seq2seq.8} parent=11 // pred_region
          %830 = vsyncadd [#allocation17], 0
          %s832 = sshll.u32 %s20, 4
          %s833 = int_to_ptr.hbm [resolvable:$true] %s832
          %s834 = sshll.u32 [#allocation18], 4
          %s835 = int_to_ptr.vmem [resolvable:$true] %s834
          %837 = dma.hbm_to_vmem [thread:$0]  %s833, 16, %s835, [#allocation17]
        $region88: #{transformer_seq2seq.8} parent=11 // pred_fallthru
          _
        // Predicated region
        $region89: #{transformer_seq2seq.8} parent=11 // pred_check
          %p838 = pneg %p515
        $region90: #{transformer_seq2seq.8} parent=11 // pred_check_branch
          %840 = sbr.rel (%p838) target = $region92
        $region91: #{transformer_seq2seq.8} parent=11 // pred_region
          %842 = vsyncadd [#allocation20], 0
          %s844 = sshll.u32 %s21, 4
          %s845 = int_to_ptr.hbm [resolvable:$true] %s844
          %s846 = sshll.u32 [#allocation19], 4
          %s847 = int_to_ptr.vmem [resolvable:$true] %s846
          %849 = dma.hbm_to_vmem [thread:$0]  %s845, 16, %s847, [#allocation20]
        $region92: #{transformer_seq2seq.8} parent=11 // pred_fallthru
          _
        // Predicated region
        $region93: #{transformer_seq2seq.8} parent=11 // pred_check
          %p850 = pneg %p536
        $region94: #{transformer_seq2seq.8} parent=11 // pred_check_branch
          %852 = sbr.rel (%p850) target = $region96
        $region95: #{transformer_seq2seq.8} parent=11 // pred_region
          _
        $region96: #{transformer_seq2seq.8} parent=11 // pred_fallthru
          _
        // Predicated region
        $region97: #{transformer_seq2seq.8} parent=11 // pred_check
          %p853 = pneg %p557
        $region98: #{transformer_seq2seq.8} parent=11 // pred_check_branch
          %855 = sbr.rel (%p853) target = $region100
        $region99: #{transformer_seq2seq.8} parent=11 // pred_region
          %857 = vsyncadd [#allocation20], 0
          %s859 = sshll.u32 %s23, 4
          %s860 = int_to_ptr.hbm [resolvable:$true] %s859
          %s861 = sshll.u32 [#allocation21], 4
          %s862 = int_to_ptr.vmem [resolvable:$true] %s861
          %864 = dma.hbm_to_vmem [thread:$0]  %s860, 16, %s862, [#allocation20]
        $region100: #{transformer_seq2seq.8} parent=11 // pred_fallthru
          _
        // Predicated region
        $region101: #{transformer_seq2seq.8} parent=11 // pred_check
          %p865 = pneg %p578
        $region102: #{transformer_seq2seq.8} parent=11 // pred_check_branch
          %867 = sbr.rel (%p865) target = $region104
        $region103: #{transformer_seq2seq.8} parent=11 // pred_region
          _
        $region104: #{transformer_seq2seq.8} parent=11 // pred_fallthru
          _
        // Predicated region
        $region105: #{transformer_seq2seq.8} parent=11 // pred_check
          %p868 = pneg %p599
        $region106: #{transformer_seq2seq.8} parent=11 // pred_check_branch
          %870 = sbr.rel (%p868) target = $region108
        $region107: #{transformer_seq2seq.8} parent=11 // pred_region
          %872 = vsyncadd [#allocation23], 0
          %s874 = sshll.u32 %s25, 4
          %s875 = int_to_ptr.hbm [resolvable:$true] %s874
          %s876 = sshll.u32 [#allocation22], 4
          %s877 = int_to_ptr.vmem [resolvable:$true] %s876
          %879 = dma.hbm_to_vmem [thread:$0]  %s875, 16, %s877, [#allocation23]
        $region108: #{transformer_seq2seq.8} parent=11 // pred_fallthru
          _
        // Predicated region
        $region109: #{transformer_seq2seq.8} parent=11 // pred_check
          %p880 = pneg %p620
        $region110: #{transformer_seq2seq.8} parent=11 // pred_check_branch
          %882 = sbr.rel (%p880) target = $region112
        $region111: #{transformer_seq2seq.8} parent=11 // pred_region
          %884 = vsyncadd [#allocation23], 0
          %s886 = sshll.u32 %s26, 4
          %s887 = int_to_ptr.hbm [resolvable:$true] %s886
          %s888 = sshll.u32 [#allocation24], 4
          %s889 = int_to_ptr.vmem [resolvable:$true] %s888
          %891 = dma.hbm_to_vmem [thread:$0]  %s887, 16, %s889, [#allocation23]
        $region112: #{transformer_seq2seq.8} parent=11 // pred_fallthru
          _
        // Predicated region
        $region113: #{transformer_seq2seq.8} parent=11 // pred_check
          %p892 = pneg %p641
        $region114: #{transformer_seq2seq.8} parent=11 // pred_check_branch
          %894 = sbr.rel (%p892) target = $region116
        $region115: #{transformer_seq2seq.8} parent=11 // pred_region
          %896 = vsyncadd [#allocation26], 0
          %s898 = sshll.u32 %s27, 4
          %s899 = int_to_ptr.hbm [resolvable:$true] %s898
          %s900 = sshll.u32 [#allocation25], 4
          %s901 = int_to_ptr.vmem [resolvable:$true] %s900
          %903 = dma.hbm_to_vmem [thread:$0]  %s899, 16, %s901, [#allocation26]
        $region116: #{transformer_seq2seq.8} parent=11 // pred_fallthru
          _
      $region12: #{transformer_seq2seq.8} parent=5 // pred_fallthru
        _
      %p904 = scmp.lt.s32.totalorder %s43, 2
      // Predicated region
      $region117: #{transformer_seq2seq.8} parent=5 // pred_check
        %p905 = pneg %p904
      $region118: #{transformer_seq2seq.8} parent=5 // pred_check_branch
        %907 = sbr.rel (%p905) target = $region120
      $region119: #{transformer_seq2seq.8} parent=5 // pred_region
        // Predicated region
        $region121: #{transformer_seq2seq.8} parent=119 // pred_check
          %p908 = pneg %p63
        $region122: #{transformer_seq2seq.8} parent=119 // pred_check_branch
          %910 = sbr.rel (%p908) target = $region124
        $region123: #{transformer_seq2seq.8} parent=119 // pred_region
          %p911 = scmp.lt.s32.totalorder %s43, 1
          %s912 = scalar_select %p911, %s43, 1
          %s913 = smul.addr %s912, 8
          %s914 = scalar_lea.vmem %s0, %s913
        $region124: #{transformer_seq2seq.8} parent=119 // pred_fallthru
          _
        // Predicated region
        $region125: #{transformer_seq2seq.8} parent=119 // pred_check
          %p915 = pneg %p89
        $region126: #{transformer_seq2seq.8} parent=119 // pred_check_branch
          %917 = sbr.rel (%p915) target = $region128
        $region127: #{transformer_seq2seq.8} parent=119 // pred_region
          %p918 = scmp.lt.s32.totalorder %s43, 1
          %s919 = scalar_select %p918, %s43, 1
          %s920 = smul.addr %s919, 8
          %s921 = scalar_lea.vmem %s1, %s920
        $region128: #{transformer_seq2seq.8} parent=119 // pred_fallthru
          _
      $region120: #{transformer_seq2seq.8} parent=5 // pred_fallthru
        _
      %p922 = scmp.le.s32.totalorder 1, %s43
      %p923 = scmp.lt.s32.totalorder %s43, 3
      %p924 = pnand %p922, %p923
      %p925 = pneg %p924
      // Predicated region
      $region129: #{transformer_seq2seq.8} parent=5 // pred_check
        _
      $region130: #{transformer_seq2seq.8} parent=5 // pred_check_branch
        %927 = sbr.rel (%p924) target = $region132
      $region131: #{transformer_seq2seq.8} parent=5 // pred_region
        %s928 = ssub.s32 %s43, 1
        // Predicated region
        $region133: #{transformer_seq2seq.8} parent=131 // pred_check
          %p929 = pneg %p200
        $region134: #{transformer_seq2seq.8} parent=131 // pred_check_branch
          %931 = sbr.rel (%p929) target = $region136
        $region135: #{transformer_seq2seq.8} parent=131 // pred_region
          %933 = dma.done [#allocation3], 16
        $region136: #{transformer_seq2seq.8} parent=131 // pred_fallthru
          _
        // Predicated region
        $region137: #{transformer_seq2seq.8} parent=131 // pred_check
          %p934 = pneg %p221
        $region138: #{transformer_seq2seq.8} parent=131 // pred_check_branch
          %936 = sbr.rel (%p934) target = $region140
        $region139: #{transformer_seq2seq.8} parent=131 // pred_region
          %938 = dma.done [#allocation5], 16
        $region140: #{transformer_seq2seq.8} parent=131 // pred_fallthru
          _
        // Predicated region
        $region141: #{transformer_seq2seq.8} parent=131 // pred_check
          %p939 = pneg %p242
        $region142: #{transformer_seq2seq.8} parent=131 // pred_check_branch
          %941 = sbr.rel (%p939) target = $region144
        $region143: #{transformer_seq2seq.8} parent=131 // pred_region
          %943 = dma.done [#allocation5], 16
        $region144: #{transformer_seq2seq.8} parent=131 // pred_fallthru
          _
        // Predicated region
        $region145: #{transformer_seq2seq.8} parent=131 // pred_check
          %p944 = pneg %p263
        $region146: #{transformer_seq2seq.8} parent=131 // pred_check_branch
          %946 = sbr.rel (%p944) target = $region148
        $region147: #{transformer_seq2seq.8} parent=131 // pred_region
          %948 = dma.done [#allocation8], 16
        $region148: #{transformer_seq2seq.8} parent=131 // pred_fallthru
          _
        // Predicated region
        $region149: #{transformer_seq2seq.8} parent=131 // pred_check
          %p949 = pneg %p284
        $region150: #{transformer_seq2seq.8} parent=131 // pred_check_branch
          %951 = sbr.rel (%p949) target = $region152
        $region151: #{transformer_seq2seq.8} parent=131 // pred_region
          %953 = dma.done [#allocation8], 16
        $region152: #{transformer_seq2seq.8} parent=131 // pred_fallthru
          _
        // Predicated region
        $region153: #{transformer_seq2seq.8} parent=131 // pred_check
          %p954 = pneg %p305
        $region154: #{transformer_seq2seq.8} parent=131 // pred_check_branch
          %956 = sbr.rel (%p954) target = $region156
        $region155: #{transformer_seq2seq.8} parent=131 // pred_region
          %958 = dma.done [#allocation11], 16
        $region156: #{transformer_seq2seq.8} parent=131 // pred_fallthru
          _
        // Predicated region
        $region157: #{transformer_seq2seq.8} parent=131 // pred_check
          %p959 = pneg %p410
        $region158: #{transformer_seq2seq.8} parent=131 // pred_check_branch
          %961 = sbr.rel (%p959) target = $region160
        $region159: #{transformer_seq2seq.8} parent=131 // pred_region
          %963 = dma.done [#allocation11], 16
        $region160: #{transformer_seq2seq.8} parent=131 // pred_fallthru
          _
        // Predicated region
        $region161: #{transformer_seq2seq.8} parent=131 // pred_check
          %p964 = pneg %p431
        $region162: #{transformer_seq2seq.8} parent=131 // pred_check_branch
          %966 = sbr.rel (%p964) target = $region164
        $region163: #{transformer_seq2seq.8} parent=131 // pred_region
          %968 = dma.done [#allocation14], 16
        $region164: #{transformer_seq2seq.8} parent=131 // pred_fallthru
          _
        // Predicated region
        $region165: #{transformer_seq2seq.8} parent=131 // pred_check
          %p969 = pneg %p452
        $region166: #{transformer_seq2seq.8} parent=131 // pred_check_branch
          %971 = sbr.rel (%p969) target = $region168
        $region167: #{transformer_seq2seq.8} parent=131 // pred_region
          %973 = dma.done [#allocation14], 16
        $region168: #{transformer_seq2seq.8} parent=131 // pred_fallthru
          _
        // Predicated region
        $region169: #{transformer_seq2seq.8} parent=131 // pred_check
          %p974 = pneg %p473
        $region170: #{transformer_seq2seq.8} parent=131 // pred_check_branch
          %976 = sbr.rel (%p974) target = $region172
        $region171: #{transformer_seq2seq.8} parent=131 // pred_region
          %978 = dma.done [#allocation17], 16
        $region172: #{transformer_seq2seq.8} parent=131 // pred_fallthru
          _
        // Predicated region
        $region173: #{transformer_seq2seq.8} parent=131 // pred_check
          %p979 = pneg %p494
        $region174: #{transformer_seq2seq.8} parent=131 // pred_check_branch
          %981 = sbr.rel (%p979) target = $region176
        $region175: #{transformer_seq2seq.8} parent=131 // pred_region
          %983 = dma.done [#allocation17], 16
        $region176: #{transformer_seq2seq.8} parent=131 // pred_fallthru
          _
        // Predicated region
        $region177: #{transformer_seq2seq.8} parent=131 // pred_check
          %p984 = pneg %p515
        $region178: #{transformer_seq2seq.8} parent=131 // pred_check_branch
          %986 = sbr.rel (%p984) target = $region180
        $region179: #{transformer_seq2seq.8} parent=131 // pred_region
          %988 = dma.done [#allocation20], 16
        $region180: #{transformer_seq2seq.8} parent=131 // pred_fallthru
          _
        // Predicated region
        $region181: #{transformer_seq2seq.8} parent=131 // pred_check
          %p989 = pneg %p557
        $region182: #{transformer_seq2seq.8} parent=131 // pred_check_branch
          %991 = sbr.rel (%p989) target = $region184
        $region183: #{transformer_seq2seq.8} parent=131 // pred_region
          %993 = dma.done [#allocation20], 16
        $region184: #{transformer_seq2seq.8} parent=131 // pred_fallthru
          _
        // Predicated region
        $region185: #{transformer_seq2seq.8} parent=131 // pred_check
          %p994 = pneg %p599
        $region186: #{transformer_seq2seq.8} parent=131 // pred_check_branch
          %996 = sbr.rel (%p994) target = $region188
        $region187: #{transformer_seq2seq.8} parent=131 // pred_region
          %998 = dma.done [#allocation23], 16
        $region188: #{transformer_seq2seq.8} parent=131 // pred_fallthru
          _
        // Predicated region
        $region189: #{transformer_seq2seq.8} parent=131 // pred_check
          %p999 = pneg %p620
        $region190: #{transformer_seq2seq.8} parent=131 // pred_check_branch
          %1001 = sbr.rel (%p999) target = $region192
        $region191: #{transformer_seq2seq.8} parent=131 // pred_region
          %1003 = dma.done [#allocation23], 16
        $region192: #{transformer_seq2seq.8} parent=131 // pred_fallthru
          _
        // Predicated region
        $region193: #{transformer_seq2seq.8} parent=131 // pred_check
          %p1004 = pneg %p641
        $region194: #{transformer_seq2seq.8} parent=131 // pred_check_branch
          %1006 = sbr.rel (%p1004) target = $region196
        $region195: #{transformer_seq2seq.8} parent=131 // pred_region
          %1008 = dma.done [#allocation26], 16
        $region196: #{transformer_seq2seq.8} parent=131 // pred_fallthru
          _
        %p1009 = scmp.lt.s32.totalorder %s48, 1
        %s1010 = scalar_select %p1009, %s48, 1
        %s1011 = smul.addr %s1010, 8
        %s1012 = scalar_lea.vmem %s0, %s1011
        %p1013 = pneg %p69
        %p1014 = pneg %p66
        %p1015 = scmp.lt.s32.totalorder %s48, 1
        %s1016 = scalar_select %p1015, %s48, 1
        %s1017 = smul.addr %s1016, 8
        %s1018 = scalar_lea.vmem %s1, %s1017
        %p1019 = pneg %p95
        %p1020 = pneg %p92
        %p1021 = pneg %p116
        %p1022 = pneg %p113
        %p1023 = pneg %p137
        %p1024 = pneg %p134
        %p1025 = pneg %p158
        %p1026 = pneg %p155
        %p1027 = pneg %p179
        %p1028 = pneg %p176
        %p1029 = pneg %p200
        %p1030 = pneg %p197
        %p1031 = pneg %p221
        %p1032 = pneg %p218
        %p1033 = pneg %p242
        %p1034 = pneg %p239
        %p1035 = pneg %p263
        %p1036 = pneg %p260
        %p1037 = pneg %p284
        %p1038 = pneg %p281
        %p1039 = pneg %p305
        %p1040 = pneg %p302
        %p1041 = pneg %p326
        %p1042 = pneg %p323
        %p1043 = pneg %p347
        %p1044 = pneg %p344
        %p1045 = pneg %p368
        %p1046 = pneg %p365
        %p1047 = pneg %p389
        %p1048 = pneg %p386
        %p1049 = pneg %p410
        %p1050 = pneg %p407
        %p1051 = pneg %p431
        %p1052 = pneg %p428
        %p1053 = pneg %p452
        %p1054 = pneg %p449
        %p1055 = pneg %p473
        %p1056 = pneg %p470
        %p1057 = pneg %p494
        %p1058 = pneg %p491
        %p1059 = pneg %p515
        %p1060 = pneg %p512
        %p1061 = pneg %p536
        %p1062 = pneg %p533
        %p1063 = pneg %p557
        %p1064 = pneg %p554
        %p1065 = pneg %p578
        %p1066 = pneg %p575
        %p1067 = pneg %p599
        %p1068 = pneg %p596
        %p1069 = pneg %p620
        %p1070 = pneg %p617
        %p1071 = pneg %p641
        %p1072 = pneg %p638
        %p1073 = pneg %p667
        %p1074 = pneg %p664
        %p1075 = scmp.lt.s32.totalorder %s48, 1
        %s1076 = scalar_select %p1075, %s48, 1
        %s1077 = smul.addr %s1076, 8
        %s1078 = scalar_lea.vmem %s28, %s1077
        %p1079 = scmp.lt.s32.totalorder %s48, 1
        %s1080 = scalar_select %p1079, %s48, 1
        %s1081 = smul.addr %s1080, 8
        %s1082 = scalar_lea.vmem %s0, %s1081
        %p1083 = scmp.lt.s32.totalorder %s48, 1
        %s1084 = scalar_select %p1083, %s48, 1
        %s1085 = smul.addr %s1084, 8
        %s1086 = scalar_lea.vmem %s1, %s1085
        %p1087 = scmp.lt.s32.totalorder %s48, 1
        %s1088 = scalar_select %p1087, %s48, 1
        %s1089 = smul.addr %s1088, 8
        %s1090 = scalar_lea.vmem %s28, %s1089
        %v1092 = vld [vmem:[%s1082] sm:$0xff]
        %v1093 = vld [vmem:[%s1086] sm:$0xff]
        %v1094 = vld [vmem:[%s2] sm:$0xf]
        %v1095 = vld [vmem:[%s2 + $0x4] sm:$0xf]
        %v1096 = vld [vmem:[%s2 + $0x8] sm:$0xf]
        %v1097 = vld [vmem:[%s2 + $0xc] sm:$0xf]
        %v1098 = vld [vmem:[%s3] sm:$0xf]
        %v1099 = vld [vmem:[%s3 + $0x4] sm:$0xf]
        %v1100 = vld [vmem:[%s3 + $0x8] sm:$0xf]
        %v1101 = vld [vmem:[%s3 + $0xc] sm:$0xf]
        %v1102 = vld [vmem:[%s4] sm:$0xf]
        %v1103 = vld [vmem:[%s4 + $0x4] sm:$0xf]
        %v1104 = vld [vmem:[%s4 + $0x8] sm:$0xf]
        %v1105 = vld [vmem:[%s4 + $0xc] sm:$0xf]
        %v1106 = vld [vmem:[%s5] sm:$0xf]
        %v1107 = vld [vmem:[%s5 + $0x4] sm:$0xf]
        %v1108 = vld [vmem:[%s5 + $0x8] sm:$0xf]
        %v1109 = vld [vmem:[%s5 + $0xc] sm:$0xf]
        %v1110 = vld [vmem:[#allocation2] sm:$0x1]
        %v1111 = vld [vmem:[#allocation4] sm:$0x1]
        %v1112 = vld [vmem:[#allocation6] sm:$0x1]
        %v1113 = vld [vmem:[#allocation7] sm:$0x1]
        %v1114 = vld [vmem:[#allocation9] sm:$0x1]
        %v1115 = vld [vmem:[#allocation10] sm:$0x1]
        %v1116 = vpack.c.bf16 %v1092, %v1092
        %v1118 = vperm.slane %v1110, 0
        %v1124 = vunpack.c.l.b16 %v1094
        %v1125 = vunpack.c.l.b16 %v1095
        %v1126 = vunpack.c.l.b16 %v1096
        %v1127 = vunpack.c.l.b16 %v1097
        %v1128 = vpack.c.b16 %v1125, %v1124
        %v1129 = vpack.c.b16 %v1127, %v1126
        %vm1132 = vcmask 261120
        %v1134 = vsel %vm1132, %v1116, 0
        %1136 = vmatpush.bf16.msra.mxu0 0
        %1137 = vmatpush.bf16.msra.mxu0 0
        %1138 = vmatpush.bf16.msra.mxu0 0
        %1139 = vmatpush.bf16.msra.mxu0 0
        %1140 = vmatpush.bf16.msra.mxu0 0
        %1141 = vmatpush.bf16.msra.mxu0 0
        %1142 = vmatpush.bf16.msra.mxu0 %v1129
        %1143 = vmatpush.bf16.msra.mxu0 %v1128
        %1144 = vmatmul.bf16.gmra.mxu0 %v1134
        %v1145 = vpop.f32.mrf.mxu0
        %v1146 = vadd.f32 %v1118, %v1145
        %v1147 = vpop.f32.mrf.mxu0
        %1148 = vdwg.mxu0
        %v1149 = vpack.c.bf16 %v1146, %v1146
        %v1151 = vperm.slane %v1111, 0
        %v1157 = vunpack.c.l.b16 %v1098
        %v1158 = vunpack.c.l.b16 %v1099
        %v1159 = vunpack.c.l.b16 %v1100
        %v1160 = vunpack.c.l.b16 %v1101
        %v1161 = vpack.c.b16 %v1158, %v1157
        %v1162 = vpack.c.b16 %v1160, %v1159
        %1165 = vmatpush.bf16.msra.mxu0 0
        %1166 = vmatpush.bf16.msra.mxu0 0
        %1167 = vmatpush.bf16.msra.mxu0 0
        %1168 = vmatpush.bf16.msra.mxu0 0
        %1169 = vmatpush.bf16.msra.mxu0 0
        %1170 = vmatpush.bf16.msra.mxu0 0
        %1171 = vmatpush.bf16.msra.mxu0 %v1162
        %1172 = vmatpush.bf16.msra.mxu0 %v1161
        %1173 = vmatmul.bf16.gmra.mxu0 %v1134
        %v1174 = vpop.f32.mrf.mxu0
        %v1175 = vadd.f32 %v1151, %v1174
        %v1176 = vpop.f32.mrf.mxu0
        %1177 = vdwg.mxu0
        %v1178 = vpack.c.bf16 %v1175, %v1175
        %v1180 = vperm.slane %v1112, 0
        %v1186 = vunpack.c.l.b16 %v1102
        %v1187 = vunpack.c.l.b16 %v1103
        %v1188 = vunpack.c.l.b16 %v1104
        %v1189 = vunpack.c.l.b16 %v1105
        %v1190 = vpack.c.b16 %v1187, %v1186
        %v1191 = vpack.c.b16 %v1189, %v1188
        %1194 = vmatpush.bf16.msra.mxu0 0
        %1195 = vmatpush.bf16.msra.mxu0 0
        %1196 = vmatpush.bf16.msra.mxu0 0
        %1197 = vmatpush.bf16.msra.mxu0 0
        %1198 = vmatpush.bf16.msra.mxu0 0
        %1199 = vmatpush.bf16.msra.mxu0 0
        %1200 = vmatpush.bf16.msra.mxu0 %v1191
        %1201 = vmatpush.bf16.msra.mxu0 %v1190
        %1202 = vmatmul.bf16.gmra.mxu0 %v1134
        %v1203 = vpop.f32.mrf.mxu0
        %v1204 = vadd.f32 %v1180, %v1203
        %v1205 = vpop.f32.mrf.mxu0
        %1206 = vdwg.mxu0
        %v1207 = vpack.c.bf16 %v1204, %v1204
        %vm1208 = vcmask 64512
        %v1210 = vsel %vm1208, %v1149, 0
        %v1213 = vsel %vm1208, %v1178, 0
        %1215 = vmatpush.bf16.xpose.msra.mxu0 0
        %1216 = vmatpush.bf16.xpose.msra.mxu0 0
        %1217 = vmatpush.bf16.xpose.msra.mxu0 0
        %1218 = vmatpush.bf16.xpose.msra.mxu0 0
        %1219 = vmatpush.bf16.xpose.msra.mxu0 0
        %1220 = vmatpush.bf16.xpose.msra.mxu0 0
        %1221 = vmatpush.bf16.xpose.msra.mxu0 0
        %1222 = vmatpush.bf16.xpose.msra.mxu0 %v1213
        %1223 = vmatmul.bf16.gmra.mxu0 %v1210
        %v1224 = vpop.f32.mrf.mxu0
        %v1225 = vadd.f32 0.0, %v1224
        %v1226 = vpop.f32.mrf.mxu0
        %1227 = vdwg.mxu0
        %v1228 = vmul.f32 %v1225, 0.35355338
        %v1229 = vsel %vm1208, %v1228, -inf
        %1230 = vmax.xlane.f32.xlu0 %v1229
        %v1231 = vpop.xlane.xlu0 %1230
        %v1232 = vsub.f32 %v1228, %v1231
        %v1233 = vmul.f32 %v1232, 1.442695
        %v1234 = vpow.pop %v1233
        %v1235 = vsel %vm1208, %v1234, 0.0
        %1236 = vadd.xlane.f32.xlu0 %v1235
        %v1237 = vpop.xlane.xlu0 %1236
        %v1238 = vrcp.pop %v1237
        %v1239 = vmul.f32 %v1234, %v1238
        %v1240 = vpack.c.bf16 %v1239, %v1239
        %v1242 = vsel %vm1208, %v1240, 0
        %vm1244 = vcmask 1043456
        %v1246 = vsel %vm1244, %v1207, 0
        %1248 = vmatpush.bf16.msra.mxu0 0
        %1249 = vmatpush.bf16.msra.mxu0 0
        %1250 = vmatpush.bf16.msra.mxu0 0
        %1251 = vmatpush.bf16.msra.mxu0 0
        %1252 = vmatpush.bf16.msra.mxu0 0
        %1253 = vmatpush.bf16.msra.mxu0 0
        %1254 = vmatpush.bf16.msra.mxu0 0
        %1255 = vmatpush.bf16.msra.mxu0 %v1246
        %1256 = vmatmul.bf16.gmra.mxu0 %v1242
        %v1257 = vpop.f32.mrf.mxu0
        %v1258 = vadd.f32 0.0, %v1257
        %v1259 = vpop.f32.mrf.mxu0
        %1260 = vdwg.mxu0
        %v1261 = vpack.c.bf16 %v1258, %v1258
        %v1263 = vunpack.c.l.b16 %v1149
        %v1264 = vpack.c.b16 %v1263, %v1263
        %1265 = vrot.lane.b32.xlu0 %v1264, 120
        %v1266 = vpop.permute.xlu0 %1265
        %v1268 = vunpack.c.l.b16 %v1178
        %v1269 = vpack.c.b16 %v1268, %v1268
        %1270 = vrot.lane.b32.xlu0 %v1269, 120
        %v1271 = vpop.permute.xlu0 %1270
        %v1273 = vsel %vm1208, %v1266, 0
        %v1276 = vsel %vm1208, %v1271, 0
        %1278 = vmatpush.bf16.xpose.msra.mxu0 0
        %1279 = vmatpush.bf16.xpose.msra.mxu0 0
        %1280 = vmatpush.bf16.xpose.msra.mxu0 0
        %1281 = vmatpush.bf16.xpose.msra.mxu0 0
        %1282 = vmatpush.bf16.xpose.msra.mxu0 0
        %1283 = vmatpush.bf16.xpose.msra.mxu0 0
        %1284 = vmatpush.bf16.xpose.msra.mxu0 0
        %1285 = vmatpush.bf16.xpose.msra.mxu0 %v1276
        %1286 = vmatmul.bf16.gmra.mxu0 %v1273
        %v1287 = vpop.f32.mrf.mxu0
        %v1288 = vadd.f32 0.0, %v1287
        %v1289 = vpop.f32.mrf.mxu0
        %1290 = vdwg.mxu0
        %v1291 = vmul.f32 %v1288, 0.35355338
        %v1292 = vsel %vm1208, %v1291, -inf
        %1293 = vmax.xlane.f32.xlu0 %v1292
        %v1294 = vpop.xlane.xlu0 %1293
        %v1295 = vsub.f32 %v1291, %v1294
        %v1296 = vmul.f32 %v1295, 1.442695
        %v1297 = vpow.pop %v1296
        %v1298 = vsel %vm1208, %v1297, 0.0
        %1299 = vadd.xlane.f32.xlu0 %v1298
        %v1300 = vpop.xlane.xlu0 %1299
        %v1301 = vrcp.pop %v1300
        %v1302 = vmul.f32 %v1297, %v1301
        %v1303 = vpack.c.bf16 %v1302, %v1302
        %v1305 = vunpack.c.l.b16 %v1207
        %v1306 = vpack.c.b16 %v1305, %v1305
        %1307 = vrot.lane.b32.xlu0 %v1306, 120
        %v1308 = vpop.permute.xlu0 %1307
        %v1310 = vsel %vm1208, %v1303, 0
        %v1313 = vsel %vm1244, %v1308, 0
        %1315 = vmatpush.bf16.msra.mxu0 0
        %1316 = vmatpush.bf16.msra.mxu0 0
        %1317 = vmatpush.bf16.msra.mxu0 0
        %1318 = vmatpush.bf16.msra.mxu0 0
        %1319 = vmatpush.bf16.msra.mxu0 0
        %1320 = vmatpush.bf16.msra.mxu0 0
        %1321 = vmatpush.bf16.msra.mxu0 0
        %1322 = vmatpush.bf16.msra.mxu0 %v1313
        %1323 = vmatmul.bf16.gmra.mxu0 %v1310
        %v1324 = vpop.f32.mrf.mxu0
        %v1325 = vadd.f32 0.0, %v1324
        %v1326 = vpop.f32.mrf.mxu0
        %1327 = vdwg.mxu0
        %v1328 = vpack.c.bf16 %v1325, %v1325
        %v1330 = vsel %vm1208, %v1328, 0
        %v1333 = vsel %vm1244, %v1107, 0
        %1335 = vmatpush.bf16.msra.mxu0 0
        %1336 = vmatpush.bf16.msra.mxu0 0
        %1337 = vmatpush.bf16.msra.mxu0 0
        %1338 = vmatpush.bf16.msra.mxu0 0
        %1339 = vmatpush.bf16.msra.mxu0 0
        %1340 = vmatpush.bf16.msra.mxu0 0
        %1341 = vmatpush.bf16.msra.mxu0 0
        %1342 = vmatpush.bf16.msra.mxu0 %v1333
        %1343 = vmatmul.bf16.gmra.mxu0 %v1330
        %v1344 = vpop.f32.mrf.mxu0
        %v1345 = vadd.f32 0.0, %v1344
        %v1346 = vpop.f32.mrf.mxu0
        %1347 = vdwg.mxu0
        %v1349 = vsel %vm1208, %v1261, 0
        %v1352 = vsel %vm1244, %v1106, 0
        %1354 = vmatpush.bf16.msra.mxu0 0
        %1355 = vmatpush.bf16.msra.mxu0 0
        %1356 = vmatpush.bf16.msra.mxu0 0
        %1357 = vmatpush.bf16.msra.mxu0 0
        %1358 = vmatpush.bf16.msra.mxu0 0
        %1359 = vmatpush.bf16.msra.mxu0 0
        %1360 = vmatpush.bf16.msra.mxu0 0
        %1361 = vmatpush.bf16.msra.mxu0 %v1352
        %1362 = vmatmul.bf16.gmra.mxu0 %v1349
        %v1363 = vpop.f32.mrf.mxu0
        %v1364 = vadd.f32 %v1345, %v1363
        %v1365 = vpop.f32.mrf.mxu0
        %1366 = vdwg.mxu0
        %1367 = vrot.lane.b32.xlu0 %v1264, 112
        %v1368 = vpop.permute.xlu0 %1367
        %1369 = vrot.lane.b32.xlu0 %v1269, 112
        %v1370 = vpop.permute.xlu0 %1369
        %v1372 = vsel %vm1208, %v1368, 0
        %v1375 = vsel %vm1208, %v1370, 0
        %1377 = vmatpush.bf16.xpose.msra.mxu0 0
        %1378 = vmatpush.bf16.xpose.msra.mxu0 0
        %1379 = vmatpush.bf16.xpose.msra.mxu0 0
        %1380 = vmatpush.bf16.xpose.msra.mxu0 0
        %1381 = vmatpush.bf16.xpose.msra.mxu0 0
        %1382 = vmatpush.bf16.xpose.msra.mxu0 0
        %1383 = vmatpush.bf16.xpose.msra.mxu0 0
        %1384 = vmatpush.bf16.xpose.msra.mxu0 %v1375
        %1385 = vmatmul.bf16.gmra.mxu0 %v1372
        %v1386 = vpop.f32.mrf.mxu0
        %v1387 = vadd.f32 0.0, %v1386
        %v1388 = vpop.f32.mrf.mxu0
        %1389 = vdwg.mxu0
        %v1390 = vmul.f32 %v1387, 0.35355338
        %v1391 = vsel %vm1208, %v1390, -inf
        %1392 = vmax.xlane.f32.xlu0 %v1391
        %v1393 = vpop.xlane.xlu0 %1392
        %v1394 = vsub.f32 %v1390, %v1393
        %v1395 = vmul.f32 %v1394, 1.442695
        %v1396 = vpow.pop %v1395
        %v1397 = vsel %vm1208, %v1396, 0.0
        %1398 = vadd.xlane.f32.xlu0 %v1397
        %v1399 = vpop.xlane.xlu0 %1398
        %v1400 = vrcp.pop %v1399
        %v1401 = vmul.f32 %v1396, %v1400
        %v1402 = vpack.c.bf16 %v1401, %v1401
        %1403 = vrot.lane.b32.xlu0 %v1306, 112
        %v1404 = vpop.permute.xlu0 %1403
        %v1406 = vsel %vm1208, %v1402, 0
        %v1409 = vsel %vm1244, %v1404, 0
        %1411 = vmatpush.bf16.msra.mxu0 0
        %1412 = vmatpush.bf16.msra.mxu0 0
        %1413 = vmatpush.bf16.msra.mxu0 0
        %1414 = vmatpush.bf16.msra.mxu0 0
        %1415 = vmatpush.bf16.msra.mxu0 0
        %1416 = vmatpush.bf16.msra.mxu0 0
        %1417 = vmatpush.bf16.msra.mxu0 0
        %1418 = vmatpush.bf16.msra.mxu0 %v1409
        %1419 = vmatmul.bf16.gmra.mxu0 %v1406
        %v1420 = vpop.f32.mrf.mxu0
        %v1421 = vadd.f32 0.0, %v1420
        %v1422 = vpop.f32.mrf.mxu0
        %1423 = vdwg.mxu0
        %v1424 = vpack.c.bf16 %v1421, %v1421
        %v1426 = vsel %vm1208, %v1424, 0
        %v1429 = vsel %vm1244, %v1108, 0
        %1431 = vmatpush.bf16.msra.mxu0 0
        %1432 = vmatpush.bf16.msra.mxu0 0
        %1433 = vmatpush.bf16.msra.mxu0 0
        %1434 = vmatpush.bf16.msra.mxu0 0
        %1435 = vmatpush.bf16.msra.mxu0 0
        %1436 = vmatpush.bf16.msra.mxu0 0
        %1437 = vmatpush.bf16.msra.mxu0 0
        %1438 = vmatpush.bf16.msra.mxu0 %v1429
        %1439 = vmatmul.bf16.gmra.mxu0 %v1426
        %v1440 = vpop.f32.mrf.mxu0
        %v1441 = vadd.f32 0.0, %v1440
        %v1442 = vpop.f32.mrf.mxu0
        %1443 = vdwg.mxu0
        %v1444 = vadd.f32 %v1364, %v1441
        %1445 = vrot.lane.b32.xlu0 %v1264, 104
        %v1446 = vpop.permute.xlu0 %1445
        %1447 = vrot.lane.b32.xlu0 %v1269, 104
        %v1448 = vpop.permute.xlu0 %1447
        %v1450 = vsel %vm1208, %v1446, 0
        %v1453 = vsel %vm1208, %v1448, 0
        %1455 = vmatpush.bf16.xpose.msra.mxu0 0
        %1456 = vmatpush.bf16.xpose.msra.mxu0 0
        %1457 = vmatpush.bf16.xpose.msra.mxu0 0
        %1458 = vmatpush.bf16.xpose.msra.mxu0 0
        %1459 = vmatpush.bf16.xpose.msra.mxu0 0
        %1460 = vmatpush.bf16.xpose.msra.mxu0 0
        %1461 = vmatpush.bf16.xpose.msra.mxu0 0
        %1462 = vmatpush.bf16.xpose.msra.mxu0 %v1453
        %1463 = vmatmul.bf16.gmra.mxu0 %v1450
        %v1464 = vpop.f32.mrf.mxu0
        %v1465 = vadd.f32 0.0, %v1464
        %v1466 = vpop.f32.mrf.mxu0
        %1467 = vdwg.mxu0
        %v1468 = vmul.f32 %v1465, 0.35355338
        %v1469 = vsel %vm1208, %v1468, -inf
        %1470 = vmax.xlane.f32.xlu0 %v1469
        %v1471 = vpop.xlane.xlu0 %1470
        %v1472 = vsub.f32 %v1468, %v1471
        %v1473 = vmul.f32 %v1472, 1.442695
        %v1474 = vpow.pop %v1473
        %v1475 = vsel %vm1208, %v1474, 0.0
        %1476 = vadd.xlane.f32.xlu0 %v1475
        %v1477 = vpop.xlane.xlu0 %1476
        %v1478 = vrcp.pop %v1477
        %v1479 = vmul.f32 %v1474, %v1478
        %v1480 = vpack.c.bf16 %v1479, %v1479
        %1481 = vrot.lane.b32.xlu0 %v1306, 104
        %v1482 = vpop.permute.xlu0 %1481
        %v1484 = vsel %vm1208, %v1480, 0
        %v1487 = vsel %vm1244, %v1482, 0
        %1489 = vmatpush.bf16.msra.mxu0 0
        %1490 = vmatpush.bf16.msra.mxu0 0
        %1491 = vmatpush.bf16.msra.mxu0 0
        %1492 = vmatpush.bf16.msra.mxu0 0
        %1493 = vmatpush.bf16.msra.mxu0 0
        %1494 = vmatpush.bf16.msra.mxu0 0
        %1495 = vmatpush.bf16.msra.mxu0 0
        %1496 = vmatpush.bf16.msra.mxu0 %v1487
        %1497 = vmatmul.bf16.gmra.mxu0 %v1484
        %v1498 = vpop.f32.mrf.mxu0
        %v1499 = vadd.f32 0.0, %v1498
        %v1500 = vpop.f32.mrf.mxu0
        %1501 = vdwg.mxu0
        %v1502 = vpack.c.bf16 %v1499, %v1499
        %v1504 = vsel %vm1208, %v1502, 0
        %v1507 = vsel %vm1244, %v1109, 0
        %1509 = vmatpush.bf16.msra.mxu0 0
        %1510 = vmatpush.bf16.msra.mxu0 0
        %1511 = vmatpush.bf16.msra.mxu0 0
        %1512 = vmatpush.bf16.msra.mxu0 0
        %1513 = vmatpush.bf16.msra.mxu0 0
        %1514 = vmatpush.bf16.msra.mxu0 0
        %1515 = vmatpush.bf16.msra.mxu0 0
        %1516 = vmatpush.bf16.msra.mxu0 %v1507
        %1517 = vmatmul.bf16.gmra.mxu0 %v1504
        %v1518 = vpop.f32.mrf.mxu0
        %v1519 = vadd.f32 0.0, %v1518
        %v1520 = vpop.f32.mrf.mxu0
        %1521 = vdwg.mxu0
        %v1522 = vadd.f32 %v1444, %v1519
        %v1523 = vadd.f32 %v1092, %v1522
        %v1525 = vperm.slane %v1113, 0
        %v1527 = vadd.f32 %v1523, %v1525
        %v1528 = vsel %vm1132, %v1527, 0.0
        %1529 = vadd.xlane.f32.xlu0 %v1528
        %v1530 = vpop.xlane.xlu0 %1529
        %v1531 = vrcp.pop 32.0
        %v1532 = vmul.f32 32.0, %v1531
        %v1533 = vsub.f32 1.0, %v1532
        %v1534 = vmul.f32 %v1531, %v1533
        %v1535 = vadd.f32 %v1531, %v1534
        %vm1536 = vweird.f32 %v1531
        %v1537 = vsel %vm1536, %v1531, %v1535
        %v1538 = vmul.f32 %v1530, %v1537
        %v1539 = vsub.f32 %v1527, %v1538
        %v1540 = vmul.f32 %v1539, %v1539
        %v1541 = vsel %vm1132, %v1540, 0.0
        %1542 = vadd.xlane.f32.xlu0 %v1541
        %v1543 = vpop.xlane.xlu0 %1542
        %v1544 = vmul.f32 %v1543, %v1537
        %v1545 = vadd.f32 %v1544, 1e-05
        %v1546 = vrsqrt.pop %v1545
        %v1547 = vmul.f32 %v1546, %v1545
        %v1548 = vmul.f32 %v1547, %v1546
        %v1549 = vmul.f32 0.5, %v1548
        %v1550 = vsub.f32 1.5, %v1549
        %v1551 = vmul.f32 %v1546, %v1550
        %vm1552 = vweird.f32 %v1545
        %vm1553 = vweird.f32 %v1546
        %vm1554 = vmor %vm1552, %vm1553
        %v1555 = vsel %vm1554, %v1546, %v1551
        %v1556 = vmul.f32 %v1539, %v1555
        %v1558 = vperm.slane %v1114, 0
        %v1560 = vmul.f32 %v1556, %v1558
        %v1562 = vperm.slane %v1115, 0
        %v1564 = vadd.f32 %v1560, %v1562
        %v1565 = vld [vmem:[%s12] sm:$0xf]
        %v1566 = vld [vmem:[%s12 + $0x4] sm:$0xf]
        %v1567 = vld [vmem:[%s12 + $0x8] sm:$0xf]
        %v1568 = vld [vmem:[%s12 + $0xc] sm:$0xf]
        %v1569 = vld [vmem:[%s13] sm:$0xf]
        %v1570 = vld [vmem:[%s13 + $0x4] sm:$0xf]
        %v1571 = vld [vmem:[%s13 + $0x8] sm:$0xf]
        %v1572 = vld [vmem:[%s13 + $0xc] sm:$0xf]
        %v1573 = vld [vmem:[%s14] sm:$0xf]
        %v1574 = vld [vmem:[%s14 + $0x4] sm:$0xf]
        %v1575 = vld [vmem:[%s14 + $0x8] sm:$0xf]
        %v1576 = vld [vmem:[%s14 + $0xc] sm:$0xf]
        %v1577 = vld [vmem:[%s15] sm:$0xf]
        %v1578 = vld [vmem:[%s15 + $0x4] sm:$0xf]
        %v1579 = vld [vmem:[%s15 + $0x8] sm:$0xf]
        %v1580 = vld [vmem:[%s15 + $0xc] sm:$0xf]
        %v1581 = vld [vmem:[#allocation12] sm:$0x1]
        %v1582 = vld [vmem:[#allocation13] sm:$0x1]
        %v1583 = vld [vmem:[#allocation15] sm:$0x1]
        %v1584 = vld [vmem:[#allocation16] sm:$0x1]
        %v1585 = vld [vmem:[#allocation18] sm:$0x1]
        %v1586 = vld [vmem:[#allocation19] sm:$0x1]
        %v1587 = vpack.c.bf16 %v1564, %v1564
        %v1588 = vpack.c.bf16 %v1093, %v1093
        %v1590 = vperm.slane %v1581, 0
        %v1596 = vunpack.c.l.b16 %v1565
        %v1597 = vunpack.c.l.b16 %v1566
        %v1598 = vunpack.c.l.b16 %v1567
        %v1599 = vunpack.c.l.b16 %v1568
        %v1600 = vpack.c.b16 %v1597, %v1596
        %v1601 = vpack.c.b16 %v1599, %v1598
        %v1605 = vsel %vm1132, %v1587, 0
        %1607 = vmatpush.bf16.msra.mxu0 0
        %1608 = vmatpush.bf16.msra.mxu0 0
        %1609 = vmatpush.bf16.msra.mxu0 0
        %1610 = vmatpush.bf16.msra.mxu0 0
        %1611 = vmatpush.bf16.msra.mxu0 0
        %1612 = vmatpush.bf16.msra.mxu0 0
        %1613 = vmatpush.bf16.msra.mxu0 %v1601
        %1614 = vmatpush.bf16.msra.mxu0 %v1600
        %1615 = vmatmul.bf16.gmra.mxu0 %v1605
        %v1616 = vpop.f32.mrf.mxu0
        %v1617 = vadd.f32 %v1590, %v1616
        %v1618 = vpop.f32.mrf.mxu0
        %1619 = vdwg.mxu0
        %v1620 = vpack.c.bf16 %v1617, %v1617
        %v1622 = vperm.slane %v1582, 0
        %v1628 = vunpack.c.l.b16 %v1569
        %v1629 = vunpack.c.l.b16 %v1570
        %v1630 = vunpack.c.l.b16 %v1571
        %v1631 = vunpack.c.l.b16 %v1572
        %v1632 = vpack.c.b16 %v1629, %v1628
        %v1633 = vpack.c.b16 %v1631, %v1630
        %v1637 = vsel %vm1132, %v1588, 0
        %1639 = vmatpush.bf16.msra.mxu0 0
        %1640 = vmatpush.bf16.msra.mxu0 0
        %1641 = vmatpush.bf16.msra.mxu0 0
        %1642 = vmatpush.bf16.msra.mxu0 0
        %1643 = vmatpush.bf16.msra.mxu0 0
        %1644 = vmatpush.bf16.msra.mxu0 0
        %1645 = vmatpush.bf16.msra.mxu0 %v1633
        %1646 = vmatpush.bf16.msra.mxu0 %v1632
        %1647 = vmatmul.bf16.gmra.mxu0 %v1637
        %v1648 = vpop.f32.mrf.mxu0
        %v1649 = vadd.f32 %v1622, %v1648
        %v1650 = vpop.f32.mrf.mxu0
        %1651 = vdwg.mxu0
        %v1652 = vpack.c.bf16 %v1649, %v1649
        %v1654 = vperm.slane %v1583, 0
        %v1660 = vunpack.c.l.b16 %v1573
        %v1661 = vunpack.c.l.b16 %v1574
        %v1662 = vunpack.c.l.b16 %v1575
        %v1663 = vunpack.c.l.b16 %v1576
        %v1664 = vpack.c.b16 %v1661, %v1660
        %v1665 = vpack.c.b16 %v1663, %v1662
        %1668 = vmatpush.bf16.msra.mxu0 0
        %1669 = vmatpush.bf16.msra.mxu0 0
        %1670 = vmatpush.bf16.msra.mxu0 0
        %1671 = vmatpush.bf16.msra.mxu0 0
        %1672 = vmatpush.bf16.msra.mxu0 0
        %1673 = vmatpush.bf16.msra.mxu0 0
        %1674 = vmatpush.bf16.msra.mxu0 %v1665
        %1675 = vmatpush.bf16.msra.mxu0 %v1664
        %1676 = vmatmul.bf16.gmra.mxu0 %v1637
        %v1677 = vpop.f32.mrf.mxu0
        %v1678 = vadd.f32 %v1654, %v1677
        %v1679 = vpop.f32.mrf.mxu0
        %1680 = vdwg.mxu0
        %v1681 = vpack.c.bf16 %v1678, %v1678
        %v1683 = vsel %vm1208, %v1620, 0
        %v1686 = vsel %vm1208, %v1652, 0
        %1688 = vmatpush.bf16.xpose.msra.mxu0 0
        %1689 = vmatpush.bf16.xpose.msra.mxu0 0
        %1690 = vmatpush.bf16.xpose.msra.mxu0 0
        %1691 = vmatpush.bf16.xpose.msra.mxu0 0
        %1692 = vmatpush.bf16.xpose.msra.mxu0 0
        %1693 = vmatpush.bf16.xpose.msra.mxu0 0
        %1694 = vmatpush.bf16.xpose.msra.mxu0 0
        %1695 = vmatpush.bf16.xpose.msra.mxu0 %v1686
        %1696 = vmatmul.bf16.gmra.mxu0 %v1683
        %v1697 = vpop.f32.mrf.mxu0
        %v1698 = vadd.f32 0.0, %v1697
        %v1699 = vpop.f32.mrf.mxu0
        %1700 = vdwg.mxu0
        %v1701 = vmul.f32 %v1698, 0.35355338
        %v1702 = vsel %vm1208, %v1701, -inf
        %1703 = vmax.xlane.f32.xlu0 %v1702
        %v1704 = vpop.xlane.xlu0 %1703
        %v1705 = vsub.f32 %v1701, %v1704
        %v1706 = vmul.f32 %v1705, 1.442695
        %v1707 = vpow.pop %v1706
        %v1708 = vsel %vm1208, %v1707, 0.0
        %1709 = vadd.xlane.f32.xlu0 %v1708
        %v1710 = vpop.xlane.xlu0 %1709
        %v1711 = vrcp.pop %v1710
        %v1712 = vmul.f32 %v1707, %v1711
        %v1713 = vpack.c.bf16 %v1712, %v1712
        %v1715 = vsel %vm1208, %v1713, 0
        %v1718 = vsel %vm1244, %v1681, 0
        %1720 = vmatpush.bf16.msra.mxu0 0
        %1721 = vmatpush.bf16.msra.mxu0 0
        %1722 = vmatpush.bf16.msra.mxu0 0
        %1723 = vmatpush.bf16.msra.mxu0 0
        %1724 = vmatpush.bf16.msra.mxu0 0
        %1725 = vmatpush.bf16.msra.mxu0 0
        %1726 = vmatpush.bf16.msra.mxu0 0
        %1727 = vmatpush.bf16.msra.mxu0 %v1718
        %1728 = vmatmul.bf16.gmra.mxu0 %v1715
        %v1729 = vpop.f32.mrf.mxu0
        %v1730 = vadd.f32 0.0, %v1729
        %v1731 = vpop.f32.mrf.mxu0
        %1732 = vdwg.mxu0
        %v1733 = vpack.c.bf16 %v1730, %v1730
        %v1735 = vunpack.c.l.b16 %v1620
        %v1736 = vpack.c.b16 %v1735, %v1735
        %1737 = vrot.lane.b32.xlu0 %v1736, 120
        %v1738 = vpop.permute.xlu0 %1737
        %v1740 = vunpack.c.l.b16 %v1652
        %v1741 = vpack.c.b16 %v1740, %v1740
        %1742 = vrot.lane.b32.xlu0 %v1741, 120
        %v1743 = vpop.permute.xlu0 %1742
        %v1745 = vsel %vm1208, %v1738, 0
        %v1748 = vsel %vm1208, %v1743, 0
        %1750 = vmatpush.bf16.xpose.msra.mxu0 0
        %1751 = vmatpush.bf16.xpose.msra.mxu0 0
        %1752 = vmatpush.bf16.xpose.msra.mxu0 0
        %1753 = vmatpush.bf16.xpose.msra.mxu0 0
        %1754 = vmatpush.bf16.xpose.msra.mxu0 0
        %1755 = vmatpush.bf16.xpose.msra.mxu0 0
        %1756 = vmatpush.bf16.xpose.msra.mxu0 0
        %1757 = vmatpush.bf16.xpose.msra.mxu0 %v1748
        %1758 = vmatmul.bf16.gmra.mxu0 %v1745
        %v1759 = vpop.f32.mrf.mxu0
        %v1760 = vadd.f32 0.0, %v1759
        %v1761 = vpop.f32.mrf.mxu0
        %1762 = vdwg.mxu0
        %v1763 = vmul.f32 %v1760, 0.35355338
        %v1764 = vsel %vm1208, %v1763, -inf
        %1765 = vmax.xlane.f32.xlu0 %v1764
        %v1766 = vpop.xlane.xlu0 %1765
        %v1767 = vsub.f32 %v1763, %v1766
        %v1768 = vmul.f32 %v1767, 1.442695
        %v1769 = vpow.pop %v1768
        %v1770 = vsel %vm1208, %v1769, 0.0
        %1771 = vadd.xlane.f32.xlu0 %v1770
        %v1772 = vpop.xlane.xlu0 %1771
        %v1773 = vrcp.pop %v1772
        %v1774 = vmul.f32 %v1769, %v1773
        %v1775 = vpack.c.bf16 %v1774, %v1774
        %v1777 = vunpack.c.l.b16 %v1681
        %v1778 = vpack.c.b16 %v1777, %v1777
        %1779 = vrot.lane.b32.xlu0 %v1778, 120
        %v1780 = vpop.permute.xlu0 %1779
        %v1782 = vsel %vm1208, %v1775, 0
        %v1785 = vsel %vm1244, %v1780, 0
        %1787 = vmatpush.bf16.msra.mxu0 0
        %1788 = vmatpush.bf16.msra.mxu0 0
        %1789 = vmatpush.bf16.msra.mxu0 0
        %1790 = vmatpush.bf16.msra.mxu0 0
        %1791 = vmatpush.bf16.msra.mxu0 0
        %1792 = vmatpush.bf16.msra.mxu0 0
        %1793 = vmatpush.bf16.msra.mxu0 0
        %1794 = vmatpush.bf16.msra.mxu0 %v1785
        %1795 = vmatmul.bf16.gmra.mxu0 %v1782
        %v1796 = vpop.f32.mrf.mxu0
        %v1797 = vadd.f32 0.0, %v1796
        %v1798 = vpop.f32.mrf.mxu0
        %1799 = vdwg.mxu0
        %v1800 = vpack.c.bf16 %v1797, %v1797
        %v1802 = vsel %vm1208, %v1800, 0
        %v1805 = vsel %vm1244, %v1578, 0
        %1807 = vmatpush.bf16.msra.mxu0 0
        %1808 = vmatpush.bf16.msra.mxu0 0
        %1809 = vmatpush.bf16.msra.mxu0 0
        %1810 = vmatpush.bf16.msra.mxu0 0
        %1811 = vmatpush.bf16.msra.mxu0 0
        %1812 = vmatpush.bf16.msra.mxu0 0
        %1813 = vmatpush.bf16.msra.mxu0 0
        %1814 = vmatpush.bf16.msra.mxu0 %v1805
        %1815 = vmatmul.bf16.gmra.mxu0 %v1802
        %v1816 = vpop.f32.mrf.mxu0
        %v1817 = vadd.f32 0.0, %v1816
        %v1818 = vpop.f32.mrf.mxu0
        %1819 = vdwg.mxu0
        %v1821 = vsel %vm1208, %v1733, 0
        %v1824 = vsel %vm1244, %v1577, 0
        %1826 = vmatpush.bf16.msra.mxu0 0
        %1827 = vmatpush.bf16.msra.mxu0 0
        %1828 = vmatpush.bf16.msra.mxu0 0
        %1829 = vmatpush.bf16.msra.mxu0 0
        %1830 = vmatpush.bf16.msra.mxu0 0
        %1831 = vmatpush.bf16.msra.mxu0 0
        %1832 = vmatpush.bf16.msra.mxu0 0
        %1833 = vmatpush.bf16.msra.mxu0 %v1824
        %1834 = vmatmul.bf16.gmra.mxu0 %v1821
        %v1835 = vpop.f32.mrf.mxu0
        %v1836 = vadd.f32 %v1817, %v1835
        %v1837 = vpop.f32.mrf.mxu0
        %1838 = vdwg.mxu0
        %1839 = vrot.lane.b32.xlu0 %v1736, 112
        %v1840 = vpop.permute.xlu0 %1839
        %1841 = vrot.lane.b32.xlu0 %v1741, 112
        %v1842 = vpop.permute.xlu0 %1841
        %v1844 = vsel %vm1208, %v1840, 0
        %v1847 = vsel %vm1208, %v1842, 0
        %1849 = vmatpush.bf16.xpose.msra.mxu0 0
        %1850 = vmatpush.bf16.xpose.msra.mxu0 0
        %1851 = vmatpush.bf16.xpose.msra.mxu0 0
        %1852 = vmatpush.bf16.xpose.msra.mxu0 0
        %1853 = vmatpush.bf16.xpose.msra.mxu0 0
        %1854 = vmatpush.bf16.xpose.msra.mxu0 0
        %1855 = vmatpush.bf16.xpose.msra.mxu0 0
        %1856 = vmatpush.bf16.xpose.msra.mxu0 %v1847
        %1857 = vmatmul.bf16.gmra.mxu0 %v1844
        %v1858 = vpop.f32.mrf.mxu0
        %v1859 = vadd.f32 0.0, %v1858
        %v1860 = vpop.f32.mrf.mxu0
        %1861 = vdwg.mxu0
        %v1862 = vmul.f32 %v1859, 0.35355338
        %v1863 = vsel %vm1208, %v1862, -inf
        %1864 = vmax.xlane.f32.xlu0 %v1863
        %v1865 = vpop.xlane.xlu0 %1864
        %v1866 = vsub.f32 %v1862, %v1865
        %v1867 = vmul.f32 %v1866, 1.442695
        %v1868 = vpow.pop %v1867
        %v1869 = vsel %vm1208, %v1868, 0.0
        %1870 = vadd.xlane.f32.xlu0 %v1869
        %v1871 = vpop.xlane.xlu0 %1870
        %v1872 = vrcp.pop %v1871
        %v1873 = vmul.f32 %v1868, %v1872
        %v1874 = vpack.c.bf16 %v1873, %v1873
        %1875 = vrot.lane.b32.xlu0 %v1778, 112
        %v1876 = vpop.permute.xlu0 %1875
        %v1878 = vsel %vm1208, %v1874, 0
        %v1881 = vsel %vm1244, %v1876, 0
        %1883 = vmatpush.bf16.msra.mxu0 0
        %1884 = vmatpush.bf16.msra.mxu0 0
        %1885 = vmatpush.bf16.msra.mxu0 0
        %1886 = vmatpush.bf16.msra.mxu0 0
        %1887 = vmatpush.bf16.msra.mxu0 0
        %1888 = vmatpush.bf16.msra.mxu0 0
        %1889 = vmatpush.bf16.msra.mxu0 0
        %1890 = vmatpush.bf16.msra.mxu0 %v1881
        %1891 = vmatmul.bf16.gmra.mxu0 %v1878
        %v1892 = vpop.f32.mrf.mxu0
        %v1893 = vadd.f32 0.0, %v1892
        %v1894 = vpop.f32.mrf.mxu0
        %1895 = vdwg.mxu0
        %v1896 = vpack.c.bf16 %v1893, %v1893
        %v1898 = vsel %vm1208, %v1896, 0
        %v1901 = vsel %vm1244, %v1579, 0
        %1903 = vmatpush.bf16.msra.mxu0 0
        %1904 = vmatpush.bf16.msra.mxu0 0
        %1905 = vmatpush.bf16.msra.mxu0 0
        %1906 = vmatpush.bf16.msra.mxu0 0
        %1907 = vmatpush.bf16.msra.mxu0 0
        %1908 = vmatpush.bf16.msra.mxu0 0
        %1909 = vmatpush.bf16.msra.mxu0 0
        %1910 = vmatpush.bf16.msra.mxu0 %v1901
        %1911 = vmatmul.bf16.gmra.mxu0 %v1898
        %v1912 = vpop.f32.mrf.mxu0
        %v1913 = vadd.f32 0.0, %v1912
        %v1914 = vpop.f32.mrf.mxu0
        %1915 = vdwg.mxu0
        %v1916 = vadd.f32 %v1836, %v1913
        %1917 = vrot.lane.b32.xlu0 %v1736, 104
        %v1918 = vpop.permute.xlu0 %1917
        %1919 = vrot.lane.b32.xlu0 %v1741, 104
        %v1920 = vpop.permute.xlu0 %1919
        %v1922 = vsel %vm1208, %v1918, 0
        %v1925 = vsel %vm1208, %v1920, 0
        %1927 = vmatpush.bf16.xpose.msra.mxu0 0
        %1928 = vmatpush.bf16.xpose.msra.mxu0 0
        %1929 = vmatpush.bf16.xpose.msra.mxu0 0
        %1930 = vmatpush.bf16.xpose.msra.mxu0 0
        %1931 = vmatpush.bf16.xpose.msra.mxu0 0
        %1932 = vmatpush.bf16.xpose.msra.mxu0 0
        %1933 = vmatpush.bf16.xpose.msra.mxu0 0
        %1934 = vmatpush.bf16.xpose.msra.mxu0 %v1925
        %1935 = vmatmul.bf16.gmra.mxu0 %v1922
        %v1936 = vpop.f32.mrf.mxu0
        %v1937 = vadd.f32 0.0, %v1936
        %v1938 = vpop.f32.mrf.mxu0
        %1939 = vdwg.mxu0
        %v1940 = vmul.f32 %v1937, 0.35355338
        %v1941 = vsel %vm1208, %v1940, -inf
        %1942 = vmax.xlane.f32.xlu0 %v1941
        %v1943 = vpop.xlane.xlu0 %1942
        %v1944 = vsub.f32 %v1940, %v1943
        %v1945 = vmul.f32 %v1944, 1.442695
        %v1946 = vpow.pop %v1945
        %v1947 = vsel %vm1208, %v1946, 0.0
        %1948 = vadd.xlane.f32.xlu0 %v1947
        %v1949 = vpop.xlane.xlu0 %1948
        %v1950 = vrcp.pop %v1949
        %v1951 = vmul.f32 %v1946, %v1950
        %v1952 = vpack.c.bf16 %v1951, %v1951
        %1953 = vrot.lane.b32.xlu0 %v1778, 104
        %v1954 = vpop.permute.xlu0 %1953
        %v1956 = vsel %vm1208, %v1952, 0
        %v1959 = vsel %vm1244, %v1954, 0
        %1961 = vmatpush.bf16.msra.mxu0 0
        %1962 = vmatpush.bf16.msra.mxu0 0
        %1963 = vmatpush.bf16.msra.mxu0 0
        %1964 = vmatpush.bf16.msra.mxu0 0
        %1965 = vmatpush.bf16.msra.mxu0 0
        %1966 = vmatpush.bf16.msra.mxu0 0
        %1967 = vmatpush.bf16.msra.mxu0 0
        %1968 = vmatpush.bf16.msra.mxu0 %v1959
        %1969 = vmatmul.bf16.gmra.mxu0 %v1956
        %v1970 = vpop.f32.mrf.mxu0
        %v1971 = vadd.f32 0.0, %v1970
        %v1972 = vpop.f32.mrf.mxu0
        %1973 = vdwg.mxu0
        %v1974 = vpack.c.bf16 %v1971, %v1971
        %v1976 = vsel %vm1208, %v1974, 0
        %v1979 = vsel %vm1244, %v1580, 0
        %1981 = vmatpush.bf16.msra.mxu0 0
        %1982 = vmatpush.bf16.msra.mxu0 0
        %1983 = vmatpush.bf16.msra.mxu0 0
        %1984 = vmatpush.bf16.msra.mxu0 0
        %1985 = vmatpush.bf16.msra.mxu0 0
        %1986 = vmatpush.bf16.msra.mxu0 0
        %1987 = vmatpush.bf16.msra.mxu0 0
        %1988 = vmatpush.bf16.msra.mxu0 %v1979
        %1989 = vmatmul.bf16.gmra.mxu0 %v1976
        %v1990 = vpop.f32.mrf.mxu0
        %v1991 = vadd.f32 0.0, %v1990
        %v1992 = vpop.f32.mrf.mxu0
        %1993 = vdwg.mxu0
        %v1994 = vadd.f32 %v1916, %v1991
        %v1995 = vadd.f32 %v1564, %v1994
        %v1997 = vperm.slane %v1584, 0
        %v1999 = vadd.f32 %v1995, %v1997
        %v2000 = vsel %vm1132, %v1999, 0.0
        %2001 = vadd.xlane.f32.xlu0 %v2000
        %v2002 = vpop.xlane.xlu0 %2001
        %v2003 = vmul.f32 %v2002, %v1537
        %v2004 = vsub.f32 %v1999, %v2003
        %v2005 = vmul.f32 %v2004, %v2004
        %v2006 = vsel %vm1132, %v2005, 0.0
        %2007 = vadd.xlane.f32.xlu0 %v2006
        %v2008 = vpop.xlane.xlu0 %2007
        %v2009 = vmul.f32 %v2008, %v1537
        %v2010 = vadd.f32 %v2009, 1e-05
        %v2011 = vrsqrt.pop %v2010
        %v2012 = vmul.f32 %v2011, %v2010
        %v2013 = vmul.f32 %v2012, %v2011
        %v2014 = vmul.f32 0.5, %v2013
        %v2015 = vsub.f32 1.5, %v2014
        %v2016 = vmul.f32 %v2011, %v2015
        %vm2017 = vweird.f32 %v2010
        %vm2018 = vweird.f32 %v2011
        %vm2019 = vmor %vm2017, %vm2018
        %v2020 = vsel %vm2019, %v2011, %v2016
        %v2021 = vmul.f32 %v2004, %v2020
        %v2023 = vperm.slane %v1585, 0
        %v2025 = vmul.f32 %v2021, %v2023
        %v2027 = vperm.slane %v1586, 0
        %v2029 = vadd.f32 %v2025, %v2027
        %v2030 = vld [vmem:[%s22] sm:$0xf]
        %v2031 = vld [vmem:[%s22 + $0x4] sm:$0xf]
        %v2032 = vld [vmem:[%s22 + $0x8] sm:$0xf]
        %v2033 = vld [vmem:[%s22 + $0xc] sm:$0xf]
        %v2034 = vld [vmem:[#allocation21] sm:$0x1]
        %v2035 = vld [vmem:[%s24] sm:$0xf]
        %v2036 = vld [vmem:[%s24 + $0x4] sm:$0xf]
        %v2037 = vld [vmem:[%s24 + $0x8] sm:$0xf]
        %v2038 = vld [vmem:[%s24 + $0xc] sm:$0xf]
        %v2039 = vld [vmem:[%s24 + $0x10] sm:$0xf]
        %v2040 = vld [vmem:[%s24 + $0x14] sm:$0xf]
        %v2041 = vld [vmem:[%s24 + $0x18] sm:$0xf]
        %v2042 = vld [vmem:[%s24 + $0x1c] sm:$0xf]
        %v2043 = vld [vmem:[#allocation22] sm:$0x1]
        %v2044 = vld [vmem:[#allocation24] sm:$0x1]
        %v2045 = vld [vmem:[#allocation25] sm:$0x1]
        %v2046 = vpack.c.bf16 %v2029, %v2029
        %v2048 = vperm.slane %v2034, 0
        %v2054 = vunpack.c.l.b16 %v2030
        %v2055 = vunpack.c.l.b16 %v2031
        %v2056 = vunpack.c.l.b16 %v2032
        %v2057 = vunpack.c.l.b16 %v2033
        %v2058 = vpack.c.b16 %v2055, %v2054
        %v2059 = vpack.c.b16 %v2057, %v2056
        %v2063 = vsel %vm1132, %v2046, 0
        %2065 = vmatpush.bf16.msra.mxu0 0
        %2066 = vmatpush.bf16.msra.mxu0 0
        %2067 = vmatpush.bf16.msra.mxu0 0
        %2068 = vmatpush.bf16.msra.mxu0 0
        %2069 = vmatpush.bf16.msra.mxu0 0
        %2070 = vmatpush.bf16.msra.mxu0 0
        %2071 = vmatpush.bf16.msra.mxu0 %v2059
        %2072 = vmatpush.bf16.msra.mxu0 %v2058
        %2073 = vmatmul.bf16.gmra.mxu0 %v2063
        %v2074 = vpop.f32.mrf.mxu0
        %v2075 = vadd.f32 %v2048, %v2074
        %v2076 = vpop.f32.mrf.mxu0
        %2077 = vdwg.mxu0
        %v2078 = vmax.f32 %v2075, 0.0
        %v2079 = vpack.c.bf16 %v2078, %v2078
        %v2081 = vperm.slane %v2043, 0
        %v2091 = vunpack.c.l.b16 %v2035
        %v2092 = vunpack.c.l.b16 %v2036
        %v2093 = vunpack.c.l.b16 %v2037
        %v2094 = vunpack.c.l.b16 %v2038
        %v2095 = vunpack.c.l.b16 %v2039
        %v2096 = vunpack.c.l.b16 %v2040
        %v2097 = vunpack.c.l.b16 %v2041
        %v2098 = vunpack.c.l.b16 %v2042
        %v2099 = vpack.c.b16 %v2092, %v2091
        %v2100 = vpack.c.b16 %v2094, %v2093
        %v2101 = vpack.c.b16 %v2096, %v2095
        %v2102 = vpack.c.b16 %v2098, %v2097
        %vm2107 = vcmask 523264
        %v2109 = vsel %vm2107, %v2079, 0
        %2111 = vmatpush.bf16.msra.mxu0 0
        %2112 = vmatpush.bf16.msra.mxu0 0
        %2113 = vmatpush.bf16.msra.mxu0 0
        %2114 = vmatpush.bf16.msra.mxu0 0
        %2115 = vmatpush.bf16.msra.mxu0 %v2102
        %2116 = vmatpush.bf16.msra.mxu0 %v2101
        %2117 = vmatpush.bf16.msra.mxu0 %v2100
        %2118 = vmatpush.bf16.msra.mxu0 %v2099
        %2119 = vmatmul.bf16.gmra.mxu0 %v2109
        %v2120 = vpop.f32.mrf.mxu0
        %v2121 = vadd.f32 %v2081, %v2120
        %v2122 = vpop.f32.mrf.mxu0
        %2123 = vdwg.mxu0
        %v2124 = vadd.f32 %v2029, %v2121
        %v2125 = vsel %vm1132, %v2124, 0.0
        %2126 = vadd.xlane.f32.xlu0 %v2125
        %v2127 = vpop.xlane.xlu0 %2126
        %v2128 = vmul.f32 %v2127, %v1537
        %v2129 = vsub.f32 %v2124, %v2128
        %v2130 = vmul.f32 %v2129, %v2129
        %v2131 = vsel %vm1132, %v2130, 0.0
        %2132 = vadd.xlane.f32.xlu0 %v2131
        %v2133 = vpop.xlane.xlu0 %2132
        %v2134 = vmul.f32 %v2133, %v1537
        %v2135 = vadd.f32 %v2134, 1e-05
        %v2136 = vrsqrt.pop %v2135
        %v2137 = vmul.f32 %v2136, %v2135
        %v2138 = vmul.f32 %v2137, %v2136
        %v2139 = vmul.f32 0.5, %v2138
        %v2140 = vsub.f32 1.5, %v2139
        %v2141 = vmul.f32 %v2136, %v2140
        %vm2142 = vweird.f32 %v2135
        %vm2143 = vweird.f32 %v2136
        %vm2144 = vmor %vm2142, %vm2143
        %v2145 = vsel %vm2144, %v2136, %v2141
        %v2146 = vmul.f32 %v2129, %v2145
        %v2148 = vperm.slane %v2044, 0
        %v2150 = vmul.f32 %v2146, %v2148
        %v2152 = vperm.slane %v2045, 0
        %v2154 = vadd.f32 %v2150, %v2152
        %2155 = vst.msk [vmem:[%s1090] sm:$0xff] %vm1132, %v2154
        %p2156 = scmp.lt.s32.totalorder %s48, 1
        %s2157 = scalar_select %p2156, %s48, 1
        %s2158 = smul.addr %s2157, 8
        %s2159 = scalar_lea.vmem %s28, %s2158
        // Predicated region
        $region197: #{transformer_seq2seq.8} parent=131 // pred_check
          %p2160 = pneg %p664
        $region198: #{transformer_seq2seq.8} parent=131 // pred_check_branch
          %2162 = sbr.rel (%p2160) target = $region200
        $region199: #{transformer_seq2seq.8} parent=131 // pred_region
          _
        $region200: #{transformer_seq2seq.8} parent=131 // pred_fallthru
          _
      $region132: #{transformer_seq2seq.8} parent=5 // pred_fallthru
        _
      %p2163 = scmp.le.s32.totalorder 2, %s43
      // Predicated region
      $region201: #{transformer_seq2seq.8} parent=5 // pred_check
        %p2164 = pneg %p2163
      $region202: #{transformer_seq2seq.8} parent=5 // pred_check_branch
        %2166 = sbr.rel (%p2164) target = $region204
      $region203: #{transformer_seq2seq.8} parent=5 // pred_region
        %s2167 = ssub.s32 %s43, 2
        // Predicated region
        $region205: #{transformer_seq2seq.8} parent=203 // pred_check
          %p2168 = pneg %p670
        $region206: #{transformer_seq2seq.8} parent=203 // pred_check_branch
          %2170 = sbr.rel (%p2168) target = $region208
        $region207: #{transformer_seq2seq.8} parent=203 // pred_region
          %p2171 = scmp.lt.s32.totalorder %s49, 1
          %s2172 = scalar_select %p2171, %s49, 1
          %s2173 = smul.addr %s2172, 8
          %s2174 = scalar_lea.vmem %s28, %s2173
        $region208: #{transformer_seq2seq.8} parent=203 // pred_fallthru
          _
      $region204: #{transformer_seq2seq.8} parent=5 // pred_fallthru
        _
    $region6: #{transformer_seq2seq.8} parent=1 // loop_footer
      %s47 = sadd.s32 1, %s43
    $region7: #{transformer_seq2seq.8} parent=1 // loop_footer_branch
      %42 = sbr.rel target = $region3
    $region8: #{transformer_seq2seq.8} parent=1 // loop_exit
      _
    %2175 = vsyncpa [#allocation3], 1
    %s2176 = scalar_lea.sflag [#allocation3], 1
    %2177 = vsyncpa %s2176, 1
    %2178 = vsyncpa [#allocation5], 1
    %2179 = vsyncpa [#allocation8], 1
    %2180 = vsyncpa [#allocation11], 1
    %2181 = vsyncpa [#allocation14], 1
    %2182 = vsyncpa [#allocation17], 1
    %2183 = vsyncpa [#allocation20], 1
    %2184 = vsyncpa [#allocation23], 1
    %2185 = vsyncpa [#allocation26], 1

// kernel: transformer_seq2seq.7
$region0: #{transformer_seq2seq.7}
  #allocation0 [shape = 'u32[]', space=smem, size = 0x4, offset = 0x4, fixed_abs, tag = 'smem constant byte address 0x4 - core index']
  #allocation1 [shape = 'u32[72,128]{1,0:T(1,128)}', space=vmem, size = 0x9000, scoped, tag = 'internal scratch']
  %s0 = inlined_call_operand.vmem [shape: f32[2,8,32], index: 0, kind: input, shape index: {}]
  %s1 = inlined_call_operand.vmem [shape: f32[2,8,32], index: 1, kind: input, shape index: {}]
  %s2 = inlined_call_operand.vmem [shape: bf16[32,32], index: 2, kind: input, shape index: {}]
  %s3 = inlined_call_operand.vmem [shape: bf16[32,32], index: 3, kind: input, shape index: {}]
  %s4 = inlined_call_operand.vmem [shape: bf16[32,32], index: 4, kind: input, shape index: {}]
  %s5 = inlined_call_operand.vmem [shape: bf16[32,32], index: 5, kind: input, shape index: {}]
  %s6 = inlined_call_operand.vmem [shape: f32[1,32], index: 6, kind: input, shape index: {}]
  %s7 = inlined_call_operand.hbm [shape: f32[1,32], index: 7, kind: input, shape index: {}]
  %s8 = inlined_call_operand.hbm [shape: f32[1,32], index: 8, kind: input, shape index: {}]
  %s9 = inlined_call_operand.hbm [shape: f32[1,32], index: 9, kind: input, shape index: {}]
  %s10 = inlined_call_operand.hbm [shape: f32[1,32], index: 10, kind: input, shape index: {}]
  %s11 = inlined_call_operand.hbm [shape: f32[1,32], index: 11, kind: input, shape index: {}]
  %s12 = inlined_call_operand.vmem [shape: bf16[32,32], index: 12, kind: input, shape index: {}]
  %s13 = inlined_call_operand.vmem [shape: bf16[32,32], index: 13, kind: input, shape index: {}]
  %s14 = inlined_call_operand.vmem [shape: bf16[32,32], index: 14, kind: input, shape index: {}]
  %s15 = inlined_call_operand.vmem [shape: bf16[32,32], index: 15, kind: input, shape index: {}]
  %s16 = inlined_call_operand.hbm [shape: f32[1,32], index: 16, kind: input, shape index: {}]
  %s17 = inlined_call_operand.hbm [shape: f32[1,32], index: 17, kind: input, shape index: {}]
  %s18 = inlined_call_operand.hbm [shape: f32[1,32], index: 18, kind: input, shape index: {}]
  %s19 = inlined_call_operand.hbm [shape: f32[1,32], index: 19, kind: input, shape index: {}]
  %s20 = inlined_call_operand.hbm [shape: f32[1,32], index: 20, kind: input, shape index: {}]
  %s21 = inlined_call_operand.hbm [shape: f32[1,32], index: 21, kind: input, shape index: {}]
  %s22 = inlined_call_operand.vmem [shape: bf16[32,64], index: 22, kind: input, shape index: {}]
  %s23 = inlined_call_operand.hbm [shape: f32[1,64], index: 23, kind: input, shape index: {}]
  %s24 = inlined_call_operand.vmem [shape: bf16[64,32], index: 24, kind: input, shape index: {}]
  %s25 = inlined_call_operand.hbm [shape: f32[1,32], index: 25, kind: input, shape index: {}]
  %s26 = inlined_call_operand.hbm [shape: f32[1,32], index: 26, kind: input, shape index: {}]
  %s27 = inlined_call_operand.hbm [shape: f32[1,32], index: 27, kind: input, shape index: {}]
  %s28 = inlined_call_operand.vmem [shape: f32[2,8,32], index: 28, kind: output, shape index: {}]
  %s29 = sld [smem:[#allocation0]]
  $region205: #{transformer_seq2seq.7} parent=0
    _
  %s31 = ssub.s32 1, %s29
  %s32 = scalar_select 0, %s31, %s29
  $region1: #{transformer_seq2seq.7} parent=0
    #allocation2 [shape = 'u8[512]{0}', space=vmem, size = 0x400, scoped, tag = 'input window, operand 7, single buffered']
    #allocation3 [shape = 's32[2]{0}', space=sflag, size = 0x8, scoped, tag = 'scoped memory for transformer_seq2seq.7']
    #allocation4 [shape = 'u8[512]{0}', space=vmem, size = 0x400, scoped, tag = 'input window, operand 8, single buffered']
    #allocation5 [shape = 's32[1]{0}', space=sflag, size = 0x4, scoped, tag = 'scoped memory for transformer_seq2seq.7']
    #allocation6 [shape = 'u8[512]{0}', space=vmem, size = 0x400, scoped, tag = 'input window, operand 9, single buffered']
    #allocation7 [shape = 'u8[512]{0}', space=vmem, size = 0x400, scoped, tag = 'input window, operand 10, single buffered']
    #allocation8 [shape = 's32[1]{0}', space=sflag, size = 0x4, scoped, tag = 'scoped memory for transformer_seq2seq.7']
    #allocation9 [shape = 'u8[512]{0}', space=vmem, size = 0x400, scoped, tag = 'input window, operand 11, single buffered']
    #allocation10 [shape = 'u8[512]{0}', space=vmem, size = 0x400, scoped, tag = 'input window, operand 16, single buffered']
    #allocation11 [shape = 's32[1]{0}', space=sflag, size = 0x4, scoped, tag = 'scoped memory for transformer_seq2seq.7']
    #allocation12 [shape = 'u8[512]{0}', space=vmem, size = 0x400, scoped, tag = 'input window, operand 17, single buffered']
    #allocation13 [shape = 'u8[512]{0}', space=vmem, size = 0x400, scoped, tag = 'input window, operand 18, single buffered']
    #allocation14 [shape = 's32[1]{0}', space=sflag, size = 0x4, scoped, tag = 'scoped memory for transformer_seq2seq.7']
    #allocation15 [shape = 'u8[512]{0}', space=vmem, size = 0x400, scoped, tag = 'input window, operand 19, single buffered']
    #allocation16 [shape = 'u8[512]{0}', space=vmem, size = 0x400, scoped, tag = 'input window, operand 20, single buffered']
    #allocation17 [shape = 's32[1]{0}', space=sflag, size = 0x4, scoped, tag = 'scoped memory for transformer_seq2seq.7']
    #allocation18 [shape = 'u8[512]{0}', space=vmem, size = 0x400, scoped, tag = 'input window, operand 21, single buffered']
    #allocation19 [shape = 'u8[512]{0}', space=vmem, size = 0x400, scoped, tag = 'input window, operand 23, single buffered']
    #allocation20 [shape = 's32[1]{0}', space=sflag, size = 0x4, scoped, tag = 'scoped memory for transformer_seq2seq.7']
    #allocation21 [shape = 'u8[512]{0}', space=vmem, size = 0x400, scoped, tag = 'input window, operand 25, single buffered']
    #allocation22 [shape = 'u8[512]{0}', space=vmem, size = 0x400, scoped, tag = 'input window, operand 26, single buffered']
    #allocation23 [shape = 's32[1]{0}', space=sflag, size = 0x4, scoped, tag = 'scoped memory for transformer_seq2seq.7']
    #allocation24 [shape = 'u8[512]{0}', space=vmem, size = 0x400, scoped, tag = 'input window, operand 27, single buffered']
    %33 = vsyncpa [#allocation3], 0
    %34 = vsyncpa [#allocation5], 0
    %35 = vsyncpa [#allocation8], 0
    %36 = vsyncpa [#allocation11], 0
    %37 = vsyncpa [#allocation14], 0
    %38 = vsyncpa [#allocation17], 0
    %39 = vsyncpa [#allocation20], 0
    %40 = vsyncpa [#allocation23], 0
    loop: start=0, step=1, limit=4
    $region2: #{transformer_seq2seq.7} parent=1 // loop_pre_header
      _
    $region3: #{transformer_seq2seq.7} parent=1 // loop_header
      %s42 = sphi 0, %s46
      %p43 = scmp.ge.s32.totalorder %s42, 4
      %s52 = sphi 0, %s54
      %s55 = sphi 0, %s52
      %s56 = sphi 0, %s55
      %s72 = sphi 0, %s56
      %s78 = sphi 0, %s80
      %s81 = sphi 0, %s78
      %s82 = sphi 0, %s81
      %s98 = sphi 0, %s82
      %s102 = sphi 0, %s102
      %s104 = sphi 0, %s102
      %s105 = sphi 0, %s104
      %s119 = sphi 0, %s105
      %s123 = sphi 0, %s123
      %s125 = sphi 0, %s123
      %s126 = sphi 0, %s125
      %s140 = sphi 0, %s126
      %s144 = sphi 0, %s144
      %s146 = sphi 0, %s144
      %s147 = sphi 0, %s146
      %s161 = sphi 0, %s147
      %s165 = sphi 0, %s165
      %s167 = sphi 0, %s165
      %s168 = sphi 0, %s167
      %s182 = sphi 0, %s168
      %s186 = sphi 0, %s186
      %s188 = sphi 0, %s186
      %s189 = sphi 0, %s188
      %s203 = sphi 0, %s189
      %s207 = sphi 0, %s207
      %s209 = sphi 0, %s207
      %s210 = sphi 0, %s209
      %s224 = sphi 0, %s210
      %s228 = sphi 0, %s228
      %s230 = sphi 0, %s228
      %s231 = sphi 0, %s230
      %s245 = sphi 0, %s231
      %s249 = sphi 0, %s249
      %s251 = sphi 0, %s249
      %s252 = sphi 0, %s251
      %s266 = sphi 0, %s252
      %s270 = sphi 0, %s270
      %s272 = sphi 0, %s270
      %s273 = sphi 0, %s272
      %s287 = sphi 0, %s273
      %s291 = sphi 0, %s291
      %s293 = sphi 0, %s291
      %s294 = sphi 0, %s293
      %s308 = sphi 0, %s294
      %s312 = sphi 0, %s312
      %s314 = sphi 0, %s312
      %s315 = sphi 0, %s314
      %s329 = sphi 0, %s315
      %s333 = sphi 0, %s333
      %s335 = sphi 0, %s333
      %s336 = sphi 0, %s335
      %s350 = sphi 0, %s336
      %s354 = sphi 0, %s354
      %s356 = sphi 0, %s354
      %s357 = sphi 0, %s356
      %s371 = sphi 0, %s357
      %s375 = sphi 0, %s375
      %s377 = sphi 0, %s375
      %s378 = sphi 0, %s377
      %s392 = sphi 0, %s378
      %s396 = sphi 0, %s396
      %s398 = sphi 0, %s396
      %s399 = sphi 0, %s398
      %s413 = sphi 0, %s399
      %s417 = sphi 0, %s417
      %s419 = sphi 0, %s417
      %s420 = sphi 0, %s419
      %s434 = sphi 0, %s420
      %s438 = sphi 0, %s438
      %s440 = sphi 0, %s438
      %s441 = sphi 0, %s440
      %s455 = sphi 0, %s441
      %s459 = sphi 0, %s459
      %s461 = sphi 0, %s459
      %s462 = sphi 0, %s461
      %s476 = sphi 0, %s462
      %s480 = sphi 0, %s480
      %s482 = sphi 0, %s480
      %s483 = sphi 0, %s482
      %s497 = sphi 0, %s483
      %s501 = sphi 0, %s501
      %s503 = sphi 0, %s501
      %s504 = sphi 0, %s503
      %s518 = sphi 0, %s504
      %s522 = sphi 0, %s522
      %s524 = sphi 0, %s522
      %s525 = sphi 0, %s524
      %s539 = sphi 0, %s525
      %s543 = sphi 0, %s543
      %s545 = sphi 0, %s543
      %s546 = sphi 0, %s545
      %s560 = sphi 0, %s546
      %s564 = sphi 0, %s564
      %s566 = sphi 0, %s564
      %s567 = sphi 0, %s566
      %s581 = sphi 0, %s567
      %s585 = sphi 0, %s585
      %s587 = sphi 0, %s585
      %s588 = sphi 0, %s587
      %s602 = sphi 0, %s588
      %s606 = sphi 0, %s606
      %s608 = sphi 0, %s606
      %s609 = sphi 0, %s608
      %s623 = sphi 0, %s609
      %s627 = sphi 0, %s627
      %s629 = sphi 0, %s627
      %s630 = sphi 0, %s629
      %s644 = sphi 0, %s630
      %s650 = sphi 0, %s652
      %s653 = sphi 0, %s650
      %s654 = sphi 0, %s653
      %s670 = sphi 0, %s654
    $region4: #{transformer_seq2seq.7} parent=1 // loop_header_branch
      %45 = sbr.rel (%p43) target = $region8
    $region5: #{transformer_seq2seq.7} parent=1 // loop_body
      %s47 = ssub.s32 %s42, 1
      %s48 = ssub.s32 %s42, 2
      %s49 = sadd.s32 %s42, 1
      %s50 = ssub.s32 %s42, %s49
      %p51 = scmp.eq.s32.totalorder %s50, 0
      %s53 = sadd.s32 %s52, 1
      %s54 = scalar_select %p51, %s52, %s53
      %p57 = pneg %p51
      %p58 = scmp.eq.s32.totalorder %s42, 1
      %p59 = por %p57, %p58
      %p60 = scmp.ne.s32.totalorder %s52, %s55
      %p61 = scmp.eq.s32.totalorder %s42, 0
      %p62 = por %p60, %p61
      %p63 = scmp.ne.s32.totalorder %s52, %s55
      %p64 = scmp.eq.s32.totalorder %s47, 1
      %p65 = por %p63, %p64
      %p66 = scmp.ne.s32.totalorder %s55, %s56
      %p67 = scmp.eq.s32.totalorder %s47, 0
      %p68 = por %p66, %p67
      %p69 = scmp.ne.s32.totalorder %s55, %s56
      %p70 = scmp.eq.s32.totalorder %s48, 1
      %p71 = por %p69, %p70
      %p73 = scmp.ne.s32.totalorder %s56, %s72
      %p74 = scmp.eq.s32.totalorder %s48, 0
      %p75 = por %p73, %p74
      %s76 = ssub.s32 %s42, %s49
      %p77 = scmp.eq.s32.totalorder %s76, 0
      %s79 = sadd.s32 %s78, 1
      %s80 = scalar_select %p77, %s78, %s79
      %p83 = pneg %p77
      %p84 = scmp.eq.s32.totalorder %s42, 1
      %p85 = por %p83, %p84
      %p86 = scmp.ne.s32.totalorder %s78, %s81
      %p87 = scmp.eq.s32.totalorder %s42, 0
      %p88 = por %p86, %p87
      %p89 = scmp.ne.s32.totalorder %s78, %s81
      %p90 = scmp.eq.s32.totalorder %s47, 1
      %p91 = por %p89, %p90
      %p92 = scmp.ne.s32.totalorder %s81, %s82
      %p93 = scmp.eq.s32.totalorder %s47, 0
      %p94 = por %p92, %p93
      %p95 = scmp.ne.s32.totalorder %s81, %s82
      %p96 = scmp.eq.s32.totalorder %s48, 1
      %p97 = por %p95, %p96
      %p99 = scmp.ne.s32.totalorder %s82, %s98
      %p100 = scmp.eq.s32.totalorder %s48, 0
      %p101 = por %p99, %p100
      %s103 = sadd.s32 %s102, 1
      %p106 = scmp.eq.s32.totalorder %s42, 1
      %p107 = scmp.ne.s32.totalorder %s102, %s104
      %p108 = scmp.eq.s32.totalorder %s42, 0
      %p109 = por %p107, %p108
      %p110 = scmp.ne.s32.totalorder %s102, %s104
      %p111 = scmp.eq.s32.totalorder %s47, 1
      %p112 = por %p110, %p111
      %p113 = scmp.ne.s32.totalorder %s104, %s105
      %p114 = scmp.eq.s32.totalorder %s47, 0
      %p115 = por %p113, %p114
      %p116 = scmp.ne.s32.totalorder %s104, %s105
      %p117 = scmp.eq.s32.totalorder %s48, 1
      %p118 = por %p116, %p117
      %p120 = scmp.ne.s32.totalorder %s105, %s119
      %p121 = scmp.eq.s32.totalorder %s48, 0
      %p122 = por %p120, %p121
      %s124 = sadd.s32 %s123, 1
      %p127 = scmp.eq.s32.totalorder %s42, 1
      %p128 = scmp.ne.s32.totalorder %s123, %s125
      %p129 = scmp.eq.s32.totalorder %s42, 0
      %p130 = por %p128, %p129
      %p131 = scmp.ne.s32.totalorder %s123, %s125
      %p132 = scmp.eq.s32.totalorder %s47, 1
      %p133 = por %p131, %p132
      %p134 = scmp.ne.s32.totalorder %s125, %s126
      %p135 = scmp.eq.s32.totalorder %s47, 0
      %p136 = por %p134, %p135
      %p137 = scmp.ne.s32.totalorder %s125, %s126
      %p138 = scmp.eq.s32.totalorder %s48, 1
      %p139 = por %p137, %p138
      %p141 = scmp.ne.s32.totalorder %s126, %s140
      %p142 = scmp.eq.s32.totalorder %s48, 0
      %p143 = por %p141, %p142
      %s145 = sadd.s32 %s144, 1
      %p148 = scmp.eq.s32.totalorder %s42, 1
      %p149 = scmp.ne.s32.totalorder %s144, %s146
      %p150 = scmp.eq.s32.totalorder %s42, 0
      %p151 = por %p149, %p150
      %p152 = scmp.ne.s32.totalorder %s144, %s146
      %p153 = scmp.eq.s32.totalorder %s47, 1
      %p154 = por %p152, %p153
      %p155 = scmp.ne.s32.totalorder %s146, %s147
      %p156 = scmp.eq.s32.totalorder %s47, 0
      %p157 = por %p155, %p156
      %p158 = scmp.ne.s32.totalorder %s146, %s147
      %p159 = scmp.eq.s32.totalorder %s48, 1
      %p160 = por %p158, %p159
      %p162 = scmp.ne.s32.totalorder %s147, %s161
      %p163 = scmp.eq.s32.totalorder %s48, 0
      %p164 = por %p162, %p163
      %s166 = sadd.s32 %s165, 1
      %p169 = scmp.eq.s32.totalorder %s42, 1
      %p170 = scmp.ne.s32.totalorder %s165, %s167
      %p171 = scmp.eq.s32.totalorder %s42, 0
      %p172 = por %p170, %p171
      %p173 = scmp.ne.s32.totalorder %s165, %s167
      %p174 = scmp.eq.s32.totalorder %s47, 1
      %p175 = por %p173, %p174
      %p176 = scmp.ne.s32.totalorder %s167, %s168
      %p177 = scmp.eq.s32.totalorder %s47, 0
      %p178 = por %p176, %p177
      %p179 = scmp.ne.s32.totalorder %s167, %s168
      %p180 = scmp.eq.s32.totalorder %s48, 1
      %p181 = por %p179, %p180
      %p183 = scmp.ne.s32.totalorder %s168, %s182
      %p184 = scmp.eq.s32.totalorder %s48, 0
      %p185 = por %p183, %p184
      %s187 = sadd.s32 %s186, 1
      %p190 = scmp.eq.s32.totalorder %s42, 1
      %p191 = scmp.ne.s32.totalorder %s186, %s188
      %p192 = scmp.eq.s32.totalorder %s42, 0
      %p193 = por %p191, %p192
      %p194 = scmp.ne.s32.totalorder %s186, %s188
      %p195 = scmp.eq.s32.totalorder %s47, 1
      %p196 = por %p194, %p195
      %p197 = scmp.ne.s32.totalorder %s188, %s189
      %p198 = scmp.eq.s32.totalorder %s47, 0
      %p199 = por %p197, %p198
      %p200 = scmp.ne.s32.totalorder %s188, %s189
      %p201 = scmp.eq.s32.totalorder %s48, 1
      %p202 = por %p200, %p201
      %p204 = scmp.ne.s32.totalorder %s189, %s203
      %p205 = scmp.eq.s32.totalorder %s48, 0
      %p206 = por %p204, %p205
      %s208 = sadd.s32 %s207, 1
      %p211 = scmp.eq.s32.totalorder %s42, 1
      %p212 = scmp.ne.s32.totalorder %s207, %s209
      %p213 = scmp.eq.s32.totalorder %s42, 0
      %p214 = por %p212, %p213
      %p215 = scmp.ne.s32.totalorder %s207, %s209
      %p216 = scmp.eq.s32.totalorder %s47, 1
      %p217 = por %p215, %p216
      %p218 = scmp.ne.s32.totalorder %s209, %s210
      %p219 = scmp.eq.s32.totalorder %s47, 0
      %p220 = por %p218, %p219
      %p221 = scmp.ne.s32.totalorder %s209, %s210
      %p222 = scmp.eq.s32.totalorder %s48, 1
      %p223 = por %p221, %p222
      %p225 = scmp.ne.s32.totalorder %s210, %s224
      %p226 = scmp.eq.s32.totalorder %s48, 0
      %p227 = por %p225, %p226
      %s229 = sadd.s32 %s228, 1
      %p232 = scmp.eq.s32.totalorder %s42, 1
      %p233 = scmp.ne.s32.totalorder %s228, %s230
      %p234 = scmp.eq.s32.totalorder %s42, 0
      %p235 = por %p233, %p234
      %p236 = scmp.ne.s32.totalorder %s228, %s230
      %p237 = scmp.eq.s32.totalorder %s47, 1
      %p238 = por %p236, %p237
      %p239 = scmp.ne.s32.totalorder %s230, %s231
      %p240 = scmp.eq.s32.totalorder %s47, 0
      %p241 = por %p239, %p240
      %p242 = scmp.ne.s32.totalorder %s230, %s231
      %p243 = scmp.eq.s32.totalorder %s48, 1
      %p244 = por %p242, %p243
      %p246 = scmp.ne.s32.totalorder %s231, %s245
      %p247 = scmp.eq.s32.totalorder %s48, 0
      %p248 = por %p246, %p247
      %s250 = sadd.s32 %s249, 1
      %p253 = scmp.eq.s32.totalorder %s42, 1
      %p254 = scmp.ne.s32.totalorder %s249, %s251
      %p255 = scmp.eq.s32.totalorder %s42, 0
      %p256 = por %p254, %p255
      %p257 = scmp.ne.s32.totalorder %s249, %s251
      %p258 = scmp.eq.s32.totalorder %s47, 1
      %p259 = por %p257, %p258
      %p260 = scmp.ne.s32.totalorder %s251, %s252
      %p261 = scmp.eq.s32.totalorder %s47, 0
      %p262 = por %p260, %p261
      %p263 = scmp.ne.s32.totalorder %s251, %s252
      %p264 = scmp.eq.s32.totalorder %s48, 1
      %p265 = por %p263, %p264
      %p267 = scmp.ne.s32.totalorder %s252, %s266
      %p268 = scmp.eq.s32.totalorder %s48, 0
      %p269 = por %p267, %p268
      %s271 = sadd.s32 %s270, 1
      %p274 = scmp.eq.s32.totalorder %s42, 1
      %p275 = scmp.ne.s32.totalorder %s270, %s272
      %p276 = scmp.eq.s32.totalorder %s42, 0
      %p277 = por %p275, %p276
      %p278 = scmp.ne.s32.totalorder %s270, %s272
      %p279 = scmp.eq.s32.totalorder %s47, 1
      %p280 = por %p278, %p279
      %p281 = scmp.ne.s32.totalorder %s272, %s273
      %p282 = scmp.eq.s32.totalorder %s47, 0
      %p283 = por %p281, %p282
      %p284 = scmp.ne.s32.totalorder %s272, %s273
      %p285 = scmp.eq.s32.totalorder %s48, 1
      %p286 = por %p284, %p285
      %p288 = scmp.ne.s32.totalorder %s273, %s287
      %p289 = scmp.eq.s32.totalorder %s48, 0
      %p290 = por %p288, %p289
      %s292 = sadd.s32 %s291, 1
      %p295 = scmp.eq.s32.totalorder %s42, 1
      %p296 = scmp.ne.s32.totalorder %s291, %s293
      %p297 = scmp.eq.s32.totalorder %s42, 0
      %p298 = por %p296, %p297
      %p299 = scmp.ne.s32.totalorder %s291, %s293
      %p300 = scmp.eq.s32.totalorder %s47, 1
      %p301 = por %p299, %p300
      %p302 = scmp.ne.s32.totalorder %s293, %s294
      %p303 = scmp.eq.s32.totalorder %s47, 0
      %p304 = por %p302, %p303
      %p305 = scmp.ne.s32.totalorder %s293, %s294
      %p306 = scmp.eq.s32.totalorder %s48, 1
      %p307 = por %p305, %p306
      %p309 = scmp.ne.s32.totalorder %s294, %s308
      %p310 = scmp.eq.s32.totalorder %s48, 0
      %p311 = por %p309, %p310
      %s313 = sadd.s32 %s312, 1
      %p316 = scmp.eq.s32.totalorder %s42, 1
      %p317 = scmp.ne.s32.totalorder %s312, %s314
      %p318 = scmp.eq.s32.totalorder %s42, 0
      %p319 = por %p317, %p318
      %p320 = scmp.ne.s32.totalorder %s312, %s314
      %p321 = scmp.eq.s32.totalorder %s47, 1
      %p322 = por %p320, %p321
      %p323 = scmp.ne.s32.totalorder %s314, %s315
      %p324 = scmp.eq.s32.totalorder %s47, 0
      %p325 = por %p323, %p324
      %p326 = scmp.ne.s32.totalorder %s314, %s315
      %p327 = scmp.eq.s32.totalorder %s48, 1
      %p328 = por %p326, %p327
      %p330 = scmp.ne.s32.totalorder %s315, %s329
      %p331 = scmp.eq.s32.totalorder %s48, 0
      %p332 = por %p330, %p331
      %s334 = sadd.s32 %s333, 1
      %p337 = scmp.eq.s32.totalorder %s42, 1
      %p338 = scmp.ne.s32.totalorder %s333, %s335
      %p339 = scmp.eq.s32.totalorder %s42, 0
      %p340 = por %p338, %p339
      %p341 = scmp.ne.s32.totalorder %s333, %s335
      %p342 = scmp.eq.s32.totalorder %s47, 1
      %p343 = por %p341, %p342
      %p344 = scmp.ne.s32.totalorder %s335, %s336
      %p345 = scmp.eq.s32.totalorder %s47, 0
      %p346 = por %p344, %p345
      %p347 = scmp.ne.s32.totalorder %s335, %s336
      %p348 = scmp.eq.s32.totalorder %s48, 1
      %p349 = por %p347, %p348
      %p351 = scmp.ne.s32.totalorder %s336, %s350
      %p352 = scmp.eq.s32.totalorder %s48, 0
      %p353 = por %p351, %p352
      %s355 = sadd.s32 %s354, 1
      %p358 = scmp.eq.s32.totalorder %s42, 1
      %p359 = scmp.ne.s32.totalorder %s354, %s356
      %p360 = scmp.eq.s32.totalorder %s42, 0
      %p361 = por %p359, %p360
      %p362 = scmp.ne.s32.totalorder %s354, %s356
      %p363 = scmp.eq.s32.totalorder %s47, 1
      %p364 = por %p362, %p363
      %p365 = scmp.ne.s32.totalorder %s356, %s357
      %p366 = scmp.eq.s32.totalorder %s47, 0
      %p367 = por %p365, %p366
      %p368 = scmp.ne.s32.totalorder %s356, %s357
      %p369 = scmp.eq.s32.totalorder %s48, 1
      %p370 = por %p368, %p369
      %p372 = scmp.ne.s32.totalorder %s357, %s371
      %p373 = scmp.eq.s32.totalorder %s48, 0
      %p374 = por %p372, %p373
      %s376 = sadd.s32 %s375, 1
      %p379 = scmp.eq.s32.totalorder %s42, 1
      %p380 = scmp.ne.s32.totalorder %s375, %s377
      %p381 = scmp.eq.s32.totalorder %s42, 0
      %p382 = por %p380, %p381
      %p383 = scmp.ne.s32.totalorder %s375, %s377
      %p384 = scmp.eq.s32.totalorder %s47, 1
      %p385 = por %p383, %p384
      %p386 = scmp.ne.s32.totalorder %s377, %s378
      %p387 = scmp.eq.s32.totalorder %s47, 0
      %p388 = por %p386, %p387
      %p389 = scmp.ne.s32.totalorder %s377, %s378
      %p390 = scmp.eq.s32.totalorder %s48, 1
      %p391 = por %p389, %p390
      %p393 = scmp.ne.s32.totalorder %s378, %s392
      %p394 = scmp.eq.s32.totalorder %s48, 0
      %p395 = por %p393, %p394
      %s397 = sadd.s32 %s396, 1
      %p400 = scmp.eq.s32.totalorder %s42, 1
      %p401 = scmp.ne.s32.totalorder %s396, %s398
      %p402 = scmp.eq.s32.totalorder %s42, 0
      %p403 = por %p401, %p402
      %p404 = scmp.ne.s32.totalorder %s396, %s398
      %p405 = scmp.eq.s32.totalorder %s47, 1
      %p406 = por %p404, %p405
      %p407 = scmp.ne.s32.totalorder %s398, %s399
      %p408 = scmp.eq.s32.totalorder %s47, 0
      %p409 = por %p407, %p408
      %p410 = scmp.ne.s32.totalorder %s398, %s399
      %p411 = scmp.eq.s32.totalorder %s48, 1
      %p412 = por %p410, %p411
      %p414 = scmp.ne.s32.totalorder %s399, %s413
      %p415 = scmp.eq.s32.totalorder %s48, 0
      %p416 = por %p414, %p415
      %s418 = sadd.s32 %s417, 1
      %p421 = scmp.eq.s32.totalorder %s42, 1
      %p422 = scmp.ne.s32.totalorder %s417, %s419
      %p423 = scmp.eq.s32.totalorder %s42, 0
      %p424 = por %p422, %p423
      %p425 = scmp.ne.s32.totalorder %s417, %s419
      %p426 = scmp.eq.s32.totalorder %s47, 1
      %p427 = por %p425, %p426
      %p428 = scmp.ne.s32.totalorder %s419, %s420
      %p429 = scmp.eq.s32.totalorder %s47, 0
      %p430 = por %p428, %p429
      %p431 = scmp.ne.s32.totalorder %s419, %s420
      %p432 = scmp.eq.s32.totalorder %s48, 1
      %p433 = por %p431, %p432
      %p435 = scmp.ne.s32.totalorder %s420, %s434
      %p436 = scmp.eq.s32.totalorder %s48, 0
      %p437 = por %p435, %p436
      %s439 = sadd.s32 %s438, 1
      %p442 = scmp.eq.s32.totalorder %s42, 1
      %p443 = scmp.ne.s32.totalorder %s438, %s440
      %p444 = scmp.eq.s32.totalorder %s42, 0
      %p445 = por %p443, %p444
      %p446 = scmp.ne.s32.totalorder %s438, %s440
      %p447 = scmp.eq.s32.totalorder %s47, 1
      %p448 = por %p446, %p447
      %p449 = scmp.ne.s32.totalorder %s440, %s441
      %p450 = scmp.eq.s32.totalorder %s47, 0
      %p451 = por %p449, %p450
      %p452 = scmp.ne.s32.totalorder %s440, %s441
      %p453 = scmp.eq.s32.totalorder %s48, 1
      %p454 = por %p452, %p453
      %p456 = scmp.ne.s32.totalorder %s441, %s455
      %p457 = scmp.eq.s32.totalorder %s48, 0
      %p458 = por %p456, %p457
      %s460 = sadd.s32 %s459, 1
      %p463 = scmp.eq.s32.totalorder %s42, 1
      %p464 = scmp.ne.s32.totalorder %s459, %s461
      %p465 = scmp.eq.s32.totalorder %s42, 0
      %p466 = por %p464, %p465
      %p467 = scmp.ne.s32.totalorder %s459, %s461
      %p468 = scmp.eq.s32.totalorder %s47, 1
      %p469 = por %p467, %p468
      %p470 = scmp.ne.s32.totalorder %s461, %s462
      %p471 = scmp.eq.s32.totalorder %s47, 0
      %p472 = por %p470, %p471
      %p473 = scmp.ne.s32.totalorder %s461, %s462
      %p474 = scmp.eq.s32.totalorder %s48, 1
      %p475 = por %p473, %p474
      %p477 = scmp.ne.s32.totalorder %s462, %s476
      %p478 = scmp.eq.s32.totalorder %s48, 0
      %p479 = por %p477, %p478
      %s481 = sadd.s32 %s480, 1
      %p484 = scmp.eq.s32.totalorder %s42, 1
      %p485 = scmp.ne.s32.totalorder %s480, %s482
      %p486 = scmp.eq.s32.totalorder %s42, 0
      %p487 = por %p485, %p486
      %p488 = scmp.ne.s32.totalorder %s480, %s482
      %p489 = scmp.eq.s32.totalorder %s47, 1
      %p490 = por %p488, %p489
      %p491 = scmp.ne.s32.totalorder %s482, %s483
      %p492 = scmp.eq.s32.totalorder %s47, 0
      %p493 = por %p491, %p492
      %p494 = scmp.ne.s32.totalorder %s482, %s483
      %p495 = scmp.eq.s32.totalorder %s48, 1
      %p496 = por %p494, %p495
      %p498 = scmp.ne.s32.totalorder %s483, %s497
      %p499 = scmp.eq.s32.totalorder %s48, 0
      %p500 = por %p498, %p499
      %s502 = sadd.s32 %s501, 1
      %p505 = scmp.eq.s32.totalorder %s42, 1
      %p506 = scmp.ne.s32.totalorder %s501, %s503
      %p507 = scmp.eq.s32.totalorder %s42, 0
      %p508 = por %p506, %p507
      %p509 = scmp.ne.s32.totalorder %s501, %s503
      %p510 = scmp.eq.s32.totalorder %s47, 1
      %p511 = por %p509, %p510
      %p512 = scmp.ne.s32.totalorder %s503, %s504
      %p513 = scmp.eq.s32.totalorder %s47, 0
      %p514 = por %p512, %p513
      %p515 = scmp.ne.s32.totalorder %s503, %s504
      %p516 = scmp.eq.s32.totalorder %s48, 1
      %p517 = por %p515, %p516
      %p519 = scmp.ne.s32.totalorder %s504, %s518
      %p520 = scmp.eq.s32.totalorder %s48, 0
      %p521 = por %p519, %p520
      %s523 = sadd.s32 %s522, 1
      %p526 = scmp.eq.s32.totalorder %s42, 1
      %p527 = scmp.ne.s32.totalorder %s522, %s524
      %p528 = scmp.eq.s32.totalorder %s42, 0
      %p529 = por %p527, %p528
      %p530 = scmp.ne.s32.totalorder %s522, %s524
      %p531 = scmp.eq.s32.totalorder %s47, 1
      %p532 = por %p530, %p531
      %p533 = scmp.ne.s32.totalorder %s524, %s525
      %p534 = scmp.eq.s32.totalorder %s47, 0
      %p535 = por %p533, %p534
      %p536 = scmp.ne.s32.totalorder %s524, %s525
      %p537 = scmp.eq.s32.totalorder %s48, 1
      %p538 = por %p536, %p537
      %p540 = scmp.ne.s32.totalorder %s525, %s539
      %p541 = scmp.eq.s32.totalorder %s48, 0
      %p542 = por %p540, %p541
      %s544 = sadd.s32 %s543, 1
      %p547 = scmp.eq.s32.totalorder %s42, 1
      %p548 = scmp.ne.s32.totalorder %s543, %s545
      %p549 = scmp.eq.s32.totalorder %s42, 0
      %p550 = por %p548, %p549
      %p551 = scmp.ne.s32.totalorder %s543, %s545
      %p552 = scmp.eq.s32.totalorder %s47, 1
      %p553 = por %p551, %p552
      %p554 = scmp.ne.s32.totalorder %s545, %s546
      %p555 = scmp.eq.s32.totalorder %s47, 0
      %p556 = por %p554, %p555
      %p557 = scmp.ne.s32.totalorder %s545, %s546
      %p558 = scmp.eq.s32.totalorder %s48, 1
      %p559 = por %p557, %p558
      %p561 = scmp.ne.s32.totalorder %s546, %s560
      %p562 = scmp.eq.s32.totalorder %s48, 0
      %p563 = por %p561, %p562
      %s565 = sadd.s32 %s564, 1
      %p568 = scmp.eq.s32.totalorder %s42, 1
      %p569 = scmp.ne.s32.totalorder %s564, %s566
      %p570 = scmp.eq.s32.totalorder %s42, 0
      %p571 = por %p569, %p570
      %p572 = scmp.ne.s32.totalorder %s564, %s566
      %p573 = scmp.eq.s32.totalorder %s47, 1
      %p574 = por %p572, %p573
      %p575 = scmp.ne.s32.totalorder %s566, %s567
      %p576 = scmp.eq.s32.totalorder %s47, 0
      %p577 = por %p575, %p576
      %p578 = scmp.ne.s32.totalorder %s566, %s567
      %p579 = scmp.eq.s32.totalorder %s48, 1
      %p580 = por %p578, %p579
      %p582 = scmp.ne.s32.totalorder %s567, %s581
      %p583 = scmp.eq.s32.totalorder %s48, 0
      %p584 = por %p582, %p583
      %s586 = sadd.s32 %s585, 1
      %p589 = scmp.eq.s32.totalorder %s42, 1
      %p590 = scmp.ne.s32.totalorder %s585, %s587
      %p591 = scmp.eq.s32.totalorder %s42, 0
      %p592 = por %p590, %p591
      %p593 = scmp.ne.s32.totalorder %s585, %s587
      %p594 = scmp.eq.s32.totalorder %s47, 1
      %p595 = por %p593, %p594
      %p596 = scmp.ne.s32.totalorder %s587, %s588
      %p597 = scmp.eq.s32.totalorder %s47, 0
      %p598 = por %p596, %p597
      %p599 = scmp.ne.s32.totalorder %s587, %s588
      %p600 = scmp.eq.s32.totalorder %s48, 1
      %p601 = por %p599, %p600
      %p603 = scmp.ne.s32.totalorder %s588, %s602
      %p604 = scmp.eq.s32.totalorder %s48, 0
      %p605 = por %p603, %p604
      %s607 = sadd.s32 %s606, 1
      %p610 = scmp.eq.s32.totalorder %s42, 1
      %p611 = scmp.ne.s32.totalorder %s606, %s608
      %p612 = scmp.eq.s32.totalorder %s42, 0
      %p613 = por %p611, %p612
      %p614 = scmp.ne.s32.totalorder %s606, %s608
      %p615 = scmp.eq.s32.totalorder %s47, 1
      %p616 = por %p614, %p615
      %p617 = scmp.ne.s32.totalorder %s608, %s609
      %p618 = scmp.eq.s32.totalorder %s47, 0
      %p619 = por %p617, %p618
      %p620 = scmp.ne.s32.totalorder %s608, %s609
      %p621 = scmp.eq.s32.totalorder %s48, 1
      %p622 = por %p620, %p621
      %p624 = scmp.ne.s32.totalorder %s609, %s623
      %p625 = scmp.eq.s32.totalorder %s48, 0
      %p626 = por %p624, %p625
      %s628 = sadd.s32 %s627, 1
      %p631 = scmp.eq.s32.totalorder %s42, 1
      %p632 = scmp.ne.s32.totalorder %s627, %s629
      %p633 = scmp.eq.s32.totalorder %s42, 0
      %p634 = por %p632, %p633
      %p635 = scmp.ne.s32.totalorder %s627, %s629
      %p636 = scmp.eq.s32.totalorder %s47, 1
      %p637 = por %p635, %p636
      %p638 = scmp.ne.s32.totalorder %s629, %s630
      %p639 = scmp.eq.s32.totalorder %s47, 0
      %p640 = por %p638, %p639
      %p641 = scmp.ne.s32.totalorder %s629, %s630
      %p642 = scmp.eq.s32.totalorder %s48, 1
      %p643 = por %p641, %p642
      %p645 = scmp.ne.s32.totalorder %s630, %s644
      %p646 = scmp.eq.s32.totalorder %s48, 0
      %p647 = por %p645, %p646
      %s648 = ssub.s32 %s42, %s49
      %p649 = scmp.eq.s32.totalorder %s648, 0
      %s651 = sadd.s32 %s650, 1
      %s652 = scalar_select %p649, %s650, %s651
      %p655 = pneg %p649
      %p656 = scmp.eq.s32.totalorder %s42, 1
      %p657 = por %p655, %p656
      %p658 = scmp.ne.s32.totalorder %s650, %s653
      %p659 = scmp.eq.s32.totalorder %s42, 0
      %p660 = por %p658, %p659
      %p661 = scmp.ne.s32.totalorder %s650, %s653
      %p662 = scmp.eq.s32.totalorder %s47, 1
      %p663 = por %p661, %p662
      %p664 = scmp.ne.s32.totalorder %s653, %s654
      %p665 = scmp.eq.s32.totalorder %s47, 0
      %p666 = por %p664, %p665
      %p667 = scmp.ne.s32.totalorder %s653, %s654
      %p668 = scmp.eq.s32.totalorder %s48, 1
      %p669 = por %p667, %p668
      %p671 = scmp.ne.s32.totalorder %s654, %s670
      %p672 = scmp.eq.s32.totalorder %s48, 0
      %p673 = por %p671, %p672
      %p674 = scmp.le.s32.totalorder 1, %s42
      %p675 = scmp.lt.s32.totalorder %s42, 3
      %p676 = pnand %p674, %p675
      %p677 = pneg %p676
      // Predicated region
      $region9: #{transformer_seq2seq.7} parent=5 // pred_check
        _
      $region10: #{transformer_seq2seq.7} parent=5 // pred_check_branch
        %679 = sbr.rel (%p676) target = $region12
      $region11: #{transformer_seq2seq.7} parent=5 // pred_region
        %s680 = ssub.s32 %s42, 1
        // Predicated region
        $region13: #{transformer_seq2seq.7} parent=11 // pred_check
          %p681 = pneg %p115
        $region14: #{transformer_seq2seq.7} parent=11 // pred_check_branch
          %683 = sbr.rel (%p681) target = $region16
        $region15: #{transformer_seq2seq.7} parent=11 // pred_region
          _
        $region16: #{transformer_seq2seq.7} parent=11 // pred_fallthru
          _
        // Predicated region
        $region17: #{transformer_seq2seq.7} parent=11 // pred_check
          %p684 = pneg %p136
        $region18: #{transformer_seq2seq.7} parent=11 // pred_check_branch
          %686 = sbr.rel (%p684) target = $region20
        $region19: #{transformer_seq2seq.7} parent=11 // pred_region
          _
        $region20: #{transformer_seq2seq.7} parent=11 // pred_fallthru
          _
        // Predicated region
        $region21: #{transformer_seq2seq.7} parent=11 // pred_check
          %p687 = pneg %p157
        $region22: #{transformer_seq2seq.7} parent=11 // pred_check_branch
          %689 = sbr.rel (%p687) target = $region24
        $region23: #{transformer_seq2seq.7} parent=11 // pred_region
          _
        $region24: #{transformer_seq2seq.7} parent=11 // pred_fallthru
          _
        // Predicated region
        $region25: #{transformer_seq2seq.7} parent=11 // pred_check
          %p690 = pneg %p178
        $region26: #{transformer_seq2seq.7} parent=11 // pred_check_branch
          %692 = sbr.rel (%p690) target = $region28
        $region27: #{transformer_seq2seq.7} parent=11 // pred_region
          _
        $region28: #{transformer_seq2seq.7} parent=11 // pred_fallthru
          _
        // Predicated region
        $region29: #{transformer_seq2seq.7} parent=11 // pred_check
          %p693 = pneg %p199
        $region30: #{transformer_seq2seq.7} parent=11 // pred_check_branch
          %695 = sbr.rel (%p693) target = $region32
        $region31: #{transformer_seq2seq.7} parent=11 // pred_region
          _
        $region32: #{transformer_seq2seq.7} parent=11 // pred_fallthru
          _
        // Predicated region
        $region33: #{transformer_seq2seq.7} parent=11 // pred_check
          %p696 = pneg %p220
        $region34: #{transformer_seq2seq.7} parent=11 // pred_check_branch
          %698 = sbr.rel (%p696) target = $region36
        $region35: #{transformer_seq2seq.7} parent=11 // pred_region
          %700 = vsyncadd [#allocation3], 0
          %s702 = sshll.u32 %s7, 4
          %s703 = int_to_ptr.hbm [resolvable:$true] %s702
          %s704 = sshll.u32 [#allocation2], 4
          %s705 = int_to_ptr.vmem [resolvable:$true] %s704
          %707 = dma.hbm_to_vmem [thread:$0]  %s703, 16, %s705, [#allocation3]
        $region36: #{transformer_seq2seq.7} parent=11 // pred_fallthru
          _
        // Predicated region
        $region37: #{transformer_seq2seq.7} parent=11 // pred_check
          %p708 = pneg %p241
        $region38: #{transformer_seq2seq.7} parent=11 // pred_check_branch
          %710 = sbr.rel (%p708) target = $region40
        $region39: #{transformer_seq2seq.7} parent=11 // pred_region
          %712 = vsyncadd [#allocation5], 0
          %s714 = sshll.u32 %s8, 4
          %s715 = int_to_ptr.hbm [resolvable:$true] %s714
          %s716 = sshll.u32 [#allocation4], 4
          %s717 = int_to_ptr.vmem [resolvable:$true] %s716
          %719 = dma.hbm_to_vmem [thread:$0]  %s715, 16, %s717, [#allocation5]
        $region40: #{transformer_seq2seq.7} parent=11 // pred_fallthru
          _
        // Predicated region
        $region41: #{transformer_seq2seq.7} parent=11 // pred_check
          %p720 = pneg %p262
        $region42: #{transformer_seq2seq.7} parent=11 // pred_check_branch
          %722 = sbr.rel (%p720) target = $region44
        $region43: #{transformer_seq2seq.7} parent=11 // pred_region
          %724 = vsyncadd [#allocation5], 0
          %s726 = sshll.u32 %s9, 4
          %s727 = int_to_ptr.hbm [resolvable:$true] %s726
          %s728 = sshll.u32 [#allocation6], 4
          %s729 = int_to_ptr.vmem [resolvable:$true] %s728
          %731 = dma.hbm_to_vmem [thread:$0]  %s727, 16, %s729, [#allocation5]
        $region44: #{transformer_seq2seq.7} parent=11 // pred_fallthru
          _
        // Predicated region
        $region45: #{transformer_seq2seq.7} parent=11 // pred_check
          %p732 = pneg %p283
        $region46: #{transformer_seq2seq.7} parent=11 // pred_check_branch
          %734 = sbr.rel (%p732) target = $region48
        $region47: #{transformer_seq2seq.7} parent=11 // pred_region
          %736 = vsyncadd [#allocation8], 0
          %s738 = sshll.u32 %s10, 4
          %s739 = int_to_ptr.hbm [resolvable:$true] %s738
          %s740 = sshll.u32 [#allocation7], 4
          %s741 = int_to_ptr.vmem [resolvable:$true] %s740
          %743 = dma.hbm_to_vmem [thread:$0]  %s739, 16, %s741, [#allocation8]
        $region48: #{transformer_seq2seq.7} parent=11 // pred_fallthru
          _
        // Predicated region
        $region49: #{transformer_seq2seq.7} parent=11 // pred_check
          %p744 = pneg %p304
        $region50: #{transformer_seq2seq.7} parent=11 // pred_check_branch
          %746 = sbr.rel (%p744) target = $region52
        $region51: #{transformer_seq2seq.7} parent=11 // pred_region
          %748 = vsyncadd [#allocation8], 0
          %s750 = sshll.u32 %s11, 4
          %s751 = int_to_ptr.hbm [resolvable:$true] %s750
          %s752 = sshll.u32 [#allocation9], 4
          %s753 = int_to_ptr.vmem [resolvable:$true] %s752
          %755 = dma.hbm_to_vmem [thread:$0]  %s751, 16, %s753, [#allocation8]
        $region52: #{transformer_seq2seq.7} parent=11 // pred_fallthru
          _
        // Predicated region
        $region53: #{transformer_seq2seq.7} parent=11 // pred_check
          %p756 = pneg %p325
        $region54: #{transformer_seq2seq.7} parent=11 // pred_check_branch
          %758 = sbr.rel (%p756) target = $region56
        $region55: #{transformer_seq2seq.7} parent=11 // pred_region
          _
        $region56: #{transformer_seq2seq.7} parent=11 // pred_fallthru
          _
        // Predicated region
        $region57: #{transformer_seq2seq.7} parent=11 // pred_check
          %p759 = pneg %p346
        $region58: #{transformer_seq2seq.7} parent=11 // pred_check_branch
          %761 = sbr.rel (%p759) target = $region60
        $region59: #{transformer_seq2seq.7} parent=11 // pred_region
          _
        $region60: #{transformer_seq2seq.7} parent=11 // pred_fallthru
          _
        // Predicated region
        $region61: #{transformer_seq2seq.7} parent=11 // pred_check
          %p762 = pneg %p367
        $region62: #{transformer_seq2seq.7} parent=11 // pred_check_branch
          %764 = sbr.rel (%p762) target = $region64
        $region63: #{transformer_seq2seq.7} parent=11 // pred_region
          _
        $region64: #{transformer_seq2seq.7} parent=11 // pred_fallthru
          _
        // Predicated region
        $region65: #{transformer_seq2seq.7} parent=11 // pred_check
          %p765 = pneg %p388
        $region66: #{transformer_seq2seq.7} parent=11 // pred_check_branch
          %767 = sbr.rel (%p765) target = $region68
        $region67: #{transformer_seq2seq.7} parent=11 // pred_region
          _
        $region68: #{transformer_seq2seq.7} parent=11 // pred_fallthru
          _
        // Predicated region
        $region69: #{transformer_seq2seq.7} parent=11 // pred_check
          %p768 = pneg %p409
        $region70: #{transformer_seq2seq.7} parent=11 // pred_check_branch
          %770 = sbr.rel (%p768) target = $region72
        $region71: #{transformer_seq2seq.7} parent=11 // pred_region
          %772 = vsyncadd [#allocation11], 0
          %s774 = sshll.u32 %s16, 4
          %s775 = int_to_ptr.hbm [resolvable:$true] %s774
          %s776 = sshll.u32 [#allocation10], 4
          %s777 = int_to_ptr.vmem [resolvable:$true] %s776
          %779 = dma.hbm_to_vmem [thread:$0]  %s775, 16, %s777, [#allocation11]
        $region72: #{transformer_seq2seq.7} parent=11 // pred_fallthru
          _
        // Predicated region
        $region73: #{transformer_seq2seq.7} parent=11 // pred_check
          %p780 = pneg %p430
        $region74: #{transformer_seq2seq.7} parent=11 // pred_check_branch
          %782 = sbr.rel (%p780) target = $region76
        $region75: #{transformer_seq2seq.7} parent=11 // pred_region
          %784 = vsyncadd [#allocation11], 0
          %s786 = sshll.u32 %s17, 4
          %s787 = int_to_ptr.hbm [resolvable:$true] %s786
          %s788 = sshll.u32 [#allocation12], 4
          %s789 = int_to_ptr.vmem [resolvable:$true] %s788
          %791 = dma.hbm_to_vmem [thread:$0]  %s787, 16, %s789, [#allocation11]
        $region76: #{transformer_seq2seq.7} parent=11 // pred_fallthru
          _
        // Predicated region
        $region77: #{transformer_seq2seq.7} parent=11 // pred_check
          %p792 = pneg %p451
        $region78: #{transformer_seq2seq.7} parent=11 // pred_check_branch
          %794 = sbr.rel (%p792) target = $region80
        $region79: #{transformer_seq2seq.7} parent=11 // pred_region
          %796 = vsyncadd [#allocation14], 0
          %s798 = sshll.u32 %s18, 4
          %s799 = int_to_ptr.hbm [resolvable:$true] %s798
          %s800 = sshll.u32 [#allocation13], 4
          %s801 = int_to_ptr.vmem [resolvable:$true] %s800
          %803 = dma.hbm_to_vmem [thread:$0]  %s799, 16, %s801, [#allocation14]
        $region80: #{transformer_seq2seq.7} parent=11 // pred_fallthru
          _
        // Predicated region
        $region81: #{transformer_seq2seq.7} parent=11 // pred_check
          %p804 = pneg %p472
        $region82: #{transformer_seq2seq.7} parent=11 // pred_check_branch
          %806 = sbr.rel (%p804) target = $region84
        $region83: #{transformer_seq2seq.7} parent=11 // pred_region
          %808 = vsyncadd [#allocation14], 0
          %s810 = sshll.u32 %s19, 4
          %s811 = int_to_ptr.hbm [resolvable:$true] %s810
          %s812 = sshll.u32 [#allocation15], 4
          %s813 = int_to_ptr.vmem [resolvable:$true] %s812
          %815 = dma.hbm_to_vmem [thread:$0]  %s811, 16, %s813, [#allocation14]
        $region84: #{transformer_seq2seq.7} parent=11 // pred_fallthru
          _
        // Predicated region
        $region85: #{transformer_seq2seq.7} parent=11 // pred_check
          %p816 = pneg %p493
        $region86: #{transformer_seq2seq.7} parent=11 // pred_check_branch
          %818 = sbr.rel (%p816) target = $region88
        $region87: #{transformer_seq2seq.7} parent=11 // pred_region
          %820 = vsyncadd [#allocation17], 0
          %s822 = sshll.u32 %s20, 4
          %s823 = int_to_ptr.hbm [resolvable:$true] %s822
          %s824 = sshll.u32 [#allocation16], 4
          %s825 = int_to_ptr.vmem [resolvable:$true] %s824
          %827 = dma.hbm_to_vmem [thread:$0]  %s823, 16, %s825, [#allocation17]
        $region88: #{transformer_seq2seq.7} parent=11 // pred_fallthru
          _
        // Predicated region
        $region89: #{transformer_seq2seq.7} parent=11 // pred_check
          %p828 = pneg %p514
        $region90: #{transformer_seq2seq.7} parent=11 // pred_check_branch
          %830 = sbr.rel (%p828) target = $region92
        $region91: #{transformer_seq2seq.7} parent=11 // pred_region
          %832 = vsyncadd [#allocation17], 0
          %s834 = sshll.u32 %s21, 4
          %s835 = int_to_ptr.hbm [resolvable:$true] %s834
          %s836 = sshll.u32 [#allocation18], 4
          %s837 = int_to_ptr.vmem [resolvable:$true] %s836
          %839 = dma.hbm_to_vmem [thread:$0]  %s835, 16, %s837, [#allocation17]
        $region92: #{transformer_seq2seq.7} parent=11 // pred_fallthru
          _
        // Predicated region
        $region93: #{transformer_seq2seq.7} parent=11 // pred_check
          %p840 = pneg %p535
        $region94: #{transformer_seq2seq.7} parent=11 // pred_check_branch
          %842 = sbr.rel (%p840) target = $region96
        $region95: #{transformer_seq2seq.7} parent=11 // pred_region
          _
        $region96: #{transformer_seq2seq.7} parent=11 // pred_fallthru
          _
        // Predicated region
        $region97: #{transformer_seq2seq.7} parent=11 // pred_check
          %p843 = pneg %p556
        $region98: #{transformer_seq2seq.7} parent=11 // pred_check_branch
          %845 = sbr.rel (%p843) target = $region100
        $region99: #{transformer_seq2seq.7} parent=11 // pred_region
          %847 = vsyncadd [#allocation20], 0
          %s849 = sshll.u32 %s23, 4
          %s850 = int_to_ptr.hbm [resolvable:$true] %s849
          %s851 = sshll.u32 [#allocation19], 4
          %s852 = int_to_ptr.vmem [resolvable:$true] %s851
          %854 = dma.hbm_to_vmem [thread:$0]  %s850, 16, %s852, [#allocation20]
        $region100: #{transformer_seq2seq.7} parent=11 // pred_fallthru
          _
        // Predicated region
        $region101: #{transformer_seq2seq.7} parent=11 // pred_check
          %p855 = pneg %p577
        $region102: #{transformer_seq2seq.7} parent=11 // pred_check_branch
          %857 = sbr.rel (%p855) target = $region104
        $region103: #{transformer_seq2seq.7} parent=11 // pred_region
          _
        $region104: #{transformer_seq2seq.7} parent=11 // pred_fallthru
          _
        // Predicated region
        $region105: #{transformer_seq2seq.7} parent=11 // pred_check
          %p858 = pneg %p598
        $region106: #{transformer_seq2seq.7} parent=11 // pred_check_branch
          %860 = sbr.rel (%p858) target = $region108
        $region107: #{transformer_seq2seq.7} parent=11 // pred_region
          %862 = vsyncadd [#allocation20], 0
          %s864 = sshll.u32 %s25, 4
          %s865 = int_to_ptr.hbm [resolvable:$true] %s864
          %s866 = sshll.u32 [#allocation21], 4
          %s867 = int_to_ptr.vmem [resolvable:$true] %s866
          %869 = dma.hbm_to_vmem [thread:$0]  %s865, 16, %s867, [#allocation20]
        $region108: #{transformer_seq2seq.7} parent=11 // pred_fallthru
          _
        // Predicated region
        $region109: #{transformer_seq2seq.7} parent=11 // pred_check
          %p870 = pneg %p619
        $region110: #{transformer_seq2seq.7} parent=11 // pred_check_branch
          %872 = sbr.rel (%p870) target = $region112
        $region111: #{transformer_seq2seq.7} parent=11 // pred_region
          %874 = vsyncadd [#allocation23], 0
          %s876 = sshll.u32 %s26, 4
          %s877 = int_to_ptr.hbm [resolvable:$true] %s876
          %s878 = sshll.u32 [#allocation22], 4
          %s879 = int_to_ptr.vmem [resolvable:$true] %s878
          %881 = dma.hbm_to_vmem [thread:$0]  %s877, 16, %s879, [#allocation23]
        $region112: #{transformer_seq2seq.7} parent=11 // pred_fallthru
          _
        // Predicated region
        $region113: #{transformer_seq2seq.7} parent=11 // pred_check
          %p882 = pneg %p640
        $region114: #{transformer_seq2seq.7} parent=11 // pred_check_branch
          %884 = sbr.rel (%p882) target = $region116
        $region115: #{transformer_seq2seq.7} parent=11 // pred_region
          %886 = vsyncadd [#allocation23], 0
          %s888 = sshll.u32 %s27, 4
          %s889 = int_to_ptr.hbm [resolvable:$true] %s888
          %s890 = sshll.u32 [#allocation24], 4
          %s891 = int_to_ptr.vmem [resolvable:$true] %s890
          %893 = dma.hbm_to_vmem [thread:$0]  %s889, 16, %s891, [#allocation23]
        $region116: #{transformer_seq2seq.7} parent=11 // pred_fallthru
          _
      $region12: #{transformer_seq2seq.7} parent=5 // pred_fallthru
        _
      %p894 = scmp.lt.s32.totalorder %s42, 2
      // Predicated region
      $region117: #{transformer_seq2seq.7} parent=5 // pred_check
        %p895 = pneg %p894
      $region118: #{transformer_seq2seq.7} parent=5 // pred_check_branch
        %897 = sbr.rel (%p895) target = $region120
      $region119: #{transformer_seq2seq.7} parent=5 // pred_region
        // Predicated region
        $region121: #{transformer_seq2seq.7} parent=119 // pred_check
          %p898 = pneg %p62
        $region122: #{transformer_seq2seq.7} parent=119 // pred_check_branch
          %900 = sbr.rel (%p898) target = $region124
        $region123: #{transformer_seq2seq.7} parent=119 // pred_region
          %p901 = scmp.lt.s32.totalorder %s42, 1
          %s902 = scalar_select %p901, %s42, 1
          %s903 = smul.addr %s902, 8
          %s904 = scalar_lea.vmem %s0, %s903
        $region124: #{transformer_seq2seq.7} parent=119 // pred_fallthru
          _
        // Predicated region
        $region125: #{transformer_seq2seq.7} parent=119 // pred_check
          %p905 = pneg %p88
        $region126: #{transformer_seq2seq.7} parent=119 // pred_check_branch
          %907 = sbr.rel (%p905) target = $region128
        $region127: #{transformer_seq2seq.7} parent=119 // pred_region
          %p908 = scmp.lt.s32.totalorder %s42, 1
          %s909 = scalar_select %p908, %s42, 1
          %s910 = smul.addr %s909, 8
          %s911 = scalar_lea.vmem %s1, %s910
        $region128: #{transformer_seq2seq.7} parent=119 // pred_fallthru
          _
      $region120: #{transformer_seq2seq.7} parent=5 // pred_fallthru
        _
      %p912 = scmp.le.s32.totalorder 1, %s42
      %p913 = scmp.lt.s32.totalorder %s42, 3
      %p914 = pnand %p912, %p913
      %p915 = pneg %p914
      // Predicated region
      $region129: #{transformer_seq2seq.7} parent=5 // pred_check
        _
      $region130: #{transformer_seq2seq.7} parent=5 // pred_check_branch
        %917 = sbr.rel (%p914) target = $region132
      $region131: #{transformer_seq2seq.7} parent=5 // pred_region
        %s918 = ssub.s32 %s42, 1
        // Predicated region
        $region133: #{transformer_seq2seq.7} parent=131 // pred_check
          %p919 = pneg %p220
        $region134: #{transformer_seq2seq.7} parent=131 // pred_check_branch
          %921 = sbr.rel (%p919) target = $region136
        $region135: #{transformer_seq2seq.7} parent=131 // pred_region
          %923 = dma.done [#allocation3], 16
        $region136: #{transformer_seq2seq.7} parent=131 // pred_fallthru
          _
        // Predicated region
        $region137: #{transformer_seq2seq.7} parent=131 // pred_check
          %p924 = pneg %p241
        $region138: #{transformer_seq2seq.7} parent=131 // pred_check_branch
          %926 = sbr.rel (%p924) target = $region140
        $region139: #{transformer_seq2seq.7} parent=131 // pred_region
          %928 = dma.done [#allocation5], 16
        $region140: #{transformer_seq2seq.7} parent=131 // pred_fallthru
          _
        // Predicated region
        $region141: #{transformer_seq2seq.7} parent=131 // pred_check
          %p929 = pneg %p262
        $region142: #{transformer_seq2seq.7} parent=131 // pred_check_branch
          %931 = sbr.rel (%p929) target = $region144
        $region143: #{transformer_seq2seq.7} parent=131 // pred_region
          %933 = dma.done [#allocation5], 16
        $region144: #{transformer_seq2seq.7} parent=131 // pred_fallthru
          _
        // Predicated region
        $region145: #{transformer_seq2seq.7} parent=131 // pred_check
          %p934 = pneg %p283
        $region146: #{transformer_seq2seq.7} parent=131 // pred_check_branch
          %936 = sbr.rel (%p934) target = $region148
        $region147: #{transformer_seq2seq.7} parent=131 // pred_region
          %938 = dma.done [#allocation8], 16
        $region148: #{transformer_seq2seq.7} parent=131 // pred_fallthru
          _
        // Predicated region
        $region149: #{transformer_seq2seq.7} parent=131 // pred_check
          %p939 = pneg %p304
        $region150: #{transformer_seq2seq.7} parent=131 // pred_check_branch
          %941 = sbr.rel (%p939) target = $region152
        $region151: #{transformer_seq2seq.7} parent=131 // pred_region
          %943 = dma.done [#allocation8], 16
        $region152: #{transformer_seq2seq.7} parent=131 // pred_fallthru
          _
        // Predicated region
        $region153: #{transformer_seq2seq.7} parent=131 // pred_check
          %p944 = pneg %p409
        $region154: #{transformer_seq2seq.7} parent=131 // pred_check_branch
          %946 = sbr.rel (%p944) target = $region156
        $region155: #{transformer_seq2seq.7} parent=131 // pred_region
          %948 = dma.done [#allocation11], 16
        $region156: #{transformer_seq2seq.7} parent=131 // pred_fallthru
          _
        // Predicated region
        $region157: #{transformer_seq2seq.7} parent=131 // pred_check
          %p949 = pneg %p430
        $region158: #{transformer_seq2seq.7} parent=131 // pred_check_branch
          %951 = sbr.rel (%p949) target = $region160
        $region159: #{transformer_seq2seq.7} parent=131 // pred_region
          %953 = dma.done [#allocation11], 16
        $region160: #{transformer_seq2seq.7} parent=131 // pred_fallthru
          _
        // Predicated region
        $region161: #{transformer_seq2seq.7} parent=131 // pred_check
          %p954 = pneg %p451
        $region162: #{transformer_seq2seq.7} parent=131 // pred_check_branch
          %956 = sbr.rel (%p954) target = $region164
        $region163: #{transformer_seq2seq.7} parent=131 // pred_region
          %958 = dma.done [#allocation14], 16
        $region164: #{transformer_seq2seq.7} parent=131 // pred_fallthru
          _
        // Predicated region
        $region165: #{transformer_seq2seq.7} parent=131 // pred_check
          %p959 = pneg %p472
        $region166: #{transformer_seq2seq.7} parent=131 // pred_check_branch
          %961 = sbr.rel (%p959) target = $region168
        $region167: #{transformer_seq2seq.7} parent=131 // pred_region
          %963 = dma.done [#allocation14], 16
        $region168: #{transformer_seq2seq.7} parent=131 // pred_fallthru
          _
        // Predicated region
        $region169: #{transformer_seq2seq.7} parent=131 // pred_check
          %p964 = pneg %p493
        $region170: #{transformer_seq2seq.7} parent=131 // pred_check_branch
          %966 = sbr.rel (%p964) target = $region172
        $region171: #{transformer_seq2seq.7} parent=131 // pred_region
          %968 = dma.done [#allocation17], 16
        $region172: #{transformer_seq2seq.7} parent=131 // pred_fallthru
          _
        // Predicated region
        $region173: #{transformer_seq2seq.7} parent=131 // pred_check
          %p969 = pneg %p514
        $region174: #{transformer_seq2seq.7} parent=131 // pred_check_branch
          %971 = sbr.rel (%p969) target = $region176
        $region175: #{transformer_seq2seq.7} parent=131 // pred_region
          %973 = dma.done [#allocation17], 16
        $region176: #{transformer_seq2seq.7} parent=131 // pred_fallthru
          _
        // Predicated region
        $region177: #{transformer_seq2seq.7} parent=131 // pred_check
          %p974 = pneg %p556
        $region178: #{transformer_seq2seq.7} parent=131 // pred_check_branch
          %976 = sbr.rel (%p974) target = $region180
        $region179: #{transformer_seq2seq.7} parent=131 // pred_region
          %978 = dma.done [#allocation20], 16
        $region180: #{transformer_seq2seq.7} parent=131 // pred_fallthru
          _
        // Predicated region
        $region181: #{transformer_seq2seq.7} parent=131 // pred_check
          %p979 = pneg %p598
        $region182: #{transformer_seq2seq.7} parent=131 // pred_check_branch
          %981 = sbr.rel (%p979) target = $region184
        $region183: #{transformer_seq2seq.7} parent=131 // pred_region
          %983 = dma.done [#allocation20], 16
        $region184: #{transformer_seq2seq.7} parent=131 // pred_fallthru
          _
        // Predicated region
        $region185: #{transformer_seq2seq.7} parent=131 // pred_check
          %p984 = pneg %p619
        $region186: #{transformer_seq2seq.7} parent=131 // pred_check_branch
          %986 = sbr.rel (%p984) target = $region188
        $region187: #{transformer_seq2seq.7} parent=131 // pred_region
          %988 = dma.done [#allocation23], 16
        $region188: #{transformer_seq2seq.7} parent=131 // pred_fallthru
          _
        // Predicated region
        $region189: #{transformer_seq2seq.7} parent=131 // pred_check
          %p989 = pneg %p640
        $region190: #{transformer_seq2seq.7} parent=131 // pred_check_branch
          %991 = sbr.rel (%p989) target = $region192
        $region191: #{transformer_seq2seq.7} parent=131 // pred_region
          %993 = dma.done [#allocation23], 16
        $region192: #{transformer_seq2seq.7} parent=131 // pred_fallthru
          _
        %p994 = scmp.lt.s32.totalorder %s47, 1
        %s995 = scalar_select %p994, %s47, 1
        %s996 = smul.addr %s995, 8
        %s997 = scalar_lea.vmem %s0, %s996
        %p998 = pneg %p68
        %p999 = pneg %p65
        %p1000 = scmp.lt.s32.totalorder %s47, 1
        %s1001 = scalar_select %p1000, %s47, 1
        %s1002 = smul.addr %s1001, 8
        %s1003 = scalar_lea.vmem %s1, %s1002
        %p1004 = pneg %p94
        %p1005 = pneg %p91
        %p1006 = pneg %p115
        %p1007 = pneg %p112
        %p1008 = pneg %p136
        %p1009 = pneg %p133
        %p1010 = pneg %p157
        %p1011 = pneg %p154
        %p1012 = pneg %p178
        %p1013 = pneg %p175
        %p1014 = pneg %p199
        %p1015 = pneg %p196
        %p1016 = pneg %p220
        %p1017 = pneg %p217
        %p1018 = pneg %p241
        %p1019 = pneg %p238
        %p1020 = pneg %p262
        %p1021 = pneg %p259
        %p1022 = pneg %p283
        %p1023 = pneg %p280
        %p1024 = pneg %p304
        %p1025 = pneg %p301
        %p1026 = pneg %p325
        %p1027 = pneg %p322
        %p1028 = pneg %p346
        %p1029 = pneg %p343
        %p1030 = pneg %p367
        %p1031 = pneg %p364
        %p1032 = pneg %p388
        %p1033 = pneg %p385
        %p1034 = pneg %p409
        %p1035 = pneg %p406
        %p1036 = pneg %p430
        %p1037 = pneg %p427
        %p1038 = pneg %p451
        %p1039 = pneg %p448
        %p1040 = pneg %p472
        %p1041 = pneg %p469
        %p1042 = pneg %p493
        %p1043 = pneg %p490
        %p1044 = pneg %p514
        %p1045 = pneg %p511
        %p1046 = pneg %p535
        %p1047 = pneg %p532
        %p1048 = pneg %p556
        %p1049 = pneg %p553
        %p1050 = pneg %p577
        %p1051 = pneg %p574
        %p1052 = pneg %p598
        %p1053 = pneg %p595
        %p1054 = pneg %p619
        %p1055 = pneg %p616
        %p1056 = pneg %p640
        %p1057 = pneg %p637
        %p1058 = pneg %p666
        %p1059 = pneg %p663
        %p1060 = scmp.lt.s32.totalorder %s47, 1
        %s1061 = scalar_select %p1060, %s47, 1
        %s1062 = smul.addr %s1061, 8
        %s1063 = scalar_lea.vmem %s28, %s1062
        %p1064 = scmp.lt.s32.totalorder %s47, 1
        %s1065 = scalar_select %p1064, %s47, 1
        %s1066 = smul.addr %s1065, 8
        %s1067 = scalar_lea.vmem %s0, %s1066
        %p1068 = scmp.lt.s32.totalorder %s47, 1
        %s1069 = scalar_select %p1068, %s47, 1
        %s1070 = smul.addr %s1069, 8
        %s1071 = scalar_lea.vmem %s1, %s1070
        %p1072 = scmp.lt.s32.totalorder %s47, 1
        %s1073 = scalar_select %p1072, %s47, 1
        %s1074 = smul.addr %s1073, 8
        %s1075 = scalar_lea.vmem %s28, %s1074
        %v1077 = vld [vmem:[%s1067] sm:$0xff]
        %v1078 = vld [vmem:[%s1071] sm:$0xff]
        %v1079 = vld [vmem:[%s2] sm:$0xf]
        %v1080 = vld [vmem:[%s2 + $0x4] sm:$0xf]
        %v1081 = vld [vmem:[%s2 + $0x8] sm:$0xf]
        %v1082 = vld [vmem:[%s2 + $0xc] sm:$0xf]
        %v1083 = vld [vmem:[%s3] sm:$0xf]
        %v1084 = vld [vmem:[%s3 + $0x4] sm:$0xf]
        %v1085 = vld [vmem:[%s3 + $0x8] sm:$0xf]
        %v1086 = vld [vmem:[%s3 + $0xc] sm:$0xf]
        %v1087 = vld [vmem:[%s4] sm:$0xf]
        %v1088 = vld [vmem:[%s4 + $0x4] sm:$0xf]
        %v1089 = vld [vmem:[%s4 + $0x8] sm:$0xf]
        %v1090 = vld [vmem:[%s4 + $0xc] sm:$0xf]
        %v1091 = vld [vmem:[%s5] sm:$0xf]
        %v1092 = vld [vmem:[%s5 + $0x4] sm:$0xf]
        %v1093 = vld [vmem:[%s5 + $0x8] sm:$0xf]
        %v1094 = vld [vmem:[%s5 + $0xc] sm:$0xf]
        %v1095 = vld [vmem:[%s6] sm:$0x1]
        %v1096 = vld [vmem:[#allocation2] sm:$0x1]
        %v1097 = vld [vmem:[#allocation4] sm:$0x1]
        %v1098 = vld [vmem:[#allocation6] sm:$0x1]
        %v1099 = vld [vmem:[#allocation7] sm:$0x1]
        %v1100 = vld [vmem:[#allocation9] sm:$0x1]
        %v1101 = vpack.c.bf16 %v1077, %v1077
        %v1103 = vperm.slane %v1095, 0
        %v1109 = vunpack.c.l.b16 %v1079
        %v1110 = vunpack.c.l.b16 %v1080
        %v1111 = vunpack.c.l.b16 %v1081
        %v1112 = vunpack.c.l.b16 %v1082
        %v1113 = vpack.c.b16 %v1110, %v1109
        %v1114 = vpack.c.b16 %v1112, %v1111
        %vm1117 = vcmask 261120
        %v1119 = vsel %vm1117, %v1101, 0
        %1121 = vmatpush.bf16.msra.mxu0 0
        %1122 = vmatpush.bf16.msra.mxu0 0
        %1123 = vmatpush.bf16.msra.mxu0 0
        %1124 = vmatpush.bf16.msra.mxu0 0
        %1125 = vmatpush.bf16.msra.mxu0 0
        %1126 = vmatpush.bf16.msra.mxu0 0
        %1127 = vmatpush.bf16.msra.mxu0 %v1114
        %1128 = vmatpush.bf16.msra.mxu0 %v1113
        %1129 = vmatmul.bf16.gmra.mxu0 %v1119
        %v1130 = vpop.f32.mrf.mxu0
        %v1131 = vadd.f32 %v1103, %v1130
        %v1132 = vpop.f32.mrf.mxu0
        %1133 = vdwg.mxu0
        %v1134 = vpack.c.bf16 %v1131, %v1131
        %v1136 = vperm.slane %v1096, 0
        %v1142 = vunpack.c.l.b16 %v1083
        %v1143 = vunpack.c.l.b16 %v1084
        %v1144 = vunpack.c.l.b16 %v1085
        %v1145 = vunpack.c.l.b16 %v1086
        %v1146 = vpack.c.b16 %v1143, %v1142
        %v1147 = vpack.c.b16 %v1145, %v1144
        %1150 = vmatpush.bf16.msra.mxu0 0
        %1151 = vmatpush.bf16.msra.mxu0 0
        %1152 = vmatpush.bf16.msra.mxu0 0
        %1153 = vmatpush.bf16.msra.mxu0 0
        %1154 = vmatpush.bf16.msra.mxu0 0
        %1155 = vmatpush.bf16.msra.mxu0 0
        %1156 = vmatpush.bf16.msra.mxu0 %v1147
        %1157 = vmatpush.bf16.msra.mxu0 %v1146
        %1158 = vmatmul.bf16.gmra.mxu0 %v1119
        %v1159 = vpop.f32.mrf.mxu0
        %v1160 = vadd.f32 %v1136, %v1159
        %v1161 = vpop.f32.mrf.mxu0
        %1162 = vdwg.mxu0
        %v1163 = vpack.c.bf16 %v1160, %v1160
        %v1165 = vperm.slane %v1097, 0
        %v1171 = vunpack.c.l.b16 %v1087
        %v1172 = vunpack.c.l.b16 %v1088
        %v1173 = vunpack.c.l.b16 %v1089
        %v1174 = vunpack.c.l.b16 %v1090
        %v1175 = vpack.c.b16 %v1172, %v1171
        %v1176 = vpack.c.b16 %v1174, %v1173
        %1179 = vmatpush.bf16.msra.mxu0 0
        %1180 = vmatpush.bf16.msra.mxu0 0
        %1181 = vmatpush.bf16.msra.mxu0 0
        %1182 = vmatpush.bf16.msra.mxu0 0
        %1183 = vmatpush.bf16.msra.mxu0 0
        %1184 = vmatpush.bf16.msra.mxu0 0
        %1185 = vmatpush.bf16.msra.mxu0 %v1176
        %1186 = vmatpush.bf16.msra.mxu0 %v1175
        %1187 = vmatmul.bf16.gmra.mxu0 %v1119
        %v1188 = vpop.f32.mrf.mxu0
        %v1189 = vadd.f32 %v1165, %v1188
        %v1190 = vpop.f32.mrf.mxu0
        %1191 = vdwg.mxu0
        %v1192 = vpack.c.bf16 %v1189, %v1189
        %vm1193 = vcmask 64512
        %v1195 = vsel %vm1193, %v1134, 0
        %v1198 = vsel %vm1193, %v1163, 0
        %1200 = vmatpush.bf16.xpose.msra.mxu0 0
        %1201 = vmatpush.bf16.xpose.msra.mxu0 0
        %1202 = vmatpush.bf16.xpose.msra.mxu0 0
        %1203 = vmatpush.bf16.xpose.msra.mxu0 0
        %1204 = vmatpush.bf16.xpose.msra.mxu0 0
        %1205 = vmatpush.bf16.xpose.msra.mxu0 0
        %1206 = vmatpush.bf16.xpose.msra.mxu0 0
        %1207 = vmatpush.bf16.xpose.msra.mxu0 %v1198
        %1208 = vmatmul.bf16.gmra.mxu0 %v1195
        %v1209 = vpop.f32.mrf.mxu0
        %v1210 = vadd.f32 0.0, %v1209
        %v1211 = vpop.f32.mrf.mxu0
        %1212 = vdwg.mxu0
        %v1213 = vmul.f32 %v1210, 0.35355338
        %v1214 = vsel %vm1193, %v1213, -inf
        %1215 = vmax.xlane.f32.xlu0 %v1214
        %v1216 = vpop.xlane.xlu0 %1215
        %v1217 = vsub.f32 %v1213, %v1216
        %v1218 = vmul.f32 %v1217, 1.442695
        %v1219 = vpow.pop %v1218
        %v1220 = vsel %vm1193, %v1219, 0.0
        %1221 = vadd.xlane.f32.xlu0 %v1220
        %v1222 = vpop.xlane.xlu0 %1221
        %v1223 = vrcp.pop %v1222
        %v1224 = vmul.f32 %v1219, %v1223
        %v1225 = vpack.c.bf16 %v1224, %v1224
        %v1227 = vsel %vm1193, %v1225, 0
        %vm1229 = vcmask 1043456
        %v1231 = vsel %vm1229, %v1192, 0
        %1233 = vmatpush.bf16.msra.mxu0 0
        %1234 = vmatpush.bf16.msra.mxu0 0
        %1235 = vmatpush.bf16.msra.mxu0 0
        %1236 = vmatpush.bf16.msra.mxu0 0
        %1237 = vmatpush.bf16.msra.mxu0 0
        %1238 = vmatpush.bf16.msra.mxu0 0
        %1239 = vmatpush.bf16.msra.mxu0 0
        %1240 = vmatpush.bf16.msra.mxu0 %v1231
        %1241 = vmatmul.bf16.gmra.mxu0 %v1227
        %v1242 = vpop.f32.mrf.mxu0
        %v1243 = vadd.f32 0.0, %v1242
        %v1244 = vpop.f32.mrf.mxu0
        %1245 = vdwg.mxu0
        %v1246 = vpack.c.bf16 %v1243, %v1243
        %v1248 = vunpack.c.l.b16 %v1134
        %v1249 = vpack.c.b16 %v1248, %v1248
        %1250 = vrot.lane.b32.xlu0 %v1249, 120
        %v1251 = vpop.permute.xlu0 %1250
        %v1253 = vunpack.c.l.b16 %v1163
        %v1254 = vpack.c.b16 %v1253, %v1253
        %1255 = vrot.lane.b32.xlu0 %v1254, 120
        %v1256 = vpop.permute.xlu0 %1255
        %v1258 = vsel %vm1193, %v1251, 0
        %v1261 = vsel %vm1193, %v1256, 0
        %1263 = vmatpush.bf16.xpose.msra.mxu0 0
        %1264 = vmatpush.bf16.xpose.msra.mxu0 0
        %1265 = vmatpush.bf16.xpose.msra.mxu0 0
        %1266 = vmatpush.bf16.xpose.msra.mxu0 0
        %1267 = vmatpush.bf16.xpose.msra.mxu0 0
        %1268 = vmatpush.bf16.xpose.msra.mxu0 0
        %1269 = vmatpush.bf16.xpose.msra.mxu0 0
        %1270 = vmatpush.bf16.xpose.msra.mxu0 %v1261
        %1271 = vmatmul.bf16.gmra.mxu0 %v1258
        %v1272 = vpop.f32.mrf.mxu0
        %v1273 = vadd.f32 0.0, %v1272
        %v1274 = vpop.f32.mrf.mxu0
        %1275 = vdwg.mxu0
        %v1276 = vmul.f32 %v1273, 0.35355338
        %v1277 = vsel %vm1193, %v1276, -inf
        %1278 = vmax.xlane.f32.xlu0 %v1277
        %v1279 = vpop.xlane.xlu0 %1278
        %v1280 = vsub.f32 %v1276, %v1279
        %v1281 = vmul.f32 %v1280, 1.442695
        %v1282 = vpow.pop %v1281
        %v1283 = vsel %vm1193, %v1282, 0.0
        %1284 = vadd.xlane.f32.xlu0 %v1283
        %v1285 = vpop.xlane.xlu0 %1284
        %v1286 = vrcp.pop %v1285
        %v1287 = vmul.f32 %v1282, %v1286
        %v1288 = vpack.c.bf16 %v1287, %v1287
        %v1290 = vunpack.c.l.b16 %v1192
        %v1291 = vpack.c.b16 %v1290, %v1290
        %1292 = vrot.lane.b32.xlu0 %v1291, 120
        %v1293 = vpop.permute.xlu0 %1292
        %v1295 = vsel %vm1193, %v1288, 0
        %v1298 = vsel %vm1229, %v1293, 0
        %1300 = vmatpush.bf16.msra.mxu0 0
        %1301 = vmatpush.bf16.msra.mxu0 0
        %1302 = vmatpush.bf16.msra.mxu0 0
        %1303 = vmatpush.bf16.msra.mxu0 0
        %1304 = vmatpush.bf16.msra.mxu0 0
        %1305 = vmatpush.bf16.msra.mxu0 0
        %1306 = vmatpush.bf16.msra.mxu0 0
        %1307 = vmatpush.bf16.msra.mxu0 %v1298
        %1308 = vmatmul.bf16.gmra.mxu0 %v1295
        %v1309 = vpop.f32.mrf.mxu0
        %v1310 = vadd.f32 0.0, %v1309
        %v1311 = vpop.f32.mrf.mxu0
        %1312 = vdwg.mxu0
        %v1313 = vpack.c.bf16 %v1310, %v1310
        %v1315 = vsel %vm1193, %v1313, 0
        %v1318 = vsel %vm1229, %v1092, 0
        %1320 = vmatpush.bf16.msra.mxu0 0
        %1321 = vmatpush.bf16.msra.mxu0 0
        %1322 = vmatpush.bf16.msra.mxu0 0
        %1323 = vmatpush.bf16.msra.mxu0 0
        %1324 = vmatpush.bf16.msra.mxu0 0
        %1325 = vmatpush.bf16.msra.mxu0 0
        %1326 = vmatpush.bf16.msra.mxu0 0
        %1327 = vmatpush.bf16.msra.mxu0 %v1318
        %1328 = vmatmul.bf16.gmra.mxu0 %v1315
        %v1329 = vpop.f32.mrf.mxu0
        %v1330 = vadd.f32 0.0, %v1329
        %v1331 = vpop.f32.mrf.mxu0
        %1332 = vdwg.mxu0
        %v1334 = vsel %vm1193, %v1246, 0
        %v1337 = vsel %vm1229, %v1091, 0
        %1339 = vmatpush.bf16.msra.mxu0 0
        %1340 = vmatpush.bf16.msra.mxu0 0
        %1341 = vmatpush.bf16.msra.mxu0 0
        %1342 = vmatpush.bf16.msra.mxu0 0
        %1343 = vmatpush.bf16.msra.mxu0 0
        %1344 = vmatpush.bf16.msra.mxu0 0
        %1345 = vmatpush.bf16.msra.mxu0 0
        %1346 = vmatpush.bf16.msra.mxu0 %v1337
        %1347 = vmatmul.bf16.gmra.mxu0 %v1334
        %v1348 = vpop.f32.mrf.mxu0
        %v1349 = vadd.f32 %v1330, %v1348
        %v1350 = vpop.f32.mrf.mxu0
        %1351 = vdwg.mxu0
        %1352 = vrot.lane.b32.xlu0 %v1249, 112
        %v1353 = vpop.permute.xlu0 %1352
        %1354 = vrot.lane.b32.xlu0 %v1254, 112
        %v1355 = vpop.permute.xlu0 %1354
        %v1357 = vsel %vm1193, %v1353, 0
        %v1360 = vsel %vm1193, %v1355, 0
        %1362 = vmatpush.bf16.xpose.msra.mxu0 0
        %1363 = vmatpush.bf16.xpose.msra.mxu0 0
        %1364 = vmatpush.bf16.xpose.msra.mxu0 0
        %1365 = vmatpush.bf16.xpose.msra.mxu0 0
        %1366 = vmatpush.bf16.xpose.msra.mxu0 0
        %1367 = vmatpush.bf16.xpose.msra.mxu0 0
        %1368 = vmatpush.bf16.xpose.msra.mxu0 0
        %1369 = vmatpush.bf16.xpose.msra.mxu0 %v1360
        %1370 = vmatmul.bf16.gmra.mxu0 %v1357
        %v1371 = vpop.f32.mrf.mxu0
        %v1372 = vadd.f32 0.0, %v1371
        %v1373 = vpop.f32.mrf.mxu0
        %1374 = vdwg.mxu0
        %v1375 = vmul.f32 %v1372, 0.35355338
        %v1376 = vsel %vm1193, %v1375, -inf
        %1377 = vmax.xlane.f32.xlu0 %v1376
        %v1378 = vpop.xlane.xlu0 %1377
        %v1379 = vsub.f32 %v1375, %v1378
        %v1380 = vmul.f32 %v1379, 1.442695
        %v1381 = vpow.pop %v1380
        %v1382 = vsel %vm1193, %v1381, 0.0
        %1383 = vadd.xlane.f32.xlu0 %v1382
        %v1384 = vpop.xlane.xlu0 %1383
        %v1385 = vrcp.pop %v1384
        %v1386 = vmul.f32 %v1381, %v1385
        %v1387 = vpack.c.bf16 %v1386, %v1386
        %1388 = vrot.lane.b32.xlu0 %v1291, 112
        %v1389 = vpop.permute.xlu0 %1388
        %v1391 = vsel %vm1193, %v1387, 0
        %v1394 = vsel %vm1229, %v1389, 0
        %1396 = vmatpush.bf16.msra.mxu0 0
        %1397 = vmatpush.bf16.msra.mxu0 0
        %1398 = vmatpush.bf16.msra.mxu0 0
        %1399 = vmatpush.bf16.msra.mxu0 0
        %1400 = vmatpush.bf16.msra.mxu0 0
        %1401 = vmatpush.bf16.msra.mxu0 0
        %1402 = vmatpush.bf16.msra.mxu0 0
        %1403 = vmatpush.bf16.msra.mxu0 %v1394
        %1404 = vmatmul.bf16.gmra.mxu0 %v1391
        %v1405 = vpop.f32.mrf.mxu0
        %v1406 = vadd.f32 0.0, %v1405
        %v1407 = vpop.f32.mrf.mxu0
        %1408 = vdwg.mxu0
        %v1409 = vpack.c.bf16 %v1406, %v1406
        %v1411 = vsel %vm1193, %v1409, 0
        %v1414 = vsel %vm1229, %v1093, 0
        %1416 = vmatpush.bf16.msra.mxu0 0
        %1417 = vmatpush.bf16.msra.mxu0 0
        %1418 = vmatpush.bf16.msra.mxu0 0
        %1419 = vmatpush.bf16.msra.mxu0 0
        %1420 = vmatpush.bf16.msra.mxu0 0
        %1421 = vmatpush.bf16.msra.mxu0 0
        %1422 = vmatpush.bf16.msra.mxu0 0
        %1423 = vmatpush.bf16.msra.mxu0 %v1414
        %1424 = vmatmul.bf16.gmra.mxu0 %v1411
        %v1425 = vpop.f32.mrf.mxu0
        %v1426 = vadd.f32 0.0, %v1425
        %v1427 = vpop.f32.mrf.mxu0
        %1428 = vdwg.mxu0
        %v1429 = vadd.f32 %v1349, %v1426
        %1430 = vrot.lane.b32.xlu0 %v1249, 104
        %v1431 = vpop.permute.xlu0 %1430
        %1432 = vrot.lane.b32.xlu0 %v1254, 104
        %v1433 = vpop.permute.xlu0 %1432
        %v1435 = vsel %vm1193, %v1431, 0
        %v1438 = vsel %vm1193, %v1433, 0
        %1440 = vmatpush.bf16.xpose.msra.mxu0 0
        %1441 = vmatpush.bf16.xpose.msra.mxu0 0
        %1442 = vmatpush.bf16.xpose.msra.mxu0 0
        %1443 = vmatpush.bf16.xpose.msra.mxu0 0
        %1444 = vmatpush.bf16.xpose.msra.mxu0 0
        %1445 = vmatpush.bf16.xpose.msra.mxu0 0
        %1446 = vmatpush.bf16.xpose.msra.mxu0 0
        %1447 = vmatpush.bf16.xpose.msra.mxu0 %v1438
        %1448 = vmatmul.bf16.gmra.mxu0 %v1435
        %v1449 = vpop.f32.mrf.mxu0
        %v1450 = vadd.f32 0.0, %v1449
        %v1451 = vpop.f32.mrf.mxu0
        %1452 = vdwg.mxu0
        %v1453 = vmul.f32 %v1450, 0.35355338
        %v1454 = vsel %vm1193, %v1453, -inf
        %1455 = vmax.xlane.f32.xlu0 %v1454
        %v1456 = vpop.xlane.xlu0 %1455
        %v1457 = vsub.f32 %v1453, %v1456
        %v1458 = vmul.f32 %v1457, 1.442695
        %v1459 = vpow.pop %v1458
        %v1460 = vsel %vm1193, %v1459, 0.0
        %1461 = vadd.xlane.f32.xlu0 %v1460
        %v1462 = vpop.xlane.xlu0 %1461
        %v1463 = vrcp.pop %v1462
        %v1464 = vmul.f32 %v1459, %v1463
        %v1465 = vpack.c.bf16 %v1464, %v1464
        %1466 = vrot.lane.b32.xlu0 %v1291, 104
        %v1467 = vpop.permute.xlu0 %1466
        %v1469 = vsel %vm1193, %v1465, 0
        %v1472 = vsel %vm1229, %v1467, 0
        %1474 = vmatpush.bf16.msra.mxu0 0
        %1475 = vmatpush.bf16.msra.mxu0 0
        %1476 = vmatpush.bf16.msra.mxu0 0
        %1477 = vmatpush.bf16.msra.mxu0 0
        %1478 = vmatpush.bf16.msra.mxu0 0
        %1479 = vmatpush.bf16.msra.mxu0 0
        %1480 = vmatpush.bf16.msra.mxu0 0
        %1481 = vmatpush.bf16.msra.mxu0 %v1472
        %1482 = vmatmul.bf16.gmra.mxu0 %v1469
        %v1483 = vpop.f32.mrf.mxu0
        %v1484 = vadd.f32 0.0, %v1483
        %v1485 = vpop.f32.mrf.mxu0
        %1486 = vdwg.mxu0
        %v1487 = vpack.c.bf16 %v1484, %v1484
        %v1489 = vsel %vm1193, %v1487, 0
        %v1492 = vsel %vm1229, %v1094, 0
        %1494 = vmatpush.bf16.msra.mxu0 0
        %1495 = vmatpush.bf16.msra.mxu0 0
        %1496 = vmatpush.bf16.msra.mxu0 0
        %1497 = vmatpush.bf16.msra.mxu0 0
        %1498 = vmatpush.bf16.msra.mxu0 0
        %1499 = vmatpush.bf16.msra.mxu0 0
        %1500 = vmatpush.bf16.msra.mxu0 0
        %1501 = vmatpush.bf16.msra.mxu0 %v1492
        %1502 = vmatmul.bf16.gmra.mxu0 %v1489
        %v1503 = vpop.f32.mrf.mxu0
        %v1504 = vadd.f32 0.0, %v1503
        %v1505 = vpop.f32.mrf.mxu0
        %1506 = vdwg.mxu0
        %v1507 = vadd.f32 %v1429, %v1504
        %v1508 = vadd.f32 %v1077, %v1507
        %v1510 = vperm.slane %v1098, 0
        %v1512 = vadd.f32 %v1508, %v1510
        %v1513 = vsel %vm1117, %v1512, 0.0
        %1514 = vadd.xlane.f32.xlu0 %v1513
        %v1515 = vpop.xlane.xlu0 %1514
        %v1516 = vrcp.pop 32.0
        %v1517 = vmul.f32 32.0, %v1516
        %v1518 = vsub.f32 1.0, %v1517
        %v1519 = vmul.f32 %v1516, %v1518
        %v1520 = vadd.f32 %v1516, %v1519
        %vm1521 = vweird.f32 %v1516
        %v1522 = vsel %vm1521, %v1516, %v1520
        %v1523 = vmul.f32 %v1515, %v1522
        %v1524 = vsub.f32 %v1512, %v1523
        %v1525 = vmul.f32 %v1524, %v1524
        %v1526 = vsel %vm1117, %v1525, 0.0
        %1527 = vadd.xlane.f32.xlu0 %v1526
        %v1528 = vpop.xlane.xlu0 %1527
        %v1529 = vmul.f32 %v1528, %v1522
        %v1530 = vadd.f32 %v1529, 1e-05
        %v1531 = vrsqrt.pop %v1530
        %v1532 = vmul.f32 %v1531, %v1530
        %v1533 = vmul.f32 %v1532, %v1531
        %v1534 = vmul.f32 0.5, %v1533
        %v1535 = vsub.f32 1.5, %v1534
        %v1536 = vmul.f32 %v1531, %v1535
        %vm1537 = vweird.f32 %v1530
        %vm1538 = vweird.f32 %v1531
        %vm1539 = vmor %vm1537, %vm1538
        %v1540 = vsel %vm1539, %v1531, %v1536
        %v1541 = vmul.f32 %v1524, %v1540
        %v1543 = vperm.slane %v1099, 0
        %v1545 = vmul.f32 %v1541, %v1543
        %v1547 = vperm.slane %v1100, 0
        %v1549 = vadd.f32 %v1545, %v1547
        %v1550 = vld [vmem:[%s12] sm:$0xf]
        %v1551 = vld [vmem:[%s12 + $0x4] sm:$0xf]
        %v1552 = vld [vmem:[%s12 + $0x8] sm:$0xf]
        %v1553 = vld [vmem:[%s12 + $0xc] sm:$0xf]
        %v1554 = vld [vmem:[%s13] sm:$0xf]
        %v1555 = vld [vmem:[%s13 + $0x4] sm:$0xf]
        %v1556 = vld [vmem:[%s13 + $0x8] sm:$0xf]
        %v1557 = vld [vmem:[%s13 + $0xc] sm:$0xf]
        %v1558 = vld [vmem:[%s14] sm:$0xf]
        %v1559 = vld [vmem:[%s14 + $0x4] sm:$0xf]
        %v1560 = vld [vmem:[%s14 + $0x8] sm:$0xf]
        %v1561 = vld [vmem:[%s14 + $0xc] sm:$0xf]
        %v1562 = vld [vmem:[%s15] sm:$0xf]
        %v1563 = vld [vmem:[%s15 + $0x4] sm:$0xf]
        %v1564 = vld [vmem:[%s15 + $0x8] sm:$0xf]
        %v1565 = vld [vmem:[%s15 + $0xc] sm:$0xf]
        %v1566 = vld [vmem:[#allocation10] sm:$0x1]
        %v1567 = vld [vmem:[#allocation12] sm:$0x1]
        %v1568 = vld [vmem:[#allocation13] sm:$0x1]
        %v1569 = vld [vmem:[#allocation15] sm:$0x1]
        %v1570 = vld [vmem:[#allocation16] sm:$0x1]
        %v1571 = vld [vmem:[#allocation18] sm:$0x1]
        %v1572 = vpack.c.bf16 %v1549, %v1549
        %v1573 = vpack.c.bf16 %v1078, %v1078
        %v1575 = vperm.slane %v1566, 0
        %v1581 = vunpack.c.l.b16 %v1550
        %v1582 = vunpack.c.l.b16 %v1551
        %v1583 = vunpack.c.l.b16 %v1552
        %v1584 = vunpack.c.l.b16 %v1553
        %v1585 = vpack.c.b16 %v1582, %v1581
        %v1586 = vpack.c.b16 %v1584, %v1583
        %v1590 = vsel %vm1117, %v1572, 0
        %1592 = vmatpush.bf16.msra.mxu0 0
        %1593 = vmatpush.bf16.msra.mxu0 0
        %1594 = vmatpush.bf16.msra.mxu0 0
        %1595 = vmatpush.bf16.msra.mxu0 0
        %1596 = vmatpush.bf16.msra.mxu0 0
        %1597 = vmatpush.bf16.msra.mxu0 0
        %1598 = vmatpush.bf16.msra.mxu0 %v1586
        %1599 = vmatpush.bf16.msra.mxu0 %v1585
        %1600 = vmatmul.bf16.gmra.mxu0 %v1590
        %v1601 = vpop.f32.mrf.mxu0
        %v1602 = vadd.f32 %v1575, %v1601
        %v1603 = vpop.f32.mrf.mxu0
        %1604 = vdwg.mxu0
        %v1605 = vpack.c.bf16 %v1602, %v1602
        %v1607 = vperm.slane %v1567, 0
        %v1613 = vunpack.c.l.b16 %v1554
        %v1614 = vunpack.c.l.b16 %v1555
        %v1615 = vunpack.c.l.b16 %v1556
        %v1616 = vunpack.c.l.b16 %v1557
        %v1617 = vpack.c.b16 %v1614, %v1613
        %v1618 = vpack.c.b16 %v1616, %v1615
        %v1622 = vsel %vm1117, %v1573, 0
        %1624 = vmatpush.bf16.msra.mxu0 0
        %1625 = vmatpush.bf16.msra.mxu0 0
        %1626 = vmatpush.bf16.msra.mxu0 0
        %1627 = vmatpush.bf16.msra.mxu0 0
        %1628 = vmatpush.bf16.msra.mxu0 0
        %1629 = vmatpush.bf16.msra.mxu0 0
        %1630 = vmatpush.bf16.msra.mxu0 %v1618
        %1631 = vmatpush.bf16.msra.mxu0 %v1617
        %1632 = vmatmul.bf16.gmra.mxu0 %v1622
        %v1633 = vpop.f32.mrf.mxu0
        %v1634 = vadd.f32 %v1607, %v1633
        %v1635 = vpop.f32.mrf.mxu0
        %1636 = vdwg.mxu0
        %v1637 = vpack.c.bf16 %v1634, %v1634
        %v1639 = vperm.slane %v1568, 0
        %v1645 = vunpack.c.l.b16 %v1558
        %v1646 = vunpack.c.l.b16 %v1559
        %v1647 = vunpack.c.l.b16 %v1560
        %v1648 = vunpack.c.l.b16 %v1561
        %v1649 = vpack.c.b16 %v1646, %v1645
        %v1650 = vpack.c.b16 %v1648, %v1647
        %1653 = vmatpush.bf16.msra.mxu0 0
        %1654 = vmatpush.bf16.msra.mxu0 0
        %1655 = vmatpush.bf16.msra.mxu0 0
        %1656 = vmatpush.bf16.msra.mxu0 0
        %1657 = vmatpush.bf16.msra.mxu0 0
        %1658 = vmatpush.bf16.msra.mxu0 0
        %1659 = vmatpush.bf16.msra.mxu0 %v1650
        %1660 = vmatpush.bf16.msra.mxu0 %v1649
        %1661 = vmatmul.bf16.gmra.mxu0 %v1622
        %v1662 = vpop.f32.mrf.mxu0
        %v1663 = vadd.f32 %v1639, %v1662
        %v1664 = vpop.f32.mrf.mxu0
        %1665 = vdwg.mxu0
        %v1666 = vpack.c.bf16 %v1663, %v1663
        %v1668 = vsel %vm1193, %v1605, 0
        %v1671 = vsel %vm1193, %v1637, 0
        %1673 = vmatpush.bf16.xpose.msra.mxu0 0
        %1674 = vmatpush.bf16.xpose.msra.mxu0 0
        %1675 = vmatpush.bf16.xpose.msra.mxu0 0
        %1676 = vmatpush.bf16.xpose.msra.mxu0 0
        %1677 = vmatpush.bf16.xpose.msra.mxu0 0
        %1678 = vmatpush.bf16.xpose.msra.mxu0 0
        %1679 = vmatpush.bf16.xpose.msra.mxu0 0
        %1680 = vmatpush.bf16.xpose.msra.mxu0 %v1671
        %1681 = vmatmul.bf16.gmra.mxu0 %v1668
        %v1682 = vpop.f32.mrf.mxu0
        %v1683 = vadd.f32 0.0, %v1682
        %v1684 = vpop.f32.mrf.mxu0
        %1685 = vdwg.mxu0
        %v1686 = vmul.f32 %v1683, 0.35355338
        %v1687 = vsel %vm1193, %v1686, -inf
        %1688 = vmax.xlane.f32.xlu0 %v1687
        %v1689 = vpop.xlane.xlu0 %1688
        %v1690 = vsub.f32 %v1686, %v1689
        %v1691 = vmul.f32 %v1690, 1.442695
        %v1692 = vpow.pop %v1691
        %v1693 = vsel %vm1193, %v1692, 0.0
        %1694 = vadd.xlane.f32.xlu0 %v1693
        %v1695 = vpop.xlane.xlu0 %1694
        %v1696 = vrcp.pop %v1695
        %v1697 = vmul.f32 %v1692, %v1696
        %v1698 = vpack.c.bf16 %v1697, %v1697
        %v1700 = vsel %vm1193, %v1698, 0
        %v1703 = vsel %vm1229, %v1666, 0
        %1705 = vmatpush.bf16.msra.mxu0 0
        %1706 = vmatpush.bf16.msra.mxu0 0
        %1707 = vmatpush.bf16.msra.mxu0 0
        %1708 = vmatpush.bf16.msra.mxu0 0
        %1709 = vmatpush.bf16.msra.mxu0 0
        %1710 = vmatpush.bf16.msra.mxu0 0
        %1711 = vmatpush.bf16.msra.mxu0 0
        %1712 = vmatpush.bf16.msra.mxu0 %v1703
        %1713 = vmatmul.bf16.gmra.mxu0 %v1700
        %v1714 = vpop.f32.mrf.mxu0
        %v1715 = vadd.f32 0.0, %v1714
        %v1716 = vpop.f32.mrf.mxu0
        %1717 = vdwg.mxu0
        %v1718 = vpack.c.bf16 %v1715, %v1715
        %v1720 = vunpack.c.l.b16 %v1605
        %v1721 = vpack.c.b16 %v1720, %v1720
        %1722 = vrot.lane.b32.xlu0 %v1721, 120
        %v1723 = vpop.permute.xlu0 %1722
        %v1725 = vunpack.c.l.b16 %v1637
        %v1726 = vpack.c.b16 %v1725, %v1725
        %1727 = vrot.lane.b32.xlu0 %v1726, 120
        %v1728 = vpop.permute.xlu0 %1727
        %v1730 = vsel %vm1193, %v1723, 0
        %v1733 = vsel %vm1193, %v1728, 0
        %1735 = vmatpush.bf16.xpose.msra.mxu0 0
        %1736 = vmatpush.bf16.xpose.msra.mxu0 0
        %1737 = vmatpush.bf16.xpose.msra.mxu0 0
        %1738 = vmatpush.bf16.xpose.msra.mxu0 0
        %1739 = vmatpush.bf16.xpose.msra.mxu0 0
        %1740 = vmatpush.bf16.xpose.msra.mxu0 0
        %1741 = vmatpush.bf16.xpose.msra.mxu0 0
        %1742 = vmatpush.bf16.xpose.msra.mxu0 %v1733
        %1743 = vmatmul.bf16.gmra.mxu0 %v1730
        %v1744 = vpop.f32.mrf.mxu0
        %v1745 = vadd.f32 0.0, %v1744
        %v1746 = vpop.f32.mrf.mxu0
        %1747 = vdwg.mxu0
        %v1748 = vmul.f32 %v1745, 0.35355338
        %v1749 = vsel %vm1193, %v1748, -inf
        %1750 = vmax.xlane.f32.xlu0 %v1749
        %v1751 = vpop.xlane.xlu0 %1750
        %v1752 = vsub.f32 %v1748, %v1751
        %v1753 = vmul.f32 %v1752, 1.442695
        %v1754 = vpow.pop %v1753
        %v1755 = vsel %vm1193, %v1754, 0.0
        %1756 = vadd.xlane.f32.xlu0 %v1755
        %v1757 = vpop.xlane.xlu0 %1756
        %v1758 = vrcp.pop %v1757
        %v1759 = vmul.f32 %v1754, %v1758
        %v1760 = vpack.c.bf16 %v1759, %v1759
        %v1762 = vunpack.c.l.b16 %v1666
        %v1763 = vpack.c.b16 %v1762, %v1762
        %1764 = vrot.lane.b32.xlu0 %v1763, 120
        %v1765 = vpop.permute.xlu0 %1764
        %v1767 = vsel %vm1193, %v1760, 0
        %v1770 = vsel %vm1229, %v1765, 0
        %1772 = vmatpush.bf16.msra.mxu0 0
        %1773 = vmatpush.bf16.msra.mxu0 0
        %1774 = vmatpush.bf16.msra.mxu0 0
        %1775 = vmatpush.bf16.msra.mxu0 0
        %1776 = vmatpush.bf16.msra.mxu0 0
        %1777 = vmatpush.bf16.msra.mxu0 0
        %1778 = vmatpush.bf16.msra.mxu0 0
        %1779 = vmatpush.bf16.msra.mxu0 %v1770
        %1780 = vmatmul.bf16.gmra.mxu0 %v1767
        %v1781 = vpop.f32.mrf.mxu0
        %v1782 = vadd.f32 0.0, %v1781
        %v1783 = vpop.f32.mrf.mxu0
        %1784 = vdwg.mxu0
        %v1785 = vpack.c.bf16 %v1782, %v1782
        %v1787 = vsel %vm1193, %v1785, 0
        %v1790 = vsel %vm1229, %v1563, 0
        %1792 = vmatpush.bf16.msra.mxu0 0
        %1793 = vmatpush.bf16.msra.mxu0 0
        %1794 = vmatpush.bf16.msra.mxu0 0
        %1795 = vmatpush.bf16.msra.mxu0 0
        %1796 = vmatpush.bf16.msra.mxu0 0
        %1797 = vmatpush.bf16.msra.mxu0 0
        %1798 = vmatpush.bf16.msra.mxu0 0
        %1799 = vmatpush.bf16.msra.mxu0 %v1790
        %1800 = vmatmul.bf16.gmra.mxu0 %v1787
        %v1801 = vpop.f32.mrf.mxu0
        %v1802 = vadd.f32 0.0, %v1801
        %v1803 = vpop.f32.mrf.mxu0
        %1804 = vdwg.mxu0
        %v1806 = vsel %vm1193, %v1718, 0
        %v1809 = vsel %vm1229, %v1562, 0
        %1811 = vmatpush.bf16.msra.mxu0 0
        %1812 = vmatpush.bf16.msra.mxu0 0
        %1813 = vmatpush.bf16.msra.mxu0 0
        %1814 = vmatpush.bf16.msra.mxu0 0
        %1815 = vmatpush.bf16.msra.mxu0 0
        %1816 = vmatpush.bf16.msra.mxu0 0
        %1817 = vmatpush.bf16.msra.mxu0 0
        %1818 = vmatpush.bf16.msra.mxu0 %v1809
        %1819 = vmatmul.bf16.gmra.mxu0 %v1806
        %v1820 = vpop.f32.mrf.mxu0
        %v1821 = vadd.f32 %v1802, %v1820
        %v1822 = vpop.f32.mrf.mxu0
        %1823 = vdwg.mxu0
        %1824 = vrot.lane.b32.xlu0 %v1721, 112
        %v1825 = vpop.permute.xlu0 %1824
        %1826 = vrot.lane.b32.xlu0 %v1726, 112
        %v1827 = vpop.permute.xlu0 %1826
        %v1829 = vsel %vm1193, %v1825, 0
        %v1832 = vsel %vm1193, %v1827, 0
        %1834 = vmatpush.bf16.xpose.msra.mxu0 0
        %1835 = vmatpush.bf16.xpose.msra.mxu0 0
        %1836 = vmatpush.bf16.xpose.msra.mxu0 0
        %1837 = vmatpush.bf16.xpose.msra.mxu0 0
        %1838 = vmatpush.bf16.xpose.msra.mxu0 0
        %1839 = vmatpush.bf16.xpose.msra.mxu0 0
        %1840 = vmatpush.bf16.xpose.msra.mxu0 0
        %1841 = vmatpush.bf16.xpose.msra.mxu0 %v1832
        %1842 = vmatmul.bf16.gmra.mxu0 %v1829
        %v1843 = vpop.f32.mrf.mxu0
        %v1844 = vadd.f32 0.0, %v1843
        %v1845 = vpop.f32.mrf.mxu0
        %1846 = vdwg.mxu0
        %v1847 = vmul.f32 %v1844, 0.35355338
        %v1848 = vsel %vm1193, %v1847, -inf
        %1849 = vmax.xlane.f32.xlu0 %v1848
        %v1850 = vpop.xlane.xlu0 %1849
        %v1851 = vsub.f32 %v1847, %v1850
        %v1852 = vmul.f32 %v1851, 1.442695
        %v1853 = vpow.pop %v1852
        %v1854 = vsel %vm1193, %v1853, 0.0
        %1855 = vadd.xlane.f32.xlu0 %v1854
        %v1856 = vpop.xlane.xlu0 %1855
        %v1857 = vrcp.pop %v1856
        %v1858 = vmul.f32 %v1853, %v1857
        %v1859 = vpack.c.bf16 %v1858, %v1858
        %1860 = vrot.lane.b32.xlu0 %v1763, 112
        %v1861 = vpop.permute.xlu0 %1860
        %v1863 = vsel %vm1193, %v1859, 0
        %v1866 = vsel %vm1229, %v1861, 0
        %1868 = vmatpush.bf16.msra.mxu0 0
        %1869 = vmatpush.bf16.msra.mxu0 0
        %1870 = vmatpush.bf16.msra.mxu0 0
        %1871 = vmatpush.bf16.msra.mxu0 0
        %1872 = vmatpush.bf16.msra.mxu0 0
        %1873 = vmatpush.bf16.msra.mxu0 0
        %1874 = vmatpush.bf16.msra.mxu0 0
        %1875 = vmatpush.bf16.msra.mxu0 %v1866
        %1876 = vmatmul.bf16.gmra.mxu0 %v1863
        %v1877 = vpop.f32.mrf.mxu0
        %v1878 = vadd.f32 0.0, %v1877
        %v1879 = vpop.f32.mrf.mxu0
        %1880 = vdwg.mxu0
        %v1881 = vpack.c.bf16 %v1878, %v1878
        %v1883 = vsel %vm1193, %v1881, 0
        %v1886 = vsel %vm1229, %v1564, 0
        %1888 = vmatpush.bf16.msra.mxu0 0
        %1889 = vmatpush.bf16.msra.mxu0 0
        %1890 = vmatpush.bf16.msra.mxu0 0
        %1891 = vmatpush.bf16.msra.mxu0 0
        %1892 = vmatpush.bf16.msra.mxu0 0
        %1893 = vmatpush.bf16.msra.mxu0 0
        %1894 = vmatpush.bf16.msra.mxu0 0
        %1895 = vmatpush.bf16.msra.mxu0 %v1886
        %1896 = vmatmul.bf16.gmra.mxu0 %v1883
        %v1897 = vpop.f32.mrf.mxu0
        %v1898 = vadd.f32 0.0, %v1897
        %v1899 = vpop.f32.mrf.mxu0
        %1900 = vdwg.mxu0
        %v1901 = vadd.f32 %v1821, %v1898
        %1902 = vrot.lane.b32.xlu0 %v1721, 104
        %v1903 = vpop.permute.xlu0 %1902
        %1904 = vrot.lane.b32.xlu0 %v1726, 104
        %v1905 = vpop.permute.xlu0 %1904
        %v1907 = vsel %vm1193, %v1903, 0
        %v1910 = vsel %vm1193, %v1905, 0
        %1912 = vmatpush.bf16.xpose.msra.mxu0 0
        %1913 = vmatpush.bf16.xpose.msra.mxu0 0
        %1914 = vmatpush.bf16.xpose.msra.mxu0 0
        %1915 = vmatpush.bf16.xpose.msra.mxu0 0
        %1916 = vmatpush.bf16.xpose.msra.mxu0 0
        %1917 = vmatpush.bf16.xpose.msra.mxu0 0
        %1918 = vmatpush.bf16.xpose.msra.mxu0 0
        %1919 = vmatpush.bf16.xpose.msra.mxu0 %v1910
        %1920 = vmatmul.bf16.gmra.mxu0 %v1907
        %v1921 = vpop.f32.mrf.mxu0
        %v1922 = vadd.f32 0.0, %v1921
        %v1923 = vpop.f32.mrf.mxu0
        %1924 = vdwg.mxu0
        %v1925 = vmul.f32 %v1922, 0.35355338
        %v1926 = vsel %vm1193, %v1925, -inf
        %1927 = vmax.xlane.f32.xlu0 %v1926
        %v1928 = vpop.xlane.xlu0 %1927
        %v1929 = vsub.f32 %v1925, %v1928
        %v1930 = vmul.f32 %v1929, 1.442695
        %v1931 = vpow.pop %v1930
        %v1932 = vsel %vm1193, %v1931, 0.0
        %1933 = vadd.xlane.f32.xlu0 %v1932
        %v1934 = vpop.xlane.xlu0 %1933
        %v1935 = vrcp.pop %v1934
        %v1936 = vmul.f32 %v1931, %v1935
        %v1937 = vpack.c.bf16 %v1936, %v1936
        %1938 = vrot.lane.b32.xlu0 %v1763, 104
        %v1939 = vpop.permute.xlu0 %1938
        %v1941 = vsel %vm1193, %v1937, 0
        %v1944 = vsel %vm1229, %v1939, 0
        %1946 = vmatpush.bf16.msra.mxu0 0
        %1947 = vmatpush.bf16.msra.mxu0 0
        %1948 = vmatpush.bf16.msra.mxu0 0
        %1949 = vmatpush.bf16.msra.mxu0 0
        %1950 = vmatpush.bf16.msra.mxu0 0
        %1951 = vmatpush.bf16.msra.mxu0 0
        %1952 = vmatpush.bf16.msra.mxu0 0
        %1953 = vmatpush.bf16.msra.mxu0 %v1944
        %1954 = vmatmul.bf16.gmra.mxu0 %v1941
        %v1955 = vpop.f32.mrf.mxu0
        %v1956 = vadd.f32 0.0, %v1955
        %v1957 = vpop.f32.mrf.mxu0
        %1958 = vdwg.mxu0
        %v1959 = vpack.c.bf16 %v1956, %v1956
        %v1961 = vsel %vm1193, %v1959, 0
        %v1964 = vsel %vm1229, %v1565, 0
        %1966 = vmatpush.bf16.msra.mxu0 0
        %1967 = vmatpush.bf16.msra.mxu0 0
        %1968 = vmatpush.bf16.msra.mxu0 0
        %1969 = vmatpush.bf16.msra.mxu0 0
        %1970 = vmatpush.bf16.msra.mxu0 0
        %1971 = vmatpush.bf16.msra.mxu0 0
        %1972 = vmatpush.bf16.msra.mxu0 0
        %1973 = vmatpush.bf16.msra.mxu0 %v1964
        %1974 = vmatmul.bf16.gmra.mxu0 %v1961
        %v1975 = vpop.f32.mrf.mxu0
        %v1976 = vadd.f32 0.0, %v1975
        %v1977 = vpop.f32.mrf.mxu0
        %1978 = vdwg.mxu0
        %v1979 = vadd.f32 %v1901, %v1976
        %v1980 = vadd.f32 %v1549, %v1979
        %v1982 = vperm.slane %v1569, 0
        %v1984 = vadd.f32 %v1980, %v1982
        %v1985 = vsel %vm1117, %v1984, 0.0
        %1986 = vadd.xlane.f32.xlu0 %v1985
        %v1987 = vpop.xlane.xlu0 %1986
        %v1988 = vmul.f32 %v1987, %v1522
        %v1989 = vsub.f32 %v1984, %v1988
        %v1990 = vmul.f32 %v1989, %v1989
        %v1991 = vsel %vm1117, %v1990, 0.0
        %1992 = vadd.xlane.f32.xlu0 %v1991
        %v1993 = vpop.xlane.xlu0 %1992
        %v1994 = vmul.f32 %v1993, %v1522
        %v1995 = vadd.f32 %v1994, 1e-05
        %v1996 = vrsqrt.pop %v1995
        %v1997 = vmul.f32 %v1996, %v1995
        %v1998 = vmul.f32 %v1997, %v1996
        %v1999 = vmul.f32 0.5, %v1998
        %v2000 = vsub.f32 1.5, %v1999
        %v2001 = vmul.f32 %v1996, %v2000
        %vm2002 = vweird.f32 %v1995
        %vm2003 = vweird.f32 %v1996
        %vm2004 = vmor %vm2002, %vm2003
        %v2005 = vsel %vm2004, %v1996, %v2001
        %v2006 = vmul.f32 %v1989, %v2005
        %v2008 = vperm.slane %v1570, 0
        %v2010 = vmul.f32 %v2006, %v2008
        %v2012 = vperm.slane %v1571, 0
        %v2014 = vadd.f32 %v2010, %v2012
        %v2015 = vld [vmem:[%s22] sm:$0xf]
        %v2016 = vld [vmem:[%s22 + $0x4] sm:$0xf]
        %v2017 = vld [vmem:[%s22 + $0x8] sm:$0xf]
        %v2018 = vld [vmem:[%s22 + $0xc] sm:$0xf]
        %v2019 = vld [vmem:[#allocation19] sm:$0x1]
        %v2020 = vld [vmem:[%s24] sm:$0xf]
        %v2021 = vld [vmem:[%s24 + $0x4] sm:$0xf]
        %v2022 = vld [vmem:[%s24 + $0x8] sm:$0xf]
        %v2023 = vld [vmem:[%s24 + $0xc] sm:$0xf]
        %v2024 = vld [vmem:[%s24 + $0x10] sm:$0xf]
        %v2025 = vld [vmem:[%s24 + $0x14] sm:$0xf]
        %v2026 = vld [vmem:[%s24 + $0x18] sm:$0xf]
        %v2027 = vld [vmem:[%s24 + $0x1c] sm:$0xf]
        %v2028 = vld [vmem:[#allocation21] sm:$0x1]
        %v2029 = vld [vmem:[#allocation22] sm:$0x1]
        %v2030 = vld [vmem:[#allocation24] sm:$0x1]
        %v2031 = vpack.c.bf16 %v2014, %v2014
        %v2033 = vperm.slane %v2019, 0
        %v2039 = vunpack.c.l.b16 %v2015
        %v2040 = vunpack.c.l.b16 %v2016
        %v2041 = vunpack.c.l.b16 %v2017
        %v2042 = vunpack.c.l.b16 %v2018
        %v2043 = vpack.c.b16 %v2040, %v2039
        %v2044 = vpack.c.b16 %v2042, %v2041
        %v2048 = vsel %vm1117, %v2031, 0
        %2050 = vmatpush.bf16.msra.mxu0 0
        %2051 = vmatpush.bf16.msra.mxu0 0
        %2052 = vmatpush.bf16.msra.mxu0 0
        %2053 = vmatpush.bf16.msra.mxu0 0
        %2054 = vmatpush.bf16.msra.mxu0 0
        %2055 = vmatpush.bf16.msra.mxu0 0
        %2056 = vmatpush.bf16.msra.mxu0 %v2044
        %2057 = vmatpush.bf16.msra.mxu0 %v2043
        %2058 = vmatmul.bf16.gmra.mxu0 %v2048
        %v2059 = vpop.f32.mrf.mxu0
        %v2060 = vadd.f32 %v2033, %v2059
        %v2061 = vpop.f32.mrf.mxu0
        %2062 = vdwg.mxu0
        %v2063 = vmax.f32 %v2060, 0.0
        %v2064 = vpack.c.bf16 %v2063, %v2063
        %v2066 = vperm.slane %v2028, 0
        %v2076 = vunpack.c.l.b16 %v2020
        %v2077 = vunpack.c.l.b16 %v2021
        %v2078 = vunpack.c.l.b16 %v2022
        %v2079 = vunpack.c.l.b16 %v2023
        %v2080 = vunpack.c.l.b16 %v2024
        %v2081 = vunpack.c.l.b16 %v2025
        %v2082 = vunpack.c.l.b16 %v2026
        %v2083 = vunpack.c.l.b16 %v2027
        %v2084 = vpack.c.b16 %v2077, %v2076
        %v2085 = vpack.c.b16 %v2079, %v2078
        %v2086 = vpack.c.b16 %v2081, %v2080
        %v2087 = vpack.c.b16 %v2083, %v2082
        %vm2092 = vcmask 523264
        %v2094 = vsel %vm2092, %v2064, 0
        %2096 = vmatpush.bf16.msra.mxu0 0
        %2097 = vmatpush.bf16.msra.mxu0 0
        %2098 = vmatpush.bf16.msra.mxu0 0
        %2099 = vmatpush.bf16.msra.mxu0 0
        %2100 = vmatpush.bf16.msra.mxu0 %v2087
        %2101 = vmatpush.bf16.msra.mxu0 %v2086
        %2102 = vmatpush.bf16.msra.mxu0 %v2085
        %2103 = vmatpush.bf16.msra.mxu0 %v2084
        %2104 = vmatmul.bf16.gmra.mxu0 %v2094
        %v2105 = vpop.f32.mrf.mxu0
        %v2106 = vadd.f32 %v2066, %v2105
        %v2107 = vpop.f32.mrf.mxu0
        %2108 = vdwg.mxu0
        %v2109 = vadd.f32 %v2014, %v2106
        %v2110 = vsel %vm1117, %v2109, 0.0
        %2111 = vadd.xlane.f32.xlu0 %v2110
        %v2112 = vpop.xlane.xlu0 %2111
        %v2113 = vmul.f32 %v2112, %v1522
        %v2114 = vsub.f32 %v2109, %v2113
        %v2115 = vmul.f32 %v2114, %v2114
        %v2116 = vsel %vm1117, %v2115, 0.0
        %2117 = vadd.xlane.f32.xlu0 %v2116
        %v2118 = vpop.xlane.xlu0 %2117
        %v2119 = vmul.f32 %v2118, %v1522
        %v2120 = vadd.f32 %v2119, 1e-05
        %v2121 = vrsqrt.pop %v2120
        %v2122 = vmul.f32 %v2121, %v2120
        %v2123 = vmul.f32 %v2122, %v2121
        %v2124 = vmul.f32 0.5, %v2123
        %v2125 = vsub.f32 1.5, %v2124
        %v2126 = vmul.f32 %v2121, %v2125
        %vm2127 = vweird.f32 %v2120
        %vm2128 = vweird.f32 %v2121
        %vm2129 = vmor %vm2127, %vm2128
        %v2130 = vsel %vm2129, %v2121, %v2126
        %v2131 = vmul.f32 %v2114, %v2130
        %v2133 = vperm.slane %v2029, 0
        %v2135 = vmul.f32 %v2131, %v2133
        %v2137 = vperm.slane %v2030, 0
        %v2139 = vadd.f32 %v2135, %v2137
        %2140 = vst.msk [vmem:[%s1075] sm:$0xff] %vm1117, %v2139
        %p2141 = scmp.lt.s32.totalorder %s47, 1
        %s2142 = scalar_select %p2141, %s47, 1
        %s2143 = smul.addr %s2142, 8
        %s2144 = scalar_lea.vmem %s28, %s2143
        // Predicated region
        $region193: #{transformer_seq2seq.7} parent=131 // pred_check
          %p2145 = pneg %p663
        $region194: #{transformer_seq2seq.7} parent=131 // pred_check_branch
          %2147 = sbr.rel (%p2145) target = $region196
        $region195: #{transformer_seq2seq.7} parent=131 // pred_region
          _
        $region196: #{transformer_seq2seq.7} parent=131 // pred_fallthru
          _
      $region132: #{transformer_seq2seq.7} parent=5 // pred_fallthru
        _
      %p2148 = scmp.le.s32.totalorder 2, %s42
      // Predicated region
      $region197: #{transformer_seq2seq.7} parent=5 // pred_check
        %p2149 = pneg %p2148
      $region198: #{transformer_seq2seq.7} parent=5 // pred_check_branch
        %2151 = sbr.rel (%p2149) target = $region200
      $region199: #{transformer_seq2seq.7} parent=5 // pred_region
        %s2152 = ssub.s32 %s42, 2
        // Predicated region
        $region201: #{transformer_seq2seq.7} parent=199 // pred_check
          %p2153 = pneg %p669
        $region202: #{transformer_seq2seq.7} parent=199 // pred_check_branch
          %2155 = sbr.rel (%p2153) target = $region204
        $region203: #{transformer_seq2seq.7} parent=199 // pred_region
          %p2156 = scmp.lt.s32.totalorder %s48, 1
          %s2157 = scalar_select %p2156, %s48, 1
          %s2158 = smul.addr %s2157, 8
          %s2159 = scalar_lea.vmem %s28, %s2158
        $region204: #{transformer_seq2seq.7} parent=199 // pred_fallthru
          _
      $region200: #{transformer_seq2seq.7} parent=5 // pred_fallthru
        _
    $region6: #{transformer_seq2seq.7} parent=1 // loop_footer
      %s46 = sadd.s32 1, %s42
    $region7: #{transformer_seq2seq.7} parent=1 // loop_footer_branch
      %41 = sbr.rel target = $region3
    $region8: #{transformer_seq2seq.7} parent=1 // loop_exit
      _
    %2160 = vsyncpa [#allocation3], 1
    %s2161 = scalar_lea.sflag [#allocation3], 1
    %2162 = vsyncpa %s2161, 1
    %2163 = vsyncpa [#allocation5], 1
    %2164 = vsyncpa [#allocation8], 1
    %2165 = vsyncpa [#allocation11], 1
    %2166 = vsyncpa [#allocation14], 1
    %2167 = vsyncpa [#allocation17], 1
    %2168 = vsyncpa [#allocation20], 1
    %2169 = vsyncpa [#allocation23], 1

// kernel: transformer_seq2seq.9
$region0: #{transformer_seq2seq.9}
  #allocation0 [shape = 'u32[]', space=smem, size = 0x4, offset = 0x4, fixed_abs, tag = 'smem constant byte address 0x4 - core index']
  #allocation1 [shape = 'u32[72,128]{1,0:T(1,128)}', space=vmem, size = 0x9000, scoped, tag = 'internal scratch']
  %s0 = inlined_call_operand.vmem [shape: f32[16,32], index: 0, kind: input, shape index: {}]
  %s1 = inlined_call_operand.vmem [shape: bf16[32,128], index: 1, kind: input, shape index: {}]
  %s2 = inlined_call_operand.vmem [shape: f32[1,128], index: 2, kind: input, shape index: {}]
  %s3 = inlined_call_operand.vmem [shape: f32[16,128], index: 3, kind: output, shape index: {}]
  %s4 = sld [smem:[#allocation0]]
  $region45: #{transformer_seq2seq.9} parent=0
    _
  %s6 = ssub.s32 1, %s4
  %s7 = scalar_select 0, %s6, %s4
  loop: start=0, step=1, limit=4
  $region2: #{transformer_seq2seq.9} parent=0 // loop_pre_header
    _
  $region3: #{transformer_seq2seq.9} parent=0 // loop_header
    %s9 = sphi 0, %s13
    %p10 = scmp.ge.s32.totalorder %s9, 4
    %s16 = sphi 0, %s28
    %s17 = sphi 0, %s24
    %s18 = sphi 0, %s16
    %s19 = sphi 0, %s17
    %s20 = sphi 0, %s18
    %s21 = sphi 0, %s19
    %s31 = sphi 0, %s33
    %s34 = sphi 0, %s31
    %s35 = sphi 0, %s34
    %s51 = sphi 0, %s35
    %s57 = sphi 0, %s59
    %s60 = sphi 0, %s57
    %s61 = sphi 0, %s60
    %s77 = sphi 0, %s61
    %s83 = sphi 0, %s85
    %s86 = sphi 0, %s83
    %s87 = sphi 0, %s86
    %s103 = sphi 0, %s87
    %s111 = sphi 0, %s113
    %s114 = sphi 0, %s111
    %s115 = sphi 0, %s114
    %s131 = sphi 0, %s115
  $region4: #{transformer_seq2seq.9} parent=0 // loop_header_branch
    %12 = sbr.rel (%p10) target = $region8
  $region5: #{transformer_seq2seq.9} parent=0 // loop_body
    %s14 = ssub.s32 %s9, 1
    %s15 = ssub.s32 %s9, 2
    %s22 = sadd.s32 1, %s17
    %p23 = scmp.ge.s32.totalorder %s22, 1
    %s24 = scalar_select %p23, 0, %s22
    %s25 = sadd.s32 1, %s16
    %s26 = scalar_select %p23, %s25, %s16
    %p27 = scmp.ge.s32.totalorder %s26, 2
    %s28 = scalar_select %p27, 0, %s26
    %s29 = ssub.s32 %s16, %s28
    %p30 = scmp.eq.s32.totalorder %s29, 0
    %s32 = sadd.s32 %s31, 1
    %s33 = scalar_select %p30, %s31, %s32
    %p36 = pneg %p30
    %p37 = scmp.eq.s32.totalorder %s9, 1
    %p38 = por %p36, %p37
    %p39 = scmp.ne.s32.totalorder %s31, %s34
    %p40 = scmp.eq.s32.totalorder %s9, 0
    %p41 = por %p39, %p40
    %p42 = scmp.ne.s32.totalorder %s31, %s34
    %p43 = scmp.eq.s32.totalorder %s14, 1
    %p44 = por %p42, %p43
    %p45 = scmp.ne.s32.totalorder %s34, %s35
    %p46 = scmp.eq.s32.totalorder %s14, 0
    %p47 = por %p45, %p46
    %p48 = scmp.ne.s32.totalorder %s34, %s35
    %p49 = scmp.eq.s32.totalorder %s15, 1
    %p50 = por %p48, %p49
    %p52 = scmp.ne.s32.totalorder %s35, %s51
    %p53 = scmp.eq.s32.totalorder %s15, 0
    %p54 = por %p52, %p53
    %s55 = ssub.s32 %s17, %s24
    %p56 = scmp.eq.s32.totalorder %s55, 0
    %s58 = sadd.s32 %s57, 1
    %s59 = scalar_select %p56, %s57, %s58
    %p62 = pneg %p56
    %p63 = scmp.eq.s32.totalorder %s9, 1
    %p64 = por %p62, %p63
    %p65 = scmp.ne.s32.totalorder %s57, %s60
    %p66 = scmp.eq.s32.totalorder %s9, 0
    %p67 = por %p65, %p66
    %p68 = scmp.ne.s32.totalorder %s57, %s60
    %p69 = scmp.eq.s32.totalorder %s14, 1
    %p70 = por %p68, %p69
    %p71 = scmp.ne.s32.totalorder %s60, %s61
    %p72 = scmp.eq.s32.totalorder %s14, 0
    %p73 = por %p71, %p72
    %p74 = scmp.ne.s32.totalorder %s60, %s61
    %p75 = scmp.eq.s32.totalorder %s15, 1
    %p76 = por %p74, %p75
    %p78 = scmp.ne.s32.totalorder %s61, %s77
    %p79 = scmp.eq.s32.totalorder %s15, 0
    %p80 = por %p78, %p79
    %s81 = ssub.s32 %s17, %s24
    %p82 = scmp.eq.s32.totalorder %s81, 0
    %s84 = sadd.s32 %s83, 1
    %s85 = scalar_select %p82, %s83, %s84
    %p88 = pneg %p82
    %p89 = scmp.eq.s32.totalorder %s9, 1
    %p90 = por %p88, %p89
    %p91 = scmp.ne.s32.totalorder %s83, %s86
    %p92 = scmp.eq.s32.totalorder %s9, 0
    %p93 = por %p91, %p92
    %p94 = scmp.ne.s32.totalorder %s83, %s86
    %p95 = scmp.eq.s32.totalorder %s14, 1
    %p96 = por %p94, %p95
    %p97 = scmp.ne.s32.totalorder %s86, %s87
    %p98 = scmp.eq.s32.totalorder %s14, 0
    %p99 = por %p97, %p98
    %p100 = scmp.ne.s32.totalorder %s86, %s87
    %p101 = scmp.eq.s32.totalorder %s15, 1
    %p102 = por %p100, %p101
    %p104 = scmp.ne.s32.totalorder %s87, %s103
    %p105 = scmp.eq.s32.totalorder %s15, 0
    %p106 = por %p104, %p105
    %s107 = ssub.s32 %s16, %s28
    %s108 = ssub.s32 %s17, %s24
    %s109 = sor.u32 %s107, %s108
    %p110 = scmp.eq.s32.totalorder %s109, 0
    %s112 = sadd.s32 %s111, 1
    %s113 = scalar_select %p110, %s111, %s112
    %p116 = pneg %p110
    %p117 = scmp.eq.s32.totalorder %s9, 1
    %p118 = por %p116, %p117
    %p119 = scmp.ne.s32.totalorder %s111, %s114
    %p120 = scmp.eq.s32.totalorder %s9, 0
    %p121 = por %p119, %p120
    %p122 = scmp.ne.s32.totalorder %s111, %s114
    %p123 = scmp.eq.s32.totalorder %s14, 1
    %p124 = por %p122, %p123
    %p125 = scmp.ne.s32.totalorder %s114, %s115
    %p126 = scmp.eq.s32.totalorder %s14, 0
    %p127 = por %p125, %p126
    %p128 = scmp.ne.s32.totalorder %s114, %s115
    %p129 = scmp.eq.s32.totalorder %s15, 1
    %p130 = por %p128, %p129
    %p132 = scmp.ne.s32.totalorder %s115, %s131
    %p133 = scmp.eq.s32.totalorder %s15, 0
    %p134 = por %p132, %p133
    %p135 = scmp.le.s32.totalorder 1, %s9
    %p136 = scmp.lt.s32.totalorder %s9, 3
    %p137 = pnand %p135, %p136
    %p138 = pneg %p137
    // Predicated region
    $region9: #{transformer_seq2seq.9} parent=5 // pred_check
      _
    $region10: #{transformer_seq2seq.9} parent=5 // pred_check_branch
      %140 = sbr.rel (%p137) target = $region12
    $region11: #{transformer_seq2seq.9} parent=5 // pred_region
      %s141 = ssub.s32 %s9, 1
      // Predicated region
      $region13: #{transformer_seq2seq.9} parent=11 // pred_check
        %p142 = pneg %p73
      $region14: #{transformer_seq2seq.9} parent=11 // pred_check_branch
        %144 = sbr.rel (%p142) target = $region16
      $region15: #{transformer_seq2seq.9} parent=11 // pred_region
        %p145 = scmp.lt.s32.totalorder %s19, 0
        %s146 = scalar_select %p145, %s19, 0
        %s147 = smul.addr %s146, 4
        %s148 = scalar_lea.vmem %s1, %s147
      $region16: #{transformer_seq2seq.9} parent=11 // pred_fallthru
        _
      // Predicated region
      $region17: #{transformer_seq2seq.9} parent=11 // pred_check
        %p149 = pneg %p99
      $region18: #{transformer_seq2seq.9} parent=11 // pred_check_branch
        %151 = sbr.rel (%p149) target = $region20
      $region19: #{transformer_seq2seq.9} parent=11 // pred_region
        %p152 = scmp.lt.s32.totalorder %s19, 0
        %s153 = scalar_select %p152, %s19, 0
        %s154 = scalar_lea.vmem %s2, %s153
      $region20: #{transformer_seq2seq.9} parent=11 // pred_fallthru
        _
    $region12: #{transformer_seq2seq.9} parent=5 // pred_fallthru
      _
    %p155 = scmp.lt.s32.totalorder %s9, 2
    // Predicated region
    $region21: #{transformer_seq2seq.9} parent=5 // pred_check
      %p156 = pneg %p155
    $region22: #{transformer_seq2seq.9} parent=5 // pred_check_branch
      %158 = sbr.rel (%p156) target = $region24
    $region23: #{transformer_seq2seq.9} parent=5 // pred_region
      // Predicated region
      $region25: #{transformer_seq2seq.9} parent=23 // pred_check
        %p159 = pneg %p41
      $region26: #{transformer_seq2seq.9} parent=23 // pred_check_branch
        %161 = sbr.rel (%p159) target = $region28
      $region27: #{transformer_seq2seq.9} parent=23 // pred_region
        %p162 = scmp.lt.s32.totalorder %s16, 1
        %s163 = scalar_select %p162, %s16, 1
        %s164 = smul.addr %s163, 8
        %s165 = scalar_lea.vmem %s0, %s164
      $region28: #{transformer_seq2seq.9} parent=23 // pred_fallthru
        _
    $region24: #{transformer_seq2seq.9} parent=5 // pred_fallthru
      _
    %p166 = scmp.le.s32.totalorder 1, %s9
    %p167 = scmp.lt.s32.totalorder %s9, 3
    %p168 = pnand %p166, %p167
    %p169 = pneg %p168
    // Predicated region
    $region29: #{transformer_seq2seq.9} parent=5 // pred_check
      _
    $region30: #{transformer_seq2seq.9} parent=5 // pred_check_branch
      %171 = sbr.rel (%p168) target = $region32
    $region31: #{transformer_seq2seq.9} parent=5 // pred_region
      %s172 = ssub.s32 %s9, 1
      %p173 = scmp.lt.s32.totalorder %s18, 1
      %s174 = scalar_select %p173, %s18, 1
      %s175 = smul.addr %s174, 8
      %s176 = scalar_lea.vmem %s0, %s175
      %p177 = pneg %p47
      %p178 = pneg %p44
      %p179 = scmp.lt.s32.totalorder %s19, 0
      %s180 = scalar_select %p179, %s19, 0
      %s181 = smul.addr %s180, 4
      %s182 = scalar_lea.vmem %s1, %s181
      %p183 = pneg %p73
      %p184 = pneg %p70
      %p185 = scmp.lt.s32.totalorder %s19, 0
      %s186 = scalar_select %p185, %s19, 0
      %s187 = scalar_lea.vmem %s2, %s186
      %p188 = pneg %p99
      %p189 = pneg %p96
      %p190 = pneg %p127
      %p191 = pneg %p124
      %p192 = scmp.lt.s32.totalorder %s18, 1
      %s193 = scalar_select %p192, %s18, 1
      %p194 = scmp.lt.s32.totalorder %s19, 0
      %s195 = scalar_select %p194, %s19, 0
      %s196 = sadd.s32 %s195, %s193
      %s197 = smul.addr %s196, 8
      %s198 = scalar_lea.vmem %s3, %s197
      %p199 = scmp.lt.s32.totalorder %s18, 1
      %s200 = scalar_select %p199, %s18, 1
      %s201 = smul.addr %s200, 8
      %s202 = scalar_lea.vmem %s0, %s201
      %p203 = scmp.lt.s32.totalorder %s19, 0
      %s204 = scalar_select %p203, %s19, 0
      %s205 = smul.addr %s204, 4
      %s206 = scalar_lea.vmem %s1, %s205
      %p207 = scmp.lt.s32.totalorder %s19, 0
      %s208 = scalar_select %p207, %s19, 0
      %s209 = scalar_lea.vmem %s2, %s208
      %p210 = scmp.lt.s32.totalorder %s18, 1
      %s211 = scalar_select %p210, %s18, 1
      %p212 = scmp.lt.s32.totalorder %s19, 0
      %s213 = scalar_select %p212, %s19, 0
      %s214 = sadd.s32 %s213, %s211
      %s215 = smul.addr %s214, 8
      %s216 = scalar_lea.vmem %s3, %s215
      %v218 = vld [vmem:[%s202] sm:$0xff]
      %v219 = vpack.c.bf16 %v218, %v218
      %v220 = vld [vmem:[%s206] sm:$0xf]
      %v221 = vld [vmem:[%s206 + $0x4] sm:$0xf]
      %v222 = vld [vmem:[%s206 + $0x8] sm:$0xf]
      %v223 = vld [vmem:[%s206 + $0xc] sm:$0xf]
      %v224 = vld [vmem:[%s209] sm:$0x1]
      %v226 = vperm.slane %v224, 0
      %v232 = vunpack.c.l.b16 %v220
      %v233 = vunpack.c.l.b16 %v221
      %v234 = vunpack.c.l.b16 %v222
      %v235 = vunpack.c.l.b16 %v223
      %v236 = vpack.c.b16 %v233, %v232
      %v237 = vpack.c.b16 %v235, %v234
      %vm240 = vcmask 261120
      %v242 = vsel %vm240, %v219, 0
      %244 = vmatpush.bf16.msra.mxu0 0
      %245 = vmatpush.bf16.msra.mxu0 0
      %246 = vmatpush.bf16.msra.mxu0 0
      %247 = vmatpush.bf16.msra.mxu0 0
      %248 = vmatpush.bf16.msra.mxu0 0
      %249 = vmatpush.bf16.msra.mxu0 0
      %250 = vmatpush.bf16.msra.mxu0 %v237
      %251 = vmatpush.bf16.msra.mxu0 %v236
      %252 = vmatmul.bf16.gmra.mxu0 %v242
      %v253 = vpop.f32.mrf.mxu0
      %v254 = vadd.f32 %v226, %v253
      %v255 = vpop.f32.mrf.mxu0
      %256 = vdwg.mxu0
      %257 = vst [vmem:[%s216] sm:$0xff] %v254
      %p258 = scmp.lt.s32.totalorder %s18, 1
      %s259 = scalar_select %p258, %s18, 1
      %p260 = scmp.lt.s32.totalorder %s19, 0
      %s261 = scalar_select %p260, %s19, 0
      %s262 = sadd.s32 %s261, %s259
      %s263 = smul.addr %s262, 8
      %s264 = scalar_lea.vmem %s3, %s263
      // Predicated region
      $region33: #{transformer_seq2seq.9} parent=31 // pred_check
        %p265 = pneg %p124
      $region34: #{transformer_seq2seq.9} parent=31 // pred_check_branch
        %267 = sbr.rel (%p265) target = $region36
      $region35: #{transformer_seq2seq.9} parent=31 // pred_region
        _
      $region36: #{transformer_seq2seq.9} parent=31 // pred_fallthru
        _
    $region32: #{transformer_seq2seq.9} parent=5 // pred_fallthru
      _
    %p268 = scmp.le.s32.totalorder 2, %s9
    // Predicated region
    $region37: #{transformer_seq2seq.9} parent=5 // pred_check
      %p269 = pneg %p268
    $region38: #{transformer_seq2seq.9} parent=5 // pred_check_branch
      %271 = sbr.rel (%p269) target = $region40
    $region39: #{transformer_seq2seq.9} parent=5 // pred_region
      %s272 = ssub.s32 %s9, 2
      // Predicated region
      $region41: #{transformer_seq2seq.9} parent=39 // pred_check
        %p273 = pneg %p130
      $region42: #{transformer_seq2seq.9} parent=39 // pred_check_branch
        %275 = sbr.rel (%p273) target = $region44
      $region43: #{transformer_seq2seq.9} parent=39 // pred_region
        %p276 = scmp.lt.s32.totalorder %s20, 1
        %s277 = scalar_select %p276, %s20, 1
        %p278 = scmp.lt.s32.totalorder %s21, 0
        %s279 = scalar_select %p278, %s21, 0
        %s280 = sadd.s32 %s279, %s277
        %s281 = smul.addr %s280, 8
        %s282 = scalar_lea.vmem %s3, %s281
      $region44: #{transformer_seq2seq.9} parent=39 // pred_fallthru
        _
    $region40: #{transformer_seq2seq.9} parent=5 // pred_fallthru
      _
  $region6: #{transformer_seq2seq.9} parent=0 // loop_footer
    %s13 = sadd.s32 1, %s9
  $region7: #{transformer_seq2seq.9} parent=0 // loop_footer_branch
    %8 = sbr.rel target = $region3
  $region8: #{transformer_seq2seq.9} parent=0 // loop_exit
    _

</llo_original>
